<compile_context>
chip_gen: v5e
topology: v5e:2x2
jax: 0.10.0
libtpu: 0.0.40
codegen_flags: <defaults>
</compile_context>

<pallas_src>
import functools

import jax
import jax.numpy as jnp
from jax import lax
from jax.experimental import pallas as pl
from jax.experimental.pallas import tpu as pltpu


# ----------------------------------------------------------------------------
# Fused Conv3x3(pad=1) + 2x2 MaxPool + bias + ReLU kernel.
# One (image, row-half) per grid step; the inner loop walks groups of R pooled
# output rows.  The wrapper pre-builds a tap-expanded input whose W axis is
# permuted to [even cols | odd cols] so both pool directions are aligned slices.
# ----------------------------------------------------------------------------
def conv_relu_pool_kernel(x_ref, w_ref, b_ref, o_ref, *, W, R, h2_half):
    # x_ref : (1, Hx, W, K)  tap-expanded, W-permuted input, bf16
    #         Hx = H   for conv1 (kh,kw folded onto lanes, K = 9*Cin padded)
    #         Hx = H+2 for conv2/3 (kw on lanes, kernel walks the 3 kh taps)
    # w_ref : (T, K, Cout)   bf16 weight slabs (T = 1 or 3)
    # b_ref : (1, Cout)      f32
    # o_ref : (1, h2_half, W//2, Cout) bf16   (this core's half of the rows)
    taps = w_ref.shape[0]
    k_dim = w_ref.shape[1]
    cout = w_ref.shape[2]
    w2 = W // 2
    m_rows = 2 * R * W

    bias = b_ref[...]                        # hoisted out of the row-group loop
    half_off = pl.program_id(1) * h2_half    # pooled-row offset of this half

    @pl.loop(0, h2_half // R)
    def _(g):
        # First un-pooled input row of this group (global, multiple of 2R).
        r0 = pl.multiple_of(2 * (half_off + g * R), 2 * R)

        # One (T=1) or three (T=3) MXU matmuls accumulated into one f32 value.
        acc = None
        for kh in range(taps):
            lhs = x_ref[0, pl.ds(r0 + kh, 2 * R), :, :].reshape(m_rows, k_dim)
            part = jnp.dot(lhs, w_ref[kh], preferred_element_type=jnp.float32)
            acc = part if acc is None else acc + part       # (2RW, Cout) f32

        # 2x2 max-pool first, bias + ReLU after (commute: per-channel bias).
        a = acc.reshape(R, 2 * W, cout)
        hmax = jnp.maximum(a[:, :W, :], a[:, W:, :])        # H-direction pool
        # W axis is [even cols | odd cols] -> W pool = two aligned slices.
        pooled = jnp.maximum(hmax[:, :w2, :], hmax[:, w2:, :])
        out = jnp.maximum(pooled + bias, 0.0)
        o_ref[0, pl.ds(g * R, R), :, :] = out.astype(o_ref.dtype)


def conv_relu_pool(x_nhwc, w_slab, b_row):
    # x_nhwc: (N, H, W, Cin); w_slab: (T, K, Cout) bf16; b_row: (1, Cout) f32.
    n, h, w_dim, cin = x_nhwc.shape
    taps, k_dim, cout = w_slab.shape
    assert h % 4 == 0 and w_dim % 2 == 0
    h2, w2 = h // 2, w_dim // 2

    xb = x_nhwc.astype(jnp.bfloat16)
    if taps == 1:
        # Full 9-tap im2col on the lane axis (conv1): K = 9*Cin (zero-padded).
        xp = jnp.pad(xb, ((0, 0), (1, 1), (1, 1), (0, 0)))
        slabs = [xp[:, kh:kh + h, kw:kw + w_dim, :]
                 for kh in range(3) for kw in range(3)]
        x_t = jnp.concatenate(slabs, axis=-1)
        x_t = jnp.pad(x_t, ((0, 0), (0, 0), (0, 0), (0, k_dim - 9 * cin)))
        hx = h
    else:
        # kw-expansion only; the kernel walks the 3 kh taps over rows.
        cin_p = k_dim // 3
        xp = jnp.pad(xb, ((0, 0), (1, 1), (1, 1), (0, cin_p - cin)))
        x_t = jnp.concatenate(
            [xp[:, :, kw:kw + w_dim, :] for kw in range(3)], axis=-1)
        hx = h + 2

    # Permute W axis to [even cols | odd cols]: the in-kernel width pool becomes
    # two aligned sublane slices (no strided reads, no scratch round-trip).
    x_t = jnp.concatenate([x_t[:, :, 0::2, :], x_t[:, :, 1::2, :]], axis=2)

    # Split pooled rows across a second "parallel" grid axis (v7x megacore).
    h2_half = h2 // 2
    # Matmul M target: 512 for conv1/conv2, 256 for conv3 (acc vreg pressure).
    m_target = 256 if cout >= 128 else 512
    r = max(1, min(m_target // (2 * w_dim), h2_half))
    while h2_half % r:
        r -= 1

    kernel = functools.partial(conv_relu_pool_kernel,
                               W=w_dim, R=r, h2_half=h2_half)
    return pl.pallas_call(
        kernel,
        out_shape=jax.ShapeDtypeStruct((n, h2, w2, cout), jnp.bfloat16),
        grid_spec=pltpu.PrefetchScalarGridSpec(
            num_scalar_prefetch=0,
            grid=(n, 2),
            in_specs=[
                pl.BlockSpec((1, hx, w_dim, k_dim), lambda i, s: (i, 0, 0, 0)),
                pl.BlockSpec((taps, k_dim, cout), lambda i, s: (0, 0, 0)),
                pl.BlockSpec((1, cout), lambda i, s: (0, 0)),
            ],
            out_specs=pl.BlockSpec((1, h2_half, w2, cout),
                                   lambda i, s: (i, s, 0, 0)),
        ),
        compiler_params=pltpu.CompilerParams(
            dimension_semantics=("parallel", "parallel")),
    )(x_t, w_slab, b_row)


# ----------------------------------------------------------------------------
# Fused FC head: Linear(32768->256) + ReLU + (Dropout as identity) + Linear(256->nc)
# Tiled over the 32768-wide contraction (bf16 weight streaming, f32 accumulation).
# ----------------------------------------------------------------------------
def fc_kernel(x_ref, w1_ref, b1_ref, w2_ref, b2_ref, o_ref, acc_ref):
    k = pl.program_id(0)

    @pl.when(k == 0)
    def _():
        acc_ref[...] = jnp.zeros_like(acc_ref)

    acc_ref[...] += jnp.dot(x_ref[...], w1_ref[...],
                            preferred_element_type=jnp.float32)

    @pl.when(k == pl.num_programs(0) - 1)
    def _():
        hdn = jnp.maximum(acc_ref[...] + b1_ref[...], 0.0)
        # TODO(synk): nn.Dropout(0.3) is stochastic; inference-mode identity here.
        o_ref[...] = (jnp.dot(hdn, w2_ref[...],
                              preferred_element_type=jnp.float32)
                      + b2_ref[...]).astype(o_ref.dtype)


def fc_forward(x_flat, w1, b1, w2, b2, tk=8192):
    # x_flat: (N, K) bf16 (NHWC flatten); w1: (K, hid) bf16 pre-permuted;
    # b1: (1, hid) f32; w2: (hid, nc) f32; b2: (1, nc) f32.
    n, k_dim = x_flat.shape
    hid = w1.shape[1]
    nc = w2.shape[1]
    tk = min(tk, k_dim)
    while k_dim % tk:
        tk //= 2

    return pl.pallas_call(
        fc_kernel,
        out_shape=jax.ShapeDtypeStruct((n, nc), jnp.float32),
        grid_spec=pltpu.PrefetchScalarGridSpec(
            num_scalar_prefetch=0,
            grid=(k_dim // tk,),
            in_specs=[
                pl.BlockSpec((n, tk), lambda k: (0, k)),
                pl.BlockSpec((tk, hid), lambda k: (k, 0)),
                pl.BlockSpec((1, hid), lambda k: (0, 0)),
                pl.BlockSpec((hid, nc), lambda k: (0, 0)),
                pl.BlockSpec((1, nc), lambda k: (0, 0)),
            ],
            out_specs=pl.BlockSpec((n, nc), lambda k: (0, 0)),
            scratch_shapes=[pltpu.VMEM((n, hid), jnp.float32)],
        ),
        compiler_params=pltpu.CompilerParams(dimension_semantics=("arbitrary",)),
    )(x_flat, w1, b1, w2, b2)


# ----------------------------------------------------------------------------
# One-time weight preprocessing (call OUTSIDE jit; results are passed in).
# ----------------------------------------------------------------------------
def preprocess_params(p):
    def conv_slab_9tap(w):                 # conv1: (kh,kw,cin) folded onto lanes
        cout, cin = w.shape[0], w.shape[1]
        k = 9 * cin
        k_pad = ((k + 7) // 8) * 8
        wk = jnp.transpose(w, (2, 3, 1, 0)).reshape(k, cout)
        wk = jnp.pad(wk, ((0, k_pad - k), (0, 0)))
        return wk.reshape(1, k_pad, cout).astype(jnp.bfloat16)

    def conv_slab_3tap(w):                 # conv2/3: (kw,cin) on lanes, 3 kh slabs
        cout, cin = w.shape[0], w.shape[1]
        cin_p = ((cin + 7) // 8) * 8
        wk = jnp.transpose(w, (2, 3, 1, 0))                    # (KH, KW, Cin, Cout)
        wk = jnp.pad(wk, ((0, 0), (0, 0), (0, cin_p - cin), (0, 0)))
        return wk.reshape(3, 3 * cin_p, cout).astype(jnp.bfloat16)

    hid, kfc = p["fc1_w"].shape
    c3 = p["conv3_w"].shape[0]
    hw = kfc // c3
    h3 = int(round(hw ** 0.5))
    w3 = hw // h3
    # Permute fc1 columns from NCHW-flatten to NHWC-flatten order, pre-transpose.
    w1 = (p["fc1_w"].reshape(hid, c3, h3, w3)
          .transpose(2, 3, 1, 0).reshape(h3 * w3 * c3, hid).astype(jnp.bfloat16))

    return {
        "conv1_w": conv_slab_9tap(p["conv1_w"]),
        "conv1_b": p["conv1_b"].reshape(1, -1).astype(jnp.float32),
        "conv2_w": conv_slab_3tap(p["conv2_w"]),
        "conv2_b": p["conv2_b"].reshape(1, -1).astype(jnp.float32),
        "conv3_w": conv_slab_3tap(p["conv3_w"]),
        "conv3_b": p["conv3_b"].reshape(1, -1).astype(jnp.float32),
        "fc1_w": w1,
        "fc1_b": p["fc1_b"].reshape(1, -1).astype(jnp.float32),
        "fc2_w": jnp.transpose(p["fc2_w"]).astype(jnp.float32),
        "fc2_b": p["fc2_b"].reshape(1, -1).astype(jnp.float32),
    }


# ----------------------------------------------------------------------------
# Full forward pass (jitted; takes preprocessed params).
# ----------------------------------------------------------------------------
def fishcnn_forward(x_nchw, pp):
    x = jnp.transpose(x_nchw, (0, 2, 3, 1))                      # NCHW -> NHWC
    x = conv_relu_pool(x, pp["conv1_w"], pp["conv1_b"])          # (N, 64, 64, 32)
    x = conv_relu_pool(x, pp["conv2_w"], pp["conv2_b"])          # (N, 32, 32, 64)
    x = conv_relu_pool(x, pp["conv3_w"], pp["conv3_b"])          # (N, 16, 16, 128)
    # fc1 columns are pre-permuted to NHWC flatten order -> no transpose needed.
    x = x.reshape(x.shape[0], -1)                                # (N, 32768) bf16
    return fc_forward(x, pp["fc1_w"], pp["fc1_b"], pp["fc2_w"], pp["fc2_b"])


# ----------------------------------------------------------------------------
# Pure-JAX reference for validation.
# ----------------------------------------------------------------------------
def reference_forward(x_nchw, p):
    x = jnp.transpose(x_nchw, (0, 2, 3, 1)).astype(jnp.float32)
    for wkey, bkey in (("conv1_w", "conv1_b"), ("conv2_w", "conv2_b"),
                       ("conv3_w", "conv3_b")):
        w = jnp.transpose(p[wkey], (2, 3, 1, 0))  # HWIO
        x = lax.conv_general_dilated(
            x, w, window_strides=(1, 1), padding="SAME",
            dimension_numbers=("NHWC", "HWIO", "NHWC"),
            precision=lax.Precision.HIGHEST)
        x = jnp.maximum(x + p[bkey], 0.0)
        x = lax.reduce_window(x, -jnp.inf, lax.max,
                              (1, 2, 2, 1), (1, 2, 2, 1), "VALID")
    x = jnp.transpose(x, (0, 3, 1, 2)).reshape(x.shape[0], -1)
    h = jnp.maximum(
        jnp.dot(x, p["fc1_w"].T, precision=lax.Precision.HIGHEST) + p["fc1_b"], 0.0)
    return jnp.dot(h, p["fc2_w"].T, precision=lax.Precision.HIGHEST) + p["fc2_b"]


if __name__ == "__main__":
    num_classes = 10
    # Spatial 128 is implied by Linear(128 * 16 * 16, 256): 128 -> 64 -> 32 -> 16.
    N, C, H, W = 2, 3, 128, 128

    key = jax.random.PRNGKey(0)
    ks = jax.random.split(key, 11)
    s = 0.05
    params = {
        "conv1_w": jax.random.normal(ks[0], (32, 3, 3, 3), jnp.float32) * s,
        "conv1_b": jax.random.normal(ks[1], (32,), jnp.float32) * s,
        "conv2_w": jax.random.normal(ks[2], (64, 32, 3, 3), jnp.float32) * s,
        "conv2_b": jax.random.normal(ks[3], (64,), jnp.float32) * s,
        "conv3_w": jax.random.normal(ks[4], (128, 64, 3, 3), jnp.float32) * s,
        "conv3_b": jax.random.normal(ks[5], (128,), jnp.float32) * s,
        "fc1_w": jax.random.normal(ks[6], (256, 128 * 16 * 16), jnp.float32) * 0.01,
        "fc1_b": jax.random.normal(ks[7], (256,), jnp.float32) * 0.01,
        "fc2_w": jax.random.normal(ks[8], (num_classes, 256), jnp.float32) * 0.01,
        "fc2_b": jax.random.normal(ks[9], (num_classes,), jnp.float32) * 0.01,
    }
    x = jax.random.normal(ks[10], (N, C, H, W), jnp.float32)

    # Weight layout conversion / casts happen once, outside jit.
    prep = jax.tree_util.tree_map(jax.block_until_ready, preprocess_params(params))

    fwd = jax.jit(fishcnn_forward)
    out = jax.block_until_ready(fwd(x, prep))
    assert out.shape == (N, num_classes), out.shape

    ref = jax.block_until_ready(jax.jit(reference_forward)(x, params))
    max_diff = float(jnp.max(jnp.abs(out - ref)))
    scale_ref = 1.0 + float(jnp.max(jnp.abs(ref)))
    assert max_diff < 5e-2 * scale_ref, (max_diff, scale_ref)

    print("KERNEL_OK")
</pallas_src>

<mosaic_0001>
module attributes {stable_mosaic.version = 11 : i64} {
  func.func @conv_relu_pool_kernel(%arg0: i32, %arg1: i32, %arg2: memref<1x128x128x32xbf16, #tpu.memory_space<vmem>>, %arg3: memref<1x32x32xbf16, #tpu.memory_space<vmem>>, %arg4: memref<1x32xf32, #tpu.memory_space<vmem>>, %arg5: memref<1x32x64x32xbf16, #tpu.memory_space<vmem>>) attributes {dimension_semantics = [#tpu.dimension_semantics<parallel>, #tpu.dimension_semantics<parallel>], iteration_bounds = array<i64: 2, 2>, scalar_prefetch = 0 : i64, scratch_operands = 0 : i64, tpu.core_type = #tpu.core_type<tc>, window_params = [{transform_indices = @transform_0, window_bounds = array<i64: 1, 128, 128, 32>}, {pipeline_mode = #tpu.pipeline_mode<synchronous>, transform_indices = @transform_1, window_bounds = array<i64: 1, 32, 32>}, {pipeline_mode = #tpu.pipeline_mode<synchronous>, transform_indices = @transform_2, window_bounds = array<i64: 1, 32>}, {transform_indices = @transform_3, window_bounds = array<i64: 1, 32, 64, 32>}]} {
    %c0 = arith.constant 0 : index
    %c0_0 = arith.constant 0 : index
    %0 = vector.load %arg4[%c0, %c0_0] : memref<1x32xf32, #tpu.memory_space<vmem>>, vector<1x32xf32>
    %c32_i32 = arith.constant 32 : i32
    %1 = arith.muli %arg1, %c32_i32 : i32
    %c0_i32 = arith.constant 0 : i32
    %c16_i32 = arith.constant 16 : i32
    %2 = arith.addi %c0_i32, %c16_i32 : i32
    %c1_i32 = arith.constant 1 : i32
    scf.for %arg6 = %c0_i32 to %2 step %c1_i32  : i32 {
      %c1_i32_2 = arith.constant 1 : i32
      %3 = arith.muli %arg6, %c1_i32_2 : i32
      %c0_i32_3 = arith.constant 0 : i32
      %4 = arith.addi %c0_i32_3, %3 : i32
      %c2_i32 = arith.constant 2 : i32
      %5 = arith.muli %4, %c2_i32 : i32
      %6 = arith.addi %1, %5 : i32
      %c2_i32_4 = arith.constant 2 : i32
      %7 = arith.muli %c2_i32_4, %6 : i32
      %8 = tpu.assume_multiple %7, 4 : i32
      %c0_i32_5 = arith.constant 0 : i32
      %9 = arith.addi %8, %c0_i32_5 : i32
      %c0_6 = arith.constant 0 : index
      %10 = arith.index_cast %9 : i32 to index
      %c0_7 = arith.constant 0 : index
      %c0_8 = arith.constant 0 : index
      %11 = vector.load %arg2[%c0_6, %10, %c0_7, %c0_8] : memref<1x128x128x32xbf16, #tpu.memory_space<vmem>>, vector<1x4x128x32xbf16>
      %12 = vector.shape_cast %11 : vector<1x4x128x32xbf16> to vector<4x128x32xbf16>
      %13 = vector.shape_cast %12 : vector<4x128x32xbf16> to vector<512x32xbf16>
      %c0_9 = arith.constant 0 : index
      %c0_10 = arith.constant 0 : index
      %c0_11 = arith.constant 0 : index
      %14 = vector.load %arg3[%c0_9, %c0_10, %c0_11] : memref<1x32x32xbf16, #tpu.memory_space<vmem>>, vector<1x32x32xbf16>
      %15 = vector.shape_cast %14 : vector<1x32x32xbf16> to vector<32x32xbf16>
      %cst = arith.constant dense<0.000000e+00> : vector<512x32xf32>
      %16 = tpu.matmul %13, %15, %cst {dimension_numbers = #tpu.dot_dimension_numbers<[1], [0], [0], [1], [0, 0, 1, 1], [], []>} : vector<512x32xbf16>, vector<32x32xbf16>, vector<512x32xf32> -> vector<512x32xf32>
      %17 = vector.shape_cast %16 : vector<512x32xf32> to vector<2x256x32xf32>
      %18 = vector.extract_strided_slice %17 {offsets = [0, 0, 0], sizes = [2, 128, 32], strides = [1, 1, 1]} : vector<2x256x32xf32> to vector<2x128x32xf32>
      %19 = vector.extract_strided_slice %17 {offsets = [0, 128, 0], sizes = [2, 128, 32], strides = [1, 1, 1]} : vector<2x256x32xf32> to vector<2x128x32xf32>
      %20 = arith.maximumf %18, %19 : vector<2x128x32xf32>
      %21 = vector.extract_strided_slice %20 {offsets = [0, 0, 0], sizes = [2, 64, 32], strides = [1, 1, 1]} : vector<2x128x32xf32> to vector<2x64x32xf32>
      %22 = vector.extract_strided_slice %20 {offsets = [0, 64, 0], sizes = [2, 64, 32], strides = [1, 1, 1]} : vector<2x128x32xf32> to vector<2x64x32xf32>
      %23 = arith.maximumf %21, %22 : vector<2x64x32xf32>
      %24 = vector.shape_cast %0 : vector<1x32xf32> to vector<1x1x32xf32>
      %25 = vector.broadcast %24 : vector<1x1x32xf32> to vector<2x64x32xf32>
      %26 = arith.addf %23, %25 : vector<2x64x32xf32>
      %cst_12 = arith.constant 0.000000e+00 : f32
      %27 = vector.broadcast %cst_12 : f32 to vector<2x64x32xf32>
      %28 = arith.maximumf %26, %27 : vector<2x64x32xf32>
      %29 = arith.truncf %28 : vector<2x64x32xf32> to vector<2x64x32xbf16>
      %c2_i32_13 = arith.constant 2 : i32
      %30 = arith.muli %4, %c2_i32_13 : i32
      %c0_14 = arith.constant 0 : index
      %31 = arith.index_cast %30 : i32 to index
      %c0_15 = arith.constant 0 : index
      %c0_16 = arith.constant 0 : index
      %32 = vector.load %arg5[%c0_14, %31, %c0_15, %c0_16] : memref<1x32x64x32xbf16, #tpu.memory_space<vmem>>, vector<1x2x64x32xbf16>
      %33 = vector.shape_cast %32 : vector<1x2x64x32xbf16> to vector<2x64x32xbf16>
      %34 = vector.shape_cast %29 : vector<2x64x32xbf16> to vector<1x2x64x32xbf16>
      tpu.vector_store %arg5[%c0_14, %31, %c0_15, %c0_16], %34 {strides = array<i32>} : memref<1x32x64x32xbf16, #tpu.memory_space<vmem>>, vector<1x2x64x32xbf16>,
    }
    %c16_i32_1 = arith.constant 16 : i32
    return
  }
  func.func @transform_0(%arg0: i32, %arg1: i32) -> (i32, i32, i32, i32) {
    %c0_i32 = arith.constant 0 : i32
    %c0_i32_0 = arith.constant 0 : i32
    %c0_i32_1 = arith.constant 0 : i32
    %c0_i32_2 = arith.constant 0 : i32
    return %arg0, %c0_i32, %c0_i32_0, %c0_i32_1 : i32, i32, i32, i32
  }
  func.func @transform_1(%arg0: i32, %arg1: i32) -> (i32, i32, i32) {
    %c0_i32 = arith.constant 0 : i32
    %c0_i32_0 = arith.constant 0 : i32
    %c0_i32_1 = arith.constant 0 : i32
    %c0_i32_2 = arith.constant 0 : i32
    return %c0_i32, %c0_i32_0, %c0_i32_1 : i32, i32, i32
  }
  func.func @transform_2(%arg0: i32, %arg1: i32) -> (i32, i32) {
    %c0_i32 = arith.constant 0 : i32
    %c0_i32_0 = arith.constant 0 : i32
    %c0_i32_1 = arith.constant 0 : i32
    return %c0_i32, %c0_i32_0 : i32, i32
  }
  func.func @transform_3(%arg0: i32, %arg1: i32) -> (i32, i32, i32, i32) {
    %c0_i32 = arith.constant 0 : i32
    %c0_i32_0 = arith.constant 0 : i32
    %c0_i32_1 = arith.constant 0 : i32
    return %arg0, %arg1, %c0_i32, %c0_i32_0 : i32, i32, i32, i32
  }
}

module attributes {stable_mosaic.version = 11 : i64} {
  func.func @conv_relu_pool_kernel(%arg0: i32, %arg1: i32, %arg2: memref<1x66x64x96xbf16, #tpu.memory_space<vmem>>, %arg3: memref<3x96x64xbf16, #tpu.memory_space<vmem>>, %arg4: memref<1x64xf32, #tpu.memory_space<vmem>>, %arg5: memref<1x16x32x64xbf16, #tpu.memory_space<vmem>>) attributes {dimension_semantics = [#tpu.dimension_semantics<parallel>, #tpu.dimension_semantics<parallel>], iteration_bounds = array<i64: 2, 2>, scalar_prefetch = 0 : i64, scratch_operands = 0 : i64, tpu.core_type = #tpu.core_type<tc>, window_params = [{transform_indices = @transform_0, window_bounds = array<i64: 1, 66, 64, 96>}, {pipeline_mode = #tpu.pipeline_mode<synchronous>, transform_indices = @transform_1, window_bounds = array<i64: 3, 96, 64>}, {pipeline_mode = #tpu.pipeline_mode<synchronous>, transform_indices = @transform_2, window_bounds = array<i64: 1, 64>}, {transform_indices = @transform_3, window_bounds = array<i64: 1, 16, 32, 64>}]} {
    %c0 = arith.constant 0 : index
    %c0_0 = arith.constant 0 : index
    %0 = vector.load %arg4[%c0, %c0_0] : memref<1x64xf32, #tpu.memory_space<vmem>>, vector<1x64xf32>
    %c16_i32 = arith.constant 16 : i32
    %1 = arith.muli %arg1, %c16_i32 : i32
    %c0_i32 = arith.constant 0 : i32
    %c4_i32 = arith.constant 4 : i32
    %2 = arith.addi %c0_i32, %c4_i32 : i32
    %c1_i32 = arith.constant 1 : i32
    scf.for %arg6 = %c0_i32 to %2 step %c1_i32  : i32 {
      %c1_i32_2 = arith.constant 1 : i32
      %3 = arith.muli %arg6, %c1_i32_2 : i32
      %c0_i32_3 = arith.constant 0 : i32
      %4 = arith.addi %c0_i32_3, %3 : i32
      %c4_i32_4 = arith.constant 4 : i32
      %5 = arith.muli %4, %c4_i32_4 : i32
      %6 = arith.addi %1, %5 : i32
      %c2_i32 = arith.constant 2 : i32
      %7 = arith.muli %c2_i32, %6 : i32
      %8 = tpu.assume_multiple %7, 8 : i32
      %c0_i32_5 = arith.constant 0 : i32
      %9 = arith.addi %8, %c0_i32_5 : i32
      %c0_6 = arith.constant 0 : index
      %10 = arith.index_cast %9 : i32 to index
      %c0_7 = arith.constant 0 : index
      %c0_8 = arith.constant 0 : index
      %11 = vector.load %arg2[%c0_6, %10, %c0_7, %c0_8] : memref<1x66x64x96xbf16, #tpu.memory_space<vmem>>, vector<1x8x64x96xbf16>
      %12 = vector.shape_cast %11 : vector<1x8x64x96xbf16> to vector<8x64x96xbf16>
      %13 = vector.shape_cast %12 : vector<8x64x96xbf16> to vector<512x96xbf16>
      %c0_9 = arith.constant 0 : index
      %c0_10 = arith.constant 0 : index
      %c0_11 = arith.constant 0 : index
      %14 = vector.load %arg3[%c0_9, %c0_10, %c0_11] : memref<3x96x64xbf16, #tpu.memory_space<vmem>>, vector<1x96x64xbf16>
      %15 = vector.shape_cast %14 : vector<1x96x64xbf16> to vector<96x64xbf16>
      %cst = arith.constant dense<0.000000e+00> : vector<512x64xf32>
      %16 = tpu.matmul %13, %15, %cst {dimension_numbers = #tpu.dot_dimension_numbers<[1], [0], [0], [1], [0, 0, 1, 1], [], []>} : vector<512x96xbf16>, vector<96x64xbf16>, vector<512x64xf32> -> vector<512x64xf32>
      %c1_i32_12 = arith.constant 1 : i32
      %17 = arith.addi %8, %c1_i32_12 : i32
      %c0_13 = arith.constant 0 : index
      %18 = arith.index_cast %17 : i32 to index
      %c0_14 = arith.constant 0 : index
      %c0_15 = arith.constant 0 : index
      %19 = vector.load %arg2[%c0_13, %18, %c0_14, %c0_15] : memref<1x66x64x96xbf16, #tpu.memory_space<vmem>>, vector<1x8x64x96xbf16>
      %20 = vector.shape_cast %19 : vector<1x8x64x96xbf16> to vector<8x64x96xbf16>
      %21 = vector.shape_cast %20 : vector<8x64x96xbf16> to vector<512x96xbf16>
      %c1 = arith.constant 1 : index
      %c0_16 = arith.constant 0 : index
      %c0_17 = arith.constant 0 : index
      %22 = vector.load %arg3[%c1, %c0_16, %c0_17] : memref<3x96x64xbf16, #tpu.memory_space<vmem>>, vector<1x96x64xbf16>
      %23 = vector.shape_cast %22 : vector<1x96x64xbf16> to vector<96x64xbf16>
      %cst_18 = arith.constant dense<0.000000e+00> : vector<512x64xf32>
      %24 = tpu.matmul %21, %23, %cst_18 {dimension_numbers = #tpu.dot_dimension_numbers<[1], [0], [0], [1], [0, 0, 1, 1], [], []>} : vector<512x96xbf16>, vector<96x64xbf16>, vector<512x64xf32> -> vector<512x64xf32>
      %25 = arith.addf %16, %24 : vector<512x64xf32>
      %c2_i32_19 = arith.constant 2 : i32
      %26 = arith.addi %8, %c2_i32_19 : i32
      %c0_20 = arith.constant 0 : index
      %27 = arith.index_cast %26 : i32 to index
      %c0_21 = arith.constant 0 : index
      %c0_22 = arith.constant 0 : index
      %28 = vector.load %arg2[%c0_20, %27, %c0_21, %c0_22] : memref<1x66x64x96xbf16, #tpu.memory_space<vmem>>, vector<1x8x64x96xbf16>
      %29 = vector.shape_cast %28 : vector<1x8x64x96xbf16> to vector<8x64x96xbf16>
      %30 = vector.shape_cast %29 : vector<8x64x96xbf16> to vector<512x96xbf16>
      %c2 = arith.constant 2 : index
      %c0_23 = arith.constant 0 : index
      %c0_24 = arith.constant 0 : index
      %31 = vector.load %arg3[%c2, %c0_23, %c0_24] : memref<3x96x64xbf16, #tpu.memory_space<vmem>>, vector<1x96x64xbf16>
      %32 = vector.shape_cast %31 : vector<1x96x64xbf16> to vector<96x64xbf16>
      %cst_25 = arith.constant dense<0.000000e+00> : vector<512x64xf32>
      %33 = tpu.matmul %30, %32, %cst_25 {dimension_numbers = #tpu.dot_dimension_numbers<[1], [0], [0], [1], [0, 0, 1, 1], [], []>} : vector<512x96xbf16>, vector<96x64xbf16>, vector<512x64xf32> -> vector<512x64xf32>
      %34 = arith.addf %25, %33 : vector<512x64xf32>
      %35 = vector.shape_cast %34 : vector<512x64xf32> to vector<4x128x64xf32>
      %36 = vector.extract_strided_slice %35 {offsets = [0, 0, 0], sizes = [4, 64, 64], strides = [1, 1, 1]} : vector<4x128x64xf32> to vector<4x64x64xf32>
      %37 = vector.extract_strided_slice %35 {offsets = [0, 64, 0], sizes = [4, 64, 64], strides = [1, 1, 1]} : vector<4x128x64xf32> to vector<4x64x64xf32>
      %38 = arith.maximumf %36, %37 : vector<4x64x64xf32>
      %39 = vector.extract_strided_slice %38 {offsets = [0, 0, 0], sizes = [4, 32, 64], strides = [1, 1, 1]} : vector<4x64x64xf32> to vector<4x32x64xf32>
      %40 = vector.extract_strided_slice %38 {offsets = [0, 32, 0], sizes = [4, 32, 64], strides = [1, 1, 1]} : vector<4x64x64xf32> to vector<4x32x64xf32>
      %41 = arith.maximumf %39, %40 : vector<4x32x64xf32>
      %42 = vector.shape_cast %0 : vector<1x64xf32> to vector<1x1x64xf32>
      %43 = vector.broadcast %42 : vector<1x1x64xf32> to vector<4x32x64xf32>
      %44 = arith.addf %41, %43 : vector<4x32x64xf32>
      %cst_26 = arith.constant 0.000000e+00 : f32
      %45 = vector.broadcast %cst_26 : f32 to vector<4x32x64xf32>
      %46 = arith.maximumf %44, %45 : vector<4x32x64xf32>
      %47 = arith.truncf %46 : vector<4x32x64xf32> to vector<4x32x64xbf16>
      %c4_i32_27 = arith.constant 4 : i32
      %48 = arith.muli %4, %c4_i32_27 : i32
      %c0_28 = arith.constant 0 : index
      %49 = arith.index_cast %48 : i32 to index
      %c0_29 = arith.constant 0 : index
      %c0_30 = arith.constant 0 : index
      %50 = vector.load %arg5[%c0_28, %49, %c0_29, %c0_30] : memref<1x16x32x64xbf16, #tpu.memory_space<vmem>>, vector<1x4x32x64xbf16>
      %51 = vector.shape_cast %50 : vector<1x4x32x64xbf16> to vector<4x32x64xbf16>
      %52 = vector.shape_cast %47 : vector<4x32x64xbf16> to vector<1x4x32x64xbf16>
      tpu.vector_store %arg5[%c0_28, %49, %c0_29, %c0_30], %52 {strides = array<i32>} : memref<1x16x32x64xbf16, #tpu.memory_space<vmem>>, vector<1x4x32x64xbf16>,
    }
    %c4_i32_1 = arith.constant 4 : i32
    return
  }
  func.func @transform_0(%arg0: i32, %arg1: i32) -> (i32, i32, i32, i32) {
    %c0_i32 = arith.constant 0 : i32
    %c0_i32_0 = arith.constant 0 : i32
    %c0_i32_1 = arith.constant 0 : i32
    %c0_i32_2 = arith.constant 0 : i32
    return %arg0, %c0_i32, %c0_i32_0, %c0_i32_1 : i32, i32, i32, i32
  }
  func.func @transform_1(%arg0: i32, %arg1: i32) -> (i32, i32, i32) {
    %c0_i32 = arith.constant 0 : i32
    %c0_i32_0 = arith.constant 0 : i32
    %c0_i32_1 = arith.constant 0 : i32
    %c0_i32_2 = arith.constant 0 : i32
    return %c0_i32, %c0_i32_0, %c0_i32_1 : i32, i32, i32
  }
  func.func @transform_2(%arg0: i32, %arg1: i32) -> (i32, i32) {
    %c0_i32 = arith.constant 0 : i32
    %c0_i32_0 = arith.constant 0 : i32
    %c0_i32_1 = arith.constant 0 : i32
    return %c0_i32, %c0_i32_0 : i32, i32
  }
  func.func @transform_3(%arg0: i32, %arg1: i32) -> (i32, i32, i32, i32) {
    %c0_i32 = arith.constant 0 : i32
    %c0_i32_0 = arith.constant 0 : i32
    %c0_i32_1 = arith.constant 0 : i32
    return %arg0, %arg1, %c0_i32, %c0_i32_0 : i32, i32, i32, i32
  }
}

module attributes {stable_mosaic.version = 11 : i64} {
  func.func @conv_relu_pool_kernel(%arg0: i32, %arg1: i32, %arg2: memref<1x34x32x192xbf16, #tpu.memory_space<vmem>>, %arg3: memref<3x192x128xbf16, #tpu.memory_space<vmem>>, %arg4: memref<1x128xf32, #tpu.memory_space<vmem>>, %arg5: memref<1x8x16x128xbf16, #tpu.memory_space<vmem>>) attributes {dimension_semantics = [#tpu.dimension_semantics<parallel>, #tpu.dimension_semantics<parallel>], iteration_bounds = array<i64: 2, 2>, scalar_prefetch = 0 : i64, scratch_operands = 0 : i64, tpu.core_type = #tpu.core_type<tc>, window_params = [{transform_indices = @transform_0, window_bounds = array<i64: 1, 34, 32, 192>}, {pipeline_mode = #tpu.pipeline_mode<synchronous>, transform_indices = @transform_1, window_bounds = array<i64: 3, 192, 128>}, {pipeline_mode = #tpu.pipeline_mode<synchronous>, transform_indices = @transform_2, window_bounds = array<i64: 1, 128>}, {transform_indices = @transform_3, window_bounds = array<i64: 1, 8, 16, 128>}]} {
    %c0 = arith.constant 0 : index
    %c0_0 = arith.constant 0 : index
    %0 = vector.load %arg4[%c0, %c0_0] : memref<1x128xf32, #tpu.memory_space<vmem>>, vector<1x128xf32>
    %c8_i32 = arith.constant 8 : i32
    %1 = arith.muli %arg1, %c8_i32 : i32
    %c0_i32 = arith.constant 0 : i32
    %c2_i32 = arith.constant 2 : i32
    %2 = arith.addi %c0_i32, %c2_i32 : i32
    %c1_i32 = arith.constant 1 : i32
    scf.for %arg6 = %c0_i32 to %2 step %c1_i32  : i32 {
      %c1_i32_2 = arith.constant 1 : i32
      %3 = arith.muli %arg6, %c1_i32_2 : i32
      %c0_i32_3 = arith.constant 0 : i32
      %4 = arith.addi %c0_i32_3, %3 : i32
      %c4_i32 = arith.constant 4 : i32
      %5 = arith.muli %4, %c4_i32 : i32
      %6 = arith.addi %1, %5 : i32
      %c2_i32_4 = arith.constant 2 : i32
      %7 = arith.muli %c2_i32_4, %6 : i32
      %8 = tpu.assume_multiple %7, 8 : i32
      %c0_i32_5 = arith.constant 0 : i32
      %9 = arith.addi %8, %c0_i32_5 : i32
      %c0_6 = arith.constant 0 : index
      %10 = arith.index_cast %9 : i32 to index
      %c0_7 = arith.constant 0 : index
      %c0_8 = arith.constant 0 : index
      %11 = vector.load %arg2[%c0_6, %10, %c0_7, %c0_8] : memref<1x34x32x192xbf16, #tpu.memory_space<vmem>>, vector<1x8x32x192xbf16>
      %12 = vector.shape_cast %11 : vector<1x8x32x192xbf16> to vector<8x32x192xbf16>
      %13 = vector.shape_cast %12 : vector<8x32x192xbf16> to vector<256x192xbf16>
      %c0_9 = arith.constant 0 : index
      %c0_10 = arith.constant 0 : index
      %c0_11 = arith.constant 0 : index
      %14 = vector.load %arg3[%c0_9, %c0_10, %c0_11] : memref<3x192x128xbf16, #tpu.memory_space<vmem>>, vector<1x192x128xbf16>
      %15 = vector.shape_cast %14 : vector<1x192x128xbf16> to vector<192x128xbf16>
      %cst = arith.constant dense<0.000000e+00> : vector<256x128xf32>
      %16 = tpu.matmul %13, %15, %cst {dimension_numbers = #tpu.dot_dimension_numbers<[1], [0], [0], [1], [0, 0, 1, 1], [], []>} : vector<256x192xbf16>, vector<192x128xbf16>, vector<256x128xf32> -> vector<256x128xf32>
      %c1_i32_12 = arith.constant 1 : i32
      %17 = arith.addi %8, %c1_i32_12 : i32
      %c0_13 = arith.constant 0 : index
      %18 = arith.index_cast %17 : i32 to index
      %c0_14 = arith.constant 0 : index
      %c0_15 = arith.constant 0 : index
      %19 = vector.load %arg2[%c0_13, %18, %c0_14, %c0_15] : memref<1x34x32x192xbf16, #tpu.memory_space<vmem>>, vector<1x8x32x192xbf16>
      %20 = vector.shape_cast %19 : vector<1x8x32x192xbf16> to vector<8x32x192xbf16>
      %21 = vector.shape_cast %20 : vector<8x32x192xbf16> to vector<256x192xbf16>
      %c1 = arith.constant 1 : index
      %c0_16 = arith.constant 0 : index
      %c0_17 = arith.constant 0 : index
      %22 = vector.load %arg3[%c1, %c0_16, %c0_17] : memref<3x192x128xbf16, #tpu.memory_space<vmem>>, vector<1x192x128xbf16>
      %23 = vector.shape_cast %22 : vector<1x192x128xbf16> to vector<192x128xbf16>
      %cst_18 = arith.constant dense<0.000000e+00> : vector<256x128xf32>
      %24 = tpu.matmul %21, %23, %cst_18 {dimension_numbers = #tpu.dot_dimension_numbers<[1], [0], [0], [1], [0, 0, 1, 1], [], []>} : vector<256x192xbf16>, vector<192x128xbf16>, vector<256x128xf32> -> vector<256x128xf32>
      %25 = arith.addf %16, %24 : vector<256x128xf32>
      %c2_i32_19 = arith.constant 2 : i32
      %26 = arith.addi %8, %c2_i32_19 : i32
      %c0_20 = arith.constant 0 : index
      %27 = arith.index_cast %26 : i32 to index
      %c0_21 = arith.constant 0 : index
      %c0_22 = arith.constant 0 : index
      %28 = vector.load %arg2[%c0_20, %27, %c0_21, %c0_22] : memref<1x34x32x192xbf16, #tpu.memory_space<vmem>>, vector<1x8x32x192xbf16>
      %29 = vector.shape_cast %28 : vector<1x8x32x192xbf16> to vector<8x32x192xbf16>
      %30 = vector.shape_cast %29 : vector<8x32x192xbf16> to vector<256x192xbf16>
      %c2 = arith.constant 2 : index
      %c0_23 = arith.constant 0 : index
      %c0_24 = arith.constant 0 : index
      %31 = vector.load %arg3[%c2, %c0_23, %c0_24] : memref<3x192x128xbf16, #tpu.memory_space<vmem>>, vector<1x192x128xbf16>
      %32 = vector.shape_cast %31 : vector<1x192x128xbf16> to vector<192x128xbf16>
      %cst_25 = arith.constant dense<0.000000e+00> : vector<256x128xf32>
      %33 = tpu.matmul %30, %32, %cst_25 {dimension_numbers = #tpu.dot_dimension_numbers<[1], [0], [0], [1], [0, 0, 1, 1], [], []>} : vector<256x192xbf16>, vector<192x128xbf16>, vector<256x128xf32> -> vector<256x128xf32>
      %34 = arith.addf %25, %33 : vector<256x128xf32>
      %35 = vector.shape_cast %34 : vector<256x128xf32> to vector<4x64x128xf32>
      %36 = vector.extract_strided_slice %35 {offsets = [0, 0, 0], sizes = [4, 32, 128], strides = [1, 1, 1]} : vector<4x64x128xf32> to vector<4x32x128xf32>
      %37 = vector.extract_strided_slice %35 {offsets = [0, 32, 0], sizes = [4, 32, 128], strides = [1, 1, 1]} : vector<4x64x128xf32> to vector<4x32x128xf32>
      %38 = arith.maximumf %36, %37 : vector<4x32x128xf32>
      %39 = vector.extract_strided_slice %38 {offsets = [0, 0, 0], sizes = [4, 16, 128], strides = [1, 1, 1]} : vector<4x32x128xf32> to vector<4x16x128xf32>
      %40 = vector.extract_strided_slice %38 {offsets = [0, 16, 0], sizes = [4, 16, 128], strides = [1, 1, 1]} : vector<4x32x128xf32> to vector<4x16x128xf32>
      %41 = arith.maximumf %39, %40 : vector<4x16x128xf32>
      %42 = vector.shape_cast %0 : vector<1x128xf32> to vector<1x1x128xf32>
      %43 = vector.broadcast %42 : vector<1x1x128xf32> to vector<4x16x128xf32>
      %44 = arith.addf %41, %43 : vector<4x16x128xf32>
      %cst_26 = arith.constant 0.000000e+00 : f32
      %45 = vector.broadcast %cst_26 : f32 to vector<4x16x128xf32>
      %46 = arith.maximumf %44, %45 : vector<4x16x128xf32>
      %47 = arith.truncf %46 : vector<4x16x128xf32> to vector<4x16x128xbf16>
      %c4_i32_27 = arith.constant 4 : i32
      %48 = arith.muli %4, %c4_i32_27 : i32
      %c0_28 = arith.constant 0 : index
      %49 = arith.index_cast %48 : i32 to index
      %c0_29 = arith.constant 0 : index
      %c0_30 = arith.constant 0 : index
      %50 = vector.load %arg5[%c0_28, %49, %c0_29, %c0_30] : memref<1x8x16x128xbf16, #tpu.memory_space<vmem>>, vector<1x4x16x128xbf16>
      %51 = vector.shape_cast %50 : vector<1x4x16x128xbf16> to vector<4x16x128xbf16>
      %52 = vector.shape_cast %47 : vector<4x16x128xbf16> to vector<1x4x16x128xbf16>
      tpu.vector_store %arg5[%c0_28, %49, %c0_29, %c0_30], %52 {strides = array<i32>} : memref<1x8x16x128xbf16, #tpu.memory_space<vmem>>, vector<1x4x16x128xbf16>,
    }
    %c2_i32_1 = arith.constant 2 : i32
    return
  }
  func.func @transform_0(%arg0: i32, %arg1: i32) -> (i32, i32, i32, i32) {
    %c0_i32 = arith.constant 0 : i32
    %c0_i32_0 = arith.constant 0 : i32
    %c0_i32_1 = arith.constant 0 : i32
    %c0_i32_2 = arith.constant 0 : i32
    return %arg0, %c0_i32, %c0_i32_0, %c0_i32_1 : i32, i32, i32, i32
  }
  func.func @transform_1(%arg0: i32, %arg1: i32) -> (i32, i32, i32) {
    %c0_i32 = arith.constant 0 : i32
    %c0_i32_0 = arith.constant 0 : i32
    %c0_i32_1 = arith.constant 0 : i32
    %c0_i32_2 = arith.constant 0 : i32
    return %c0_i32, %c0_i32_0, %c0_i32_1 : i32, i32, i32
  }
  func.func @transform_2(%arg0: i32, %arg1: i32) -> (i32, i32) {
    %c0_i32 = arith.constant 0 : i32
    %c0_i32_0 = arith.constant 0 : i32
    %c0_i32_1 = arith.constant 0 : i32
    return %c0_i32, %c0_i32_0 : i32, i32
  }
  func.func @transform_3(%arg0: i32, %arg1: i32) -> (i32, i32, i32, i32) {
    %c0_i32 = arith.constant 0 : i32
    %c0_i32_0 = arith.constant 0 : i32
    %c0_i32_1 = arith.constant 0 : i32
    return %arg0, %arg1, %c0_i32, %c0_i32_0 : i32, i32, i32, i32
  }
}

module attributes {stable_mosaic.version = 11 : i64} {
  func.func @fc_kernel(%arg0: i32, %arg1: memref<2x8192xbf16, #tpu.memory_space<vmem>>, %arg2: memref<8192x256xbf16, #tpu.memory_space<vmem>>, %arg3: memref<1x256xf32, #tpu.memory_space<vmem>>, %arg4: memref<256x10xf32, #tpu.memory_space<vmem>>, %arg5: memref<1x10xf32, #tpu.memory_space<vmem>>, %arg6: memref<2x10xf32, #tpu.memory_space<vmem>>, %arg7: memref<2x256xf32, #tpu.memory_space<vmem>>) attributes {dimension_semantics = [#tpu.dimension_semantics<arbitrary>], iteration_bounds = array<i64: 4>, scalar_prefetch = 0 : i64, scratch_operands = 1 : i64, tpu.core_type = #tpu.core_type<tc>, window_params = [{transform_indices = @transform_0, window_bounds = array<i64: 2, 8192>}, {transform_indices = @transform_1, window_bounds = array<i64: 8192, 256>}, {pipeline_mode = #tpu.pipeline_mode<synchronous>, transform_indices = @transform_2, window_bounds = array<i64: 1, 256>}, {pipeline_mode = #tpu.pipeline_mode<synchronous>, transform_indices = @transform_3, window_bounds = array<i64: 256, 10>}, {pipeline_mode = #tpu.pipeline_mode<synchronous>, transform_indices = @transform_4, window_bounds = array<i64: 1, 10>}, {pipeline_mode = #tpu.pipeline_mode<synchronous>, transform_indices = @transform_5, window_bounds = array<i64: 2, 10>}]} {
    %c0_i32 = arith.constant 0 : i32
    %0 = arith.cmpi eq, %arg0, %c0_i32 : i32
    %1 = arith.extui %0 : i1 to i32
    %c0_i32_0 = arith.constant 0 : i32
    %2 = arith.cmpi ne, %1, %c0_i32_0 : i32
    scf.if %2 {
      %cst_9 = arith.constant 0.000000e+00 : f32
      %12 = vector.broadcast %cst_9 : f32 to vector<2x256xf32>
      %c0_10 = arith.constant 0 : index
      %c0_11 = arith.constant 0 : index
      %13 = vector.load %arg7[%c0_10, %c0_11] : memref<2x256xf32, #tpu.memory_space<vmem>>, vector<2x256xf32>
      tpu.vector_store %arg7[%c0_10, %c0_11], %12 {strides = array<i32>} : memref<2x256xf32, #tpu.memory_space<vmem>>, vector<2x256xf32>,
    } else {
    }
    %c0 = arith.constant 0 : index
    %c0_1 = arith.constant 0 : index
    %3 = vector.load %arg7[%c0, %c0_1] : memref<2x256xf32, #tpu.memory_space<vmem>>, vector<2x256xf32>
    %c0_2 = arith.constant 0 : index
    %c0_3 = arith.constant 0 : index
    %4 = vector.load %arg1[%c0_2, %c0_3] : memref<2x8192xbf16, #tpu.memory_space<vmem>>, vector<2x8192xbf16>
    %c0_4 = arith.constant 0 : index
    %c0_5 = arith.constant 0 : index
    %5 = vector.load %arg2[%c0_4, %c0_5] : memref<8192x256xbf16, #tpu.memory_space<vmem>>, vector<8192x256xbf16>
    %cst = arith.constant dense<0.000000e+00> : vector<2x256xf32>
    %6 = tpu.matmul %4, %5, %cst {dimension_numbers = #tpu.dot_dimension_numbers<[1], [0], [0], [1], [0, 0, 1, 1], [], []>} : vector<2x8192xbf16>, vector<8192x256xbf16>, vector<2x256xf32> -> vector<2x256xf32>
    %7 = arith.addf %3, %6 : vector<2x256xf32>
    %c0_6 = arith.constant 0 : index
    %c0_7 = arith.constant 0 : index
    %8 = vector.load %arg7[%c0_6, %c0_7] : memref<2x256xf32, #tpu.memory_space<vmem>>, vector<2x256xf32>
    tpu.vector_store %arg7[%c0_6, %c0_7], %7 {strides = array<i32>} : memref<2x256xf32, #tpu.memory_space<vmem>>, vector<2x256xf32>,
    %c3_i32 = arith.constant 3 : i32
    %9 = arith.cmpi eq, %arg0, %c3_i32 : i32
    %10 = arith.extui %9 : i1 to i32
    %c0_i32_8 = arith.constant 0 : i32
    %11 = arith.cmpi ne, %10, %c0_i32_8 : i32
    scf.if %11 {
      %c0_9 = arith.constant 0 : index
      %c0_10 = arith.constant 0 : index
      %12 = vector.load %arg7[%c0_9, %c0_10] : memref<2x256xf32, #tpu.memory_space<vmem>>, vector<2x256xf32>
      %c0_11 = arith.constant 0 : index
      %c0_12 = arith.constant 0 : index
      %13 = vector.load %arg3[%c0_11, %c0_12] : memref<1x256xf32, #tpu.memory_space<vmem>>, vector<1x256xf32>
      %14 = vector.broadcast %13 : vector<1x256xf32> to vector<2x256xf32>
      %15 = arith.addf %12, %14 : vector<2x256xf32>
      %cst_13 = arith.constant 0.000000e+00 : f32
      %16 = vector.broadcast %cst_13 : f32 to vector<2x256xf32>
      %17 = arith.maximumf %15, %16 : vector<2x256xf32>
      %c0_14 = arith.constant 0 : index
      %c0_15 = arith.constant 0 : index
      %18 = vector.load %arg4[%c0_14, %c0_15] : memref<256x10xf32, #tpu.memory_space<vmem>>, vector<256x10xf32>
      %cst_16 = arith.constant dense<0.000000e+00> : vector<2x10xf32>
      %19 = tpu.matmul %17, %18, %cst_16 {dimension_numbers = #tpu.dot_dimension_numbers<[1], [0], [0], [1], [0, 0, 1, 1], [], []>} : vector<2x256xf32>, vector<256x10xf32>, vector<2x10xf32> -> vector<2x10xf32>
      %c0_17 = arith.constant 0 : index
      %c0_18 = arith.constant 0 : index
      %20 = vector.load %arg5[%c0_17, %c0_18] : memref<1x10xf32, #tpu.memory_space<vmem>>, vector<1x10xf32>
      %21 = vector.broadcast %20 : vector<1x10xf32> to vector<2x10xf32>
      %22 = arith.addf %19, %21 : vector<2x10xf32>
      %c0_19 = arith.constant 0 : index
      %c0_20 = arith.constant 0 : index
      %23 = vector.load %arg6[%c0_19, %c0_20] : memref<2x10xf32, #tpu.memory_space<vmem>>, vector<2x10xf32>
      tpu.vector_store %arg6[%c0_19, %c0_20], %22 {strides = array<i32>} : memref<2x10xf32, #tpu.memory_space<vmem>>, vector<2x10xf32>,
    } else {
    }
    return
  }
  func.func @transform_0(%arg0: i32) -> (i32, i32) {
    %c0_i32 = arith.constant 0 : i32
    %c0_i32_0 = arith.constant 0 : i32
    return %c0_i32, %arg0 : i32, i32
  }
  func.func @transform_1(%arg0: i32) -> (i32, i32) {
    %c0_i32 = arith.constant 0 : i32
    %c0_i32_0 = arith.constant 0 : i32
    return %arg0, %c0_i32 : i32, i32
  }
  func.func @transform_2(%arg0: i32) -> (i32, i32) {
    %c0_i32 = arith.constant 0 : i32
    %c0_i32_0 = arith.constant 0 : i32
    %c0_i32_1 = arith.constant 0 : i32
    return %c0_i32, %c0_i32_0 : i32, i32
  }
  func.func @transform_3(%arg0: i32) -> (i32, i32) {
    %c0_i32 = arith.constant 0 : i32
    %c0_i32_0 = arith.constant 0 : i32
    %c0_i32_1 = arith.constant 0 : i32
    return %c0_i32, %c0_i32_0 : i32, i32
  }
  func.func @transform_4(%arg0: i32) -> (i32, i32) {
    %c0_i32 = arith.constant 0 : i32
    %c0_i32_0 = arith.constant 0 : i32
    %c0_i32_1 = arith.constant 0 : i32
    return %c0_i32, %c0_i32_0 : i32, i32
  }
  func.func @transform_5(%arg0: i32) -> (i32, i32) {
    %c0_i32 = arith.constant 0 : i32
    %c0_i32_0 = arith.constant 0 : i32
    %c0_i32_1 = arith.constant 0 : i32
    return %c0_i32, %c0_i32_0 : i32, i32
  }
}

</mosaic_0001>

<llo_original>
// kernel: fishcnn_forward.4
$region0: #{fishcnn_forward.4}
  #allocation0 [shape = 'u32[]', space=smem, size = 0x4, offset = 0x4, fixed_abs, tag = 'smem constant byte address 0x4 - core index']
  #allocation1 [shape = 'u32[72,128]{1,0:T(1,128)}', space=vmem, size = 0x9000, scoped, tag = 'internal scratch']
  %s0 = inlined_call_operand.vmem [shape: bf16[2,128,128,32], index: 0, kind: input, shape index: {}]
  %s1 = inlined_call_operand.vmem [shape: bf16[1,32,32], index: 1, kind: input, shape index: {}]
  %s2 = inlined_call_operand.vmem [shape: f32[1,32], index: 2, kind: input, shape index: {}]
  %s3 = inlined_call_operand.vmem [shape: bf16[2,64,64,32], index: 3, kind: output, shape index: {}]
  %s4 = sld [smem:[#allocation0]]
  $region52: #{fishcnn_forward.4} parent=0
    _
  %s6 = ssub.s32 1, %s4
  %s7 = scalar_select 0, %s6, %s4
  loop: start=0, step=1, limit=6
  $region2: #{fishcnn_forward.4} parent=0 // loop_pre_header
    _
  $region3: #{fishcnn_forward.4} parent=0 // loop_header
    %s9 = sphi 0, %s13
    %p10 = scmp.ge.s32.totalorder %s9, 6
    %s16 = sphi 0, %s28
    %s17 = sphi 0, %s24
    %s18 = sphi 0, %s16
    %s19 = sphi 0, %s17
    %s20 = sphi 0, %s18
    %s21 = sphi 0, %s19
    %s31 = sphi 0, %s33
    %s34 = sphi 0, %s31
    %s35 = sphi 0, %s34
    %s51 = sphi 0, %s35
    %s55 = sphi 0, %s55
    %s57 = sphi 0, %s55
    %s58 = sphi 0, %s57
    %s72 = sphi 0, %s58
    %s76 = sphi 0, %s76
    %s78 = sphi 0, %s76
    %s79 = sphi 0, %s78
    %s93 = sphi 0, %s79
    %s101 = sphi 0, %s103
    %s104 = sphi 0, %s101
    %s105 = sphi 0, %s104
    %s121 = sphi 0, %s105
  $region4: #{fishcnn_forward.4} parent=0 // loop_header_branch
    %12 = sbr.rel (%p10) target = $region8
  $region5: #{fishcnn_forward.4} parent=0 // loop_body
    %s14 = ssub.s32 %s9, 1
    %s15 = ssub.s32 %s9, 2
    %s22 = sadd.s32 1, %s17
    %p23 = scmp.ge.s32.totalorder %s22, 2
    %s24 = scalar_select %p23, 0, %s22
    %s25 = sadd.s32 1, %s16
    %s26 = scalar_select %p23, %s25, %s16
    %p27 = scmp.ge.s32.totalorder %s26, 2
    %s28 = scalar_select %p27, 0, %s26
    %s29 = ssub.s32 %s16, %s28
    %p30 = scmp.eq.s32.totalorder %s29, 0
    %s32 = sadd.s32 %s31, 1
    %s33 = scalar_select %p30, %s31, %s32
    %p36 = pneg %p30
    %p37 = scmp.eq.s32.totalorder %s9, 3
    %p38 = por %p36, %p37
    %p39 = scmp.ne.s32.totalorder %s31, %s34
    %p40 = scmp.eq.s32.totalorder %s9, 0
    %p41 = por %p39, %p40
    %p42 = scmp.ne.s32.totalorder %s31, %s34
    %p43 = scmp.eq.s32.totalorder %s14, 3
    %p44 = por %p42, %p43
    %p45 = scmp.ne.s32.totalorder %s34, %s35
    %p46 = scmp.eq.s32.totalorder %s14, 0
    %p47 = por %p45, %p46
    %p48 = scmp.ne.s32.totalorder %s34, %s35
    %p49 = scmp.eq.s32.totalorder %s15, 3
    %p50 = por %p48, %p49
    %p52 = scmp.ne.s32.totalorder %s35, %s51
    %p53 = scmp.eq.s32.totalorder %s15, 0
    %p54 = por %p52, %p53
    %s56 = sadd.s32 %s55, 1
    %p59 = scmp.eq.s32.totalorder %s9, 3
    %p60 = scmp.ne.s32.totalorder %s55, %s57
    %p61 = scmp.eq.s32.totalorder %s9, 0
    %p62 = por %p60, %p61
    %p63 = scmp.ne.s32.totalorder %s55, %s57
    %p64 = scmp.eq.s32.totalorder %s14, 3
    %p65 = por %p63, %p64
    %p66 = scmp.ne.s32.totalorder %s57, %s58
    %p67 = scmp.eq.s32.totalorder %s14, 0
    %p68 = por %p66, %p67
    %p69 = scmp.ne.s32.totalorder %s57, %s58
    %p70 = scmp.eq.s32.totalorder %s15, 3
    %p71 = por %p69, %p70
    %p73 = scmp.ne.s32.totalorder %s58, %s72
    %p74 = scmp.eq.s32.totalorder %s15, 0
    %p75 = por %p73, %p74
    %s77 = sadd.s32 %s76, 1
    %p80 = scmp.eq.s32.totalorder %s9, 3
    %p81 = scmp.ne.s32.totalorder %s76, %s78
    %p82 = scmp.eq.s32.totalorder %s9, 0
    %p83 = por %p81, %p82
    %p84 = scmp.ne.s32.totalorder %s76, %s78
    %p85 = scmp.eq.s32.totalorder %s14, 3
    %p86 = por %p84, %p85
    %p87 = scmp.ne.s32.totalorder %s78, %s79
    %p88 = scmp.eq.s32.totalorder %s14, 0
    %p89 = por %p87, %p88
    %p90 = scmp.ne.s32.totalorder %s78, %s79
    %p91 = scmp.eq.s32.totalorder %s15, 3
    %p92 = por %p90, %p91
    %p94 = scmp.ne.s32.totalorder %s79, %s93
    %p95 = scmp.eq.s32.totalorder %s15, 0
    %p96 = por %p94, %p95
    %s97 = ssub.s32 %s16, %s28
    %s98 = ssub.s32 %s17, %s24
    %s99 = sor.u32 %s97, %s98
    %p100 = scmp.eq.s32.totalorder %s99, 0
    %s102 = sadd.s32 %s101, 1
    %s103 = scalar_select %p100, %s101, %s102
    %p106 = pneg %p100
    %p107 = scmp.eq.s32.totalorder %s9, 3
    %p108 = por %p106, %p107
    %p109 = scmp.ne.s32.totalorder %s101, %s104
    %p110 = scmp.eq.s32.totalorder %s9, 0
    %p111 = por %p109, %p110
    %p112 = scmp.ne.s32.totalorder %s101, %s104
    %p113 = scmp.eq.s32.totalorder %s14, 3
    %p114 = por %p112, %p113
    %p115 = scmp.ne.s32.totalorder %s104, %s105
    %p116 = scmp.eq.s32.totalorder %s14, 0
    %p117 = por %p115, %p116
    %p118 = scmp.ne.s32.totalorder %s104, %s105
    %p119 = scmp.eq.s32.totalorder %s15, 3
    %p120 = por %p118, %p119
    %p122 = scmp.ne.s32.totalorder %s105, %s121
    %p123 = scmp.eq.s32.totalorder %s15, 0
    %p124 = por %p122, %p123
    %p125 = scmp.le.s32.totalorder 1, %s9
    %p126 = scmp.lt.s32.totalorder %s9, 5
    %p127 = pnand %p125, %p126
    %p128 = pneg %p127
    // Predicated region
    $region9: #{fishcnn_forward.4} parent=5 // pred_check
      _
    $region10: #{fishcnn_forward.4} parent=5 // pred_check_branch
      %130 = sbr.rel (%p127) target = $region12
    $region11: #{fishcnn_forward.4} parent=5 // pred_region
      %s131 = ssub.s32 %s9, 1
      // Predicated region
      $region13: #{fishcnn_forward.4} parent=11 // pred_check
        %p132 = pneg %p68
      $region14: #{fishcnn_forward.4} parent=11 // pred_check_branch
        %134 = sbr.rel (%p132) target = $region16
      $region15: #{fishcnn_forward.4} parent=11 // pred_region
        _
      $region16: #{fishcnn_forward.4} parent=11 // pred_fallthru
        _
      // Predicated region
      $region17: #{fishcnn_forward.4} parent=11 // pred_check
        %p135 = pneg %p89
      $region18: #{fishcnn_forward.4} parent=11 // pred_check_branch
        %137 = sbr.rel (%p135) target = $region20
      $region19: #{fishcnn_forward.4} parent=11 // pred_region
        _
      $region20: #{fishcnn_forward.4} parent=11 // pred_fallthru
        _
    $region12: #{fishcnn_forward.4} parent=5 // pred_fallthru
      _
    %p138 = scmp.lt.s32.totalorder %s9, 4
    // Predicated region
    $region21: #{fishcnn_forward.4} parent=5 // pred_check
      %p139 = pneg %p138
    $region22: #{fishcnn_forward.4} parent=5 // pred_check_branch
      %141 = sbr.rel (%p139) target = $region24
    $region23: #{fishcnn_forward.4} parent=5 // pred_region
      // Predicated region
      $region25: #{fishcnn_forward.4} parent=23 // pred_check
        %p142 = pneg %p41
      $region26: #{fishcnn_forward.4} parent=23 // pred_check_branch
        %144 = sbr.rel (%p142) target = $region28
      $region27: #{fishcnn_forward.4} parent=23 // pred_region
        %p145 = scmp.lt.s32.totalorder %s16, 1
        %s146 = scalar_select %p145, %s16, 1
        %s147 = smul.addr %s146, 2048
        %s148 = smul.addr %s147, 4
        %s149 = scalar_lea.vmem %s0, %s148
      $region28: #{fishcnn_forward.4} parent=23 // pred_fallthru
        _
    $region24: #{fishcnn_forward.4} parent=5 // pred_fallthru
      _
    %p150 = scmp.le.s32.totalorder 1, %s9
    %p151 = scmp.lt.s32.totalorder %s9, 5
    %p152 = pnand %p150, %p151
    %p153 = pneg %p152
    // Predicated region
    $region29: #{fishcnn_forward.4} parent=5 // pred_check
      _
    $region30: #{fishcnn_forward.4} parent=5 // pred_check_branch
      %155 = sbr.rel (%p152) target = $region32
    $region31: #{fishcnn_forward.4} parent=5 // pred_region
      %s156 = ssub.s32 %s9, 1
      %p157 = scmp.lt.s32.totalorder %s18, 1
      %s158 = scalar_select %p157, %s18, 1
      %s159 = smul.addr %s158, 2048
      %s160 = smul.addr %s159, 4
      %s161 = scalar_lea.vmem %s0, %s160
      %p162 = pneg %p47
      %p163 = pneg %p44
      %p164 = pneg %p68
      %p165 = pneg %p65
      %p166 = pneg %p89
      %p167 = pneg %p86
      %p168 = pneg %p117
      %p169 = pneg %p114
      %s170 = smul.u32 32, %s19
      %p171 = scmp.lt.s32.totalorder %s18, 1
      %s172 = scalar_select %p171, %s18, 1
      %p173 = scmp.lt.s32.totalorder %s170, 63
      %s174 = scalar_select %p173, %s170, 63
      %s175 = smul.addr %s174, 8
      %s176 = smul.addr %s172, 512
      %s177 = sadd.s32 %s175, %s176
      %s178 = smul.addr %s177, 4
      %s179 = scalar_lea.vmem %s3, %s178
      %p180 = scmp.lt.s32.totalorder %s18, 1
      %s181 = scalar_select %p180, %s18, 1
      %s182 = smul.addr %s181, 2048
      %s183 = smul.addr %s182, 4
      %s184 = scalar_lea.vmem %s0, %s183
      %s185 = smul.u32 32, %s19
      %p186 = scmp.lt.s32.totalorder %s18, 1
      %s187 = scalar_select %p186, %s18, 1
      %p188 = scmp.lt.s32.totalorder %s185, 63
      %s189 = scalar_select %p188, %s185, 63
      %s190 = smul.addr %s189, 8
      %s191 = smul.addr %s187, 512
      %s192 = sadd.s32 %s190, %s191
      %s193 = smul.addr %s192, 4
      %s194 = scalar_lea.vmem %s3, %s193
      %s195 = smul.u32 32, %s19
      %v197 = vld [vmem:[%s2] sm:$0x1]
      %s198 = smul.u32 %s19, 32
      loop: start=0, step=1, limit=16
      $region33: #{fishcnn_forward.4} parent=31 // loop_pre_header
        _
      $region34: #{fishcnn_forward.4} parent=31 // loop_header
        %s200 = sphi 0, %s204
        %p201 = scmp.ge.s32.totalorder %s200, 16
      $region35: #{fishcnn_forward.4} parent=31 // loop_header_branch
        %203 = sbr.rel (%p201) target = $region39
      $region36: #{fishcnn_forward.4} parent=31 // loop_body
        %s205 = smul.u32 %s200, 2
        %s206 = sadd.s32 %s198, %s205
        %s207 = smul.u32 %s206, 2
        %s208 = smul.u32 %s207, 16
        %s209 = smul.addr %s208, 4
        %s210 = scalar_lea.vmem %s184, %s209
        %v211 = vld [vmem:[%s210] sm:$0xf]
        %v212 = vld [vmem:[%s210 + $0x4] sm:$0xf]
        %v213 = vld [vmem:[%s210 + $0x8] sm:$0xf]
        %v214 = vld [vmem:[%s210 + $0xc] sm:$0xf]
        %v215 = vld [vmem:[%s210 + $0x10] sm:$0xf]
        %v216 = vld [vmem:[%s210 + $0x14] sm:$0xf]
        %v217 = vld [vmem:[%s210 + $0x18] sm:$0xf]
        %v218 = vld [vmem:[%s210 + $0x1c] sm:$0xf]
        %v219 = vld [vmem:[%s210 + $0x20] sm:$0xf]
        %v220 = vld [vmem:[%s210 + $0x24] sm:$0xf]
        %v221 = vld [vmem:[%s210 + $0x28] sm:$0xf]
        %v222 = vld [vmem:[%s210 + $0x2c] sm:$0xf]
        %v223 = vld [vmem:[%s210 + $0x30] sm:$0xf]
        %v224 = vld [vmem:[%s210 + $0x34] sm:$0xf]
        %v225 = vld [vmem:[%s210 + $0x38] sm:$0xf]
        %v226 = vld [vmem:[%s210 + $0x3c] sm:$0xf]
        %v227 = vld [vmem:[%s210 + $0x40] sm:$0xf]
        %v228 = vld [vmem:[%s210 + $0x44] sm:$0xf]
        %v229 = vld [vmem:[%s210 + $0x48] sm:$0xf]
        %v230 = vld [vmem:[%s210 + $0x4c] sm:$0xf]
        %v231 = vld [vmem:[%s210 + $0x50] sm:$0xf]
        %v232 = vld [vmem:[%s210 + $0x54] sm:$0xf]
        %v233 = vld [vmem:[%s210 + $0x58] sm:$0xf]
        %v234 = vld [vmem:[%s210 + $0x5c] sm:$0xf]
        %v235 = vld [vmem:[%s210 + $0x60] sm:$0xf]
        %v236 = vld [vmem:[%s210 + $0x64] sm:$0xf]
        %v237 = vld [vmem:[%s210 + $0x68] sm:$0xf]
        %v238 = vld [vmem:[%s210 + $0x6c] sm:$0xf]
        %v239 = vld [vmem:[%s210 + $0x70] sm:$0xf]
        %v240 = vld [vmem:[%s210 + $0x74] sm:$0xf]
        %v241 = vld [vmem:[%s210 + $0x78] sm:$0xf]
        %v242 = vld [vmem:[%s210 + $0x7c] sm:$0xf]
        %v243 = vld [vmem:[%s210 + $0x80] sm:$0xf]
        %v244 = vld [vmem:[%s210 + $0x84] sm:$0xf]
        %v245 = vld [vmem:[%s210 + $0x88] sm:$0xf]
        %v246 = vld [vmem:[%s210 + $0x8c] sm:$0xf]
        %v247 = vld [vmem:[%s210 + $0x90] sm:$0xf]
        %v248 = vld [vmem:[%s210 + $0x94] sm:$0xf]
        %v249 = vld [vmem:[%s210 + $0x98] sm:$0xf]
        %v250 = vld [vmem:[%s210 + $0x9c] sm:$0xf]
        %v251 = vld [vmem:[%s210 + $0xa0] sm:$0xf]
        %v252 = vld [vmem:[%s210 + $0xa4] sm:$0xf]
        %v253 = vld [vmem:[%s210 + $0xa8] sm:$0xf]
        %v254 = vld [vmem:[%s210 + $0xac] sm:$0xf]
        %v255 = vld [vmem:[%s210 + $0xb0] sm:$0xf]
        %v256 = vld [vmem:[%s210 + $0xb4] sm:$0xf]
        %v257 = vld [vmem:[%s210 + $0xb8] sm:$0xf]
        %v258 = vld [vmem:[%s210 + $0xbc] sm:$0xf]
        %v259 = vld [vmem:[%s210 + $0xc0] sm:$0xf]
        %v260 = vld [vmem:[%s210 + $0xc4] sm:$0xf]
        %v261 = vld [vmem:[%s210 + $0xc8] sm:$0xf]
        %v262 = vld [vmem:[%s210 + $0xcc] sm:$0xf]
        %v263 = vld [vmem:[%s210 + $0xd0] sm:$0xf]
        %v264 = vld [vmem:[%s210 + $0xd4] sm:$0xf]
        %v265 = vld [vmem:[%s210 + $0xd8] sm:$0xf]
        %v266 = vld [vmem:[%s210 + $0xdc] sm:$0xf]
        %v267 = vld [vmem:[%s210 + $0xe0] sm:$0xf]
        %v268 = vld [vmem:[%s210 + $0xe4] sm:$0xf]
        %v269 = vld [vmem:[%s210 + $0xe8] sm:$0xf]
        %v270 = vld [vmem:[%s210 + $0xec] sm:$0xf]
        %v271 = vld [vmem:[%s210 + $0xf0] sm:$0xf]
        %v272 = vld [vmem:[%s210 + $0xf4] sm:$0xf]
        %v273 = vld [vmem:[%s210 + $0xf8] sm:$0xf]
        %v274 = vld [vmem:[%s210 + $0xfc] sm:$0xf]
        %v275 = vld [vmem:[%s1] sm:$0xf]
        %v276 = vld [vmem:[%s1 + $0x4] sm:$0xf]
        %v277 = vld [vmem:[%s1 + $0x8] sm:$0xf]
        %v278 = vld [vmem:[%s1 + $0xc] sm:$0xf]
        %v343 = vunpack.c.l.b16 %v211
        %v344 = vunpack.c.l.b16 %v212
        %v345 = vunpack.c.l.b16 %v213
        %v346 = vunpack.c.l.b16 %v214
        %v347 = vunpack.c.l.b16 %v215
        %v348 = vunpack.c.l.b16 %v216
        %v349 = vunpack.c.l.b16 %v217
        %v350 = vunpack.c.l.b16 %v218
        %v351 = vunpack.c.l.b16 %v219
        %v352 = vunpack.c.l.b16 %v220
        %v353 = vunpack.c.l.b16 %v221
        %v354 = vunpack.c.l.b16 %v222
        %v355 = vunpack.c.l.b16 %v223
        %v356 = vunpack.c.l.b16 %v224
        %v357 = vunpack.c.l.b16 %v225
        %v358 = vunpack.c.l.b16 %v226
        %v359 = vunpack.c.l.b16 %v227
        %v360 = vunpack.c.l.b16 %v228
        %v361 = vunpack.c.l.b16 %v229
        %v362 = vunpack.c.l.b16 %v230
        %v363 = vunpack.c.l.b16 %v231
        %v364 = vunpack.c.l.b16 %v232
        %v365 = vunpack.c.l.b16 %v233
        %v366 = vunpack.c.l.b16 %v234
        %v367 = vunpack.c.l.b16 %v235
        %v368 = vunpack.c.l.b16 %v236
        %v369 = vunpack.c.l.b16 %v237
        %v370 = vunpack.c.l.b16 %v238
        %v371 = vunpack.c.l.b16 %v239
        %v372 = vunpack.c.l.b16 %v240
        %v373 = vunpack.c.l.b16 %v241
        %v374 = vunpack.c.l.b16 %v242
        %v375 = vunpack.c.l.b16 %v243
        %v376 = vunpack.c.l.b16 %v244
        %v377 = vunpack.c.l.b16 %v245
        %v378 = vunpack.c.l.b16 %v246
        %v379 = vunpack.c.l.b16 %v247
        %v380 = vunpack.c.l.b16 %v248
        %v381 = vunpack.c.l.b16 %v249
        %v382 = vunpack.c.l.b16 %v250
        %v383 = vunpack.c.l.b16 %v251
        %v384 = vunpack.c.l.b16 %v252
        %v385 = vunpack.c.l.b16 %v253
        %v386 = vunpack.c.l.b16 %v254
        %v387 = vunpack.c.l.b16 %v255
        %v388 = vunpack.c.l.b16 %v256
        %v389 = vunpack.c.l.b16 %v257
        %v390 = vunpack.c.l.b16 %v258
        %v391 = vunpack.c.l.b16 %v259
        %v392 = vunpack.c.l.b16 %v260
        %v393 = vunpack.c.l.b16 %v261
        %v394 = vunpack.c.l.b16 %v262
        %v395 = vunpack.c.l.b16 %v263
        %v396 = vunpack.c.l.b16 %v264
        %v397 = vunpack.c.l.b16 %v265
        %v398 = vunpack.c.l.b16 %v266
        %v399 = vunpack.c.l.b16 %v267
        %v400 = vunpack.c.l.b16 %v268
        %v401 = vunpack.c.l.b16 %v269
        %v402 = vunpack.c.l.b16 %v270
        %v403 = vunpack.c.l.b16 %v271
        %v404 = vunpack.c.l.b16 %v272
        %v405 = vunpack.c.l.b16 %v273
        %v406 = vunpack.c.l.b16 %v274
        %v407 = vpack.c.b16 %v344, %v343
        %v408 = vpack.c.b16 %v346, %v345
        %v409 = vpack.c.b16 %v348, %v347
        %v410 = vpack.c.b16 %v350, %v349
        %v411 = vpack.c.b16 %v352, %v351
        %v412 = vpack.c.b16 %v354, %v353
        %v413 = vpack.c.b16 %v356, %v355
        %v414 = vpack.c.b16 %v358, %v357
        %v415 = vpack.c.b16 %v360, %v359
        %v416 = vpack.c.b16 %v362, %v361
        %v417 = vpack.c.b16 %v364, %v363
        %v418 = vpack.c.b16 %v366, %v365
        %v419 = vpack.c.b16 %v368, %v367
        %v420 = vpack.c.b16 %v370, %v369
        %v421 = vpack.c.b16 %v372, %v371
        %v422 = vpack.c.b16 %v374, %v373
        %v423 = vpack.c.b16 %v376, %v375
        %v424 = vpack.c.b16 %v378, %v377
        %v425 = vpack.c.b16 %v380, %v379
        %v426 = vpack.c.b16 %v382, %v381
        %v427 = vpack.c.b16 %v384, %v383
        %v428 = vpack.c.b16 %v386, %v385
        %v429 = vpack.c.b16 %v388, %v387
        %v430 = vpack.c.b16 %v390, %v389
        %v431 = vpack.c.b16 %v392, %v391
        %v432 = vpack.c.b16 %v394, %v393
        %v433 = vpack.c.b16 %v396, %v395
        %v434 = vpack.c.b16 %v398, %v397
        %v435 = vpack.c.b16 %v400, %v399
        %v436 = vpack.c.b16 %v402, %v401
        %v437 = vpack.c.b16 %v404, %v403
        %v438 = vpack.c.b16 %v406, %v405
        %v443 = vunpack.c.l.b16 %v275
        %v444 = vunpack.c.l.b16 %v276
        %v445 = vunpack.c.l.b16 %v277
        %v446 = vunpack.c.l.b16 %v278
        %v447 = vpack.c.b16 %v444, %v443
        %v448 = vpack.c.b16 %v446, %v445
        %vm451 = vcmask 261120
        %v453 = vsel %vm451, %v407, 0
        %v456 = vsel %vm451, %v408, 0
        %v459 = vsel %vm451, %v409, 0
        %v462 = vsel %vm451, %v410, 0
        %v465 = vsel %vm451, %v411, 0
        %v468 = vsel %vm451, %v412, 0
        %v471 = vsel %vm451, %v413, 0
        %v474 = vsel %vm451, %v414, 0
        %v477 = vsel %vm451, %v415, 0
        %v480 = vsel %vm451, %v416, 0
        %v483 = vsel %vm451, %v417, 0
        %v486 = vsel %vm451, %v418, 0
        %v489 = vsel %vm451, %v419, 0
        %v492 = vsel %vm451, %v420, 0
        %v495 = vsel %vm451, %v421, 0
        %v498 = vsel %vm451, %v422, 0
        %v501 = vsel %vm451, %v423, 0
        %v504 = vsel %vm451, %v424, 0
        %v507 = vsel %vm451, %v425, 0
        %v510 = vsel %vm451, %v426, 0
        %v513 = vsel %vm451, %v427, 0
        %v516 = vsel %vm451, %v428, 0
        %v519 = vsel %vm451, %v429, 0
        %v522 = vsel %vm451, %v430, 0
        %v525 = vsel %vm451, %v431, 0
        %v528 = vsel %vm451, %v432, 0
        %v531 = vsel %vm451, %v433, 0
        %v534 = vsel %vm451, %v434, 0
        %v537 = vsel %vm451, %v435, 0
        %v540 = vsel %vm451, %v436, 0
        %v543 = vsel %vm451, %v437, 0
        %v546 = vsel %vm451, %v438, 0
        %548 = vmatpush.bf16.msra.mxu0 0
        %549 = vmatpush.bf16.msra.mxu0 0
        %550 = vmatpush.bf16.msra.mxu0 0
        %551 = vmatpush.bf16.msra.mxu0 0
        %552 = vmatpush.bf16.msra.mxu0 0
        %553 = vmatpush.bf16.msra.mxu0 0
        %554 = vmatpush.bf16.msra.mxu0 %v448
        %555 = vmatpush.bf16.msra.mxu0 %v447
        %556 = vmatmul.bf16.gmra.mxu0 %v453
        %v557 = vpop.f32.mrf.mxu0
        %v558 = vadd.f32 0.0, %v557
        %v559 = vpop.f32.mrf.mxu0
        %v560 = vadd.f32 0.0, %v559
        %561 = vmatmul.bf16.gmra.mxu0 %v456
        %v562 = vpop.f32.mrf.mxu0
        %v563 = vadd.f32 0.0, %v562
        %v564 = vpop.f32.mrf.mxu0
        %v565 = vadd.f32 0.0, %v564
        %566 = vmatmul.bf16.gmra.mxu0 %v459
        %v567 = vpop.f32.mrf.mxu0
        %v568 = vadd.f32 0.0, %v567
        %v569 = vpop.f32.mrf.mxu0
        %v570 = vadd.f32 0.0, %v569
        %571 = vmatmul.bf16.gmra.mxu0 %v462
        %v572 = vpop.f32.mrf.mxu0
        %v573 = vadd.f32 0.0, %v572
        %v574 = vpop.f32.mrf.mxu0
        %v575 = vadd.f32 0.0, %v574
        %576 = vmatmul.bf16.gmra.mxu0 %v465
        %v577 = vpop.f32.mrf.mxu0
        %v578 = vadd.f32 0.0, %v577
        %v579 = vpop.f32.mrf.mxu0
        %v580 = vadd.f32 0.0, %v579
        %581 = vmatmul.bf16.gmra.mxu0 %v468
        %v582 = vpop.f32.mrf.mxu0
        %v583 = vadd.f32 0.0, %v582
        %v584 = vpop.f32.mrf.mxu0
        %v585 = vadd.f32 0.0, %v584
        %586 = vmatmul.bf16.gmra.mxu0 %v471
        %v587 = vpop.f32.mrf.mxu0
        %v588 = vadd.f32 0.0, %v587
        %v589 = vpop.f32.mrf.mxu0
        %v590 = vadd.f32 0.0, %v589
        %591 = vmatmul.bf16.gmra.mxu0 %v474
        %v592 = vpop.f32.mrf.mxu0
        %v593 = vadd.f32 0.0, %v592
        %v594 = vpop.f32.mrf.mxu0
        %v595 = vadd.f32 0.0, %v594
        %596 = vmatmul.bf16.gmra.mxu0 %v477
        %v597 = vpop.f32.mrf.mxu0
        %v598 = vadd.f32 0.0, %v597
        %v599 = vpop.f32.mrf.mxu0
        %v600 = vadd.f32 0.0, %v599
        %601 = vmatmul.bf16.gmra.mxu0 %v480
        %v602 = vpop.f32.mrf.mxu0
        %v603 = vadd.f32 0.0, %v602
        %v604 = vpop.f32.mrf.mxu0
        %v605 = vadd.f32 0.0, %v604
        %606 = vmatmul.bf16.gmra.mxu0 %v483
        %v607 = vpop.f32.mrf.mxu0
        %v608 = vadd.f32 0.0, %v607
        %v609 = vpop.f32.mrf.mxu0
        %v610 = vadd.f32 0.0, %v609
        %611 = vmatmul.bf16.gmra.mxu0 %v486
        %v612 = vpop.f32.mrf.mxu0
        %v613 = vadd.f32 0.0, %v612
        %v614 = vpop.f32.mrf.mxu0
        %v615 = vadd.f32 0.0, %v614
        %616 = vmatmul.bf16.gmra.mxu0 %v489
        %v617 = vpop.f32.mrf.mxu0
        %v618 = vadd.f32 0.0, %v617
        %v619 = vpop.f32.mrf.mxu0
        %v620 = vadd.f32 0.0, %v619
        %621 = vmatmul.bf16.gmra.mxu0 %v492
        %v622 = vpop.f32.mrf.mxu0
        %v623 = vadd.f32 0.0, %v622
        %v624 = vpop.f32.mrf.mxu0
        %v625 = vadd.f32 0.0, %v624
        %626 = vmatmul.bf16.gmra.mxu0 %v495
        %v627 = vpop.f32.mrf.mxu0
        %v628 = vadd.f32 0.0, %v627
        %v629 = vpop.f32.mrf.mxu0
        %v630 = vadd.f32 0.0, %v629
        %631 = vmatmul.bf16.gmra.mxu0 %v498
        %v632 = vpop.f32.mrf.mxu0
        %v633 = vadd.f32 0.0, %v632
        %v634 = vpop.f32.mrf.mxu0
        %v635 = vadd.f32 0.0, %v634
        %636 = vmatmul.bf16.gmra.mxu0 %v501
        %v637 = vpop.f32.mrf.mxu0
        %v638 = vadd.f32 0.0, %v637
        %v639 = vpop.f32.mrf.mxu0
        %v640 = vadd.f32 0.0, %v639
        %641 = vmatmul.bf16.gmra.mxu0 %v504
        %v642 = vpop.f32.mrf.mxu0
        %v643 = vadd.f32 0.0, %v642
        %v644 = vpop.f32.mrf.mxu0
        %v645 = vadd.f32 0.0, %v644
        %646 = vmatmul.bf16.gmra.mxu0 %v507
        %v647 = vpop.f32.mrf.mxu0
        %v648 = vadd.f32 0.0, %v647
        %v649 = vpop.f32.mrf.mxu0
        %v650 = vadd.f32 0.0, %v649
        %651 = vmatmul.bf16.gmra.mxu0 %v510
        %v652 = vpop.f32.mrf.mxu0
        %v653 = vadd.f32 0.0, %v652
        %v654 = vpop.f32.mrf.mxu0
        %v655 = vadd.f32 0.0, %v654
        %656 = vmatmul.bf16.gmra.mxu0 %v513
        %v657 = vpop.f32.mrf.mxu0
        %v658 = vadd.f32 0.0, %v657
        %v659 = vpop.f32.mrf.mxu0
        %v660 = vadd.f32 0.0, %v659
        %661 = vmatmul.bf16.gmra.mxu0 %v516
        %v662 = vpop.f32.mrf.mxu0
        %v663 = vadd.f32 0.0, %v662
        %v664 = vpop.f32.mrf.mxu0
        %v665 = vadd.f32 0.0, %v664
        %666 = vmatmul.bf16.gmra.mxu0 %v519
        %v667 = vpop.f32.mrf.mxu0
        %v668 = vadd.f32 0.0, %v667
        %v669 = vpop.f32.mrf.mxu0
        %v670 = vadd.f32 0.0, %v669
        %671 = vmatmul.bf16.gmra.mxu0 %v522
        %v672 = vpop.f32.mrf.mxu0
        %v673 = vadd.f32 0.0, %v672
        %v674 = vpop.f32.mrf.mxu0
        %v675 = vadd.f32 0.0, %v674
        %676 = vmatmul.bf16.gmra.mxu0 %v525
        %v677 = vpop.f32.mrf.mxu0
        %v678 = vadd.f32 0.0, %v677
        %v679 = vpop.f32.mrf.mxu0
        %v680 = vadd.f32 0.0, %v679
        %681 = vmatmul.bf16.gmra.mxu0 %v528
        %v682 = vpop.f32.mrf.mxu0
        %v683 = vadd.f32 0.0, %v682
        %v684 = vpop.f32.mrf.mxu0
        %v685 = vadd.f32 0.0, %v684
        %686 = vmatmul.bf16.gmra.mxu0 %v531
        %v687 = vpop.f32.mrf.mxu0
        %v688 = vadd.f32 0.0, %v687
        %v689 = vpop.f32.mrf.mxu0
        %v690 = vadd.f32 0.0, %v689
        %691 = vmatmul.bf16.gmra.mxu0 %v534
        %v692 = vpop.f32.mrf.mxu0
        %v693 = vadd.f32 0.0, %v692
        %v694 = vpop.f32.mrf.mxu0
        %v695 = vadd.f32 0.0, %v694
        %696 = vmatmul.bf16.gmra.mxu0 %v537
        %v697 = vpop.f32.mrf.mxu0
        %v698 = vadd.f32 0.0, %v697
        %v699 = vpop.f32.mrf.mxu0
        %v700 = vadd.f32 0.0, %v699
        %701 = vmatmul.bf16.gmra.mxu0 %v540
        %v702 = vpop.f32.mrf.mxu0
        %v703 = vadd.f32 0.0, %v702
        %v704 = vpop.f32.mrf.mxu0
        %v705 = vadd.f32 0.0, %v704
        %706 = vmatmul.bf16.gmra.mxu0 %v543
        %v707 = vpop.f32.mrf.mxu0
        %v708 = vadd.f32 0.0, %v707
        %v709 = vpop.f32.mrf.mxu0
        %v710 = vadd.f32 0.0, %v709
        %711 = vmatmul.bf16.gmra.mxu0 %v546
        %v712 = vpop.f32.mrf.mxu0
        %v713 = vadd.f32 0.0, %v712
        %v714 = vpop.f32.mrf.mxu0
        %v715 = vadd.f32 0.0, %v714
        %716 = vdwg.mxu0
        %v717 = vmax.f32 %v558, %v598
        %v718 = vmax.f32 %v560, %v600
        %v719 = vmax.f32 %v563, %v603
        %v720 = vmax.f32 %v565, %v605
        %v721 = vmax.f32 %v568, %v608
        %v722 = vmax.f32 %v570, %v610
        %v723 = vmax.f32 %v573, %v613
        %v724 = vmax.f32 %v575, %v615
        %v725 = vmax.f32 %v578, %v618
        %v726 = vmax.f32 %v580, %v620
        %v727 = vmax.f32 %v583, %v623
        %v728 = vmax.f32 %v585, %v625
        %v729 = vmax.f32 %v588, %v628
        %v730 = vmax.f32 %v590, %v630
        %v731 = vmax.f32 %v593, %v633
        %v732 = vmax.f32 %v595, %v635
        %v733 = vmax.f32 %v638, %v678
        %v734 = vmax.f32 %v640, %v680
        %v735 = vmax.f32 %v643, %v683
        %v736 = vmax.f32 %v645, %v685
        %v737 = vmax.f32 %v648, %v688
        %v738 = vmax.f32 %v650, %v690
        %v739 = vmax.f32 %v653, %v693
        %v740 = vmax.f32 %v655, %v695
        %v741 = vmax.f32 %v658, %v698
        %v742 = vmax.f32 %v660, %v700
        %v743 = vmax.f32 %v663, %v703
        %v744 = vmax.f32 %v665, %v705
        %v745 = vmax.f32 %v668, %v708
        %v746 = vmax.f32 %v670, %v710
        %v747 = vmax.f32 %v673, %v713
        %v748 = vmax.f32 %v675, %v715
        %v749 = vmax.f32 %v717, %v725
        %v750 = vmax.f32 %v718, %v726
        %v751 = vmax.f32 %v719, %v727
        %v752 = vmax.f32 %v720, %v728
        %v753 = vmax.f32 %v721, %v729
        %v754 = vmax.f32 %v722, %v730
        %v755 = vmax.f32 %v723, %v731
        %v756 = vmax.f32 %v724, %v732
        %v757 = vmax.f32 %v733, %v741
        %v758 = vmax.f32 %v734, %v742
        %v759 = vmax.f32 %v735, %v743
        %v760 = vmax.f32 %v736, %v744
        %v761 = vmax.f32 %v737, %v745
        %v762 = vmax.f32 %v738, %v746
        %v763 = vmax.f32 %v739, %v747
        %v764 = vmax.f32 %v740, %v748
        %v766 = vperm.slane %v197, 0
        %v768 = vadd.f32 %v749, %v766
        %v769 = vadd.f32 %v750, %v766
        %v770 = vadd.f32 %v751, %v766
        %v771 = vadd.f32 %v752, %v766
        %v772 = vadd.f32 %v753, %v766
        %v773 = vadd.f32 %v754, %v766
        %v774 = vadd.f32 %v755, %v766
        %v775 = vadd.f32 %v756, %v766
        %v776 = vadd.f32 %v757, %v766
        %v777 = vadd.f32 %v758, %v766
        %v778 = vadd.f32 %v759, %v766
        %v779 = vadd.f32 %v760, %v766
        %v780 = vadd.f32 %v761, %v766
        %v781 = vadd.f32 %v762, %v766
        %v782 = vadd.f32 %v763, %v766
        %v783 = vadd.f32 %v764, %v766
        %v784 = vmax.f32 %v768, 0.0
        %v785 = vmax.f32 %v769, 0.0
        %v786 = vmax.f32 %v770, 0.0
        %v787 = vmax.f32 %v771, 0.0
        %v788 = vmax.f32 %v772, 0.0
        %v789 = vmax.f32 %v773, 0.0
        %v790 = vmax.f32 %v774, 0.0
        %v791 = vmax.f32 %v775, 0.0
        %v792 = vmax.f32 %v776, 0.0
        %v793 = vmax.f32 %v777, 0.0
        %v794 = vmax.f32 %v778, 0.0
        %v795 = vmax.f32 %v779, 0.0
        %v796 = vmax.f32 %v780, 0.0
        %v797 = vmax.f32 %v781, 0.0
        %v798 = vmax.f32 %v782, 0.0
        %v799 = vmax.f32 %v783, 0.0
        %v800 = vpack.c.bf16 %v784, %v784
        %v801 = vpack.c.bf16 %v785, %v785
        %v802 = vpack.c.bf16 %v786, %v786
        %v803 = vpack.c.bf16 %v787, %v787
        %v804 = vpack.c.bf16 %v788, %v788
        %v805 = vpack.c.bf16 %v789, %v789
        %v806 = vpack.c.bf16 %v790, %v790
        %v807 = vpack.c.bf16 %v791, %v791
        %v808 = vpack.c.bf16 %v792, %v792
        %v809 = vpack.c.bf16 %v793, %v793
        %v810 = vpack.c.bf16 %v794, %v794
        %v811 = vpack.c.bf16 %v795, %v795
        %v812 = vpack.c.bf16 %v796, %v796
        %v813 = vpack.c.bf16 %v797, %v797
        %v814 = vpack.c.bf16 %v798, %v798
        %v815 = vpack.c.bf16 %v799, %v799
        %s816 = smul.u32 %s205, 8
        %s817 = smul.addr %s816, 4
        %s818 = scalar_lea.vmem %s194, %s817
        %vm819 = vcmask 257024
        %820 = vst.msk [vmem:[%s818] sm:$0xf] %vm819, %v800
        %821 = vst.msk [vmem:[%s818 + $0x4] sm:$0xf] %vm819, %v801
        %822 = vst.msk [vmem:[%s818 + $0x8] sm:$0xf] %vm819, %v802
        %823 = vst.msk [vmem:[%s818 + $0xc] sm:$0xf] %vm819, %v803
        %824 = vst.msk [vmem:[%s818 + $0x10] sm:$0xf] %vm819, %v804
        %825 = vst.msk [vmem:[%s818 + $0x14] sm:$0xf] %vm819, %v805
        %826 = vst.msk [vmem:[%s818 + $0x18] sm:$0xf] %vm819, %v806
        %827 = vst.msk [vmem:[%s818 + $0x1c] sm:$0xf] %vm819, %v807
        %828 = vst.msk [vmem:[%s818 + $0x20] sm:$0xf] %vm819, %v808
        %829 = vst.msk [vmem:[%s818 + $0x24] sm:$0xf] %vm819, %v809
        %830 = vst.msk [vmem:[%s818 + $0x28] sm:$0xf] %vm819, %v810
        %831 = vst.msk [vmem:[%s818 + $0x2c] sm:$0xf] %vm819, %v811
        %832 = vst.msk [vmem:[%s818 + $0x30] sm:$0xf] %vm819, %v812
        %833 = vst.msk [vmem:[%s818 + $0x34] sm:$0xf] %vm819, %v813
        %834 = vst.msk [vmem:[%s818 + $0x38] sm:$0xf] %vm819, %v814
        %835 = vst.msk [vmem:[%s818 + $0x3c] sm:$0xf] %vm819, %v815
      $region37: #{fishcnn_forward.4} parent=31 // loop_footer
        %s204 = sadd.s32 1, %s200
      $region38: #{fishcnn_forward.4} parent=31 // loop_footer_branch
        %199 = sbr.rel target = $region34
      $region39: #{fishcnn_forward.4} parent=31 // loop_exit
        _
      %s836 = smul.u32 32, %s19
      %p837 = scmp.lt.s32.totalorder %s18, 1
      %s838 = scalar_select %p837, %s18, 1
      %p839 = scmp.lt.s32.totalorder %s836, 63
      %s840 = scalar_select %p839, %s836, 63
      %s841 = smul.addr %s840, 8
      %s842 = smul.addr %s838, 512
      %s843 = sadd.s32 %s841, %s842
      %s844 = smul.addr %s843, 4
      %s845 = scalar_lea.vmem %s3, %s844
      // Predicated region
      $region40: #{fishcnn_forward.4} parent=31 // pred_check
        %p846 = pneg %p114
      $region41: #{fishcnn_forward.4} parent=31 // pred_check_branch
        %848 = sbr.rel (%p846) target = $region43
      $region42: #{fishcnn_forward.4} parent=31 // pred_region
        %s849 = smul.u32 32, %s19
      $region43: #{fishcnn_forward.4} parent=31 // pred_fallthru
        _
    $region32: #{fishcnn_forward.4} parent=5 // pred_fallthru
      _
    %p850 = scmp.le.s32.totalorder 2, %s9
    // Predicated region
    $region44: #{fishcnn_forward.4} parent=5 // pred_check
      %p851 = pneg %p850
    $region45: #{fishcnn_forward.4} parent=5 // pred_check_branch
      %853 = sbr.rel (%p851) target = $region47
    $region46: #{fishcnn_forward.4} parent=5 // pred_region
      %s854 = ssub.s32 %s9, 2
      // Predicated region
      $region48: #{fishcnn_forward.4} parent=46 // pred_check
        %p855 = pneg %p120
      $region49: #{fishcnn_forward.4} parent=46 // pred_check_branch
        %857 = sbr.rel (%p855) target = $region51
      $region50: #{fishcnn_forward.4} parent=46 // pred_region
        %s858 = smul.u32 32, %s21
        %p859 = scmp.lt.s32.totalorder %s20, 1
        %s860 = scalar_select %p859, %s20, 1
        %p861 = scmp.lt.s32.totalorder %s858, 63
        %s862 = scalar_select %p861, %s858, 63
        %s863 = smul.addr %s862, 8
        %s864 = smul.addr %s860, 512
        %s865 = sadd.s32 %s863, %s864
        %s866 = smul.addr %s865, 4
        %s867 = scalar_lea.vmem %s3, %s866
      $region51: #{fishcnn_forward.4} parent=46 // pred_fallthru
        _
    $region47: #{fishcnn_forward.4} parent=5 // pred_fallthru
      _
  $region6: #{fishcnn_forward.4} parent=0 // loop_footer
    %s13 = sadd.s32 1, %s9
  $region7: #{fishcnn_forward.4} parent=0 // loop_footer_branch
    %8 = sbr.rel target = $region3
  $region8: #{fishcnn_forward.4} parent=0 // loop_exit
    _

// kernel: fishcnn_forward.5
$region0: #{fishcnn_forward.5}
  #allocation0 [shape = 'u32[]', space=smem, size = 0x4, offset = 0x4, fixed_abs, tag = 'smem constant byte address 0x4 - core index']
  #allocation1 [shape = 'u32[72,128]{1,0:T(1,128)}', space=vmem, size = 0x9000, scoped, tag = 'internal scratch']
  %s0 = inlined_call_operand.vmem [shape: bf16[2,66,64,96], index: 0, kind: input, shape index: {}]
  %s1 = inlined_call_operand.vmem [shape: bf16[3,96,64], index: 1, kind: input, shape index: {}]
  %s2 = inlined_call_operand.vmem [shape: f32[1,64], index: 2, kind: input, shape index: {}]
  %s3 = inlined_call_operand.vmem [shape: bf16[2,32,32,64], index: 3, kind: output, shape index: {}]
  %s4 = sld [smem:[#allocation0]]
  $region52: #{fishcnn_forward.5} parent=0
    _
  %s6 = ssub.s32 1, %s4
  %s7 = scalar_select 0, %s6, %s4
  loop: start=0, step=1, limit=6
  $region2: #{fishcnn_forward.5} parent=0 // loop_pre_header
    _
  $region3: #{fishcnn_forward.5} parent=0 // loop_header
    %s9 = sphi 0, %s13
    %p10 = scmp.ge.s32.totalorder %s9, 6
    %s16 = sphi 0, %s28
    %s17 = sphi 0, %s24
    %s18 = sphi 0, %s16
    %s19 = sphi 0, %s17
    %s20 = sphi 0, %s18
    %s21 = sphi 0, %s19
    %s31 = sphi 0, %s33
    %s34 = sphi 0, %s31
    %s35 = sphi 0, %s34
    %s51 = sphi 0, %s35
    %s55 = sphi 0, %s55
    %s57 = sphi 0, %s55
    %s58 = sphi 0, %s57
    %s72 = sphi 0, %s58
    %s76 = sphi 0, %s76
    %s78 = sphi 0, %s76
    %s79 = sphi 0, %s78
    %s93 = sphi 0, %s79
    %s101 = sphi 0, %s103
    %s104 = sphi 0, %s101
    %s105 = sphi 0, %s104
    %s121 = sphi 0, %s105
  $region4: #{fishcnn_forward.5} parent=0 // loop_header_branch
    %12 = sbr.rel (%p10) target = $region8
  $region5: #{fishcnn_forward.5} parent=0 // loop_body
    %s14 = ssub.s32 %s9, 1
    %s15 = ssub.s32 %s9, 2
    %s22 = sadd.s32 1, %s17
    %p23 = scmp.ge.s32.totalorder %s22, 2
    %s24 = scalar_select %p23, 0, %s22
    %s25 = sadd.s32 1, %s16
    %s26 = scalar_select %p23, %s25, %s16
    %p27 = scmp.ge.s32.totalorder %s26, 2
    %s28 = scalar_select %p27, 0, %s26
    %s29 = ssub.s32 %s16, %s28
    %p30 = scmp.eq.s32.totalorder %s29, 0
    %s32 = sadd.s32 %s31, 1
    %s33 = scalar_select %p30, %s31, %s32
    %p36 = pneg %p30
    %p37 = scmp.eq.s32.totalorder %s9, 3
    %p38 = por %p36, %p37
    %p39 = scmp.ne.s32.totalorder %s31, %s34
    %p40 = scmp.eq.s32.totalorder %s9, 0
    %p41 = por %p39, %p40
    %p42 = scmp.ne.s32.totalorder %s31, %s34
    %p43 = scmp.eq.s32.totalorder %s14, 3
    %p44 = por %p42, %p43
    %p45 = scmp.ne.s32.totalorder %s34, %s35
    %p46 = scmp.eq.s32.totalorder %s14, 0
    %p47 = por %p45, %p46
    %p48 = scmp.ne.s32.totalorder %s34, %s35
    %p49 = scmp.eq.s32.totalorder %s15, 3
    %p50 = por %p48, %p49
    %p52 = scmp.ne.s32.totalorder %s35, %s51
    %p53 = scmp.eq.s32.totalorder %s15, 0
    %p54 = por %p52, %p53
    %s56 = sadd.s32 %s55, 1
    %p59 = scmp.eq.s32.totalorder %s9, 3
    %p60 = scmp.ne.s32.totalorder %s55, %s57
    %p61 = scmp.eq.s32.totalorder %s9, 0
    %p62 = por %p60, %p61
    %p63 = scmp.ne.s32.totalorder %s55, %s57
    %p64 = scmp.eq.s32.totalorder %s14, 3
    %p65 = por %p63, %p64
    %p66 = scmp.ne.s32.totalorder %s57, %s58
    %p67 = scmp.eq.s32.totalorder %s14, 0
    %p68 = por %p66, %p67
    %p69 = scmp.ne.s32.totalorder %s57, %s58
    %p70 = scmp.eq.s32.totalorder %s15, 3
    %p71 = por %p69, %p70
    %p73 = scmp.ne.s32.totalorder %s58, %s72
    %p74 = scmp.eq.s32.totalorder %s15, 0
    %p75 = por %p73, %p74
    %s77 = sadd.s32 %s76, 1
    %p80 = scmp.eq.s32.totalorder %s9, 3
    %p81 = scmp.ne.s32.totalorder %s76, %s78
    %p82 = scmp.eq.s32.totalorder %s9, 0
    %p83 = por %p81, %p82
    %p84 = scmp.ne.s32.totalorder %s76, %s78
    %p85 = scmp.eq.s32.totalorder %s14, 3
    %p86 = por %p84, %p85
    %p87 = scmp.ne.s32.totalorder %s78, %s79
    %p88 = scmp.eq.s32.totalorder %s14, 0
    %p89 = por %p87, %p88
    %p90 = scmp.ne.s32.totalorder %s78, %s79
    %p91 = scmp.eq.s32.totalorder %s15, 3
    %p92 = por %p90, %p91
    %p94 = scmp.ne.s32.totalorder %s79, %s93
    %p95 = scmp.eq.s32.totalorder %s15, 0
    %p96 = por %p94, %p95
    %s97 = ssub.s32 %s16, %s28
    %s98 = ssub.s32 %s17, %s24
    %s99 = sor.u32 %s97, %s98
    %p100 = scmp.eq.s32.totalorder %s99, 0
    %s102 = sadd.s32 %s101, 1
    %s103 = scalar_select %p100, %s101, %s102
    %p106 = pneg %p100
    %p107 = scmp.eq.s32.totalorder %s9, 3
    %p108 = por %p106, %p107
    %p109 = scmp.ne.s32.totalorder %s101, %s104
    %p110 = scmp.eq.s32.totalorder %s9, 0
    %p111 = por %p109, %p110
    %p112 = scmp.ne.s32.totalorder %s101, %s104
    %p113 = scmp.eq.s32.totalorder %s14, 3
    %p114 = por %p112, %p113
    %p115 = scmp.ne.s32.totalorder %s104, %s105
    %p116 = scmp.eq.s32.totalorder %s14, 0
    %p117 = por %p115, %p116
    %p118 = scmp.ne.s32.totalorder %s104, %s105
    %p119 = scmp.eq.s32.totalorder %s15, 3
    %p120 = por %p118, %p119
    %p122 = scmp.ne.s32.totalorder %s105, %s121
    %p123 = scmp.eq.s32.totalorder %s15, 0
    %p124 = por %p122, %p123
    %p125 = scmp.le.s32.totalorder 1, %s9
    %p126 = scmp.lt.s32.totalorder %s9, 5
    %p127 = pnand %p125, %p126
    %p128 = pneg %p127
    // Predicated region
    $region9: #{fishcnn_forward.5} parent=5 // pred_check
      _
    $region10: #{fishcnn_forward.5} parent=5 // pred_check_branch
      %130 = sbr.rel (%p127) target = $region12
    $region11: #{fishcnn_forward.5} parent=5 // pred_region
      %s131 = ssub.s32 %s9, 1
      // Predicated region
      $region13: #{fishcnn_forward.5} parent=11 // pred_check
        %p132 = pneg %p68
      $region14: #{fishcnn_forward.5} parent=11 // pred_check_branch
        %134 = sbr.rel (%p132) target = $region16
      $region15: #{fishcnn_forward.5} parent=11 // pred_region
        _
      $region16: #{fishcnn_forward.5} parent=11 // pred_fallthru
        _
      // Predicated region
      $region17: #{fishcnn_forward.5} parent=11 // pred_check
        %p135 = pneg %p89
      $region18: #{fishcnn_forward.5} parent=11 // pred_check_branch
        %137 = sbr.rel (%p135) target = $region20
      $region19: #{fishcnn_forward.5} parent=11 // pred_region
        _
      $region20: #{fishcnn_forward.5} parent=11 // pred_fallthru
        _
    $region12: #{fishcnn_forward.5} parent=5 // pred_fallthru
      _
    %p138 = scmp.lt.s32.totalorder %s9, 4
    // Predicated region
    $region21: #{fishcnn_forward.5} parent=5 // pred_check
      %p139 = pneg %p138
    $region22: #{fishcnn_forward.5} parent=5 // pred_check_branch
      %141 = sbr.rel (%p139) target = $region24
    $region23: #{fishcnn_forward.5} parent=5 // pred_region
      // Predicated region
      $region25: #{fishcnn_forward.5} parent=23 // pred_check
        %p142 = pneg %p41
      $region26: #{fishcnn_forward.5} parent=23 // pred_check_branch
        %144 = sbr.rel (%p142) target = $region28
      $region27: #{fishcnn_forward.5} parent=23 // pred_region
        %p145 = scmp.lt.s32.totalorder %s16, 1
        %s146 = scalar_select %p145, %s16, 1
        %s147 = smul.addr %s146, 528
        %s148 = smul.addr %s147, 4
        %s149 = scalar_lea.vmem %s0, %s148
      $region28: #{fishcnn_forward.5} parent=23 // pred_fallthru
        _
    $region24: #{fishcnn_forward.5} parent=5 // pred_fallthru
      _
    %p150 = scmp.le.s32.totalorder 1, %s9
    %p151 = scmp.lt.s32.totalorder %s9, 5
    %p152 = pnand %p150, %p151
    %p153 = pneg %p152
    // Predicated region
    $region29: #{fishcnn_forward.5} parent=5 // pred_check
      _
    $region30: #{fishcnn_forward.5} parent=5 // pred_check_branch
      %155 = sbr.rel (%p152) target = $region32
    $region31: #{fishcnn_forward.5} parent=5 // pred_region
      %s156 = ssub.s32 %s9, 1
      %p157 = scmp.lt.s32.totalorder %s18, 1
      %s158 = scalar_select %p157, %s18, 1
      %s159 = smul.addr %s158, 528
      %s160 = smul.addr %s159, 4
      %s161 = scalar_lea.vmem %s0, %s160
      %p162 = pneg %p47
      %p163 = pneg %p44
      %p164 = pneg %p68
      %p165 = pneg %p65
      %p166 = pneg %p89
      %p167 = pneg %p86
      %p168 = pneg %p117
      %p169 = pneg %p114
      %s170 = smul.u32 16, %s19
      %p171 = scmp.lt.s32.totalorder %s18, 1
      %s172 = scalar_select %p171, %s18, 1
      %p173 = scmp.lt.s32.totalorder %s170, 31
      %s174 = scalar_select %p173, %s170, 31
      %s175 = smul.addr %s174, 4
      %s176 = smul.addr %s172, 128
      %s177 = sadd.s32 %s175, %s176
      %s178 = smul.addr %s177, 4
      %s179 = scalar_lea.vmem %s3, %s178
      %p180 = scmp.lt.s32.totalorder %s18, 1
      %s181 = scalar_select %p180, %s18, 1
      %s182 = smul.addr %s181, 528
      %s183 = smul.addr %s182, 4
      %s184 = scalar_lea.vmem %s0, %s183
      %s185 = smul.u32 16, %s19
      %p186 = scmp.lt.s32.totalorder %s18, 1
      %s187 = scalar_select %p186, %s18, 1
      %p188 = scmp.lt.s32.totalorder %s185, 31
      %s189 = scalar_select %p188, %s185, 31
      %s190 = smul.addr %s189, 4
      %s191 = smul.addr %s187, 128
      %s192 = sadd.s32 %s190, %s191
      %s193 = smul.addr %s192, 4
      %s194 = scalar_lea.vmem %s3, %s193
      %s195 = smul.u32 16, %s19
      %v197 = vld [vmem:[%s2] sm:$0x1]
      %s198 = smul.u32 %s19, 16
      loop: start=0, step=1, limit=4
      $region33: #{fishcnn_forward.5} parent=31 // loop_pre_header
        _
      $region34: #{fishcnn_forward.5} parent=31 // loop_header
        %s200 = sphi 0, %s204
        %p201 = scmp.ge.s32.totalorder %s200, 4
      $region35: #{fishcnn_forward.5} parent=31 // loop_header_branch
        %203 = sbr.rel (%p201) target = $region39
      $region36: #{fishcnn_forward.5} parent=31 // loop_body
        %s205 = smul.u32 %s200, 4
        %s206 = sadd.s32 %s198, %s205
        %s207 = smul.u32 %s206, 2
        %s208 = smul.u32 %s207, 8
        %s209 = smul.addr %s208, 4
        %s210 = scalar_lea.vmem %s184, %s209
        %v211 = vld [vmem:[%s210] sm:$0xf]
        %v212 = vld [vmem:[%s210 + $0x4] sm:$0xf]
        %v213 = vld [vmem:[%s210 + $0x8] sm:$0xf]
        %v214 = vld [vmem:[%s210 + $0xc] sm:$0xf]
        %v215 = vld [vmem:[%s210 + $0x10] sm:$0xf]
        %v216 = vld [vmem:[%s210 + $0x14] sm:$0xf]
        %v217 = vld [vmem:[%s210 + $0x18] sm:$0xf]
        %v218 = vld [vmem:[%s210 + $0x1c] sm:$0xf]
        %v219 = vld [vmem:[%s210 + $0x20] sm:$0xf]
        %v220 = vld [vmem:[%s210 + $0x24] sm:$0xf]
        %v221 = vld [vmem:[%s210 + $0x28] sm:$0xf]
        %v222 = vld [vmem:[%s210 + $0x2c] sm:$0xf]
        %v223 = vld [vmem:[%s210 + $0x30] sm:$0xf]
        %v224 = vld [vmem:[%s210 + $0x34] sm:$0xf]
        %v225 = vld [vmem:[%s210 + $0x38] sm:$0xf]
        %v226 = vld [vmem:[%s210 + $0x3c] sm:$0xf]
        %v227 = vld [vmem:[%s210 + $0x40] sm:$0xf]
        %v228 = vld [vmem:[%s210 + $0x44] sm:$0xf]
        %v229 = vld [vmem:[%s210 + $0x48] sm:$0xf]
        %v230 = vld [vmem:[%s210 + $0x4c] sm:$0xf]
        %v231 = vld [vmem:[%s210 + $0x50] sm:$0xf]
        %v232 = vld [vmem:[%s210 + $0x54] sm:$0xf]
        %v233 = vld [vmem:[%s210 + $0x58] sm:$0xf]
        %v234 = vld [vmem:[%s210 + $0x5c] sm:$0xf]
        %v235 = vld [vmem:[%s210 + $0x60] sm:$0xf]
        %v236 = vld [vmem:[%s210 + $0x64] sm:$0xf]
        %v237 = vld [vmem:[%s210 + $0x68] sm:$0xf]
        %v238 = vld [vmem:[%s210 + $0x6c] sm:$0xf]
        %v239 = vld [vmem:[%s210 + $0x70] sm:$0xf]
        %v240 = vld [vmem:[%s210 + $0x74] sm:$0xf]
        %v241 = vld [vmem:[%s210 + $0x78] sm:$0xf]
        %v242 = vld [vmem:[%s210 + $0x7c] sm:$0xf]
        %v243 = vld [vmem:[%s210 + $0x80] sm:$0xf]
        %v244 = vld [vmem:[%s210 + $0x84] sm:$0xf]
        %v245 = vld [vmem:[%s210 + $0x88] sm:$0xf]
        %v246 = vld [vmem:[%s210 + $0x8c] sm:$0xf]
        %v247 = vld [vmem:[%s210 + $0x90] sm:$0xf]
        %v248 = vld [vmem:[%s210 + $0x94] sm:$0xf]
        %v249 = vld [vmem:[%s210 + $0x98] sm:$0xf]
        %v250 = vld [vmem:[%s210 + $0x9c] sm:$0xf]
        %v251 = vld [vmem:[%s210 + $0xa0] sm:$0xf]
        %v252 = vld [vmem:[%s210 + $0xa4] sm:$0xf]
        %v253 = vld [vmem:[%s210 + $0xa8] sm:$0xf]
        %v254 = vld [vmem:[%s210 + $0xac] sm:$0xf]
        %v255 = vld [vmem:[%s210 + $0xb0] sm:$0xf]
        %v256 = vld [vmem:[%s210 + $0xb4] sm:$0xf]
        %v257 = vld [vmem:[%s210 + $0xb8] sm:$0xf]
        %v258 = vld [vmem:[%s210 + $0xbc] sm:$0xf]
        %v259 = vld [vmem:[%s210 + $0xc0] sm:$0xf]
        %v260 = vld [vmem:[%s210 + $0xc4] sm:$0xf]
        %v261 = vld [vmem:[%s210 + $0xc8] sm:$0xf]
        %v262 = vld [vmem:[%s210 + $0xcc] sm:$0xf]
        %v263 = vld [vmem:[%s210 + $0xd0] sm:$0xf]
        %v264 = vld [vmem:[%s210 + $0xd4] sm:$0xf]
        %v265 = vld [vmem:[%s210 + $0xd8] sm:$0xf]
        %v266 = vld [vmem:[%s210 + $0xdc] sm:$0xf]
        %v267 = vld [vmem:[%s210 + $0xe0] sm:$0xf]
        %v268 = vld [vmem:[%s210 + $0xe4] sm:$0xf]
        %v269 = vld [vmem:[%s210 + $0xe8] sm:$0xf]
        %v270 = vld [vmem:[%s210 + $0xec] sm:$0xf]
        %v271 = vld [vmem:[%s210 + $0xf0] sm:$0xf]
        %v272 = vld [vmem:[%s210 + $0xf4] sm:$0xf]
        %v273 = vld [vmem:[%s210 + $0xf8] sm:$0xf]
        %v274 = vld [vmem:[%s210 + $0xfc] sm:$0xf]
        %v275 = vld [vmem:[%s1] sm:$0xf]
        %v276 = vld [vmem:[%s1 + $0x4] sm:$0xf]
        %v277 = vld [vmem:[%s1 + $0x8] sm:$0xf]
        %v278 = vld [vmem:[%s1 + $0xc] sm:$0xf]
        %v279 = vld [vmem:[%s1 + $0x10] sm:$0xf]
        %v280 = vld [vmem:[%s1 + $0x14] sm:$0xf]
        %v281 = vld [vmem:[%s1 + $0x18] sm:$0xf]
        %v282 = vld [vmem:[%s1 + $0x1c] sm:$0xf]
        %v283 = vld [vmem:[%s1 + $0x20] sm:$0xf]
        %v284 = vld [vmem:[%s1 + $0x24] sm:$0xf]
        %v285 = vld [vmem:[%s1 + $0x28] sm:$0xf]
        %v286 = vld [vmem:[%s1 + $0x2c] sm:$0xf]
        %s287 = sadd.s32 %s207, 1
        %s288 = smul.u32 %s287, 8
        %s289 = smul.addr %s288, 4
        %s290 = scalar_lea.vmem %s184, %s289
        %v291 = vld [vmem:[%s290] sm:$0xf]
        %v292 = vld [vmem:[%s290 + $0x4] sm:$0xf]
        %v293 = vld [vmem:[%s290 + $0x8] sm:$0xf]
        %v294 = vld [vmem:[%s290 + $0xc] sm:$0xf]
        %v295 = vld [vmem:[%s290 + $0x10] sm:$0xf]
        %v296 = vld [vmem:[%s290 + $0x14] sm:$0xf]
        %v297 = vld [vmem:[%s290 + $0x18] sm:$0xf]
        %v298 = vld [vmem:[%s290 + $0x1c] sm:$0xf]
        %v299 = vld [vmem:[%s290 + $0x20] sm:$0xf]
        %v300 = vld [vmem:[%s290 + $0x24] sm:$0xf]
        %v301 = vld [vmem:[%s290 + $0x28] sm:$0xf]
        %v302 = vld [vmem:[%s290 + $0x2c] sm:$0xf]
        %v303 = vld [vmem:[%s290 + $0x30] sm:$0xf]
        %v304 = vld [vmem:[%s290 + $0x34] sm:$0xf]
        %v305 = vld [vmem:[%s290 + $0x38] sm:$0xf]
        %v306 = vld [vmem:[%s290 + $0x3c] sm:$0xf]
        %v307 = vld [vmem:[%s290 + $0x40] sm:$0xf]
        %v308 = vld [vmem:[%s290 + $0x44] sm:$0xf]
        %v309 = vld [vmem:[%s290 + $0x48] sm:$0xf]
        %v310 = vld [vmem:[%s290 + $0x4c] sm:$0xf]
        %v311 = vld [vmem:[%s290 + $0x50] sm:$0xf]
        %v312 = vld [vmem:[%s290 + $0x54] sm:$0xf]
        %v313 = vld [vmem:[%s290 + $0x58] sm:$0xf]
        %v314 = vld [vmem:[%s290 + $0x5c] sm:$0xf]
        %v315 = vld [vmem:[%s290 + $0x60] sm:$0xf]
        %v316 = vld [vmem:[%s290 + $0x64] sm:$0xf]
        %v317 = vld [vmem:[%s290 + $0x68] sm:$0xf]
        %v318 = vld [vmem:[%s290 + $0x6c] sm:$0xf]
        %v319 = vld [vmem:[%s290 + $0x70] sm:$0xf]
        %v320 = vld [vmem:[%s290 + $0x74] sm:$0xf]
        %v321 = vld [vmem:[%s290 + $0x78] sm:$0xf]
        %v322 = vld [vmem:[%s290 + $0x7c] sm:$0xf]
        %v323 = vld [vmem:[%s290 + $0x80] sm:$0xf]
        %v324 = vld [vmem:[%s290 + $0x84] sm:$0xf]
        %v325 = vld [vmem:[%s290 + $0x88] sm:$0xf]
        %v326 = vld [vmem:[%s290 + $0x8c] sm:$0xf]
        %v327 = vld [vmem:[%s290 + $0x90] sm:$0xf]
        %v328 = vld [vmem:[%s290 + $0x94] sm:$0xf]
        %v329 = vld [vmem:[%s290 + $0x98] sm:$0xf]
        %v330 = vld [vmem:[%s290 + $0x9c] sm:$0xf]
        %v331 = vld [vmem:[%s290 + $0xa0] sm:$0xf]
        %v332 = vld [vmem:[%s290 + $0xa4] sm:$0xf]
        %v333 = vld [vmem:[%s290 + $0xa8] sm:$0xf]
        %v334 = vld [vmem:[%s290 + $0xac] sm:$0xf]
        %v335 = vld [vmem:[%s290 + $0xb0] sm:$0xf]
        %v336 = vld [vmem:[%s290 + $0xb4] sm:$0xf]
        %v337 = vld [vmem:[%s290 + $0xb8] sm:$0xf]
        %v338 = vld [vmem:[%s290 + $0xbc] sm:$0xf]
        %v339 = vld [vmem:[%s290 + $0xc0] sm:$0xf]
        %v340 = vld [vmem:[%s290 + $0xc4] sm:$0xf]
        %v341 = vld [vmem:[%s290 + $0xc8] sm:$0xf]
        %v342 = vld [vmem:[%s290 + $0xcc] sm:$0xf]
        %v343 = vld [vmem:[%s290 + $0xd0] sm:$0xf]
        %v344 = vld [vmem:[%s290 + $0xd4] sm:$0xf]
        %v345 = vld [vmem:[%s290 + $0xd8] sm:$0xf]
        %v346 = vld [vmem:[%s290 + $0xdc] sm:$0xf]
        %v347 = vld [vmem:[%s290 + $0xe0] sm:$0xf]
        %v348 = vld [vmem:[%s290 + $0xe4] sm:$0xf]
        %v349 = vld [vmem:[%s290 + $0xe8] sm:$0xf]
        %v350 = vld [vmem:[%s290 + $0xec] sm:$0xf]
        %v351 = vld [vmem:[%s290 + $0xf0] sm:$0xf]
        %v352 = vld [vmem:[%s290 + $0xf4] sm:$0xf]
        %v353 = vld [vmem:[%s290 + $0xf8] sm:$0xf]
        %v354 = vld [vmem:[%s290 + $0xfc] sm:$0xf]
        %s355 = scalar_lea.vmem %s1, 48
        %v356 = vld [vmem:[%s355] sm:$0xf]
        %v357 = vld [vmem:[%s355 + $0x4] sm:$0xf]
        %v358 = vld [vmem:[%s355 + $0x8] sm:$0xf]
        %v359 = vld [vmem:[%s355 + $0xc] sm:$0xf]
        %v360 = vld [vmem:[%s355 + $0x10] sm:$0xf]
        %v361 = vld [vmem:[%s355 + $0x14] sm:$0xf]
        %v362 = vld [vmem:[%s355 + $0x18] sm:$0xf]
        %v363 = vld [vmem:[%s355 + $0x1c] sm:$0xf]
        %v364 = vld [vmem:[%s355 + $0x20] sm:$0xf]
        %v365 = vld [vmem:[%s355 + $0x24] sm:$0xf]
        %v366 = vld [vmem:[%s355 + $0x28] sm:$0xf]
        %v367 = vld [vmem:[%s355 + $0x2c] sm:$0xf]
        %v432 = vunpack.c.l.b16 %v291
        %v433 = vunpack.c.l.b16 %v292
        %v434 = vunpack.c.l.b16 %v293
        %v435 = vunpack.c.l.b16 %v294
        %v436 = vunpack.c.l.b16 %v295
        %v437 = vunpack.c.l.b16 %v296
        %v438 = vunpack.c.l.b16 %v297
        %v439 = vunpack.c.l.b16 %v298
        %v440 = vunpack.c.l.b16 %v299
        %v441 = vunpack.c.l.b16 %v300
        %v442 = vunpack.c.l.b16 %v301
        %v443 = vunpack.c.l.b16 %v302
        %v444 = vunpack.c.l.b16 %v303
        %v445 = vunpack.c.l.b16 %v304
        %v446 = vunpack.c.l.b16 %v305
        %v447 = vunpack.c.l.b16 %v306
        %v448 = vunpack.c.l.b16 %v307
        %v449 = vunpack.c.l.b16 %v308
        %v450 = vunpack.c.l.b16 %v309
        %v451 = vunpack.c.l.b16 %v310
        %v452 = vunpack.c.l.b16 %v311
        %v453 = vunpack.c.l.b16 %v312
        %v454 = vunpack.c.l.b16 %v313
        %v455 = vunpack.c.l.b16 %v314
        %v456 = vunpack.c.l.b16 %v315
        %v457 = vunpack.c.l.b16 %v316
        %v458 = vunpack.c.l.b16 %v317
        %v459 = vunpack.c.l.b16 %v318
        %v460 = vunpack.c.l.b16 %v319
        %v461 = vunpack.c.l.b16 %v320
        %v462 = vunpack.c.l.b16 %v321
        %v463 = vunpack.c.l.b16 %v322
        %v464 = vunpack.c.l.b16 %v323
        %v465 = vunpack.c.l.b16 %v324
        %v466 = vunpack.c.l.b16 %v325
        %v467 = vunpack.c.l.b16 %v326
        %v468 = vunpack.c.l.b16 %v327
        %v469 = vunpack.c.l.b16 %v328
        %v470 = vunpack.c.l.b16 %v329
        %v471 = vunpack.c.l.b16 %v330
        %v472 = vunpack.c.l.b16 %v331
        %v473 = vunpack.c.l.b16 %v332
        %v474 = vunpack.c.l.b16 %v333
        %v475 = vunpack.c.l.b16 %v334
        %v476 = vunpack.c.l.b16 %v335
        %v477 = vunpack.c.l.b16 %v336
        %v478 = vunpack.c.l.b16 %v337
        %v479 = vunpack.c.l.b16 %v338
        %v480 = vunpack.c.l.b16 %v339
        %v481 = vunpack.c.l.b16 %v340
        %v482 = vunpack.c.l.b16 %v341
        %v483 = vunpack.c.l.b16 %v342
        %v484 = vunpack.c.l.b16 %v343
        %v485 = vunpack.c.l.b16 %v344
        %v486 = vunpack.c.l.b16 %v345
        %v487 = vunpack.c.l.b16 %v346
        %v488 = vunpack.c.l.b16 %v347
        %v489 = vunpack.c.l.b16 %v348
        %v490 = vunpack.c.l.b16 %v349
        %v491 = vunpack.c.l.b16 %v350
        %v492 = vunpack.c.l.b16 %v351
        %v493 = vunpack.c.l.b16 %v352
        %v494 = vunpack.c.l.b16 %v353
        %v495 = vunpack.c.l.b16 %v354
        %v496 = vpack.c.b16 %v433, %v432
        %v497 = vpack.c.b16 %v435, %v434
        %v498 = vpack.c.b16 %v437, %v436
        %v499 = vpack.c.b16 %v439, %v438
        %v500 = vpack.c.b16 %v441, %v440
        %v501 = vpack.c.b16 %v443, %v442
        %v502 = vpack.c.b16 %v445, %v444
        %v503 = vpack.c.b16 %v447, %v446
        %v504 = vpack.c.b16 %v449, %v448
        %v505 = vpack.c.b16 %v451, %v450
        %v506 = vpack.c.b16 %v453, %v452
        %v507 = vpack.c.b16 %v455, %v454
        %v508 = vpack.c.b16 %v457, %v456
        %v509 = vpack.c.b16 %v459, %v458
        %v510 = vpack.c.b16 %v461, %v460
        %v511 = vpack.c.b16 %v463, %v462
        %v512 = vpack.c.b16 %v465, %v464
        %v513 = vpack.c.b16 %v467, %v466
        %v514 = vpack.c.b16 %v469, %v468
        %v515 = vpack.c.b16 %v471, %v470
        %v516 = vpack.c.b16 %v473, %v472
        %v517 = vpack.c.b16 %v475, %v474
        %v518 = vpack.c.b16 %v477, %v476
        %v519 = vpack.c.b16 %v479, %v478
        %v520 = vpack.c.b16 %v481, %v480
        %v521 = vpack.c.b16 %v483, %v482
        %v522 = vpack.c.b16 %v485, %v484
        %v523 = vpack.c.b16 %v487, %v486
        %v524 = vpack.c.b16 %v489, %v488
        %v525 = vpack.c.b16 %v491, %v490
        %v526 = vpack.c.b16 %v493, %v492
        %v527 = vpack.c.b16 %v495, %v494
        %v540 = vunpack.c.l.b16 %v356
        %v541 = vunpack.c.l.b16 %v357
        %v542 = vunpack.c.l.b16 %v358
        %v543 = vunpack.c.l.b16 %v359
        %v544 = vunpack.c.l.b16 %v360
        %v545 = vunpack.c.l.b16 %v361
        %v546 = vunpack.c.l.b16 %v362
        %v547 = vunpack.c.l.b16 %v363
        %v548 = vunpack.c.l.b16 %v364
        %v549 = vunpack.c.l.b16 %v365
        %v550 = vunpack.c.l.b16 %v366
        %v551 = vunpack.c.l.b16 %v367
        %v552 = vpack.c.b16 %v541, %v540
        %v553 = vpack.c.b16 %v543, %v542
        %v554 = vpack.c.b16 %v545, %v544
        %v555 = vpack.c.b16 %v547, %v546
        %v556 = vpack.c.b16 %v549, %v548
        %v557 = vpack.c.b16 %v551, %v550
        %vm564 = vcmask 785408
        %v566 = vsel %vm564, %v496, 0
        %v569 = vsel %vm564, %v497, 0
        %v572 = vsel %vm564, %v498, 0
        %v575 = vsel %vm564, %v499, 0
        %v578 = vsel %vm564, %v500, 0
        %v581 = vsel %vm564, %v501, 0
        %v584 = vsel %vm564, %v502, 0
        %v587 = vsel %vm564, %v503, 0
        %v590 = vsel %vm564, %v504, 0
        %v593 = vsel %vm564, %v505, 0
        %v596 = vsel %vm564, %v506, 0
        %v599 = vsel %vm564, %v507, 0
        %v602 = vsel %vm564, %v508, 0
        %v605 = vsel %vm564, %v509, 0
        %v608 = vsel %vm564, %v510, 0
        %v611 = vsel %vm564, %v511, 0
        %v614 = vsel %vm564, %v512, 0
        %v617 = vsel %vm564, %v513, 0
        %v620 = vsel %vm564, %v514, 0
        %v623 = vsel %vm564, %v515, 0
        %v626 = vsel %vm564, %v516, 0
        %v629 = vsel %vm564, %v517, 0
        %v632 = vsel %vm564, %v518, 0
        %v635 = vsel %vm564, %v519, 0
        %v638 = vsel %vm564, %v520, 0
        %v641 = vsel %vm564, %v521, 0
        %v644 = vsel %vm564, %v522, 0
        %v647 = vsel %vm564, %v523, 0
        %v650 = vsel %vm564, %v524, 0
        %v653 = vsel %vm564, %v525, 0
        %v656 = vsel %vm564, %v526, 0
        %v659 = vsel %vm564, %v527, 0
        %661 = vmatpush.bf16.msra.mxu0 0
        %662 = vmatpush.bf16.msra.mxu0 0
        %663 = vmatpush.bf16.msra.mxu0 %v557
        %664 = vmatpush.bf16.msra.mxu0 %v556
        %665 = vmatpush.bf16.msra.mxu0 %v555
        %666 = vmatpush.bf16.msra.mxu0 %v554
        %667 = vmatpush.bf16.msra.mxu0 %v553
        %668 = vmatpush.bf16.msra.mxu0 %v552
        %669 = vmatmul.bf16.gmra.mxu0 %v566
        %v670 = vpop.f32.mrf.mxu0
        %v671 = vadd.f32 0.0, %v670
        %v672 = vpop.f32.mrf.mxu0
        %v673 = vadd.f32 0.0, %v672
        %674 = vmatmul.bf16.gmra.mxu0 %v569
        %v675 = vpop.f32.mrf.mxu0
        %v676 = vadd.f32 0.0, %v675
        %v677 = vpop.f32.mrf.mxu0
        %v678 = vadd.f32 0.0, %v677
        %679 = vmatmul.bf16.gmra.mxu0 %v572
        %v680 = vpop.f32.mrf.mxu0
        %v681 = vadd.f32 0.0, %v680
        %v682 = vpop.f32.mrf.mxu0
        %v683 = vadd.f32 0.0, %v682
        %684 = vmatmul.bf16.gmra.mxu0 %v575
        %v685 = vpop.f32.mrf.mxu0
        %v686 = vadd.f32 0.0, %v685
        %v687 = vpop.f32.mrf.mxu0
        %v688 = vadd.f32 0.0, %v687
        %689 = vmatmul.bf16.gmra.mxu0 %v578
        %v690 = vpop.f32.mrf.mxu0
        %v691 = vadd.f32 0.0, %v690
        %v692 = vpop.f32.mrf.mxu0
        %v693 = vadd.f32 0.0, %v692
        %694 = vmatmul.bf16.gmra.mxu0 %v581
        %v695 = vpop.f32.mrf.mxu0
        %v696 = vadd.f32 0.0, %v695
        %v697 = vpop.f32.mrf.mxu0
        %v698 = vadd.f32 0.0, %v697
        %699 = vmatmul.bf16.gmra.mxu0 %v584
        %v700 = vpop.f32.mrf.mxu0
        %v701 = vadd.f32 0.0, %v700
        %v702 = vpop.f32.mrf.mxu0
        %v703 = vadd.f32 0.0, %v702
        %704 = vmatmul.bf16.gmra.mxu0 %v587
        %v705 = vpop.f32.mrf.mxu0
        %v706 = vadd.f32 0.0, %v705
        %v707 = vpop.f32.mrf.mxu0
        %v708 = vadd.f32 0.0, %v707
        %709 = vmatmul.bf16.gmra.mxu0 %v590
        %v710 = vpop.f32.mrf.mxu0
        %v711 = vadd.f32 0.0, %v710
        %v712 = vpop.f32.mrf.mxu0
        %v713 = vadd.f32 0.0, %v712
        %714 = vmatmul.bf16.gmra.mxu0 %v593
        %v715 = vpop.f32.mrf.mxu0
        %v716 = vadd.f32 0.0, %v715
        %v717 = vpop.f32.mrf.mxu0
        %v718 = vadd.f32 0.0, %v717
        %719 = vmatmul.bf16.gmra.mxu0 %v596
        %v720 = vpop.f32.mrf.mxu0
        %v721 = vadd.f32 0.0, %v720
        %v722 = vpop.f32.mrf.mxu0
        %v723 = vadd.f32 0.0, %v722
        %724 = vmatmul.bf16.gmra.mxu0 %v599
        %v725 = vpop.f32.mrf.mxu0
        %v726 = vadd.f32 0.0, %v725
        %v727 = vpop.f32.mrf.mxu0
        %v728 = vadd.f32 0.0, %v727
        %729 = vmatmul.bf16.gmra.mxu0 %v602
        %v730 = vpop.f32.mrf.mxu0
        %v731 = vadd.f32 0.0, %v730
        %v732 = vpop.f32.mrf.mxu0
        %v733 = vadd.f32 0.0, %v732
        %734 = vmatmul.bf16.gmra.mxu0 %v605
        %v735 = vpop.f32.mrf.mxu0
        %v736 = vadd.f32 0.0, %v735
        %v737 = vpop.f32.mrf.mxu0
        %v738 = vadd.f32 0.0, %v737
        %739 = vmatmul.bf16.gmra.mxu0 %v608
        %v740 = vpop.f32.mrf.mxu0
        %v741 = vadd.f32 0.0, %v740
        %v742 = vpop.f32.mrf.mxu0
        %v743 = vadd.f32 0.0, %v742
        %744 = vmatmul.bf16.gmra.mxu0 %v611
        %v745 = vpop.f32.mrf.mxu0
        %v746 = vadd.f32 0.0, %v745
        %v747 = vpop.f32.mrf.mxu0
        %v748 = vadd.f32 0.0, %v747
        %749 = vmatmul.bf16.gmra.mxu0 %v614
        %v750 = vpop.f32.mrf.mxu0
        %v751 = vadd.f32 0.0, %v750
        %v752 = vpop.f32.mrf.mxu0
        %v753 = vadd.f32 0.0, %v752
        %754 = vmatmul.bf16.gmra.mxu0 %v617
        %v755 = vpop.f32.mrf.mxu0
        %v756 = vadd.f32 0.0, %v755
        %v757 = vpop.f32.mrf.mxu0
        %v758 = vadd.f32 0.0, %v757
        %759 = vmatmul.bf16.gmra.mxu0 %v620
        %v760 = vpop.f32.mrf.mxu0
        %v761 = vadd.f32 0.0, %v760
        %v762 = vpop.f32.mrf.mxu0
        %v763 = vadd.f32 0.0, %v762
        %764 = vmatmul.bf16.gmra.mxu0 %v623
        %v765 = vpop.f32.mrf.mxu0
        %v766 = vadd.f32 0.0, %v765
        %v767 = vpop.f32.mrf.mxu0
        %v768 = vadd.f32 0.0, %v767
        %769 = vmatmul.bf16.gmra.mxu0 %v626
        %v770 = vpop.f32.mrf.mxu0
        %v771 = vadd.f32 0.0, %v770
        %v772 = vpop.f32.mrf.mxu0
        %v773 = vadd.f32 0.0, %v772
        %774 = vmatmul.bf16.gmra.mxu0 %v629
        %v775 = vpop.f32.mrf.mxu0
        %v776 = vadd.f32 0.0, %v775
        %v777 = vpop.f32.mrf.mxu0
        %v778 = vadd.f32 0.0, %v777
        %779 = vmatmul.bf16.gmra.mxu0 %v632
        %v780 = vpop.f32.mrf.mxu0
        %v781 = vadd.f32 0.0, %v780
        %v782 = vpop.f32.mrf.mxu0
        %v783 = vadd.f32 0.0, %v782
        %784 = vmatmul.bf16.gmra.mxu0 %v635
        %v785 = vpop.f32.mrf.mxu0
        %v786 = vadd.f32 0.0, %v785
        %v787 = vpop.f32.mrf.mxu0
        %v788 = vadd.f32 0.0, %v787
        %789 = vmatmul.bf16.gmra.mxu0 %v638
        %v790 = vpop.f32.mrf.mxu0
        %v791 = vadd.f32 0.0, %v790
        %v792 = vpop.f32.mrf.mxu0
        %v793 = vadd.f32 0.0, %v792
        %794 = vmatmul.bf16.gmra.mxu0 %v641
        %v795 = vpop.f32.mrf.mxu0
        %v796 = vadd.f32 0.0, %v795
        %v797 = vpop.f32.mrf.mxu0
        %v798 = vadd.f32 0.0, %v797
        %799 = vmatmul.bf16.gmra.mxu0 %v644
        %v800 = vpop.f32.mrf.mxu0
        %v801 = vadd.f32 0.0, %v800
        %v802 = vpop.f32.mrf.mxu0
        %v803 = vadd.f32 0.0, %v802
        %804 = vmatmul.bf16.gmra.mxu0 %v647
        %v805 = vpop.f32.mrf.mxu0
        %v806 = vadd.f32 0.0, %v805
        %v807 = vpop.f32.mrf.mxu0
        %v808 = vadd.f32 0.0, %v807
        %809 = vmatmul.bf16.gmra.mxu0 %v650
        %v810 = vpop.f32.mrf.mxu0
        %v811 = vadd.f32 0.0, %v810
        %v812 = vpop.f32.mrf.mxu0
        %v813 = vadd.f32 0.0, %v812
        %814 = vmatmul.bf16.gmra.mxu0 %v653
        %v815 = vpop.f32.mrf.mxu0
        %v816 = vadd.f32 0.0, %v815
        %v817 = vpop.f32.mrf.mxu0
        %v818 = vadd.f32 0.0, %v817
        %819 = vmatmul.bf16.gmra.mxu0 %v656
        %v820 = vpop.f32.mrf.mxu0
        %v821 = vadd.f32 0.0, %v820
        %v822 = vpop.f32.mrf.mxu0
        %v823 = vadd.f32 0.0, %v822
        %824 = vmatmul.bf16.gmra.mxu0 %v659
        %v825 = vpop.f32.mrf.mxu0
        %v826 = vadd.f32 0.0, %v825
        %v827 = vpop.f32.mrf.mxu0
        %v828 = vadd.f32 0.0, %v827
        %829 = vdwg.mxu0
        %v894 = vunpack.c.l.b16 %v211
        %v895 = vunpack.c.l.b16 %v212
        %v896 = vunpack.c.l.b16 %v213
        %v897 = vunpack.c.l.b16 %v214
        %v898 = vunpack.c.l.b16 %v215
        %v899 = vunpack.c.l.b16 %v216
        %v900 = vunpack.c.l.b16 %v217
        %v901 = vunpack.c.l.b16 %v218
        %v902 = vunpack.c.l.b16 %v219
        %v903 = vunpack.c.l.b16 %v220
        %v904 = vunpack.c.l.b16 %v221
        %v905 = vunpack.c.l.b16 %v222
        %v906 = vunpack.c.l.b16 %v223
        %v907 = vunpack.c.l.b16 %v224
        %v908 = vunpack.c.l.b16 %v225
        %v909 = vunpack.c.l.b16 %v226
        %v910 = vunpack.c.l.b16 %v227
        %v911 = vunpack.c.l.b16 %v228
        %v912 = vunpack.c.l.b16 %v229
        %v913 = vunpack.c.l.b16 %v230
        %v914 = vunpack.c.l.b16 %v231
        %v915 = vunpack.c.l.b16 %v232
        %v916 = vunpack.c.l.b16 %v233
        %v917 = vunpack.c.l.b16 %v234
        %v918 = vunpack.c.l.b16 %v235
        %v919 = vunpack.c.l.b16 %v236
        %v920 = vunpack.c.l.b16 %v237
        %v921 = vunpack.c.l.b16 %v238
        %v922 = vunpack.c.l.b16 %v239
        %v923 = vunpack.c.l.b16 %v240
        %v924 = vunpack.c.l.b16 %v241
        %v925 = vunpack.c.l.b16 %v242
        %v926 = vunpack.c.l.b16 %v243
        %v927 = vunpack.c.l.b16 %v244
        %v928 = vunpack.c.l.b16 %v245
        %v929 = vunpack.c.l.b16 %v246
        %v930 = vunpack.c.l.b16 %v247
        %v931 = vunpack.c.l.b16 %v248
        %v932 = vunpack.c.l.b16 %v249
        %v933 = vunpack.c.l.b16 %v250
        %v934 = vunpack.c.l.b16 %v251
        %v935 = vunpack.c.l.b16 %v252
        %v936 = vunpack.c.l.b16 %v253
        %v937 = vunpack.c.l.b16 %v254
        %v938 = vunpack.c.l.b16 %v255
        %v939 = vunpack.c.l.b16 %v256
        %v940 = vunpack.c.l.b16 %v257
        %v941 = vunpack.c.l.b16 %v258
        %v942 = vunpack.c.l.b16 %v259
        %v943 = vunpack.c.l.b16 %v260
        %v944 = vunpack.c.l.b16 %v261
        %v945 = vunpack.c.l.b16 %v262
        %v946 = vunpack.c.l.b16 %v263
        %v947 = vunpack.c.l.b16 %v264
        %v948 = vunpack.c.l.b16 %v265
        %v949 = vunpack.c.l.b16 %v266
        %v950 = vunpack.c.l.b16 %v267
        %v951 = vunpack.c.l.b16 %v268
        %v952 = vunpack.c.l.b16 %v269
        %v953 = vunpack.c.l.b16 %v270
        %v954 = vunpack.c.l.b16 %v271
        %v955 = vunpack.c.l.b16 %v272
        %v956 = vunpack.c.l.b16 %v273
        %v957 = vunpack.c.l.b16 %v274
        %v958 = vpack.c.b16 %v895, %v894
        %v959 = vpack.c.b16 %v897, %v896
        %v960 = vpack.c.b16 %v899, %v898
        %v961 = vpack.c.b16 %v901, %v900
        %v962 = vpack.c.b16 %v903, %v902
        %v963 = vpack.c.b16 %v905, %v904
        %v964 = vpack.c.b16 %v907, %v906
        %v965 = vpack.c.b16 %v909, %v908
        %v966 = vpack.c.b16 %v911, %v910
        %v967 = vpack.c.b16 %v913, %v912
        %v968 = vpack.c.b16 %v915, %v914
        %v969 = vpack.c.b16 %v917, %v916
        %v970 = vpack.c.b16 %v919, %v918
        %v971 = vpack.c.b16 %v921, %v920
        %v972 = vpack.c.b16 %v923, %v922
        %v973 = vpack.c.b16 %v925, %v924
        %v974 = vpack.c.b16 %v927, %v926
        %v975 = vpack.c.b16 %v929, %v928
        %v976 = vpack.c.b16 %v931, %v930
        %v977 = vpack.c.b16 %v933, %v932
        %v978 = vpack.c.b16 %v935, %v934
        %v979 = vpack.c.b16 %v937, %v936
        %v980 = vpack.c.b16 %v939, %v938
        %v981 = vpack.c.b16 %v941, %v940
        %v982 = vpack.c.b16 %v943, %v942
        %v983 = vpack.c.b16 %v945, %v944
        %v984 = vpack.c.b16 %v947, %v946
        %v985 = vpack.c.b16 %v949, %v948
        %v986 = vpack.c.b16 %v951, %v950
        %v987 = vpack.c.b16 %v953, %v952
        %v988 = vpack.c.b16 %v955, %v954
        %v989 = vpack.c.b16 %v957, %v956
        %v1002 = vunpack.c.l.b16 %v275
        %v1003 = vunpack.c.l.b16 %v276
        %v1004 = vunpack.c.l.b16 %v277
        %v1005 = vunpack.c.l.b16 %v278
        %v1006 = vunpack.c.l.b16 %v279
        %v1007 = vunpack.c.l.b16 %v280
        %v1008 = vunpack.c.l.b16 %v281
        %v1009 = vunpack.c.l.b16 %v282
        %v1010 = vunpack.c.l.b16 %v283
        %v1011 = vunpack.c.l.b16 %v284
        %v1012 = vunpack.c.l.b16 %v285
        %v1013 = vunpack.c.l.b16 %v286
        %v1014 = vpack.c.b16 %v1003, %v1002
        %v1015 = vpack.c.b16 %v1005, %v1004
        %v1016 = vpack.c.b16 %v1007, %v1006
        %v1017 = vpack.c.b16 %v1009, %v1008
        %v1018 = vpack.c.b16 %v1011, %v1010
        %v1019 = vpack.c.b16 %v1013, %v1012
        %v1027 = vsel %vm564, %v958, 0
        %v1030 = vsel %vm564, %v959, 0
        %v1033 = vsel %vm564, %v960, 0
        %v1036 = vsel %vm564, %v961, 0
        %v1039 = vsel %vm564, %v962, 0
        %v1042 = vsel %vm564, %v963, 0
        %v1045 = vsel %vm564, %v964, 0
        %v1048 = vsel %vm564, %v965, 0
        %v1051 = vsel %vm564, %v966, 0
        %v1054 = vsel %vm564, %v967, 0
        %v1057 = vsel %vm564, %v968, 0
        %v1060 = vsel %vm564, %v969, 0
        %v1063 = vsel %vm564, %v970, 0
        %v1066 = vsel %vm564, %v971, 0
        %v1069 = vsel %vm564, %v972, 0
        %v1072 = vsel %vm564, %v973, 0
        %v1075 = vsel %vm564, %v974, 0
        %v1078 = vsel %vm564, %v975, 0
        %v1081 = vsel %vm564, %v976, 0
        %v1084 = vsel %vm564, %v977, 0
        %v1087 = vsel %vm564, %v978, 0
        %v1090 = vsel %vm564, %v979, 0
        %v1093 = vsel %vm564, %v980, 0
        %v1096 = vsel %vm564, %v981, 0
        %v1099 = vsel %vm564, %v982, 0
        %v1102 = vsel %vm564, %v983, 0
        %v1105 = vsel %vm564, %v984, 0
        %v1108 = vsel %vm564, %v985, 0
        %v1111 = vsel %vm564, %v986, 0
        %v1114 = vsel %vm564, %v987, 0
        %v1117 = vsel %vm564, %v988, 0
        %v1120 = vsel %vm564, %v989, 0
        %1122 = vmatpush.bf16.msra.mxu0 0
        %1123 = vmatpush.bf16.msra.mxu0 0
        %1124 = vmatpush.bf16.msra.mxu0 %v1019
        %1125 = vmatpush.bf16.msra.mxu0 %v1018
        %1126 = vmatpush.bf16.msra.mxu0 %v1017
        %1127 = vmatpush.bf16.msra.mxu0 %v1016
        %1128 = vmatpush.bf16.msra.mxu0 %v1015
        %1129 = vmatpush.bf16.msra.mxu0 %v1014
        %1130 = vmatmul.bf16.gmra.mxu0 %v1027
        %v1131 = vpop.f32.mrf.mxu0
        %v1132 = vadd.f32 %v671, %v1131
        %v1133 = vpop.f32.mrf.mxu0
        %v1134 = vadd.f32 %v673, %v1133
        %1135 = vmatmul.bf16.gmra.mxu0 %v1030
        %v1136 = vpop.f32.mrf.mxu0
        %v1137 = vadd.f32 %v676, %v1136
        %v1138 = vpop.f32.mrf.mxu0
        %v1139 = vadd.f32 %v678, %v1138
        %1140 = vmatmul.bf16.gmra.mxu0 %v1033
        %v1141 = vpop.f32.mrf.mxu0
        %v1142 = vadd.f32 %v681, %v1141
        %v1143 = vpop.f32.mrf.mxu0
        %v1144 = vadd.f32 %v683, %v1143
        %1145 = vmatmul.bf16.gmra.mxu0 %v1036
        %v1146 = vpop.f32.mrf.mxu0
        %v1147 = vadd.f32 %v686, %v1146
        %v1148 = vpop.f32.mrf.mxu0
        %v1149 = vadd.f32 %v688, %v1148
        %1150 = vmatmul.bf16.gmra.mxu0 %v1039
        %v1151 = vpop.f32.mrf.mxu0
        %v1152 = vadd.f32 %v691, %v1151
        %v1153 = vpop.f32.mrf.mxu0
        %v1154 = vadd.f32 %v693, %v1153
        %1155 = vmatmul.bf16.gmra.mxu0 %v1042
        %v1156 = vpop.f32.mrf.mxu0
        %v1157 = vadd.f32 %v696, %v1156
        %v1158 = vpop.f32.mrf.mxu0
        %v1159 = vadd.f32 %v698, %v1158
        %1160 = vmatmul.bf16.gmra.mxu0 %v1045
        %v1161 = vpop.f32.mrf.mxu0
        %v1162 = vadd.f32 %v701, %v1161
        %v1163 = vpop.f32.mrf.mxu0
        %v1164 = vadd.f32 %v703, %v1163
        %1165 = vmatmul.bf16.gmra.mxu0 %v1048
        %v1166 = vpop.f32.mrf.mxu0
        %v1167 = vadd.f32 %v706, %v1166
        %v1168 = vpop.f32.mrf.mxu0
        %v1169 = vadd.f32 %v708, %v1168
        %1170 = vmatmul.bf16.gmra.mxu0 %v1051
        %v1171 = vpop.f32.mrf.mxu0
        %v1172 = vadd.f32 %v711, %v1171
        %v1173 = vpop.f32.mrf.mxu0
        %v1174 = vadd.f32 %v713, %v1173
        %1175 = vmatmul.bf16.gmra.mxu0 %v1054
        %v1176 = vpop.f32.mrf.mxu0
        %v1177 = vadd.f32 %v716, %v1176
        %v1178 = vpop.f32.mrf.mxu0
        %v1179 = vadd.f32 %v718, %v1178
        %1180 = vmatmul.bf16.gmra.mxu0 %v1057
        %v1181 = vpop.f32.mrf.mxu0
        %v1182 = vadd.f32 %v721, %v1181
        %v1183 = vpop.f32.mrf.mxu0
        %v1184 = vadd.f32 %v723, %v1183
        %1185 = vmatmul.bf16.gmra.mxu0 %v1060
        %v1186 = vpop.f32.mrf.mxu0
        %v1187 = vadd.f32 %v726, %v1186
        %v1188 = vpop.f32.mrf.mxu0
        %v1189 = vadd.f32 %v728, %v1188
        %1190 = vmatmul.bf16.gmra.mxu0 %v1063
        %v1191 = vpop.f32.mrf.mxu0
        %v1192 = vadd.f32 %v731, %v1191
        %v1193 = vpop.f32.mrf.mxu0
        %v1194 = vadd.f32 %v733, %v1193
        %1195 = vmatmul.bf16.gmra.mxu0 %v1066
        %v1196 = vpop.f32.mrf.mxu0
        %v1197 = vadd.f32 %v736, %v1196
        %v1198 = vpop.f32.mrf.mxu0
        %v1199 = vadd.f32 %v738, %v1198
        %1200 = vmatmul.bf16.gmra.mxu0 %v1069
        %v1201 = vpop.f32.mrf.mxu0
        %v1202 = vadd.f32 %v741, %v1201
        %v1203 = vpop.f32.mrf.mxu0
        %v1204 = vadd.f32 %v743, %v1203
        %1205 = vmatmul.bf16.gmra.mxu0 %v1072
        %v1206 = vpop.f32.mrf.mxu0
        %v1207 = vadd.f32 %v746, %v1206
        %v1208 = vpop.f32.mrf.mxu0
        %v1209 = vadd.f32 %v748, %v1208
        %1210 = vmatmul.bf16.gmra.mxu0 %v1075
        %v1211 = vpop.f32.mrf.mxu0
        %v1212 = vadd.f32 %v751, %v1211
        %v1213 = vpop.f32.mrf.mxu0
        %v1214 = vadd.f32 %v753, %v1213
        %1215 = vmatmul.bf16.gmra.mxu0 %v1078
        %v1216 = vpop.f32.mrf.mxu0
        %v1217 = vadd.f32 %v756, %v1216
        %v1218 = vpop.f32.mrf.mxu0
        %v1219 = vadd.f32 %v758, %v1218
        %1220 = vmatmul.bf16.gmra.mxu0 %v1081
        %v1221 = vpop.f32.mrf.mxu0
        %v1222 = vadd.f32 %v761, %v1221
        %v1223 = vpop.f32.mrf.mxu0
        %v1224 = vadd.f32 %v763, %v1223
        %1225 = vmatmul.bf16.gmra.mxu0 %v1084
        %v1226 = vpop.f32.mrf.mxu0
        %v1227 = vadd.f32 %v766, %v1226
        %v1228 = vpop.f32.mrf.mxu0
        %v1229 = vadd.f32 %v768, %v1228
        %1230 = vmatmul.bf16.gmra.mxu0 %v1087
        %v1231 = vpop.f32.mrf.mxu0
        %v1232 = vadd.f32 %v771, %v1231
        %v1233 = vpop.f32.mrf.mxu0
        %v1234 = vadd.f32 %v773, %v1233
        %1235 = vmatmul.bf16.gmra.mxu0 %v1090
        %v1236 = vpop.f32.mrf.mxu0
        %v1237 = vadd.f32 %v776, %v1236
        %v1238 = vpop.f32.mrf.mxu0
        %v1239 = vadd.f32 %v778, %v1238
        %1240 = vmatmul.bf16.gmra.mxu0 %v1093
        %v1241 = vpop.f32.mrf.mxu0
        %v1242 = vadd.f32 %v781, %v1241
        %v1243 = vpop.f32.mrf.mxu0
        %v1244 = vadd.f32 %v783, %v1243
        %1245 = vmatmul.bf16.gmra.mxu0 %v1096
        %v1246 = vpop.f32.mrf.mxu0
        %v1247 = vadd.f32 %v786, %v1246
        %v1248 = vpop.f32.mrf.mxu0
        %v1249 = vadd.f32 %v788, %v1248
        %1250 = vmatmul.bf16.gmra.mxu0 %v1099
        %v1251 = vpop.f32.mrf.mxu0
        %v1252 = vadd.f32 %v791, %v1251
        %v1253 = vpop.f32.mrf.mxu0
        %v1254 = vadd.f32 %v793, %v1253
        %1255 = vmatmul.bf16.gmra.mxu0 %v1102
        %v1256 = vpop.f32.mrf.mxu0
        %v1257 = vadd.f32 %v796, %v1256
        %v1258 = vpop.f32.mrf.mxu0
        %v1259 = vadd.f32 %v798, %v1258
        %1260 = vmatmul.bf16.gmra.mxu0 %v1105
        %v1261 = vpop.f32.mrf.mxu0
        %v1262 = vadd.f32 %v801, %v1261
        %v1263 = vpop.f32.mrf.mxu0
        %v1264 = vadd.f32 %v803, %v1263
        %1265 = vmatmul.bf16.gmra.mxu0 %v1108
        %v1266 = vpop.f32.mrf.mxu0
        %v1267 = vadd.f32 %v806, %v1266
        %v1268 = vpop.f32.mrf.mxu0
        %v1269 = vadd.f32 %v808, %v1268
        %1270 = vmatmul.bf16.gmra.mxu0 %v1111
        %v1271 = vpop.f32.mrf.mxu0
        %v1272 = vadd.f32 %v811, %v1271
        %v1273 = vpop.f32.mrf.mxu0
        %v1274 = vadd.f32 %v813, %v1273
        %1275 = vmatmul.bf16.gmra.mxu0 %v1114
        %v1276 = vpop.f32.mrf.mxu0
        %v1277 = vadd.f32 %v816, %v1276
        %v1278 = vpop.f32.mrf.mxu0
        %v1279 = vadd.f32 %v818, %v1278
        %1280 = vmatmul.bf16.gmra.mxu0 %v1117
        %v1281 = vpop.f32.mrf.mxu0
        %v1282 = vadd.f32 %v821, %v1281
        %v1283 = vpop.f32.mrf.mxu0
        %v1284 = vadd.f32 %v823, %v1283
        %1285 = vmatmul.bf16.gmra.mxu0 %v1120
        %v1286 = vpop.f32.mrf.mxu0
        %v1287 = vadd.f32 %v826, %v1286
        %v1288 = vpop.f32.mrf.mxu0
        %v1289 = vadd.f32 %v828, %v1288
        %1290 = vdwg.mxu0
        %s1291 = sadd.s32 %s207, 2
        %s1292 = smul.u32 %s1291, 8
        %s1293 = smul.addr %s1292, 4
        %s1294 = scalar_lea.vmem %s184, %s1293
        %v1295 = vld [vmem:[%s1294] sm:$0xf]
        %v1296 = vld [vmem:[%s1294 + $0x4] sm:$0xf]
        %v1297 = vld [vmem:[%s1294 + $0x8] sm:$0xf]
        %v1298 = vld [vmem:[%s1294 + $0xc] sm:$0xf]
        %v1299 = vld [vmem:[%s1294 + $0x10] sm:$0xf]
        %v1300 = vld [vmem:[%s1294 + $0x14] sm:$0xf]
        %v1301 = vld [vmem:[%s1294 + $0x18] sm:$0xf]
        %v1302 = vld [vmem:[%s1294 + $0x1c] sm:$0xf]
        %v1303 = vld [vmem:[%s1294 + $0x20] sm:$0xf]
        %v1304 = vld [vmem:[%s1294 + $0x24] sm:$0xf]
        %v1305 = vld [vmem:[%s1294 + $0x28] sm:$0xf]
        %v1306 = vld [vmem:[%s1294 + $0x2c] sm:$0xf]
        %v1307 = vld [vmem:[%s1294 + $0x30] sm:$0xf]
        %v1308 = vld [vmem:[%s1294 + $0x34] sm:$0xf]
        %v1309 = vld [vmem:[%s1294 + $0x38] sm:$0xf]
        %v1310 = vld [vmem:[%s1294 + $0x3c] sm:$0xf]
        %v1311 = vld [vmem:[%s1294 + $0x40] sm:$0xf]
        %v1312 = vld [vmem:[%s1294 + $0x44] sm:$0xf]
        %v1313 = vld [vmem:[%s1294 + $0x48] sm:$0xf]
        %v1314 = vld [vmem:[%s1294 + $0x4c] sm:$0xf]
        %v1315 = vld [vmem:[%s1294 + $0x50] sm:$0xf]
        %v1316 = vld [vmem:[%s1294 + $0x54] sm:$0xf]
        %v1317 = vld [vmem:[%s1294 + $0x58] sm:$0xf]
        %v1318 = vld [vmem:[%s1294 + $0x5c] sm:$0xf]
        %v1319 = vld [vmem:[%s1294 + $0x60] sm:$0xf]
        %v1320 = vld [vmem:[%s1294 + $0x64] sm:$0xf]
        %v1321 = vld [vmem:[%s1294 + $0x68] sm:$0xf]
        %v1322 = vld [vmem:[%s1294 + $0x6c] sm:$0xf]
        %v1323 = vld [vmem:[%s1294 + $0x70] sm:$0xf]
        %v1324 = vld [vmem:[%s1294 + $0x74] sm:$0xf]
        %v1325 = vld [vmem:[%s1294 + $0x78] sm:$0xf]
        %v1326 = vld [vmem:[%s1294 + $0x7c] sm:$0xf]
        %v1327 = vld [vmem:[%s1294 + $0x80] sm:$0xf]
        %v1328 = vld [vmem:[%s1294 + $0x84] sm:$0xf]
        %v1329 = vld [vmem:[%s1294 + $0x88] sm:$0xf]
        %v1330 = vld [vmem:[%s1294 + $0x8c] sm:$0xf]
        %v1331 = vld [vmem:[%s1294 + $0x90] sm:$0xf]
        %v1332 = vld [vmem:[%s1294 + $0x94] sm:$0xf]
        %v1333 = vld [vmem:[%s1294 + $0x98] sm:$0xf]
        %v1334 = vld [vmem:[%s1294 + $0x9c] sm:$0xf]
        %v1335 = vld [vmem:[%s1294 + $0xa0] sm:$0xf]
        %v1336 = vld [vmem:[%s1294 + $0xa4] sm:$0xf]
        %v1337 = vld [vmem:[%s1294 + $0xa8] sm:$0xf]
        %v1338 = vld [vmem:[%s1294 + $0xac] sm:$0xf]
        %v1339 = vld [vmem:[%s1294 + $0xb0] sm:$0xf]
        %v1340 = vld [vmem:[%s1294 + $0xb4] sm:$0xf]
        %v1341 = vld [vmem:[%s1294 + $0xb8] sm:$0xf]
        %v1342 = vld [vmem:[%s1294 + $0xbc] sm:$0xf]
        %v1343 = vld [vmem:[%s1294 + $0xc0] sm:$0xf]
        %v1344 = vld [vmem:[%s1294 + $0xc4] sm:$0xf]
        %v1345 = vld [vmem:[%s1294 + $0xc8] sm:$0xf]
        %v1346 = vld [vmem:[%s1294 + $0xcc] sm:$0xf]
        %v1347 = vld [vmem:[%s1294 + $0xd0] sm:$0xf]
        %v1348 = vld [vmem:[%s1294 + $0xd4] sm:$0xf]
        %v1349 = vld [vmem:[%s1294 + $0xd8] sm:$0xf]
        %v1350 = vld [vmem:[%s1294 + $0xdc] sm:$0xf]
        %v1351 = vld [vmem:[%s1294 + $0xe0] sm:$0xf]
        %v1352 = vld [vmem:[%s1294 + $0xe4] sm:$0xf]
        %v1353 = vld [vmem:[%s1294 + $0xe8] sm:$0xf]
        %v1354 = vld [vmem:[%s1294 + $0xec] sm:$0xf]
        %v1355 = vld [vmem:[%s1294 + $0xf0] sm:$0xf]
        %v1356 = vld [vmem:[%s1294 + $0xf4] sm:$0xf]
        %v1357 = vld [vmem:[%s1294 + $0xf8] sm:$0xf]
        %v1358 = vld [vmem:[%s1294 + $0xfc] sm:$0xf]
        %s1359 = scalar_lea.vmem %s1, 96
        %v1360 = vld [vmem:[%s1359] sm:$0xf]
        %v1361 = vld [vmem:[%s1359 + $0x4] sm:$0xf]
        %v1362 = vld [vmem:[%s1359 + $0x8] sm:$0xf]
        %v1363 = vld [vmem:[%s1359 + $0xc] sm:$0xf]
        %v1364 = vld [vmem:[%s1359 + $0x10] sm:$0xf]
        %v1365 = vld [vmem:[%s1359 + $0x14] sm:$0xf]
        %v1366 = vld [vmem:[%s1359 + $0x18] sm:$0xf]
        %v1367 = vld [vmem:[%s1359 + $0x1c] sm:$0xf]
        %v1368 = vld [vmem:[%s1359 + $0x20] sm:$0xf]
        %v1369 = vld [vmem:[%s1359 + $0x24] sm:$0xf]
        %v1370 = vld [vmem:[%s1359 + $0x28] sm:$0xf]
        %v1371 = vld [vmem:[%s1359 + $0x2c] sm:$0xf]
        %v1436 = vunpack.c.l.b16 %v1295
        %v1437 = vunpack.c.l.b16 %v1296
        %v1438 = vunpack.c.l.b16 %v1297
        %v1439 = vunpack.c.l.b16 %v1298
        %v1440 = vunpack.c.l.b16 %v1299
        %v1441 = vunpack.c.l.b16 %v1300
        %v1442 = vunpack.c.l.b16 %v1301
        %v1443 = vunpack.c.l.b16 %v1302
        %v1444 = vunpack.c.l.b16 %v1303
        %v1445 = vunpack.c.l.b16 %v1304
        %v1446 = vunpack.c.l.b16 %v1305
        %v1447 = vunpack.c.l.b16 %v1306
        %v1448 = vunpack.c.l.b16 %v1307
        %v1449 = vunpack.c.l.b16 %v1308
        %v1450 = vunpack.c.l.b16 %v1309
        %v1451 = vunpack.c.l.b16 %v1310
        %v1452 = vunpack.c.l.b16 %v1311
        %v1453 = vunpack.c.l.b16 %v1312
        %v1454 = vunpack.c.l.b16 %v1313
        %v1455 = vunpack.c.l.b16 %v1314
        %v1456 = vunpack.c.l.b16 %v1315
        %v1457 = vunpack.c.l.b16 %v1316
        %v1458 = vunpack.c.l.b16 %v1317
        %v1459 = vunpack.c.l.b16 %v1318
        %v1460 = vunpack.c.l.b16 %v1319
        %v1461 = vunpack.c.l.b16 %v1320
        %v1462 = vunpack.c.l.b16 %v1321
        %v1463 = vunpack.c.l.b16 %v1322
        %v1464 = vunpack.c.l.b16 %v1323
        %v1465 = vunpack.c.l.b16 %v1324
        %v1466 = vunpack.c.l.b16 %v1325
        %v1467 = vunpack.c.l.b16 %v1326
        %v1468 = vunpack.c.l.b16 %v1327
        %v1469 = vunpack.c.l.b16 %v1328
        %v1470 = vunpack.c.l.b16 %v1329
        %v1471 = vunpack.c.l.b16 %v1330
        %v1472 = vunpack.c.l.b16 %v1331
        %v1473 = vunpack.c.l.b16 %v1332
        %v1474 = vunpack.c.l.b16 %v1333
        %v1475 = vunpack.c.l.b16 %v1334
        %v1476 = vunpack.c.l.b16 %v1335
        %v1477 = vunpack.c.l.b16 %v1336
        %v1478 = vunpack.c.l.b16 %v1337
        %v1479 = vunpack.c.l.b16 %v1338
        %v1480 = vunpack.c.l.b16 %v1339
        %v1481 = vunpack.c.l.b16 %v1340
        %v1482 = vunpack.c.l.b16 %v1341
        %v1483 = vunpack.c.l.b16 %v1342
        %v1484 = vunpack.c.l.b16 %v1343
        %v1485 = vunpack.c.l.b16 %v1344
        %v1486 = vunpack.c.l.b16 %v1345
        %v1487 = vunpack.c.l.b16 %v1346
        %v1488 = vunpack.c.l.b16 %v1347
        %v1489 = vunpack.c.l.b16 %v1348
        %v1490 = vunpack.c.l.b16 %v1349
        %v1491 = vunpack.c.l.b16 %v1350
        %v1492 = vunpack.c.l.b16 %v1351
        %v1493 = vunpack.c.l.b16 %v1352
        %v1494 = vunpack.c.l.b16 %v1353
        %v1495 = vunpack.c.l.b16 %v1354
        %v1496 = vunpack.c.l.b16 %v1355
        %v1497 = vunpack.c.l.b16 %v1356
        %v1498 = vunpack.c.l.b16 %v1357
        %v1499 = vunpack.c.l.b16 %v1358
        %v1500 = vpack.c.b16 %v1437, %v1436
        %v1501 = vpack.c.b16 %v1439, %v1438
        %v1502 = vpack.c.b16 %v1441, %v1440
        %v1503 = vpack.c.b16 %v1443, %v1442
        %v1504 = vpack.c.b16 %v1445, %v1444
        %v1505 = vpack.c.b16 %v1447, %v1446
        %v1506 = vpack.c.b16 %v1449, %v1448
        %v1507 = vpack.c.b16 %v1451, %v1450
        %v1508 = vpack.c.b16 %v1453, %v1452
        %v1509 = vpack.c.b16 %v1455, %v1454
        %v1510 = vpack.c.b16 %v1457, %v1456
        %v1511 = vpack.c.b16 %v1459, %v1458
        %v1512 = vpack.c.b16 %v1461, %v1460
        %v1513 = vpack.c.b16 %v1463, %v1462
        %v1514 = vpack.c.b16 %v1465, %v1464
        %v1515 = vpack.c.b16 %v1467, %v1466
        %v1516 = vpack.c.b16 %v1469, %v1468
        %v1517 = vpack.c.b16 %v1471, %v1470
        %v1518 = vpack.c.b16 %v1473, %v1472
        %v1519 = vpack.c.b16 %v1475, %v1474
        %v1520 = vpack.c.b16 %v1477, %v1476
        %v1521 = vpack.c.b16 %v1479, %v1478
        %v1522 = vpack.c.b16 %v1481, %v1480
        %v1523 = vpack.c.b16 %v1483, %v1482
        %v1524 = vpack.c.b16 %v1485, %v1484
        %v1525 = vpack.c.b16 %v1487, %v1486
        %v1526 = vpack.c.b16 %v1489, %v1488
        %v1527 = vpack.c.b16 %v1491, %v1490
        %v1528 = vpack.c.b16 %v1493, %v1492
        %v1529 = vpack.c.b16 %v1495, %v1494
        %v1530 = vpack.c.b16 %v1497, %v1496
        %v1531 = vpack.c.b16 %v1499, %v1498
        %v1544 = vunpack.c.l.b16 %v1360
        %v1545 = vunpack.c.l.b16 %v1361
        %v1546 = vunpack.c.l.b16 %v1362
        %v1547 = vunpack.c.l.b16 %v1363
        %v1548 = vunpack.c.l.b16 %v1364
        %v1549 = vunpack.c.l.b16 %v1365
        %v1550 = vunpack.c.l.b16 %v1366
        %v1551 = vunpack.c.l.b16 %v1367
        %v1552 = vunpack.c.l.b16 %v1368
        %v1553 = vunpack.c.l.b16 %v1369
        %v1554 = vunpack.c.l.b16 %v1370
        %v1555 = vunpack.c.l.b16 %v1371
        %v1556 = vpack.c.b16 %v1545, %v1544
        %v1557 = vpack.c.b16 %v1547, %v1546
        %v1558 = vpack.c.b16 %v1549, %v1548
        %v1559 = vpack.c.b16 %v1551, %v1550
        %v1560 = vpack.c.b16 %v1553, %v1552
        %v1561 = vpack.c.b16 %v1555, %v1554
        %v1569 = vsel %vm564, %v1500, 0
        %v1572 = vsel %vm564, %v1501, 0
        %v1575 = vsel %vm564, %v1502, 0
        %v1578 = vsel %vm564, %v1503, 0
        %v1581 = vsel %vm564, %v1504, 0
        %v1584 = vsel %vm564, %v1505, 0
        %v1587 = vsel %vm564, %v1506, 0
        %v1590 = vsel %vm564, %v1507, 0
        %v1593 = vsel %vm564, %v1508, 0
        %v1596 = vsel %vm564, %v1509, 0
        %v1599 = vsel %vm564, %v1510, 0
        %v1602 = vsel %vm564, %v1511, 0
        %v1605 = vsel %vm564, %v1512, 0
        %v1608 = vsel %vm564, %v1513, 0
        %v1611 = vsel %vm564, %v1514, 0
        %v1614 = vsel %vm564, %v1515, 0
        %v1617 = vsel %vm564, %v1516, 0
        %v1620 = vsel %vm564, %v1517, 0
        %v1623 = vsel %vm564, %v1518, 0
        %v1626 = vsel %vm564, %v1519, 0
        %v1629 = vsel %vm564, %v1520, 0
        %v1632 = vsel %vm564, %v1521, 0
        %v1635 = vsel %vm564, %v1522, 0
        %v1638 = vsel %vm564, %v1523, 0
        %v1641 = vsel %vm564, %v1524, 0
        %v1644 = vsel %vm564, %v1525, 0
        %v1647 = vsel %vm564, %v1526, 0
        %v1650 = vsel %vm564, %v1527, 0
        %v1653 = vsel %vm564, %v1528, 0
        %v1656 = vsel %vm564, %v1529, 0
        %v1659 = vsel %vm564, %v1530, 0
        %v1662 = vsel %vm564, %v1531, 0
        %1664 = vmatpush.bf16.msra.mxu0 0
        %1665 = vmatpush.bf16.msra.mxu0 0
        %1666 = vmatpush.bf16.msra.mxu0 %v1561
        %1667 = vmatpush.bf16.msra.mxu0 %v1560
        %1668 = vmatpush.bf16.msra.mxu0 %v1559
        %1669 = vmatpush.bf16.msra.mxu0 %v1558
        %1670 = vmatpush.bf16.msra.mxu0 %v1557
        %1671 = vmatpush.bf16.msra.mxu0 %v1556
        %1672 = vmatmul.bf16.gmra.mxu0 %v1569
        %v1673 = vpop.f32.mrf.mxu0
        %v1674 = vadd.f32 0.0, %v1673
        %v1675 = vpop.f32.mrf.mxu0
        %v1676 = vadd.f32 0.0, %v1675
        %1677 = vmatmul.bf16.gmra.mxu0 %v1572
        %v1678 = vpop.f32.mrf.mxu0
        %v1679 = vadd.f32 0.0, %v1678
        %v1680 = vpop.f32.mrf.mxu0
        %v1681 = vadd.f32 0.0, %v1680
        %1682 = vmatmul.bf16.gmra.mxu0 %v1575
        %v1683 = vpop.f32.mrf.mxu0
        %v1684 = vadd.f32 0.0, %v1683
        %v1685 = vpop.f32.mrf.mxu0
        %v1686 = vadd.f32 0.0, %v1685
        %1687 = vmatmul.bf16.gmra.mxu0 %v1578
        %v1688 = vpop.f32.mrf.mxu0
        %v1689 = vadd.f32 0.0, %v1688
        %v1690 = vpop.f32.mrf.mxu0
        %v1691 = vadd.f32 0.0, %v1690
        %1692 = vmatmul.bf16.gmra.mxu0 %v1581
        %v1693 = vpop.f32.mrf.mxu0
        %v1694 = vadd.f32 0.0, %v1693
        %v1695 = vpop.f32.mrf.mxu0
        %v1696 = vadd.f32 0.0, %v1695
        %1697 = vmatmul.bf16.gmra.mxu0 %v1584
        %v1698 = vpop.f32.mrf.mxu0
        %v1699 = vadd.f32 0.0, %v1698
        %v1700 = vpop.f32.mrf.mxu0
        %v1701 = vadd.f32 0.0, %v1700
        %1702 = vmatmul.bf16.gmra.mxu0 %v1587
        %v1703 = vpop.f32.mrf.mxu0
        %v1704 = vadd.f32 0.0, %v1703
        %v1705 = vpop.f32.mrf.mxu0
        %v1706 = vadd.f32 0.0, %v1705
        %1707 = vmatmul.bf16.gmra.mxu0 %v1590
        %v1708 = vpop.f32.mrf.mxu0
        %v1709 = vadd.f32 0.0, %v1708
        %v1710 = vpop.f32.mrf.mxu0
        %v1711 = vadd.f32 0.0, %v1710
        %1712 = vmatmul.bf16.gmra.mxu0 %v1593
        %v1713 = vpop.f32.mrf.mxu0
        %v1714 = vadd.f32 0.0, %v1713
        %v1715 = vpop.f32.mrf.mxu0
        %v1716 = vadd.f32 0.0, %v1715
        %1717 = vmatmul.bf16.gmra.mxu0 %v1596
        %v1718 = vpop.f32.mrf.mxu0
        %v1719 = vadd.f32 0.0, %v1718
        %v1720 = vpop.f32.mrf.mxu0
        %v1721 = vadd.f32 0.0, %v1720
        %1722 = vmatmul.bf16.gmra.mxu0 %v1599
        %v1723 = vpop.f32.mrf.mxu0
        %v1724 = vadd.f32 0.0, %v1723
        %v1725 = vpop.f32.mrf.mxu0
        %v1726 = vadd.f32 0.0, %v1725
        %1727 = vmatmul.bf16.gmra.mxu0 %v1602
        %v1728 = vpop.f32.mrf.mxu0
        %v1729 = vadd.f32 0.0, %v1728
        %v1730 = vpop.f32.mrf.mxu0
        %v1731 = vadd.f32 0.0, %v1730
        %1732 = vmatmul.bf16.gmra.mxu0 %v1605
        %v1733 = vpop.f32.mrf.mxu0
        %v1734 = vadd.f32 0.0, %v1733
        %v1735 = vpop.f32.mrf.mxu0
        %v1736 = vadd.f32 0.0, %v1735
        %1737 = vmatmul.bf16.gmra.mxu0 %v1608
        %v1738 = vpop.f32.mrf.mxu0
        %v1739 = vadd.f32 0.0, %v1738
        %v1740 = vpop.f32.mrf.mxu0
        %v1741 = vadd.f32 0.0, %v1740
        %1742 = vmatmul.bf16.gmra.mxu0 %v1611
        %v1743 = vpop.f32.mrf.mxu0
        %v1744 = vadd.f32 0.0, %v1743
        %v1745 = vpop.f32.mrf.mxu0
        %v1746 = vadd.f32 0.0, %v1745
        %1747 = vmatmul.bf16.gmra.mxu0 %v1614
        %v1748 = vpop.f32.mrf.mxu0
        %v1749 = vadd.f32 0.0, %v1748
        %v1750 = vpop.f32.mrf.mxu0
        %v1751 = vadd.f32 0.0, %v1750
        %1752 = vmatmul.bf16.gmra.mxu0 %v1617
        %v1753 = vpop.f32.mrf.mxu0
        %v1754 = vadd.f32 0.0, %v1753
        %v1755 = vpop.f32.mrf.mxu0
        %v1756 = vadd.f32 0.0, %v1755
        %1757 = vmatmul.bf16.gmra.mxu0 %v1620
        %v1758 = vpop.f32.mrf.mxu0
        %v1759 = vadd.f32 0.0, %v1758
        %v1760 = vpop.f32.mrf.mxu0
        %v1761 = vadd.f32 0.0, %v1760
        %1762 = vmatmul.bf16.gmra.mxu0 %v1623
        %v1763 = vpop.f32.mrf.mxu0
        %v1764 = vadd.f32 0.0, %v1763
        %v1765 = vpop.f32.mrf.mxu0
        %v1766 = vadd.f32 0.0, %v1765
        %1767 = vmatmul.bf16.gmra.mxu0 %v1626
        %v1768 = vpop.f32.mrf.mxu0
        %v1769 = vadd.f32 0.0, %v1768
        %v1770 = vpop.f32.mrf.mxu0
        %v1771 = vadd.f32 0.0, %v1770
        %1772 = vmatmul.bf16.gmra.mxu0 %v1629
        %v1773 = vpop.f32.mrf.mxu0
        %v1774 = vadd.f32 0.0, %v1773
        %v1775 = vpop.f32.mrf.mxu0
        %v1776 = vadd.f32 0.0, %v1775
        %1777 = vmatmul.bf16.gmra.mxu0 %v1632
        %v1778 = vpop.f32.mrf.mxu0
        %v1779 = vadd.f32 0.0, %v1778
        %v1780 = vpop.f32.mrf.mxu0
        %v1781 = vadd.f32 0.0, %v1780
        %1782 = vmatmul.bf16.gmra.mxu0 %v1635
        %v1783 = vpop.f32.mrf.mxu0
        %v1784 = vadd.f32 0.0, %v1783
        %v1785 = vpop.f32.mrf.mxu0
        %v1786 = vadd.f32 0.0, %v1785
        %1787 = vmatmul.bf16.gmra.mxu0 %v1638
        %v1788 = vpop.f32.mrf.mxu0
        %v1789 = vadd.f32 0.0, %v1788
        %v1790 = vpop.f32.mrf.mxu0
        %v1791 = vadd.f32 0.0, %v1790
        %1792 = vmatmul.bf16.gmra.mxu0 %v1641
        %v1793 = vpop.f32.mrf.mxu0
        %v1794 = vadd.f32 0.0, %v1793
        %v1795 = vpop.f32.mrf.mxu0
        %v1796 = vadd.f32 0.0, %v1795
        %1797 = vmatmul.bf16.gmra.mxu0 %v1644
        %v1798 = vpop.f32.mrf.mxu0
        %v1799 = vadd.f32 0.0, %v1798
        %v1800 = vpop.f32.mrf.mxu0
        %v1801 = vadd.f32 0.0, %v1800
        %1802 = vmatmul.bf16.gmra.mxu0 %v1647
        %v1803 = vpop.f32.mrf.mxu0
        %v1804 = vadd.f32 0.0, %v1803
        %v1805 = vpop.f32.mrf.mxu0
        %v1806 = vadd.f32 0.0, %v1805
        %1807 = vmatmul.bf16.gmra.mxu0 %v1650
        %v1808 = vpop.f32.mrf.mxu0
        %v1809 = vadd.f32 0.0, %v1808
        %v1810 = vpop.f32.mrf.mxu0
        %v1811 = vadd.f32 0.0, %v1810
        %1812 = vmatmul.bf16.gmra.mxu0 %v1653
        %v1813 = vpop.f32.mrf.mxu0
        %v1814 = vadd.f32 0.0, %v1813
        %v1815 = vpop.f32.mrf.mxu0
        %v1816 = vadd.f32 0.0, %v1815
        %1817 = vmatmul.bf16.gmra.mxu0 %v1656
        %v1818 = vpop.f32.mrf.mxu0
        %v1819 = vadd.f32 0.0, %v1818
        %v1820 = vpop.f32.mrf.mxu0
        %v1821 = vadd.f32 0.0, %v1820
        %1822 = vmatmul.bf16.gmra.mxu0 %v1659
        %v1823 = vpop.f32.mrf.mxu0
        %v1824 = vadd.f32 0.0, %v1823
        %v1825 = vpop.f32.mrf.mxu0
        %v1826 = vadd.f32 0.0, %v1825
        %1827 = vmatmul.bf16.gmra.mxu0 %v1662
        %v1828 = vpop.f32.mrf.mxu0
        %v1829 = vadd.f32 0.0, %v1828
        %v1830 = vpop.f32.mrf.mxu0
        %v1831 = vadd.f32 0.0, %v1830
        %1832 = vdwg.mxu0
        %v1833 = vadd.f32 %v1132, %v1674
        %v1834 = vadd.f32 %v1134, %v1676
        %v1835 = vadd.f32 %v1137, %v1679
        %v1836 = vadd.f32 %v1139, %v1681
        %v1837 = vadd.f32 %v1142, %v1684
        %v1838 = vadd.f32 %v1144, %v1686
        %v1839 = vadd.f32 %v1147, %v1689
        %v1840 = vadd.f32 %v1149, %v1691
        %v1841 = vadd.f32 %v1152, %v1694
        %v1842 = vadd.f32 %v1154, %v1696
        %v1843 = vadd.f32 %v1157, %v1699
        %v1844 = vadd.f32 %v1159, %v1701
        %v1845 = vadd.f32 %v1162, %v1704
        %v1846 = vadd.f32 %v1164, %v1706
        %v1847 = vadd.f32 %v1167, %v1709
        %v1848 = vadd.f32 %v1169, %v1711
        %v1849 = vadd.f32 %v1172, %v1714
        %v1850 = vadd.f32 %v1174, %v1716
        %v1851 = vadd.f32 %v1177, %v1719
        %v1852 = vadd.f32 %v1179, %v1721
        %v1853 = vadd.f32 %v1182, %v1724
        %v1854 = vadd.f32 %v1184, %v1726
        %v1855 = vadd.f32 %v1187, %v1729
        %v1856 = vadd.f32 %v1189, %v1731
        %v1857 = vadd.f32 %v1192, %v1734
        %v1858 = vadd.f32 %v1194, %v1736
        %v1859 = vadd.f32 %v1197, %v1739
        %v1860 = vadd.f32 %v1199, %v1741
        %v1861 = vadd.f32 %v1202, %v1744
        %v1862 = vadd.f32 %v1204, %v1746
        %v1863 = vadd.f32 %v1207, %v1749
        %v1864 = vadd.f32 %v1209, %v1751
        %v1865 = vadd.f32 %v1212, %v1754
        %v1866 = vadd.f32 %v1214, %v1756
        %v1867 = vadd.f32 %v1217, %v1759
        %v1868 = vadd.f32 %v1219, %v1761
        %v1869 = vadd.f32 %v1222, %v1764
        %v1870 = vadd.f32 %v1224, %v1766
        %v1871 = vadd.f32 %v1227, %v1769
        %v1872 = vadd.f32 %v1229, %v1771
        %v1873 = vadd.f32 %v1232, %v1774
        %v1874 = vadd.f32 %v1234, %v1776
        %v1875 = vadd.f32 %v1237, %v1779
        %v1876 = vadd.f32 %v1239, %v1781
        %v1877 = vadd.f32 %v1242, %v1784
        %v1878 = vadd.f32 %v1244, %v1786
        %v1879 = vadd.f32 %v1247, %v1789
        %v1880 = vadd.f32 %v1249, %v1791
        %v1881 = vadd.f32 %v1252, %v1794
        %v1882 = vadd.f32 %v1254, %v1796
        %v1883 = vadd.f32 %v1257, %v1799
        %v1884 = vadd.f32 %v1259, %v1801
        %v1885 = vadd.f32 %v1262, %v1804
        %v1886 = vadd.f32 %v1264, %v1806
        %v1887 = vadd.f32 %v1267, %v1809
        %v1888 = vadd.f32 %v1269, %v1811
        %v1889 = vadd.f32 %v1272, %v1814
        %v1890 = vadd.f32 %v1274, %v1816
        %v1891 = vadd.f32 %v1277, %v1819
        %v1892 = vadd.f32 %v1279, %v1821
        %v1893 = vadd.f32 %v1282, %v1824
        %v1894 = vadd.f32 %v1284, %v1826
        %v1895 = vadd.f32 %v1287, %v1829
        %v1896 = vadd.f32 %v1289, %v1831
        %v1897 = vmax.f32 %v1833, %v1841
        %v1898 = vmax.f32 %v1834, %v1842
        %v1899 = vmax.f32 %v1835, %v1843
        %v1900 = vmax.f32 %v1836, %v1844
        %v1901 = vmax.f32 %v1837, %v1845
        %v1902 = vmax.f32 %v1838, %v1846
        %v1903 = vmax.f32 %v1839, %v1847
        %v1904 = vmax.f32 %v1840, %v1848
        %v1905 = vmax.f32 %v1849, %v1857
        %v1906 = vmax.f32 %v1850, %v1858
        %v1907 = vmax.f32 %v1851, %v1859
        %v1908 = vmax.f32 %v1852, %v1860
        %v1909 = vmax.f32 %v1853, %v1861
        %v1910 = vmax.f32 %v1854, %v1862
        %v1911 = vmax.f32 %v1855, %v1863
        %v1912 = vmax.f32 %v1856, %v1864
        %v1913 = vmax.f32 %v1865, %v1873
        %v1914 = vmax.f32 %v1866, %v1874
        %v1915 = vmax.f32 %v1867, %v1875
        %v1916 = vmax.f32 %v1868, %v1876
        %v1917 = vmax.f32 %v1869, %v1877
        %v1918 = vmax.f32 %v1870, %v1878
        %v1919 = vmax.f32 %v1871, %v1879
        %v1920 = vmax.f32 %v1872, %v1880
        %v1921 = vmax.f32 %v1881, %v1889
        %v1922 = vmax.f32 %v1882, %v1890
        %v1923 = vmax.f32 %v1883, %v1891
        %v1924 = vmax.f32 %v1884, %v1892
        %v1925 = vmax.f32 %v1885, %v1893
        %v1926 = vmax.f32 %v1886, %v1894
        %v1927 = vmax.f32 %v1887, %v1895
        %v1928 = vmax.f32 %v1888, %v1896
        %v1929 = vmax.f32 %v1897, %v1901
        %v1930 = vmax.f32 %v1898, %v1902
        %v1931 = vmax.f32 %v1899, %v1903
        %v1932 = vmax.f32 %v1900, %v1904
        %v1933 = vmax.f32 %v1905, %v1909
        %v1934 = vmax.f32 %v1906, %v1910
        %v1935 = vmax.f32 %v1907, %v1911
        %v1936 = vmax.f32 %v1908, %v1912
        %v1937 = vmax.f32 %v1913, %v1917
        %v1938 = vmax.f32 %v1914, %v1918
        %v1939 = vmax.f32 %v1915, %v1919
        %v1940 = vmax.f32 %v1916, %v1920
        %v1941 = vmax.f32 %v1921, %v1925
        %v1942 = vmax.f32 %v1922, %v1926
        %v1943 = vmax.f32 %v1923, %v1927
        %v1944 = vmax.f32 %v1924, %v1928
        %v1946 = vperm.slane %v197, 0
        %v1948 = vadd.f32 %v1929, %v1946
        %v1949 = vadd.f32 %v1930, %v1946
        %v1950 = vadd.f32 %v1931, %v1946
        %v1951 = vadd.f32 %v1932, %v1946
        %v1952 = vadd.f32 %v1933, %v1946
        %v1953 = vadd.f32 %v1934, %v1946
        %v1954 = vadd.f32 %v1935, %v1946
        %v1955 = vadd.f32 %v1936, %v1946
        %v1956 = vadd.f32 %v1937, %v1946
        %v1957 = vadd.f32 %v1938, %v1946
        %v1958 = vadd.f32 %v1939, %v1946
        %v1959 = vadd.f32 %v1940, %v1946
        %v1960 = vadd.f32 %v1941, %v1946
        %v1961 = vadd.f32 %v1942, %v1946
        %v1962 = vadd.f32 %v1943, %v1946
        %v1963 = vadd.f32 %v1944, %v1946
        %v1964 = vmax.f32 %v1948, 0.0
        %v1965 = vmax.f32 %v1949, 0.0
        %v1966 = vmax.f32 %v1950, 0.0
        %v1967 = vmax.f32 %v1951, 0.0
        %v1968 = vmax.f32 %v1952, 0.0
        %v1969 = vmax.f32 %v1953, 0.0
        %v1970 = vmax.f32 %v1954, 0.0
        %v1971 = vmax.f32 %v1955, 0.0
        %v1972 = vmax.f32 %v1956, 0.0
        %v1973 = vmax.f32 %v1957, 0.0
        %v1974 = vmax.f32 %v1958, 0.0
        %v1975 = vmax.f32 %v1959, 0.0
        %v1976 = vmax.f32 %v1960, 0.0
        %v1977 = vmax.f32 %v1961, 0.0
        %v1978 = vmax.f32 %v1962, 0.0
        %v1979 = vmax.f32 %v1963, 0.0
        %v1980 = vpack.c.bf16 %v1964, %v1964
        %v1981 = vpack.c.bf16 %v1965, %v1965
        %v1982 = vpack.c.bf16 %v1966, %v1966
        %v1983 = vpack.c.bf16 %v1967, %v1967
        %v1984 = vpack.c.bf16 %v1968, %v1968
        %v1985 = vpack.c.bf16 %v1969, %v1969
        %v1986 = vpack.c.bf16 %v1970, %v1970
        %v1987 = vpack.c.bf16 %v1971, %v1971
        %v1988 = vpack.c.bf16 %v1972, %v1972
        %v1989 = vpack.c.bf16 %v1973, %v1973
        %v1990 = vpack.c.bf16 %v1974, %v1974
        %v1991 = vpack.c.bf16 %v1975, %v1975
        %v1992 = vpack.c.bf16 %v1976, %v1976
        %v1993 = vpack.c.bf16 %v1977, %v1977
        %v1994 = vpack.c.bf16 %v1978, %v1978
        %v1995 = vpack.c.bf16 %v1979, %v1979
        %s1996 = smul.u32 %s205, 4
        %s1997 = smul.addr %s1996, 4
        %s1998 = scalar_lea.vmem %s194, %s1997
        %vm1999 = vcmask 519168
        %2000 = vst.msk [vmem:[%s1998] sm:$0xf] %vm1999, %v1980
        %2001 = vst.msk [vmem:[%s1998 + $0x4] sm:$0xf] %vm1999, %v1981
        %2002 = vst.msk [vmem:[%s1998 + $0x8] sm:$0xf] %vm1999, %v1982
        %2003 = vst.msk [vmem:[%s1998 + $0xc] sm:$0xf] %vm1999, %v1983
        %2004 = vst.msk [vmem:[%s1998 + $0x10] sm:$0xf] %vm1999, %v1984
        %2005 = vst.msk [vmem:[%s1998 + $0x14] sm:$0xf] %vm1999, %v1985
        %2006 = vst.msk [vmem:[%s1998 + $0x18] sm:$0xf] %vm1999, %v1986
        %2007 = vst.msk [vmem:[%s1998 + $0x1c] sm:$0xf] %vm1999, %v1987
        %2008 = vst.msk [vmem:[%s1998 + $0x20] sm:$0xf] %vm1999, %v1988
        %2009 = vst.msk [vmem:[%s1998 + $0x24] sm:$0xf] %vm1999, %v1989
        %2010 = vst.msk [vmem:[%s1998 + $0x28] sm:$0xf] %vm1999, %v1990
        %2011 = vst.msk [vmem:[%s1998 + $0x2c] sm:$0xf] %vm1999, %v1991
        %2012 = vst.msk [vmem:[%s1998 + $0x30] sm:$0xf] %vm1999, %v1992
        %2013 = vst.msk [vmem:[%s1998 + $0x34] sm:$0xf] %vm1999, %v1993
        %2014 = vst.msk [vmem:[%s1998 + $0x38] sm:$0xf] %vm1999, %v1994
        %2015 = vst.msk [vmem:[%s1998 + $0x3c] sm:$0xf] %vm1999, %v1995
      $region37: #{fishcnn_forward.5} parent=31 // loop_footer
        %s204 = sadd.s32 1, %s200
      $region38: #{fishcnn_forward.5} parent=31 // loop_footer_branch
        %199 = sbr.rel target = $region34
      $region39: #{fishcnn_forward.5} parent=31 // loop_exit
        _
      %s2016 = smul.u32 16, %s19
      %p2017 = scmp.lt.s32.totalorder %s18, 1
      %s2018 = scalar_select %p2017, %s18, 1
      %p2019 = scmp.lt.s32.totalorder %s2016, 31
      %s2020 = scalar_select %p2019, %s2016, 31
      %s2021 = smul.addr %s2020, 4
      %s2022 = smul.addr %s2018, 128
      %s2023 = sadd.s32 %s2021, %s2022
      %s2024 = smul.addr %s2023, 4
      %s2025 = scalar_lea.vmem %s3, %s2024
      // Predicated region
      $region40: #{fishcnn_forward.5} parent=31 // pred_check
        %p2026 = pneg %p114
      $region41: #{fishcnn_forward.5} parent=31 // pred_check_branch
        %2028 = sbr.rel (%p2026) target = $region43
      $region42: #{fishcnn_forward.5} parent=31 // pred_region
        %s2029 = smul.u32 16, %s19
      $region43: #{fishcnn_forward.5} parent=31 // pred_fallthru
        _
    $region32: #{fishcnn_forward.5} parent=5 // pred_fallthru
      _
    %p2030 = scmp.le.s32.totalorder 2, %s9
    // Predicated region
    $region44: #{fishcnn_forward.5} parent=5 // pred_check
      %p2031 = pneg %p2030
    $region45: #{fishcnn_forward.5} parent=5 // pred_check_branch
      %2033 = sbr.rel (%p2031) target = $region47
    $region46: #{fishcnn_forward.5} parent=5 // pred_region
      %s2034 = ssub.s32 %s9, 2
      // Predicated region
      $region48: #{fishcnn_forward.5} parent=46 // pred_check
        %p2035 = pneg %p120
      $region49: #{fishcnn_forward.5} parent=46 // pred_check_branch
        %2037 = sbr.rel (%p2035) target = $region51
      $region50: #{fishcnn_forward.5} parent=46 // pred_region
        %s2038 = smul.u32 16, %s21
        %p2039 = scmp.lt.s32.totalorder %s20, 1
        %s2040 = scalar_select %p2039, %s20, 1
        %p2041 = scmp.lt.s32.totalorder %s2038, 31
        %s2042 = scalar_select %p2041, %s2038, 31
        %s2043 = smul.addr %s2042, 4
        %s2044 = smul.addr %s2040, 128
        %s2045 = sadd.s32 %s2043, %s2044
        %s2046 = smul.addr %s2045, 4
        %s2047 = scalar_lea.vmem %s3, %s2046
      $region51: #{fishcnn_forward.5} parent=46 // pred_fallthru
        _
    $region47: #{fishcnn_forward.5} parent=5 // pred_fallthru
      _
  $region6: #{fishcnn_forward.5} parent=0 // loop_footer
    %s13 = sadd.s32 1, %s9
  $region7: #{fishcnn_forward.5} parent=0 // loop_footer_branch
    %8 = sbr.rel target = $region3
  $region8: #{fishcnn_forward.5} parent=0 // loop_exit
    _

// kernel: fishcnn_forward.6
$region0: #{fishcnn_forward.6}
  #allocation0 [shape = 'u32[]', space=smem, size = 0x4, offset = 0x4, fixed_abs, tag = 'smem constant byte address 0x4 - core index']
  #allocation1 [shape = 'u32[72,128]{1,0:T(1,128)}', space=vmem, size = 0x9000, scoped, tag = 'internal scratch']
  %s0 = inlined_call_operand.vmem [shape: bf16[2,34,32,192], index: 0, kind: input, shape index: {}]
  %s1 = inlined_call_operand.vmem [shape: bf16[3,192,128], index: 1, kind: input, shape index: {}]
  %s2 = inlined_call_operand.vmem [shape: f32[1,128], index: 2, kind: input, shape index: {}]
  %s3 = inlined_call_operand.vmem [shape: bf16[2,16,16,128], index: 3, kind: output, shape index: {}]
  %s4 = sld [smem:[#allocation0]]
  $region52: #{fishcnn_forward.6} parent=0
    _
  %s6 = ssub.s32 1, %s4
  %s7 = scalar_select 0, %s6, %s4
  loop: start=0, step=1, limit=6
  $region2: #{fishcnn_forward.6} parent=0 // loop_pre_header
    _
  $region3: #{fishcnn_forward.6} parent=0 // loop_header
    %s9 = sphi 0, %s13
    %p10 = scmp.ge.s32.totalorder %s9, 6
    %s16 = sphi 0, %s28
    %s17 = sphi 0, %s24
    %s18 = sphi 0, %s16
    %s19 = sphi 0, %s17
    %s20 = sphi 0, %s18
    %s21 = sphi 0, %s19
    %s31 = sphi 0, %s33
    %s34 = sphi 0, %s31
    %s35 = sphi 0, %s34
    %s51 = sphi 0, %s35
    %s55 = sphi 0, %s55
    %s57 = sphi 0, %s55
    %s58 = sphi 0, %s57
    %s72 = sphi 0, %s58
    %s76 = sphi 0, %s76
    %s78 = sphi 0, %s76
    %s79 = sphi 0, %s78
    %s93 = sphi 0, %s79
    %s101 = sphi 0, %s103
    %s104 = sphi 0, %s101
    %s105 = sphi 0, %s104
    %s121 = sphi 0, %s105
  $region4: #{fishcnn_forward.6} parent=0 // loop_header_branch
    %12 = sbr.rel (%p10) target = $region8
  $region5: #{fishcnn_forward.6} parent=0 // loop_body
    %s14 = ssub.s32 %s9, 1
    %s15 = ssub.s32 %s9, 2
    %s22 = sadd.s32 1, %s17
    %p23 = scmp.ge.s32.totalorder %s22, 2
    %s24 = scalar_select %p23, 0, %s22
    %s25 = sadd.s32 1, %s16
    %s26 = scalar_select %p23, %s25, %s16
    %p27 = scmp.ge.s32.totalorder %s26, 2
    %s28 = scalar_select %p27, 0, %s26
    %s29 = ssub.s32 %s16, %s28
    %p30 = scmp.eq.s32.totalorder %s29, 0
    %s32 = sadd.s32 %s31, 1
    %s33 = scalar_select %p30, %s31, %s32
    %p36 = pneg %p30
    %p37 = scmp.eq.s32.totalorder %s9, 3
    %p38 = por %p36, %p37
    %p39 = scmp.ne.s32.totalorder %s31, %s34
    %p40 = scmp.eq.s32.totalorder %s9, 0
    %p41 = por %p39, %p40
    %p42 = scmp.ne.s32.totalorder %s31, %s34
    %p43 = scmp.eq.s32.totalorder %s14, 3
    %p44 = por %p42, %p43
    %p45 = scmp.ne.s32.totalorder %s34, %s35
    %p46 = scmp.eq.s32.totalorder %s14, 0
    %p47 = por %p45, %p46
    %p48 = scmp.ne.s32.totalorder %s34, %s35
    %p49 = scmp.eq.s32.totalorder %s15, 3
    %p50 = por %p48, %p49
    %p52 = scmp.ne.s32.totalorder %s35, %s51
    %p53 = scmp.eq.s32.totalorder %s15, 0
    %p54 = por %p52, %p53
    %s56 = sadd.s32 %s55, 1
    %p59 = scmp.eq.s32.totalorder %s9, 3
    %p60 = scmp.ne.s32.totalorder %s55, %s57
    %p61 = scmp.eq.s32.totalorder %s9, 0
    %p62 = por %p60, %p61
    %p63 = scmp.ne.s32.totalorder %s55, %s57
    %p64 = scmp.eq.s32.totalorder %s14, 3
    %p65 = por %p63, %p64
    %p66 = scmp.ne.s32.totalorder %s57, %s58
    %p67 = scmp.eq.s32.totalorder %s14, 0
    %p68 = por %p66, %p67
    %p69 = scmp.ne.s32.totalorder %s57, %s58
    %p70 = scmp.eq.s32.totalorder %s15, 3
    %p71 = por %p69, %p70
    %p73 = scmp.ne.s32.totalorder %s58, %s72
    %p74 = scmp.eq.s32.totalorder %s15, 0
    %p75 = por %p73, %p74
    %s77 = sadd.s32 %s76, 1
    %p80 = scmp.eq.s32.totalorder %s9, 3
    %p81 = scmp.ne.s32.totalorder %s76, %s78
    %p82 = scmp.eq.s32.totalorder %s9, 0
    %p83 = por %p81, %p82
    %p84 = scmp.ne.s32.totalorder %s76, %s78
    %p85 = scmp.eq.s32.totalorder %s14, 3
    %p86 = por %p84, %p85
    %p87 = scmp.ne.s32.totalorder %s78, %s79
    %p88 = scmp.eq.s32.totalorder %s14, 0
    %p89 = por %p87, %p88
    %p90 = scmp.ne.s32.totalorder %s78, %s79
    %p91 = scmp.eq.s32.totalorder %s15, 3
    %p92 = por %p90, %p91
    %p94 = scmp.ne.s32.totalorder %s79, %s93
    %p95 = scmp.eq.s32.totalorder %s15, 0
    %p96 = por %p94, %p95
    %s97 = ssub.s32 %s16, %s28
    %s98 = ssub.s32 %s17, %s24
    %s99 = sor.u32 %s97, %s98
    %p100 = scmp.eq.s32.totalorder %s99, 0
    %s102 = sadd.s32 %s101, 1
    %s103 = scalar_select %p100, %s101, %s102
    %p106 = pneg %p100
    %p107 = scmp.eq.s32.totalorder %s9, 3
    %p108 = por %p106, %p107
    %p109 = scmp.ne.s32.totalorder %s101, %s104
    %p110 = scmp.eq.s32.totalorder %s9, 0
    %p111 = por %p109, %p110
    %p112 = scmp.ne.s32.totalorder %s101, %s104
    %p113 = scmp.eq.s32.totalorder %s14, 3
    %p114 = por %p112, %p113
    %p115 = scmp.ne.s32.totalorder %s104, %s105
    %p116 = scmp.eq.s32.totalorder %s14, 0
    %p117 = por %p115, %p116
    %p118 = scmp.ne.s32.totalorder %s104, %s105
    %p119 = scmp.eq.s32.totalorder %s15, 3
    %p120 = por %p118, %p119
    %p122 = scmp.ne.s32.totalorder %s105, %s121
    %p123 = scmp.eq.s32.totalorder %s15, 0
    %p124 = por %p122, %p123
    %p125 = scmp.le.s32.totalorder 1, %s9
    %p126 = scmp.lt.s32.totalorder %s9, 5
    %p127 = pnand %p125, %p126
    %p128 = pneg %p127
    // Predicated region
    $region9: #{fishcnn_forward.6} parent=5 // pred_check
      _
    $region10: #{fishcnn_forward.6} parent=5 // pred_check_branch
      %130 = sbr.rel (%p127) target = $region12
    $region11: #{fishcnn_forward.6} parent=5 // pred_region
      %s131 = ssub.s32 %s9, 1
      // Predicated region
      $region13: #{fishcnn_forward.6} parent=11 // pred_check
        %p132 = pneg %p68
      $region14: #{fishcnn_forward.6} parent=11 // pred_check_branch
        %134 = sbr.rel (%p132) target = $region16
      $region15: #{fishcnn_forward.6} parent=11 // pred_region
        _
      $region16: #{fishcnn_forward.6} parent=11 // pred_fallthru
        _
      // Predicated region
      $region17: #{fishcnn_forward.6} parent=11 // pred_check
        %p135 = pneg %p89
      $region18: #{fishcnn_forward.6} parent=11 // pred_check_branch
        %137 = sbr.rel (%p135) target = $region20
      $region19: #{fishcnn_forward.6} parent=11 // pred_region
        _
      $region20: #{fishcnn_forward.6} parent=11 // pred_fallthru
        _
    $region12: #{fishcnn_forward.6} parent=5 // pred_fallthru
      _
    %p138 = scmp.lt.s32.totalorder %s9, 4
    // Predicated region
    $region21: #{fishcnn_forward.6} parent=5 // pred_check
      %p139 = pneg %p138
    $region22: #{fishcnn_forward.6} parent=5 // pred_check_branch
      %141 = sbr.rel (%p139) target = $region24
    $region23: #{fishcnn_forward.6} parent=5 // pred_region
      // Predicated region
      $region25: #{fishcnn_forward.6} parent=23 // pred_check
        %p142 = pneg %p41
      $region26: #{fishcnn_forward.6} parent=23 // pred_check_branch
        %144 = sbr.rel (%p142) target = $region28
      $region27: #{fishcnn_forward.6} parent=23 // pred_region
        %p145 = scmp.lt.s32.totalorder %s16, 1
        %s146 = scalar_select %p145, %s16, 1
        %s147 = smul.addr %s146, 272
        %s148 = smul.addr %s147, 4
        %s149 = scalar_lea.vmem %s0, %s148
      $region28: #{fishcnn_forward.6} parent=23 // pred_fallthru
        _
    $region24: #{fishcnn_forward.6} parent=5 // pred_fallthru
      _
    %p150 = scmp.le.s32.totalorder 1, %s9
    %p151 = scmp.lt.s32.totalorder %s9, 5
    %p152 = pnand %p150, %p151
    %p153 = pneg %p152
    // Predicated region
    $region29: #{fishcnn_forward.6} parent=5 // pred_check
      _
    $region30: #{fishcnn_forward.6} parent=5 // pred_check_branch
      %155 = sbr.rel (%p152) target = $region32
    $region31: #{fishcnn_forward.6} parent=5 // pred_region
      %s156 = ssub.s32 %s9, 1
      %p157 = scmp.lt.s32.totalorder %s18, 1
      %s158 = scalar_select %p157, %s18, 1
      %s159 = smul.addr %s158, 272
      %s160 = smul.addr %s159, 4
      %s161 = scalar_lea.vmem %s0, %s160
      %p162 = pneg %p47
      %p163 = pneg %p44
      %p164 = pneg %p68
      %p165 = pneg %p65
      %p166 = pneg %p89
      %p167 = pneg %p86
      %p168 = pneg %p117
      %p169 = pneg %p114
      %s170 = smul.u32 8, %s19
      %p171 = scmp.lt.s32.totalorder %s18, 1
      %s172 = scalar_select %p171, %s18, 1
      %p173 = scmp.lt.s32.totalorder %s170, 15
      %s174 = scalar_select %p173, %s170, 15
      %s175 = smul.addr %s174, 2
      %s176 = smul.addr %s172, 32
      %s177 = sadd.s32 %s175, %s176
      %s178 = smul.addr %s177, 4
      %s179 = scalar_lea.vmem %s3, %s178
      %p180 = scmp.lt.s32.totalorder %s18, 1
      %s181 = scalar_select %p180, %s18, 1
      %s182 = smul.addr %s181, 272
      %s183 = smul.addr %s182, 4
      %s184 = scalar_lea.vmem %s0, %s183
      %s185 = smul.u32 8, %s19
      %p186 = scmp.lt.s32.totalorder %s18, 1
      %s187 = scalar_select %p186, %s18, 1
      %p188 = scmp.lt.s32.totalorder %s185, 15
      %s189 = scalar_select %p188, %s185, 15
      %s190 = smul.addr %s189, 2
      %s191 = smul.addr %s187, 32
      %s192 = sadd.s32 %s190, %s191
      %s193 = smul.addr %s192, 4
      %s194 = scalar_lea.vmem %s3, %s193
      %s195 = smul.u32 8, %s19
      %v197 = vld [vmem:[%s2] sm:$0x1]
      %s198 = smul.u32 %s19, 8
      loop: start=0, step=1, limit=2
      $region33: #{fishcnn_forward.6} parent=31 // loop_pre_header
        _
      $region34: #{fishcnn_forward.6} parent=31 // loop_header
        %s200 = sphi 0, %s204
        %p201 = scmp.ge.s32.totalorder %s200, 2
      $region35: #{fishcnn_forward.6} parent=31 // loop_header_branch
        %203 = sbr.rel (%p201) target = $region39
      $region36: #{fishcnn_forward.6} parent=31 // loop_body
        %s205 = smul.u32 %s200, 4
        %s206 = sadd.s32 %s198, %s205
        %s207 = smul.u32 %s206, 2
        %s208 = smul.u32 %s207, 8
        %s209 = smul.addr %s208, 4
        %s210 = scalar_lea.vmem %s184, %s209
        %v211 = vld [vmem:[%s210] sm:$0xff]
        %v212 = vld [vmem:[%s210 + $0x8] sm:$0xff]
        %v213 = vld [vmem:[%s210 + $0x10] sm:$0xff]
        %v214 = vld [vmem:[%s210 + $0x18] sm:$0xff]
        %v215 = vld [vmem:[%s210 + $0x20] sm:$0xff]
        %v216 = vld [vmem:[%s210 + $0x28] sm:$0xff]
        %v217 = vld [vmem:[%s210 + $0x30] sm:$0xff]
        %v218 = vld [vmem:[%s210 + $0x38] sm:$0xff]
        %v219 = vld [vmem:[%s210 + $0x40] sm:$0xff]
        %v220 = vld [vmem:[%s210 + $0x48] sm:$0xff]
        %v221 = vld [vmem:[%s210 + $0x50] sm:$0xff]
        %v222 = vld [vmem:[%s210 + $0x58] sm:$0xff]
        %v223 = vld [vmem:[%s210 + $0x60] sm:$0xff]
        %v224 = vld [vmem:[%s210 + $0x68] sm:$0xff]
        %v225 = vld [vmem:[%s210 + $0x70] sm:$0xff]
        %v226 = vld [vmem:[%s210 + $0x78] sm:$0xff]
        %v227 = vld [vmem:[%s210 + $0x80] sm:$0xff]
        %v228 = vld [vmem:[%s210 + $0x88] sm:$0xff]
        %v229 = vld [vmem:[%s210 + $0x90] sm:$0xff]
        %v230 = vld [vmem:[%s210 + $0x98] sm:$0xff]
        %v231 = vld [vmem:[%s210 + $0xa0] sm:$0xff]
        %v232 = vld [vmem:[%s210 + $0xa8] sm:$0xff]
        %v233 = vld [vmem:[%s210 + $0xb0] sm:$0xff]
        %v234 = vld [vmem:[%s210 + $0xb8] sm:$0xff]
        %v235 = vld [vmem:[%s210 + $0xc0] sm:$0xff]
        %v236 = vld [vmem:[%s210 + $0xc8] sm:$0xff]
        %v237 = vld [vmem:[%s210 + $0xd0] sm:$0xff]
        %v238 = vld [vmem:[%s210 + $0xd8] sm:$0xff]
        %v239 = vld [vmem:[%s210 + $0xe0] sm:$0xff]
        %v240 = vld [vmem:[%s210 + $0xe8] sm:$0xff]
        %v241 = vld [vmem:[%s210 + $0xf0] sm:$0xff]
        %v242 = vld [vmem:[%s210 + $0xf8] sm:$0xff]
        %v243 = vld [vmem:[%s1] sm:$0xf]
        %v244 = vld [vmem:[%s1 + $0x4] sm:$0xf]
        %v245 = vld [vmem:[%s1 + $0x8] sm:$0xf]
        %v246 = vld [vmem:[%s1 + $0xc] sm:$0xf]
        %v247 = vld [vmem:[%s1 + $0x10] sm:$0xf]
        %v248 = vld [vmem:[%s1 + $0x14] sm:$0xf]
        %v249 = vld [vmem:[%s1 + $0x18] sm:$0xf]
        %v250 = vld [vmem:[%s1 + $0x1c] sm:$0xf]
        %v251 = vld [vmem:[%s1 + $0x20] sm:$0xf]
        %v252 = vld [vmem:[%s1 + $0x24] sm:$0xf]
        %v253 = vld [vmem:[%s1 + $0x28] sm:$0xf]
        %v254 = vld [vmem:[%s1 + $0x2c] sm:$0xf]
        %v255 = vld [vmem:[%s1 + $0x30] sm:$0xf]
        %v256 = vld [vmem:[%s1 + $0x34] sm:$0xf]
        %v257 = vld [vmem:[%s1 + $0x38] sm:$0xf]
        %v258 = vld [vmem:[%s1 + $0x3c] sm:$0xf]
        %v259 = vld [vmem:[%s1 + $0x40] sm:$0xf]
        %v260 = vld [vmem:[%s1 + $0x44] sm:$0xf]
        %v261 = vld [vmem:[%s1 + $0x48] sm:$0xf]
        %v262 = vld [vmem:[%s1 + $0x4c] sm:$0xf]
        %v263 = vld [vmem:[%s1 + $0x50] sm:$0xf]
        %v264 = vld [vmem:[%s1 + $0x54] sm:$0xf]
        %v265 = vld [vmem:[%s1 + $0x58] sm:$0xf]
        %v266 = vld [vmem:[%s1 + $0x5c] sm:$0xf]
        %s267 = sadd.s32 %s207, 1
        %s268 = smul.u32 %s267, 8
        %s269 = smul.addr %s268, 4
        %s270 = scalar_lea.vmem %s184, %s269
        %v271 = vld [vmem:[%s270] sm:$0xff]
        %v272 = vld [vmem:[%s270 + $0x8] sm:$0xff]
        %v273 = vld [vmem:[%s270 + $0x10] sm:$0xff]
        %v274 = vld [vmem:[%s270 + $0x18] sm:$0xff]
        %v275 = vld [vmem:[%s270 + $0x20] sm:$0xff]
        %v276 = vld [vmem:[%s270 + $0x28] sm:$0xff]
        %v277 = vld [vmem:[%s270 + $0x30] sm:$0xff]
        %v278 = vld [vmem:[%s270 + $0x38] sm:$0xff]
        %v279 = vld [vmem:[%s270 + $0x40] sm:$0xff]
        %v280 = vld [vmem:[%s270 + $0x48] sm:$0xff]
        %v281 = vld [vmem:[%s270 + $0x50] sm:$0xff]
        %v282 = vld [vmem:[%s270 + $0x58] sm:$0xff]
        %v283 = vld [vmem:[%s270 + $0x60] sm:$0xff]
        %v284 = vld [vmem:[%s270 + $0x68] sm:$0xff]
        %v285 = vld [vmem:[%s270 + $0x70] sm:$0xff]
        %v286 = vld [vmem:[%s270 + $0x78] sm:$0xff]
        %v287 = vld [vmem:[%s270 + $0x80] sm:$0xff]
        %v288 = vld [vmem:[%s270 + $0x88] sm:$0xff]
        %v289 = vld [vmem:[%s270 + $0x90] sm:$0xff]
        %v290 = vld [vmem:[%s270 + $0x98] sm:$0xff]
        %v291 = vld [vmem:[%s270 + $0xa0] sm:$0xff]
        %v292 = vld [vmem:[%s270 + $0xa8] sm:$0xff]
        %v293 = vld [vmem:[%s270 + $0xb0] sm:$0xff]
        %v294 = vld [vmem:[%s270 + $0xb8] sm:$0xff]
        %v295 = vld [vmem:[%s270 + $0xc0] sm:$0xff]
        %v296 = vld [vmem:[%s270 + $0xc8] sm:$0xff]
        %v297 = vld [vmem:[%s270 + $0xd0] sm:$0xff]
        %v298 = vld [vmem:[%s270 + $0xd8] sm:$0xff]
        %v299 = vld [vmem:[%s270 + $0xe0] sm:$0xff]
        %v300 = vld [vmem:[%s270 + $0xe8] sm:$0xff]
        %v301 = vld [vmem:[%s270 + $0xf0] sm:$0xff]
        %v302 = vld [vmem:[%s270 + $0xf8] sm:$0xff]
        %s303 = scalar_lea.vmem %s1, 96
        %v304 = vld [vmem:[%s303] sm:$0xf]
        %v305 = vld [vmem:[%s303 + $0x4] sm:$0xf]
        %v306 = vld [vmem:[%s303 + $0x8] sm:$0xf]
        %v307 = vld [vmem:[%s303 + $0xc] sm:$0xf]
        %v308 = vld [vmem:[%s303 + $0x10] sm:$0xf]
        %v309 = vld [vmem:[%s303 + $0x14] sm:$0xf]
        %v310 = vld [vmem:[%s303 + $0x18] sm:$0xf]
        %v311 = vld [vmem:[%s303 + $0x1c] sm:$0xf]
        %v312 = vld [vmem:[%s303 + $0x20] sm:$0xf]
        %v313 = vld [vmem:[%s303 + $0x24] sm:$0xf]
        %v314 = vld [vmem:[%s303 + $0x28] sm:$0xf]
        %v315 = vld [vmem:[%s303 + $0x2c] sm:$0xf]
        %v316 = vld [vmem:[%s303 + $0x30] sm:$0xf]
        %v317 = vld [vmem:[%s303 + $0x34] sm:$0xf]
        %v318 = vld [vmem:[%s303 + $0x38] sm:$0xf]
        %v319 = vld [vmem:[%s303 + $0x3c] sm:$0xf]
        %v320 = vld [vmem:[%s303 + $0x40] sm:$0xf]
        %v321 = vld [vmem:[%s303 + $0x44] sm:$0xf]
        %v322 = vld [vmem:[%s303 + $0x48] sm:$0xf]
        %v323 = vld [vmem:[%s303 + $0x4c] sm:$0xf]
        %v324 = vld [vmem:[%s303 + $0x50] sm:$0xf]
        %v325 = vld [vmem:[%s303 + $0x54] sm:$0xf]
        %v326 = vld [vmem:[%s303 + $0x58] sm:$0xf]
        %v327 = vld [vmem:[%s303 + $0x5c] sm:$0xf]
        %v360 = vunpack.c.l.b16 %v271
        %v361 = vunpack.c.h.b16 %v271
        %v362 = vunpack.c.l.b16 %v272
        %v363 = vunpack.c.h.b16 %v272
        %v364 = vunpack.c.l.b16 %v273
        %v365 = vunpack.c.h.b16 %v273
        %v366 = vunpack.c.l.b16 %v274
        %v367 = vunpack.c.h.b16 %v274
        %v368 = vunpack.c.l.b16 %v275
        %v369 = vunpack.c.h.b16 %v275
        %v370 = vunpack.c.l.b16 %v276
        %v371 = vunpack.c.h.b16 %v276
        %v372 = vunpack.c.l.b16 %v277
        %v373 = vunpack.c.h.b16 %v277
        %v374 = vunpack.c.l.b16 %v278
        %v375 = vunpack.c.h.b16 %v278
        %v376 = vunpack.c.l.b16 %v279
        %v377 = vunpack.c.h.b16 %v279
        %v378 = vunpack.c.l.b16 %v280
        %v379 = vunpack.c.h.b16 %v280
        %v380 = vunpack.c.l.b16 %v281
        %v381 = vunpack.c.h.b16 %v281
        %v382 = vunpack.c.l.b16 %v282
        %v383 = vunpack.c.h.b16 %v282
        %v384 = vunpack.c.l.b16 %v283
        %v385 = vunpack.c.h.b16 %v283
        %v386 = vunpack.c.l.b16 %v284
        %v387 = vunpack.c.h.b16 %v284
        %v388 = vunpack.c.l.b16 %v285
        %v389 = vunpack.c.h.b16 %v285
        %v390 = vunpack.c.l.b16 %v286
        %v391 = vunpack.c.h.b16 %v286
        %v392 = vunpack.c.l.b16 %v287
        %v393 = vunpack.c.h.b16 %v287
        %v394 = vunpack.c.l.b16 %v288
        %v395 = vunpack.c.h.b16 %v288
        %v396 = vunpack.c.l.b16 %v289
        %v397 = vunpack.c.h.b16 %v289
        %v398 = vunpack.c.l.b16 %v290
        %v399 = vunpack.c.h.b16 %v290
        %v400 = vunpack.c.l.b16 %v291
        %v401 = vunpack.c.h.b16 %v291
        %v402 = vunpack.c.l.b16 %v292
        %v403 = vunpack.c.h.b16 %v292
        %v404 = vunpack.c.l.b16 %v293
        %v405 = vunpack.c.h.b16 %v293
        %v406 = vunpack.c.l.b16 %v294
        %v407 = vunpack.c.h.b16 %v294
        %v408 = vunpack.c.l.b16 %v295
        %v409 = vunpack.c.h.b16 %v295
        %v410 = vunpack.c.l.b16 %v296
        %v411 = vunpack.c.h.b16 %v296
        %v412 = vunpack.c.l.b16 %v297
        %v413 = vunpack.c.h.b16 %v297
        %v414 = vunpack.c.l.b16 %v298
        %v415 = vunpack.c.h.b16 %v298
        %v416 = vunpack.c.l.b16 %v299
        %v417 = vunpack.c.h.b16 %v299
        %v418 = vunpack.c.l.b16 %v300
        %v419 = vunpack.c.h.b16 %v300
        %v420 = vunpack.c.l.b16 %v301
        %v421 = vunpack.c.h.b16 %v301
        %v422 = vunpack.c.l.b16 %v302
        %v423 = vunpack.c.h.b16 %v302
        %v424 = vpack.c.b16 %v362, %v360
        %v425 = vpack.c.b16 %v363, %v361
        %v426 = vpack.c.b16 %v366, %v364
        %v427 = vpack.c.b16 %v367, %v365
        %v428 = vpack.c.b16 %v370, %v368
        %v429 = vpack.c.b16 %v371, %v369
        %v430 = vpack.c.b16 %v374, %v372
        %v431 = vpack.c.b16 %v375, %v373
        %v432 = vpack.c.b16 %v378, %v376
        %v433 = vpack.c.b16 %v379, %v377
        %v434 = vpack.c.b16 %v382, %v380
        %v435 = vpack.c.b16 %v383, %v381
        %v436 = vpack.c.b16 %v386, %v384
        %v437 = vpack.c.b16 %v387, %v385
        %v438 = vpack.c.b16 %v390, %v388
        %v439 = vpack.c.b16 %v391, %v389
        %v440 = vpack.c.b16 %v394, %v392
        %v441 = vpack.c.b16 %v395, %v393
        %v442 = vpack.c.b16 %v398, %v396
        %v443 = vpack.c.b16 %v399, %v397
        %v444 = vpack.c.b16 %v402, %v400
        %v445 = vpack.c.b16 %v403, %v401
        %v446 = vpack.c.b16 %v406, %v404
        %v447 = vpack.c.b16 %v407, %v405
        %v448 = vpack.c.b16 %v410, %v408
        %v449 = vpack.c.b16 %v411, %v409
        %v450 = vpack.c.b16 %v414, %v412
        %v451 = vpack.c.b16 %v415, %v413
        %v452 = vpack.c.b16 %v418, %v416
        %v453 = vpack.c.b16 %v419, %v417
        %v454 = vpack.c.b16 %v422, %v420
        %v455 = vpack.c.b16 %v423, %v421
        %v496 = vunpack.c.l.b16 %v304
        %v497 = vunpack.c.l.b16 %v305
        %v498 = vunpack.c.l.b16 %v306
        %v499 = vunpack.c.l.b16 %v307
        %v500 = vunpack.c.l.b16 %v308
        %v501 = vunpack.c.l.b16 %v309
        %v502 = vunpack.c.l.b16 %v310
        %v503 = vunpack.c.l.b16 %v311
        %v504 = vunpack.c.l.b16 %v312
        %v505 = vunpack.c.l.b16 %v313
        %v506 = vunpack.c.l.b16 %v314
        %v507 = vunpack.c.l.b16 %v315
        %v508 = vunpack.c.l.b16 %v316
        %v509 = vunpack.c.l.b16 %v317
        %v510 = vunpack.c.l.b16 %v318
        %v511 = vunpack.c.l.b16 %v319
        %v512 = vunpack.c.l.b16 %v320
        %v513 = vunpack.c.l.b16 %v321
        %v514 = vunpack.c.l.b16 %v322
        %v515 = vunpack.c.l.b16 %v323
        %v516 = vunpack.c.l.b16 %v324
        %v517 = vunpack.c.l.b16 %v325
        %v518 = vunpack.c.l.b16 %v326
        %v519 = vunpack.c.l.b16 %v327
        %v520 = vpack.c.b16 %v497, %v496
        %v521 = vpack.c.b16 %v499, %v498
        %v522 = vpack.c.b16 %v501, %v500
        %v523 = vpack.c.b16 %v503, %v502
        %v524 = vpack.c.b16 %v505, %v504
        %v525 = vpack.c.b16 %v507, %v506
        %v526 = vpack.c.b16 %v509, %v508
        %v527 = vpack.c.b16 %v511, %v510
        %v528 = vpack.c.b16 %v513, %v512
        %v529 = vpack.c.b16 %v515, %v514
        %v530 = vpack.c.b16 %v517, %v516
        %v531 = vpack.c.b16 %v519, %v518
        %vm544 = vcmask 523264
        %v546 = vsel %vm544, %v425, 0
        %v549 = vsel %vm544, %v427, 0
        %v552 = vsel %vm544, %v429, 0
        %v555 = vsel %vm544, %v431, 0
        %v558 = vsel %vm544, %v433, 0
        %v561 = vsel %vm544, %v435, 0
        %v564 = vsel %vm544, %v437, 0
        %v567 = vsel %vm544, %v439, 0
        %v570 = vsel %vm544, %v441, 0
        %v573 = vsel %vm544, %v443, 0
        %v576 = vsel %vm544, %v445, 0
        %v579 = vsel %vm544, %v447, 0
        %v582 = vsel %vm544, %v449, 0
        %v585 = vsel %vm544, %v451, 0
        %v588 = vsel %vm544, %v453, 0
        %v591 = vsel %vm544, %v455, 0
        %593 = vmatpush.bf16.msra.mxu0 %v527
        %594 = vmatpush.bf16.msra.mxu0 %v526
        %595 = vmatpush.bf16.msra.mxu0 %v525
        %596 = vmatpush.bf16.msra.mxu0 %v524
        %597 = vmatpush.bf16.msra.mxu0 %v523
        %598 = vmatpush.bf16.msra.mxu0 %v522
        %599 = vmatpush.bf16.msra.mxu0 %v521
        %600 = vmatpush.bf16.msra.mxu0 %v520
        %601 = vmatmul.bf16.gmra.mxu0 %v424
        %v602 = vpop.f32.mrf.mxu0
        %v603 = vadd.f32 0.0, %v602
        %v604 = vpop.f32.mrf.mxu0
        %v605 = vadd.f32 0.0, %v604
        %606 = vmatmul.bf16.gmra.mxu0 %v426
        %v607 = vpop.f32.mrf.mxu0
        %v608 = vadd.f32 0.0, %v607
        %v609 = vpop.f32.mrf.mxu0
        %v610 = vadd.f32 0.0, %v609
        %611 = vmatmul.bf16.gmra.mxu0 %v428
        %v612 = vpop.f32.mrf.mxu0
        %v613 = vadd.f32 0.0, %v612
        %v614 = vpop.f32.mrf.mxu0
        %v615 = vadd.f32 0.0, %v614
        %616 = vmatmul.bf16.gmra.mxu0 %v430
        %v617 = vpop.f32.mrf.mxu0
        %v618 = vadd.f32 0.0, %v617
        %v619 = vpop.f32.mrf.mxu0
        %v620 = vadd.f32 0.0, %v619
        %621 = vmatmul.bf16.gmra.mxu0 %v432
        %v622 = vpop.f32.mrf.mxu0
        %v623 = vadd.f32 0.0, %v622
        %v624 = vpop.f32.mrf.mxu0
        %v625 = vadd.f32 0.0, %v624
        %626 = vmatmul.bf16.gmra.mxu0 %v434
        %v627 = vpop.f32.mrf.mxu0
        %v628 = vadd.f32 0.0, %v627
        %v629 = vpop.f32.mrf.mxu0
        %v630 = vadd.f32 0.0, %v629
        %631 = vmatmul.bf16.gmra.mxu0 %v436
        %v632 = vpop.f32.mrf.mxu0
        %v633 = vadd.f32 0.0, %v632
        %v634 = vpop.f32.mrf.mxu0
        %v635 = vadd.f32 0.0, %v634
        %636 = vmatmul.bf16.gmra.mxu0 %v438
        %v637 = vpop.f32.mrf.mxu0
        %v638 = vadd.f32 0.0, %v637
        %v639 = vpop.f32.mrf.mxu0
        %v640 = vadd.f32 0.0, %v639
        %641 = vmatmul.bf16.gmra.mxu0 %v440
        %v642 = vpop.f32.mrf.mxu0
        %v643 = vadd.f32 0.0, %v642
        %v644 = vpop.f32.mrf.mxu0
        %v645 = vadd.f32 0.0, %v644
        %646 = vmatmul.bf16.gmra.mxu0 %v442
        %v647 = vpop.f32.mrf.mxu0
        %v648 = vadd.f32 0.0, %v647
        %v649 = vpop.f32.mrf.mxu0
        %v650 = vadd.f32 0.0, %v649
        %651 = vmatmul.bf16.gmra.mxu0 %v444
        %v652 = vpop.f32.mrf.mxu0
        %v653 = vadd.f32 0.0, %v652
        %v654 = vpop.f32.mrf.mxu0
        %v655 = vadd.f32 0.0, %v654
        %656 = vmatmul.bf16.gmra.mxu0 %v446
        %v657 = vpop.f32.mrf.mxu0
        %v658 = vadd.f32 0.0, %v657
        %v659 = vpop.f32.mrf.mxu0
        %v660 = vadd.f32 0.0, %v659
        %661 = vmatmul.bf16.gmra.mxu0 %v448
        %v662 = vpop.f32.mrf.mxu0
        %v663 = vadd.f32 0.0, %v662
        %v664 = vpop.f32.mrf.mxu0
        %v665 = vadd.f32 0.0, %v664
        %666 = vmatmul.bf16.gmra.mxu0 %v450
        %v667 = vpop.f32.mrf.mxu0
        %v668 = vadd.f32 0.0, %v667
        %v669 = vpop.f32.mrf.mxu0
        %v670 = vadd.f32 0.0, %v669
        %671 = vmatmul.bf16.gmra.mxu0 %v452
        %v672 = vpop.f32.mrf.mxu0
        %v673 = vadd.f32 0.0, %v672
        %v674 = vpop.f32.mrf.mxu0
        %v675 = vadd.f32 0.0, %v674
        %676 = vmatmul.bf16.gmra.mxu0 %v454
        %v677 = vpop.f32.mrf.mxu0
        %v678 = vadd.f32 0.0, %v677
        %v679 = vpop.f32.mrf.mxu0
        %v680 = vadd.f32 0.0, %v679
        %681 = vdwg.mxu0
        %682 = vmatpush.bf16.msra.mxu0 0
        %683 = vmatpush.bf16.msra.mxu0 0
        %684 = vmatpush.bf16.msra.mxu0 0
        %685 = vmatpush.bf16.msra.mxu0 0
        %686 = vmatpush.bf16.msra.mxu0 %v531
        %687 = vmatpush.bf16.msra.mxu0 %v530
        %688 = vmatpush.bf16.msra.mxu0 %v529
        %689 = vmatpush.bf16.msra.mxu0 %v528
        %690 = vmatmul.bf16.gmra.mxu0 %v546
        %v691 = vpop.f32.mrf.mxu0
        %v692 = vadd.f32 %v603, %v691
        %v693 = vpop.f32.mrf.mxu0
        %v694 = vadd.f32 %v605, %v693
        %695 = vmatmul.bf16.gmra.mxu0 %v549
        %v696 = vpop.f32.mrf.mxu0
        %v697 = vadd.f32 %v608, %v696
        %v698 = vpop.f32.mrf.mxu0
        %v699 = vadd.f32 %v610, %v698
        %700 = vmatmul.bf16.gmra.mxu0 %v552
        %v701 = vpop.f32.mrf.mxu0
        %v702 = vadd.f32 %v613, %v701
        %v703 = vpop.f32.mrf.mxu0
        %v704 = vadd.f32 %v615, %v703
        %705 = vmatmul.bf16.gmra.mxu0 %v555
        %v706 = vpop.f32.mrf.mxu0
        %v707 = vadd.f32 %v618, %v706
        %v708 = vpop.f32.mrf.mxu0
        %v709 = vadd.f32 %v620, %v708
        %710 = vmatmul.bf16.gmra.mxu0 %v558
        %v711 = vpop.f32.mrf.mxu0
        %v712 = vadd.f32 %v623, %v711
        %v713 = vpop.f32.mrf.mxu0
        %v714 = vadd.f32 %v625, %v713
        %715 = vmatmul.bf16.gmra.mxu0 %v561
        %v716 = vpop.f32.mrf.mxu0
        %v717 = vadd.f32 %v628, %v716
        %v718 = vpop.f32.mrf.mxu0
        %v719 = vadd.f32 %v630, %v718
        %720 = vmatmul.bf16.gmra.mxu0 %v564
        %v721 = vpop.f32.mrf.mxu0
        %v722 = vadd.f32 %v633, %v721
        %v723 = vpop.f32.mrf.mxu0
        %v724 = vadd.f32 %v635, %v723
        %725 = vmatmul.bf16.gmra.mxu0 %v567
        %v726 = vpop.f32.mrf.mxu0
        %v727 = vadd.f32 %v638, %v726
        %v728 = vpop.f32.mrf.mxu0
        %v729 = vadd.f32 %v640, %v728
        %730 = vmatmul.bf16.gmra.mxu0 %v570
        %v731 = vpop.f32.mrf.mxu0
        %v732 = vadd.f32 %v643, %v731
        %v733 = vpop.f32.mrf.mxu0
        %v734 = vadd.f32 %v645, %v733
        %735 = vmatmul.bf16.gmra.mxu0 %v573
        %v736 = vpop.f32.mrf.mxu0
        %v737 = vadd.f32 %v648, %v736
        %v738 = vpop.f32.mrf.mxu0
        %v739 = vadd.f32 %v650, %v738
        %740 = vmatmul.bf16.gmra.mxu0 %v576
        %v741 = vpop.f32.mrf.mxu0
        %v742 = vadd.f32 %v653, %v741
        %v743 = vpop.f32.mrf.mxu0
        %v744 = vadd.f32 %v655, %v743
        %745 = vmatmul.bf16.gmra.mxu0 %v579
        %v746 = vpop.f32.mrf.mxu0
        %v747 = vadd.f32 %v658, %v746
        %v748 = vpop.f32.mrf.mxu0
        %v749 = vadd.f32 %v660, %v748
        %750 = vmatmul.bf16.gmra.mxu0 %v582
        %v751 = vpop.f32.mrf.mxu0
        %v752 = vadd.f32 %v663, %v751
        %v753 = vpop.f32.mrf.mxu0
        %v754 = vadd.f32 %v665, %v753
        %755 = vmatmul.bf16.gmra.mxu0 %v585
        %v756 = vpop.f32.mrf.mxu0
        %v757 = vadd.f32 %v668, %v756
        %v758 = vpop.f32.mrf.mxu0
        %v759 = vadd.f32 %v670, %v758
        %760 = vmatmul.bf16.gmra.mxu0 %v588
        %v761 = vpop.f32.mrf.mxu0
        %v762 = vadd.f32 %v673, %v761
        %v763 = vpop.f32.mrf.mxu0
        %v764 = vadd.f32 %v675, %v763
        %765 = vmatmul.bf16.gmra.mxu0 %v591
        %v766 = vpop.f32.mrf.mxu0
        %v767 = vadd.f32 %v678, %v766
        %v768 = vpop.f32.mrf.mxu0
        %v769 = vadd.f32 %v680, %v768
        %770 = vdwg.mxu0
        %v803 = vunpack.c.l.b16 %v211
        %v804 = vunpack.c.h.b16 %v211
        %v805 = vunpack.c.l.b16 %v212
        %v806 = vunpack.c.h.b16 %v212
        %v807 = vunpack.c.l.b16 %v213
        %v808 = vunpack.c.h.b16 %v213
        %v809 = vunpack.c.l.b16 %v214
        %v810 = vunpack.c.h.b16 %v214
        %v811 = vunpack.c.l.b16 %v215
        %v812 = vunpack.c.h.b16 %v215
        %v813 = vunpack.c.l.b16 %v216
        %v814 = vunpack.c.h.b16 %v216
        %v815 = vunpack.c.l.b16 %v217
        %v816 = vunpack.c.h.b16 %v217
        %v817 = vunpack.c.l.b16 %v218
        %v818 = vunpack.c.h.b16 %v218
        %v819 = vunpack.c.l.b16 %v219
        %v820 = vunpack.c.h.b16 %v219
        %v821 = vunpack.c.l.b16 %v220
        %v822 = vunpack.c.h.b16 %v220
        %v823 = vunpack.c.l.b16 %v221
        %v824 = vunpack.c.h.b16 %v221
        %v825 = vunpack.c.l.b16 %v222
        %v826 = vunpack.c.h.b16 %v222
        %v827 = vunpack.c.l.b16 %v223
        %v828 = vunpack.c.h.b16 %v223
        %v829 = vunpack.c.l.b16 %v224
        %v830 = vunpack.c.h.b16 %v224
        %v831 = vunpack.c.l.b16 %v225
        %v832 = vunpack.c.h.b16 %v225
        %v833 = vunpack.c.l.b16 %v226
        %v834 = vunpack.c.h.b16 %v226
        %v835 = vunpack.c.l.b16 %v227
        %v836 = vunpack.c.h.b16 %v227
        %v837 = vunpack.c.l.b16 %v228
        %v838 = vunpack.c.h.b16 %v228
        %v839 = vunpack.c.l.b16 %v229
        %v840 = vunpack.c.h.b16 %v229
        %v841 = vunpack.c.l.b16 %v230
        %v842 = vunpack.c.h.b16 %v230
        %v843 = vunpack.c.l.b16 %v231
        %v844 = vunpack.c.h.b16 %v231
        %v845 = vunpack.c.l.b16 %v232
        %v846 = vunpack.c.h.b16 %v232
        %v847 = vunpack.c.l.b16 %v233
        %v848 = vunpack.c.h.b16 %v233
        %v849 = vunpack.c.l.b16 %v234
        %v850 = vunpack.c.h.b16 %v234
        %v851 = vunpack.c.l.b16 %v235
        %v852 = vunpack.c.h.b16 %v235
        %v853 = vunpack.c.l.b16 %v236
        %v854 = vunpack.c.h.b16 %v236
        %v855 = vunpack.c.l.b16 %v237
        %v856 = vunpack.c.h.b16 %v237
        %v857 = vunpack.c.l.b16 %v238
        %v858 = vunpack.c.h.b16 %v238
        %v859 = vunpack.c.l.b16 %v239
        %v860 = vunpack.c.h.b16 %v239
        %v861 = vunpack.c.l.b16 %v240
        %v862 = vunpack.c.h.b16 %v240
        %v863 = vunpack.c.l.b16 %v241
        %v864 = vunpack.c.h.b16 %v241
        %v865 = vunpack.c.l.b16 %v242
        %v866 = vunpack.c.h.b16 %v242
        %v867 = vpack.c.b16 %v805, %v803
        %v868 = vpack.c.b16 %v806, %v804
        %v869 = vpack.c.b16 %v809, %v807
        %v870 = vpack.c.b16 %v810, %v808
        %v871 = vpack.c.b16 %v813, %v811
        %v872 = vpack.c.b16 %v814, %v812
        %v873 = vpack.c.b16 %v817, %v815
        %v874 = vpack.c.b16 %v818, %v816
        %v875 = vpack.c.b16 %v821, %v819
        %v876 = vpack.c.b16 %v822, %v820
        %v877 = vpack.c.b16 %v825, %v823
        %v878 = vpack.c.b16 %v826, %v824
        %v879 = vpack.c.b16 %v829, %v827
        %v880 = vpack.c.b16 %v830, %v828
        %v881 = vpack.c.b16 %v833, %v831
        %v882 = vpack.c.b16 %v834, %v832
        %v883 = vpack.c.b16 %v837, %v835
        %v884 = vpack.c.b16 %v838, %v836
        %v885 = vpack.c.b16 %v841, %v839
        %v886 = vpack.c.b16 %v842, %v840
        %v887 = vpack.c.b16 %v845, %v843
        %v888 = vpack.c.b16 %v846, %v844
        %v889 = vpack.c.b16 %v849, %v847
        %v890 = vpack.c.b16 %v850, %v848
        %v891 = vpack.c.b16 %v853, %v851
        %v892 = vpack.c.b16 %v854, %v852
        %v893 = vpack.c.b16 %v857, %v855
        %v894 = vpack.c.b16 %v858, %v856
        %v895 = vpack.c.b16 %v861, %v859
        %v896 = vpack.c.b16 %v862, %v860
        %v897 = vpack.c.b16 %v865, %v863
        %v898 = vpack.c.b16 %v866, %v864
        %v939 = vunpack.c.l.b16 %v243
        %v940 = vunpack.c.l.b16 %v244
        %v941 = vunpack.c.l.b16 %v245
        %v942 = vunpack.c.l.b16 %v246
        %v943 = vunpack.c.l.b16 %v247
        %v944 = vunpack.c.l.b16 %v248
        %v945 = vunpack.c.l.b16 %v249
        %v946 = vunpack.c.l.b16 %v250
        %v947 = vunpack.c.l.b16 %v251
        %v948 = vunpack.c.l.b16 %v252
        %v949 = vunpack.c.l.b16 %v253
        %v950 = vunpack.c.l.b16 %v254
        %v951 = vunpack.c.l.b16 %v255
        %v952 = vunpack.c.l.b16 %v256
        %v953 = vunpack.c.l.b16 %v257
        %v954 = vunpack.c.l.b16 %v258
        %v955 = vunpack.c.l.b16 %v259
        %v956 = vunpack.c.l.b16 %v260
        %v957 = vunpack.c.l.b16 %v261
        %v958 = vunpack.c.l.b16 %v262
        %v959 = vunpack.c.l.b16 %v263
        %v960 = vunpack.c.l.b16 %v264
        %v961 = vunpack.c.l.b16 %v265
        %v962 = vunpack.c.l.b16 %v266
        %v963 = vpack.c.b16 %v940, %v939
        %v964 = vpack.c.b16 %v942, %v941
        %v965 = vpack.c.b16 %v944, %v943
        %v966 = vpack.c.b16 %v946, %v945
        %v967 = vpack.c.b16 %v948, %v947
        %v968 = vpack.c.b16 %v950, %v949
        %v969 = vpack.c.b16 %v952, %v951
        %v970 = vpack.c.b16 %v954, %v953
        %v971 = vpack.c.b16 %v956, %v955
        %v972 = vpack.c.b16 %v958, %v957
        %v973 = vpack.c.b16 %v960, %v959
        %v974 = vpack.c.b16 %v962, %v961
        %v988 = vsel %vm544, %v868, 0
        %v991 = vsel %vm544, %v870, 0
        %v994 = vsel %vm544, %v872, 0
        %v997 = vsel %vm544, %v874, 0
        %v1000 = vsel %vm544, %v876, 0
        %v1003 = vsel %vm544, %v878, 0
        %v1006 = vsel %vm544, %v880, 0
        %v1009 = vsel %vm544, %v882, 0
        %v1012 = vsel %vm544, %v884, 0
        %v1015 = vsel %vm544, %v886, 0
        %v1018 = vsel %vm544, %v888, 0
        %v1021 = vsel %vm544, %v890, 0
        %v1024 = vsel %vm544, %v892, 0
        %v1027 = vsel %vm544, %v894, 0
        %v1030 = vsel %vm544, %v896, 0
        %v1033 = vsel %vm544, %v898, 0
        %1035 = vmatpush.bf16.msra.mxu0 %v970
        %1036 = vmatpush.bf16.msra.mxu0 %v969
        %1037 = vmatpush.bf16.msra.mxu0 %v968
        %1038 = vmatpush.bf16.msra.mxu0 %v967
        %1039 = vmatpush.bf16.msra.mxu0 %v966
        %1040 = vmatpush.bf16.msra.mxu0 %v965
        %1041 = vmatpush.bf16.msra.mxu0 %v964
        %1042 = vmatpush.bf16.msra.mxu0 %v963
        %1043 = vmatmul.bf16.gmra.mxu0 %v867
        %v1044 = vpop.f32.mrf.mxu0
        %v1045 = vadd.f32 %v692, %v1044
        %v1046 = vpop.f32.mrf.mxu0
        %v1047 = vadd.f32 %v694, %v1046
        %1048 = vmatmul.bf16.gmra.mxu0 %v869
        %v1049 = vpop.f32.mrf.mxu0
        %v1050 = vadd.f32 %v697, %v1049
        %v1051 = vpop.f32.mrf.mxu0
        %v1052 = vadd.f32 %v699, %v1051
        %1053 = vmatmul.bf16.gmra.mxu0 %v871
        %v1054 = vpop.f32.mrf.mxu0
        %v1055 = vadd.f32 %v702, %v1054
        %v1056 = vpop.f32.mrf.mxu0
        %v1057 = vadd.f32 %v704, %v1056
        %1058 = vmatmul.bf16.gmra.mxu0 %v873
        %v1059 = vpop.f32.mrf.mxu0
        %v1060 = vadd.f32 %v707, %v1059
        %v1061 = vpop.f32.mrf.mxu0
        %v1062 = vadd.f32 %v709, %v1061
        %1063 = vmatmul.bf16.gmra.mxu0 %v875
        %v1064 = vpop.f32.mrf.mxu0
        %v1065 = vadd.f32 %v712, %v1064
        %v1066 = vpop.f32.mrf.mxu0
        %v1067 = vadd.f32 %v714, %v1066
        %1068 = vmatmul.bf16.gmra.mxu0 %v877
        %v1069 = vpop.f32.mrf.mxu0
        %v1070 = vadd.f32 %v717, %v1069
        %v1071 = vpop.f32.mrf.mxu0
        %v1072 = vadd.f32 %v719, %v1071
        %1073 = vmatmul.bf16.gmra.mxu0 %v879
        %v1074 = vpop.f32.mrf.mxu0
        %v1075 = vadd.f32 %v722, %v1074
        %v1076 = vpop.f32.mrf.mxu0
        %v1077 = vadd.f32 %v724, %v1076
        %1078 = vmatmul.bf16.gmra.mxu0 %v881
        %v1079 = vpop.f32.mrf.mxu0
        %v1080 = vadd.f32 %v727, %v1079
        %v1081 = vpop.f32.mrf.mxu0
        %v1082 = vadd.f32 %v729, %v1081
        %1083 = vmatmul.bf16.gmra.mxu0 %v883
        %v1084 = vpop.f32.mrf.mxu0
        %v1085 = vadd.f32 %v732, %v1084
        %v1086 = vpop.f32.mrf.mxu0
        %v1087 = vadd.f32 %v734, %v1086
        %1088 = vmatmul.bf16.gmra.mxu0 %v885
        %v1089 = vpop.f32.mrf.mxu0
        %v1090 = vadd.f32 %v737, %v1089
        %v1091 = vpop.f32.mrf.mxu0
        %v1092 = vadd.f32 %v739, %v1091
        %1093 = vmatmul.bf16.gmra.mxu0 %v887
        %v1094 = vpop.f32.mrf.mxu0
        %v1095 = vadd.f32 %v742, %v1094
        %v1096 = vpop.f32.mrf.mxu0
        %v1097 = vadd.f32 %v744, %v1096
        %1098 = vmatmul.bf16.gmra.mxu0 %v889
        %v1099 = vpop.f32.mrf.mxu0
        %v1100 = vadd.f32 %v747, %v1099
        %v1101 = vpop.f32.mrf.mxu0
        %v1102 = vadd.f32 %v749, %v1101
        %1103 = vmatmul.bf16.gmra.mxu0 %v891
        %v1104 = vpop.f32.mrf.mxu0
        %v1105 = vadd.f32 %v752, %v1104
        %v1106 = vpop.f32.mrf.mxu0
        %v1107 = vadd.f32 %v754, %v1106
        %1108 = vmatmul.bf16.gmra.mxu0 %v893
        %v1109 = vpop.f32.mrf.mxu0
        %v1110 = vadd.f32 %v757, %v1109
        %v1111 = vpop.f32.mrf.mxu0
        %v1112 = vadd.f32 %v759, %v1111
        %1113 = vmatmul.bf16.gmra.mxu0 %v895
        %v1114 = vpop.f32.mrf.mxu0
        %v1115 = vadd.f32 %v762, %v1114
        %v1116 = vpop.f32.mrf.mxu0
        %v1117 = vadd.f32 %v764, %v1116
        %1118 = vmatmul.bf16.gmra.mxu0 %v897
        %v1119 = vpop.f32.mrf.mxu0
        %v1120 = vadd.f32 %v767, %v1119
        %v1121 = vpop.f32.mrf.mxu0
        %v1122 = vadd.f32 %v769, %v1121
        %1123 = vdwg.mxu0
        %1124 = vmatpush.bf16.msra.mxu0 0
        %1125 = vmatpush.bf16.msra.mxu0 0
        %1126 = vmatpush.bf16.msra.mxu0 0
        %1127 = vmatpush.bf16.msra.mxu0 0
        %1128 = vmatpush.bf16.msra.mxu0 %v974
        %1129 = vmatpush.bf16.msra.mxu0 %v973
        %1130 = vmatpush.bf16.msra.mxu0 %v972
        %1131 = vmatpush.bf16.msra.mxu0 %v971
        %1132 = vmatmul.bf16.gmra.mxu0 %v988
        %v1133 = vpop.f32.mrf.mxu0
        %v1134 = vadd.f32 %v1045, %v1133
        %v1135 = vpop.f32.mrf.mxu0
        %v1136 = vadd.f32 %v1047, %v1135
        %1137 = vmatmul.bf16.gmra.mxu0 %v991
        %v1138 = vpop.f32.mrf.mxu0
        %v1139 = vadd.f32 %v1050, %v1138
        %v1140 = vpop.f32.mrf.mxu0
        %v1141 = vadd.f32 %v1052, %v1140
        %1142 = vmatmul.bf16.gmra.mxu0 %v994
        %v1143 = vpop.f32.mrf.mxu0
        %v1144 = vadd.f32 %v1055, %v1143
        %v1145 = vpop.f32.mrf.mxu0
        %v1146 = vadd.f32 %v1057, %v1145
        %1147 = vmatmul.bf16.gmra.mxu0 %v997
        %v1148 = vpop.f32.mrf.mxu0
        %v1149 = vadd.f32 %v1060, %v1148
        %v1150 = vpop.f32.mrf.mxu0
        %v1151 = vadd.f32 %v1062, %v1150
        %1152 = vmatmul.bf16.gmra.mxu0 %v1000
        %v1153 = vpop.f32.mrf.mxu0
        %v1154 = vadd.f32 %v1065, %v1153
        %v1155 = vpop.f32.mrf.mxu0
        %v1156 = vadd.f32 %v1067, %v1155
        %1157 = vmatmul.bf16.gmra.mxu0 %v1003
        %v1158 = vpop.f32.mrf.mxu0
        %v1159 = vadd.f32 %v1070, %v1158
        %v1160 = vpop.f32.mrf.mxu0
        %v1161 = vadd.f32 %v1072, %v1160
        %1162 = vmatmul.bf16.gmra.mxu0 %v1006
        %v1163 = vpop.f32.mrf.mxu0
        %v1164 = vadd.f32 %v1075, %v1163
        %v1165 = vpop.f32.mrf.mxu0
        %v1166 = vadd.f32 %v1077, %v1165
        %1167 = vmatmul.bf16.gmra.mxu0 %v1009
        %v1168 = vpop.f32.mrf.mxu0
        %v1169 = vadd.f32 %v1080, %v1168
        %v1170 = vpop.f32.mrf.mxu0
        %v1171 = vadd.f32 %v1082, %v1170
        %1172 = vmatmul.bf16.gmra.mxu0 %v1012
        %v1173 = vpop.f32.mrf.mxu0
        %v1174 = vadd.f32 %v1085, %v1173
        %v1175 = vpop.f32.mrf.mxu0
        %v1176 = vadd.f32 %v1087, %v1175
        %1177 = vmatmul.bf16.gmra.mxu0 %v1015
        %v1178 = vpop.f32.mrf.mxu0
        %v1179 = vadd.f32 %v1090, %v1178
        %v1180 = vpop.f32.mrf.mxu0
        %v1181 = vadd.f32 %v1092, %v1180
        %1182 = vmatmul.bf16.gmra.mxu0 %v1018
        %v1183 = vpop.f32.mrf.mxu0
        %v1184 = vadd.f32 %v1095, %v1183
        %v1185 = vpop.f32.mrf.mxu0
        %v1186 = vadd.f32 %v1097, %v1185
        %1187 = vmatmul.bf16.gmra.mxu0 %v1021
        %v1188 = vpop.f32.mrf.mxu0
        %v1189 = vadd.f32 %v1100, %v1188
        %v1190 = vpop.f32.mrf.mxu0
        %v1191 = vadd.f32 %v1102, %v1190
        %1192 = vmatmul.bf16.gmra.mxu0 %v1024
        %v1193 = vpop.f32.mrf.mxu0
        %v1194 = vadd.f32 %v1105, %v1193
        %v1195 = vpop.f32.mrf.mxu0
        %v1196 = vadd.f32 %v1107, %v1195
        %1197 = vmatmul.bf16.gmra.mxu0 %v1027
        %v1198 = vpop.f32.mrf.mxu0
        %v1199 = vadd.f32 %v1110, %v1198
        %v1200 = vpop.f32.mrf.mxu0
        %v1201 = vadd.f32 %v1112, %v1200
        %1202 = vmatmul.bf16.gmra.mxu0 %v1030
        %v1203 = vpop.f32.mrf.mxu0
        %v1204 = vadd.f32 %v1115, %v1203
        %v1205 = vpop.f32.mrf.mxu0
        %v1206 = vadd.f32 %v1117, %v1205
        %1207 = vmatmul.bf16.gmra.mxu0 %v1033
        %v1208 = vpop.f32.mrf.mxu0
        %v1209 = vadd.f32 %v1120, %v1208
        %v1210 = vpop.f32.mrf.mxu0
        %v1211 = vadd.f32 %v1122, %v1210
        %1212 = vdwg.mxu0
        %s1213 = sadd.s32 %s207, 2
        %s1214 = smul.u32 %s1213, 8
        %s1215 = smul.addr %s1214, 4
        %s1216 = scalar_lea.vmem %s184, %s1215
        %v1217 = vld [vmem:[%s1216] sm:$0xff]
        %v1218 = vld [vmem:[%s1216 + $0x8] sm:$0xff]
        %v1219 = vld [vmem:[%s1216 + $0x10] sm:$0xff]
        %v1220 = vld [vmem:[%s1216 + $0x18] sm:$0xff]
        %v1221 = vld [vmem:[%s1216 + $0x20] sm:$0xff]
        %v1222 = vld [vmem:[%s1216 + $0x28] sm:$0xff]
        %v1223 = vld [vmem:[%s1216 + $0x30] sm:$0xff]
        %v1224 = vld [vmem:[%s1216 + $0x38] sm:$0xff]
        %v1225 = vld [vmem:[%s1216 + $0x40] sm:$0xff]
        %v1226 = vld [vmem:[%s1216 + $0x48] sm:$0xff]
        %v1227 = vld [vmem:[%s1216 + $0x50] sm:$0xff]
        %v1228 = vld [vmem:[%s1216 + $0x58] sm:$0xff]
        %v1229 = vld [vmem:[%s1216 + $0x60] sm:$0xff]
        %v1230 = vld [vmem:[%s1216 + $0x68] sm:$0xff]
        %v1231 = vld [vmem:[%s1216 + $0x70] sm:$0xff]
        %v1232 = vld [vmem:[%s1216 + $0x78] sm:$0xff]
        %v1233 = vld [vmem:[%s1216 + $0x80] sm:$0xff]
        %v1234 = vld [vmem:[%s1216 + $0x88] sm:$0xff]
        %v1235 = vld [vmem:[%s1216 + $0x90] sm:$0xff]
        %v1236 = vld [vmem:[%s1216 + $0x98] sm:$0xff]
        %v1237 = vld [vmem:[%s1216 + $0xa0] sm:$0xff]
        %v1238 = vld [vmem:[%s1216 + $0xa8] sm:$0xff]
        %v1239 = vld [vmem:[%s1216 + $0xb0] sm:$0xff]
        %v1240 = vld [vmem:[%s1216 + $0xb8] sm:$0xff]
        %v1241 = vld [vmem:[%s1216 + $0xc0] sm:$0xff]
        %v1242 = vld [vmem:[%s1216 + $0xc8] sm:$0xff]
        %v1243 = vld [vmem:[%s1216 + $0xd0] sm:$0xff]
        %v1244 = vld [vmem:[%s1216 + $0xd8] sm:$0xff]
        %v1245 = vld [vmem:[%s1216 + $0xe0] sm:$0xff]
        %v1246 = vld [vmem:[%s1216 + $0xe8] sm:$0xff]
        %v1247 = vld [vmem:[%s1216 + $0xf0] sm:$0xff]
        %v1248 = vld [vmem:[%s1216 + $0xf8] sm:$0xff]
        %s1249 = scalar_lea.vmem %s1, 192
        %v1250 = vld [vmem:[%s1249] sm:$0xf]
        %v1251 = vld [vmem:[%s1249 + $0x4] sm:$0xf]
        %v1252 = vld [vmem:[%s1249 + $0x8] sm:$0xf]
        %v1253 = vld [vmem:[%s1249 + $0xc] sm:$0xf]
        %v1254 = vld [vmem:[%s1249 + $0x10] sm:$0xf]
        %v1255 = vld [vmem:[%s1249 + $0x14] sm:$0xf]
        %v1256 = vld [vmem:[%s1249 + $0x18] sm:$0xf]
        %v1257 = vld [vmem:[%s1249 + $0x1c] sm:$0xf]
        %v1258 = vld [vmem:[%s1249 + $0x20] sm:$0xf]
        %v1259 = vld [vmem:[%s1249 + $0x24] sm:$0xf]
        %v1260 = vld [vmem:[%s1249 + $0x28] sm:$0xf]
        %v1261 = vld [vmem:[%s1249 + $0x2c] sm:$0xf]
        %v1262 = vld [vmem:[%s1249 + $0x30] sm:$0xf]
        %v1263 = vld [vmem:[%s1249 + $0x34] sm:$0xf]
        %v1264 = vld [vmem:[%s1249 + $0x38] sm:$0xf]
        %v1265 = vld [vmem:[%s1249 + $0x3c] sm:$0xf]
        %v1266 = vld [vmem:[%s1249 + $0x40] sm:$0xf]
        %v1267 = vld [vmem:[%s1249 + $0x44] sm:$0xf]
        %v1268 = vld [vmem:[%s1249 + $0x48] sm:$0xf]
        %v1269 = vld [vmem:[%s1249 + $0x4c] sm:$0xf]
        %v1270 = vld [vmem:[%s1249 + $0x50] sm:$0xf]
        %v1271 = vld [vmem:[%s1249 + $0x54] sm:$0xf]
        %v1272 = vld [vmem:[%s1249 + $0x58] sm:$0xf]
        %v1273 = vld [vmem:[%s1249 + $0x5c] sm:$0xf]
        %v1306 = vunpack.c.l.b16 %v1217
        %v1307 = vunpack.c.h.b16 %v1217
        %v1308 = vunpack.c.l.b16 %v1218
        %v1309 = vunpack.c.h.b16 %v1218
        %v1310 = vunpack.c.l.b16 %v1219
        %v1311 = vunpack.c.h.b16 %v1219
        %v1312 = vunpack.c.l.b16 %v1220
        %v1313 = vunpack.c.h.b16 %v1220
        %v1314 = vunpack.c.l.b16 %v1221
        %v1315 = vunpack.c.h.b16 %v1221
        %v1316 = vunpack.c.l.b16 %v1222
        %v1317 = vunpack.c.h.b16 %v1222
        %v1318 = vunpack.c.l.b16 %v1223
        %v1319 = vunpack.c.h.b16 %v1223
        %v1320 = vunpack.c.l.b16 %v1224
        %v1321 = vunpack.c.h.b16 %v1224
        %v1322 = vunpack.c.l.b16 %v1225
        %v1323 = vunpack.c.h.b16 %v1225
        %v1324 = vunpack.c.l.b16 %v1226
        %v1325 = vunpack.c.h.b16 %v1226
        %v1326 = vunpack.c.l.b16 %v1227
        %v1327 = vunpack.c.h.b16 %v1227
        %v1328 = vunpack.c.l.b16 %v1228
        %v1329 = vunpack.c.h.b16 %v1228
        %v1330 = vunpack.c.l.b16 %v1229
        %v1331 = vunpack.c.h.b16 %v1229
        %v1332 = vunpack.c.l.b16 %v1230
        %v1333 = vunpack.c.h.b16 %v1230
        %v1334 = vunpack.c.l.b16 %v1231
        %v1335 = vunpack.c.h.b16 %v1231
        %v1336 = vunpack.c.l.b16 %v1232
        %v1337 = vunpack.c.h.b16 %v1232
        %v1338 = vunpack.c.l.b16 %v1233
        %v1339 = vunpack.c.h.b16 %v1233
        %v1340 = vunpack.c.l.b16 %v1234
        %v1341 = vunpack.c.h.b16 %v1234
        %v1342 = vunpack.c.l.b16 %v1235
        %v1343 = vunpack.c.h.b16 %v1235
        %v1344 = vunpack.c.l.b16 %v1236
        %v1345 = vunpack.c.h.b16 %v1236
        %v1346 = vunpack.c.l.b16 %v1237
        %v1347 = vunpack.c.h.b16 %v1237
        %v1348 = vunpack.c.l.b16 %v1238
        %v1349 = vunpack.c.h.b16 %v1238
        %v1350 = vunpack.c.l.b16 %v1239
        %v1351 = vunpack.c.h.b16 %v1239
        %v1352 = vunpack.c.l.b16 %v1240
        %v1353 = vunpack.c.h.b16 %v1240
        %v1354 = vunpack.c.l.b16 %v1241
        %v1355 = vunpack.c.h.b16 %v1241
        %v1356 = vunpack.c.l.b16 %v1242
        %v1357 = vunpack.c.h.b16 %v1242
        %v1358 = vunpack.c.l.b16 %v1243
        %v1359 = vunpack.c.h.b16 %v1243
        %v1360 = vunpack.c.l.b16 %v1244
        %v1361 = vunpack.c.h.b16 %v1244
        %v1362 = vunpack.c.l.b16 %v1245
        %v1363 = vunpack.c.h.b16 %v1245
        %v1364 = vunpack.c.l.b16 %v1246
        %v1365 = vunpack.c.h.b16 %v1246
        %v1366 = vunpack.c.l.b16 %v1247
        %v1367 = vunpack.c.h.b16 %v1247
        %v1368 = vunpack.c.l.b16 %v1248
        %v1369 = vunpack.c.h.b16 %v1248
        %v1370 = vpack.c.b16 %v1308, %v1306
        %v1371 = vpack.c.b16 %v1309, %v1307
        %v1372 = vpack.c.b16 %v1312, %v1310
        %v1373 = vpack.c.b16 %v1313, %v1311
        %v1374 = vpack.c.b16 %v1316, %v1314
        %v1375 = vpack.c.b16 %v1317, %v1315
        %v1376 = vpack.c.b16 %v1320, %v1318
        %v1377 = vpack.c.b16 %v1321, %v1319
        %v1378 = vpack.c.b16 %v1324, %v1322
        %v1379 = vpack.c.b16 %v1325, %v1323
        %v1380 = vpack.c.b16 %v1328, %v1326
        %v1381 = vpack.c.b16 %v1329, %v1327
        %v1382 = vpack.c.b16 %v1332, %v1330
        %v1383 = vpack.c.b16 %v1333, %v1331
        %v1384 = vpack.c.b16 %v1336, %v1334
        %v1385 = vpack.c.b16 %v1337, %v1335
        %v1386 = vpack.c.b16 %v1340, %v1338
        %v1387 = vpack.c.b16 %v1341, %v1339
        %v1388 = vpack.c.b16 %v1344, %v1342
        %v1389 = vpack.c.b16 %v1345, %v1343
        %v1390 = vpack.c.b16 %v1348, %v1346
        %v1391 = vpack.c.b16 %v1349, %v1347
        %v1392 = vpack.c.b16 %v1352, %v1350
        %v1393 = vpack.c.b16 %v1353, %v1351
        %v1394 = vpack.c.b16 %v1356, %v1354
        %v1395 = vpack.c.b16 %v1357, %v1355
        %v1396 = vpack.c.b16 %v1360, %v1358
        %v1397 = vpack.c.b16 %v1361, %v1359
        %v1398 = vpack.c.b16 %v1364, %v1362
        %v1399 = vpack.c.b16 %v1365, %v1363
        %v1400 = vpack.c.b16 %v1368, %v1366
        %v1401 = vpack.c.b16 %v1369, %v1367
        %v1442 = vunpack.c.l.b16 %v1250
        %v1443 = vunpack.c.l.b16 %v1251
        %v1444 = vunpack.c.l.b16 %v1252
        %v1445 = vunpack.c.l.b16 %v1253
        %v1446 = vunpack.c.l.b16 %v1254
        %v1447 = vunpack.c.l.b16 %v1255
        %v1448 = vunpack.c.l.b16 %v1256
        %v1449 = vunpack.c.l.b16 %v1257
        %v1450 = vunpack.c.l.b16 %v1258
        %v1451 = vunpack.c.l.b16 %v1259
        %v1452 = vunpack.c.l.b16 %v1260
        %v1453 = vunpack.c.l.b16 %v1261
        %v1454 = vunpack.c.l.b16 %v1262
        %v1455 = vunpack.c.l.b16 %v1263
        %v1456 = vunpack.c.l.b16 %v1264
        %v1457 = vunpack.c.l.b16 %v1265
        %v1458 = vunpack.c.l.b16 %v1266
        %v1459 = vunpack.c.l.b16 %v1267
        %v1460 = vunpack.c.l.b16 %v1268
        %v1461 = vunpack.c.l.b16 %v1269
        %v1462 = vunpack.c.l.b16 %v1270
        %v1463 = vunpack.c.l.b16 %v1271
        %v1464 = vunpack.c.l.b16 %v1272
        %v1465 = vunpack.c.l.b16 %v1273
        %v1466 = vpack.c.b16 %v1443, %v1442
        %v1467 = vpack.c.b16 %v1445, %v1444
        %v1468 = vpack.c.b16 %v1447, %v1446
        %v1469 = vpack.c.b16 %v1449, %v1448
        %v1470 = vpack.c.b16 %v1451, %v1450
        %v1471 = vpack.c.b16 %v1453, %v1452
        %v1472 = vpack.c.b16 %v1455, %v1454
        %v1473 = vpack.c.b16 %v1457, %v1456
        %v1474 = vpack.c.b16 %v1459, %v1458
        %v1475 = vpack.c.b16 %v1461, %v1460
        %v1476 = vpack.c.b16 %v1463, %v1462
        %v1477 = vpack.c.b16 %v1465, %v1464
        %v1491 = vsel %vm544, %v1371, 0
        %v1494 = vsel %vm544, %v1373, 0
        %v1497 = vsel %vm544, %v1375, 0
        %v1500 = vsel %vm544, %v1377, 0
        %v1503 = vsel %vm544, %v1379, 0
        %v1506 = vsel %vm544, %v1381, 0
        %v1509 = vsel %vm544, %v1383, 0
        %v1512 = vsel %vm544, %v1385, 0
        %v1515 = vsel %vm544, %v1387, 0
        %v1518 = vsel %vm544, %v1389, 0
        %v1521 = vsel %vm544, %v1391, 0
        %v1524 = vsel %vm544, %v1393, 0
        %v1527 = vsel %vm544, %v1395, 0
        %v1530 = vsel %vm544, %v1397, 0
        %v1533 = vsel %vm544, %v1399, 0
        %v1536 = vsel %vm544, %v1401, 0
        %1538 = vmatpush.bf16.msra.mxu0 %v1473
        %1539 = vmatpush.bf16.msra.mxu0 %v1472
        %1540 = vmatpush.bf16.msra.mxu0 %v1471
        %1541 = vmatpush.bf16.msra.mxu0 %v1470
        %1542 = vmatpush.bf16.msra.mxu0 %v1469
        %1543 = vmatpush.bf16.msra.mxu0 %v1468
        %1544 = vmatpush.bf16.msra.mxu0 %v1467
        %1545 = vmatpush.bf16.msra.mxu0 %v1466
        %1546 = vmatmul.bf16.gmra.mxu0 %v1370
        %v1547 = vpop.f32.mrf.mxu0
        %v1548 = vadd.f32 0.0, %v1547
        %v1549 = vpop.f32.mrf.mxu0
        %v1550 = vadd.f32 0.0, %v1549
        %1551 = vmatmul.bf16.gmra.mxu0 %v1372
        %v1552 = vpop.f32.mrf.mxu0
        %v1553 = vadd.f32 0.0, %v1552
        %v1554 = vpop.f32.mrf.mxu0
        %v1555 = vadd.f32 0.0, %v1554
        %1556 = vmatmul.bf16.gmra.mxu0 %v1374
        %v1557 = vpop.f32.mrf.mxu0
        %v1558 = vadd.f32 0.0, %v1557
        %v1559 = vpop.f32.mrf.mxu0
        %v1560 = vadd.f32 0.0, %v1559
        %1561 = vmatmul.bf16.gmra.mxu0 %v1376
        %v1562 = vpop.f32.mrf.mxu0
        %v1563 = vadd.f32 0.0, %v1562
        %v1564 = vpop.f32.mrf.mxu0
        %v1565 = vadd.f32 0.0, %v1564
        %1566 = vmatmul.bf16.gmra.mxu0 %v1378
        %v1567 = vpop.f32.mrf.mxu0
        %v1568 = vadd.f32 0.0, %v1567
        %v1569 = vpop.f32.mrf.mxu0
        %v1570 = vadd.f32 0.0, %v1569
        %1571 = vmatmul.bf16.gmra.mxu0 %v1380
        %v1572 = vpop.f32.mrf.mxu0
        %v1573 = vadd.f32 0.0, %v1572
        %v1574 = vpop.f32.mrf.mxu0
        %v1575 = vadd.f32 0.0, %v1574
        %1576 = vmatmul.bf16.gmra.mxu0 %v1382
        %v1577 = vpop.f32.mrf.mxu0
        %v1578 = vadd.f32 0.0, %v1577
        %v1579 = vpop.f32.mrf.mxu0
        %v1580 = vadd.f32 0.0, %v1579
        %1581 = vmatmul.bf16.gmra.mxu0 %v1384
        %v1582 = vpop.f32.mrf.mxu0
        %v1583 = vadd.f32 0.0, %v1582
        %v1584 = vpop.f32.mrf.mxu0
        %v1585 = vadd.f32 0.0, %v1584
        %1586 = vmatmul.bf16.gmra.mxu0 %v1386
        %v1587 = vpop.f32.mrf.mxu0
        %v1588 = vadd.f32 0.0, %v1587
        %v1589 = vpop.f32.mrf.mxu0
        %v1590 = vadd.f32 0.0, %v1589
        %1591 = vmatmul.bf16.gmra.mxu0 %v1388
        %v1592 = vpop.f32.mrf.mxu0
        %v1593 = vadd.f32 0.0, %v1592
        %v1594 = vpop.f32.mrf.mxu0
        %v1595 = vadd.f32 0.0, %v1594
        %1596 = vmatmul.bf16.gmra.mxu0 %v1390
        %v1597 = vpop.f32.mrf.mxu0
        %v1598 = vadd.f32 0.0, %v1597
        %v1599 = vpop.f32.mrf.mxu0
        %v1600 = vadd.f32 0.0, %v1599
        %1601 = vmatmul.bf16.gmra.mxu0 %v1392
        %v1602 = vpop.f32.mrf.mxu0
        %v1603 = vadd.f32 0.0, %v1602
        %v1604 = vpop.f32.mrf.mxu0
        %v1605 = vadd.f32 0.0, %v1604
        %1606 = vmatmul.bf16.gmra.mxu0 %v1394
        %v1607 = vpop.f32.mrf.mxu0
        %v1608 = vadd.f32 0.0, %v1607
        %v1609 = vpop.f32.mrf.mxu0
        %v1610 = vadd.f32 0.0, %v1609
        %1611 = vmatmul.bf16.gmra.mxu0 %v1396
        %v1612 = vpop.f32.mrf.mxu0
        %v1613 = vadd.f32 0.0, %v1612
        %v1614 = vpop.f32.mrf.mxu0
        %v1615 = vadd.f32 0.0, %v1614
        %1616 = vmatmul.bf16.gmra.mxu0 %v1398
        %v1617 = vpop.f32.mrf.mxu0
        %v1618 = vadd.f32 0.0, %v1617
        %v1619 = vpop.f32.mrf.mxu0
        %v1620 = vadd.f32 0.0, %v1619
        %1621 = vmatmul.bf16.gmra.mxu0 %v1400
        %v1622 = vpop.f32.mrf.mxu0
        %v1623 = vadd.f32 0.0, %v1622
        %v1624 = vpop.f32.mrf.mxu0
        %v1625 = vadd.f32 0.0, %v1624
        %1626 = vdwg.mxu0
        %1627 = vmatpush.bf16.msra.mxu0 0
        %1628 = vmatpush.bf16.msra.mxu0 0
        %1629 = vmatpush.bf16.msra.mxu0 0
        %1630 = vmatpush.bf16.msra.mxu0 0
        %1631 = vmatpush.bf16.msra.mxu0 %v1477
        %1632 = vmatpush.bf16.msra.mxu0 %v1476
        %1633 = vmatpush.bf16.msra.mxu0 %v1475
        %1634 = vmatpush.bf16.msra.mxu0 %v1474
        %1635 = vmatmul.bf16.gmra.mxu0 %v1491
        %v1636 = vpop.f32.mrf.mxu0
        %v1637 = vadd.f32 %v1548, %v1636
        %v1638 = vpop.f32.mrf.mxu0
        %v1639 = vadd.f32 %v1550, %v1638
        %1640 = vmatmul.bf16.gmra.mxu0 %v1494
        %v1641 = vpop.f32.mrf.mxu0
        %v1642 = vadd.f32 %v1553, %v1641
        %v1643 = vpop.f32.mrf.mxu0
        %v1644 = vadd.f32 %v1555, %v1643
        %1645 = vmatmul.bf16.gmra.mxu0 %v1497
        %v1646 = vpop.f32.mrf.mxu0
        %v1647 = vadd.f32 %v1558, %v1646
        %v1648 = vpop.f32.mrf.mxu0
        %v1649 = vadd.f32 %v1560, %v1648
        %1650 = vmatmul.bf16.gmra.mxu0 %v1500
        %v1651 = vpop.f32.mrf.mxu0
        %v1652 = vadd.f32 %v1563, %v1651
        %v1653 = vpop.f32.mrf.mxu0
        %v1654 = vadd.f32 %v1565, %v1653
        %1655 = vmatmul.bf16.gmra.mxu0 %v1503
        %v1656 = vpop.f32.mrf.mxu0
        %v1657 = vadd.f32 %v1568, %v1656
        %v1658 = vpop.f32.mrf.mxu0
        %v1659 = vadd.f32 %v1570, %v1658
        %1660 = vmatmul.bf16.gmra.mxu0 %v1506
        %v1661 = vpop.f32.mrf.mxu0
        %v1662 = vadd.f32 %v1573, %v1661
        %v1663 = vpop.f32.mrf.mxu0
        %v1664 = vadd.f32 %v1575, %v1663
        %1665 = vmatmul.bf16.gmra.mxu0 %v1509
        %v1666 = vpop.f32.mrf.mxu0
        %v1667 = vadd.f32 %v1578, %v1666
        %v1668 = vpop.f32.mrf.mxu0
        %v1669 = vadd.f32 %v1580, %v1668
        %1670 = vmatmul.bf16.gmra.mxu0 %v1512
        %v1671 = vpop.f32.mrf.mxu0
        %v1672 = vadd.f32 %v1583, %v1671
        %v1673 = vpop.f32.mrf.mxu0
        %v1674 = vadd.f32 %v1585, %v1673
        %1675 = vmatmul.bf16.gmra.mxu0 %v1515
        %v1676 = vpop.f32.mrf.mxu0
        %v1677 = vadd.f32 %v1588, %v1676
        %v1678 = vpop.f32.mrf.mxu0
        %v1679 = vadd.f32 %v1590, %v1678
        %1680 = vmatmul.bf16.gmra.mxu0 %v1518
        %v1681 = vpop.f32.mrf.mxu0
        %v1682 = vadd.f32 %v1593, %v1681
        %v1683 = vpop.f32.mrf.mxu0
        %v1684 = vadd.f32 %v1595, %v1683
        %1685 = vmatmul.bf16.gmra.mxu0 %v1521
        %v1686 = vpop.f32.mrf.mxu0
        %v1687 = vadd.f32 %v1598, %v1686
        %v1688 = vpop.f32.mrf.mxu0
        %v1689 = vadd.f32 %v1600, %v1688
        %1690 = vmatmul.bf16.gmra.mxu0 %v1524
        %v1691 = vpop.f32.mrf.mxu0
        %v1692 = vadd.f32 %v1603, %v1691
        %v1693 = vpop.f32.mrf.mxu0
        %v1694 = vadd.f32 %v1605, %v1693
        %1695 = vmatmul.bf16.gmra.mxu0 %v1527
        %v1696 = vpop.f32.mrf.mxu0
        %v1697 = vadd.f32 %v1608, %v1696
        %v1698 = vpop.f32.mrf.mxu0
        %v1699 = vadd.f32 %v1610, %v1698
        %1700 = vmatmul.bf16.gmra.mxu0 %v1530
        %v1701 = vpop.f32.mrf.mxu0
        %v1702 = vadd.f32 %v1613, %v1701
        %v1703 = vpop.f32.mrf.mxu0
        %v1704 = vadd.f32 %v1615, %v1703
        %1705 = vmatmul.bf16.gmra.mxu0 %v1533
        %v1706 = vpop.f32.mrf.mxu0
        %v1707 = vadd.f32 %v1618, %v1706
        %v1708 = vpop.f32.mrf.mxu0
        %v1709 = vadd.f32 %v1620, %v1708
        %1710 = vmatmul.bf16.gmra.mxu0 %v1536
        %v1711 = vpop.f32.mrf.mxu0
        %v1712 = vadd.f32 %v1623, %v1711
        %v1713 = vpop.f32.mrf.mxu0
        %v1714 = vadd.f32 %v1625, %v1713
        %1715 = vdwg.mxu0
        %v1716 = vadd.f32 %v1134, %v1637
        %v1717 = vadd.f32 %v1136, %v1639
        %v1718 = vadd.f32 %v1139, %v1642
        %v1719 = vadd.f32 %v1141, %v1644
        %v1720 = vadd.f32 %v1144, %v1647
        %v1721 = vadd.f32 %v1146, %v1649
        %v1722 = vadd.f32 %v1149, %v1652
        %v1723 = vadd.f32 %v1151, %v1654
        %v1724 = vadd.f32 %v1154, %v1657
        %v1725 = vadd.f32 %v1156, %v1659
        %v1726 = vadd.f32 %v1159, %v1662
        %v1727 = vadd.f32 %v1161, %v1664
        %v1728 = vadd.f32 %v1164, %v1667
        %v1729 = vadd.f32 %v1166, %v1669
        %v1730 = vadd.f32 %v1169, %v1672
        %v1731 = vadd.f32 %v1171, %v1674
        %v1732 = vadd.f32 %v1174, %v1677
        %v1733 = vadd.f32 %v1176, %v1679
        %v1734 = vadd.f32 %v1179, %v1682
        %v1735 = vadd.f32 %v1181, %v1684
        %v1736 = vadd.f32 %v1184, %v1687
        %v1737 = vadd.f32 %v1186, %v1689
        %v1738 = vadd.f32 %v1189, %v1692
        %v1739 = vadd.f32 %v1191, %v1694
        %v1740 = vadd.f32 %v1194, %v1697
        %v1741 = vadd.f32 %v1196, %v1699
        %v1742 = vadd.f32 %v1199, %v1702
        %v1743 = vadd.f32 %v1201, %v1704
        %v1744 = vadd.f32 %v1204, %v1707
        %v1745 = vadd.f32 %v1206, %v1709
        %v1746 = vadd.f32 %v1209, %v1712
        %v1747 = vadd.f32 %v1211, %v1714
        %v1748 = vmax.f32 %v1716, %v1720
        %v1749 = vmax.f32 %v1717, %v1721
        %v1750 = vmax.f32 %v1718, %v1722
        %v1751 = vmax.f32 %v1719, %v1723
        %v1752 = vmax.f32 %v1724, %v1728
        %v1753 = vmax.f32 %v1725, %v1729
        %v1754 = vmax.f32 %v1726, %v1730
        %v1755 = vmax.f32 %v1727, %v1731
        %v1756 = vmax.f32 %v1732, %v1736
        %v1757 = vmax.f32 %v1733, %v1737
        %v1758 = vmax.f32 %v1734, %v1738
        %v1759 = vmax.f32 %v1735, %v1739
        %v1760 = vmax.f32 %v1740, %v1744
        %v1761 = vmax.f32 %v1741, %v1745
        %v1762 = vmax.f32 %v1742, %v1746
        %v1763 = vmax.f32 %v1743, %v1747
        %v1764 = vmax.f32 %v1748, %v1750
        %v1765 = vmax.f32 %v1749, %v1751
        %v1766 = vmax.f32 %v1752, %v1754
        %v1767 = vmax.f32 %v1753, %v1755
        %v1768 = vmax.f32 %v1756, %v1758
        %v1769 = vmax.f32 %v1757, %v1759
        %v1770 = vmax.f32 %v1760, %v1762
        %v1771 = vmax.f32 %v1761, %v1763
        %v1773 = vperm.slane %v197, 0
        %v1775 = vadd.f32 %v1764, %v1773
        %v1776 = vadd.f32 %v1765, %v1773
        %v1777 = vadd.f32 %v1766, %v1773
        %v1778 = vadd.f32 %v1767, %v1773
        %v1779 = vadd.f32 %v1768, %v1773
        %v1780 = vadd.f32 %v1769, %v1773
        %v1781 = vadd.f32 %v1770, %v1773
        %v1782 = vadd.f32 %v1771, %v1773
        %v1783 = vmax.f32 %v1775, 0.0
        %v1784 = vmax.f32 %v1776, 0.0
        %v1785 = vmax.f32 %v1777, 0.0
        %v1786 = vmax.f32 %v1778, 0.0
        %v1787 = vmax.f32 %v1779, 0.0
        %v1788 = vmax.f32 %v1780, 0.0
        %v1789 = vmax.f32 %v1781, 0.0
        %v1790 = vmax.f32 %v1782, 0.0
        %v1791 = vpack.c.bf16 %v1783, %v1783
        %v1792 = vpack.c.bf16 %v1784, %v1784
        %v1793 = vpack.c.bf16 %v1785, %v1785
        %v1794 = vpack.c.bf16 %v1786, %v1786
        %v1795 = vpack.c.bf16 %v1787, %v1787
        %v1796 = vpack.c.bf16 %v1788, %v1788
        %v1797 = vpack.c.bf16 %v1789, %v1789
        %v1798 = vpack.c.bf16 %v1790, %v1790
        %s1799 = smul.u32 %s205, 2
        %s1800 = smul.addr %s1799, 4
        %s1801 = scalar_lea.vmem %s194, %s1800
        %1802 = vst [vmem:[%s1801] sm:$0xf] %v1791
        %1803 = vst [vmem:[%s1801 + $0x4] sm:$0xf] %v1792
        %1804 = vst [vmem:[%s1801 + $0x8] sm:$0xf] %v1793
        %1805 = vst [vmem:[%s1801 + $0xc] sm:$0xf] %v1794
        %1806 = vst [vmem:[%s1801 + $0x10] sm:$0xf] %v1795
        %1807 = vst [vmem:[%s1801 + $0x14] sm:$0xf] %v1796
        %1808 = vst [vmem:[%s1801 + $0x18] sm:$0xf] %v1797
        %1809 = vst [vmem:[%s1801 + $0x1c] sm:$0xf] %v1798
      $region37: #{fishcnn_forward.6} parent=31 // loop_footer
        %s204 = sadd.s32 1, %s200
      $region38: #{fishcnn_forward.6} parent=31 // loop_footer_branch
        %199 = sbr.rel target = $region34
      $region39: #{fishcnn_forward.6} parent=31 // loop_exit
        _
      %s1810 = smul.u32 8, %s19
      %p1811 = scmp.lt.s32.totalorder %s18, 1
      %s1812 = scalar_select %p1811, %s18, 1
      %p1813 = scmp.lt.s32.totalorder %s1810, 15
      %s1814 = scalar_select %p1813, %s1810, 15
      %s1815 = smul.addr %s1814, 2
      %s1816 = smul.addr %s1812, 32
      %s1817 = sadd.s32 %s1815, %s1816
      %s1818 = smul.addr %s1817, 4
      %s1819 = scalar_lea.vmem %s3, %s1818
      // Predicated region
      $region40: #{fishcnn_forward.6} parent=31 // pred_check
        %p1820 = pneg %p114
      $region41: #{fishcnn_forward.6} parent=31 // pred_check_branch
        %1822 = sbr.rel (%p1820) target = $region43
      $region42: #{fishcnn_forward.6} parent=31 // pred_region
        %s1823 = smul.u32 8, %s19
      $region43: #{fishcnn_forward.6} parent=31 // pred_fallthru
        _
    $region32: #{fishcnn_forward.6} parent=5 // pred_fallthru
      _
    %p1824 = scmp.le.s32.totalorder 2, %s9
    // Predicated region
    $region44: #{fishcnn_forward.6} parent=5 // pred_check
      %p1825 = pneg %p1824
    $region45: #{fishcnn_forward.6} parent=5 // pred_check_branch
      %1827 = sbr.rel (%p1825) target = $region47
    $region46: #{fishcnn_forward.6} parent=5 // pred_region
      %s1828 = ssub.s32 %s9, 2
      // Predicated region
      $region48: #{fishcnn_forward.6} parent=46 // pred_check
        %p1829 = pneg %p120
      $region49: #{fishcnn_forward.6} parent=46 // pred_check_branch
        %1831 = sbr.rel (%p1829) target = $region51
      $region50: #{fishcnn_forward.6} parent=46 // pred_region
        %s1832 = smul.u32 8, %s21
        %p1833 = scmp.lt.s32.totalorder %s20, 1
        %s1834 = scalar_select %p1833, %s20, 1
        %p1835 = scmp.lt.s32.totalorder %s1832, 15
        %s1836 = scalar_select %p1835, %s1832, 15
        %s1837 = smul.addr %s1836, 2
        %s1838 = smul.addr %s1834, 32
        %s1839 = sadd.s32 %s1837, %s1838
        %s1840 = smul.addr %s1839, 4
        %s1841 = scalar_lea.vmem %s3, %s1840
      $region51: #{fishcnn_forward.6} parent=46 // pred_fallthru
        _
    $region47: #{fishcnn_forward.6} parent=5 // pred_fallthru
      _
  $region6: #{fishcnn_forward.6} parent=0 // loop_footer
    %s13 = sadd.s32 1, %s9
  $region7: #{fishcnn_forward.6} parent=0 // loop_footer_branch
    %8 = sbr.rel target = $region3
  $region8: #{fishcnn_forward.6} parent=0 // loop_exit
    _

// kernel: fishcnn_forward.7
$region0: #{fishcnn_forward.7}
  #allocation0 [shape = 'u32[]', space=smem, size = 0x4, offset = 0x4, fixed_abs, tag = 'smem constant byte address 0x4 - core index']
  #allocation1 [shape = 'u32[72,128]{1,0:T(1,128)}', space=vmem, size = 0x9000, scoped, tag = 'internal scratch']
  #allocation2 [shape = 'f32[2,256]{1,0:T(2,128)}', space=vmem, size = 0x800, scoped, tag = 'scratch operand']
  %s0 = inlined_call_operand.vmem [shape: bf16[2,32768], index: 0, kind: input, shape index: {}]
  %s1 = inlined_call_operand.vmem [shape: bf16[32768,256], index: 1, kind: input, shape index: {}]
  %s2 = inlined_call_operand.vmem [shape: f32[1,256], index: 2, kind: input, shape index: {}]
  %s3 = inlined_call_operand.vmem [shape: f32[256,10], index: 3, kind: input, shape index: {}]
  %s4 = inlined_call_operand.vmem [shape: f32[1,10], index: 4, kind: input, shape index: {}]
  %s5 = inlined_call_operand.hbm [shape: f32[2,10], index: 5, kind: output, shape index: {}]
  %s6 = sld [smem:[#allocation0]]
  $region61: #{fishcnn_forward.7} parent=0
    _
  %s8 = ssub.s32 1, %s6
  %s9 = scalar_select 0, %s8, %s6
  $region1: #{fishcnn_forward.7} parent=0
    #allocation3 [shape = 'u8[1024]{0}', space=vmem, size = 0x400, scoped, tag = 'output window, operand 0, single buffered']
    #allocation4 [shape = 's32[2]{0}', space=sflag, size = 0x8, scoped, tag = 'scoped memory for fishcnn_forward.7']
    %10 = vsyncpa [#allocation4], 0
    loop: start=0, step=1, limit=6
    $region2: #{fishcnn_forward.7} parent=1 // loop_pre_header
      _
    $region3: #{fishcnn_forward.7} parent=1 // loop_header
      %s12 = sphi 0, %s16
      %p13 = scmp.ge.s32.totalorder %s12, 6
      %s22 = sphi 0, %s24
      %s25 = sphi 0, %s22
      %s26 = sphi 0, %s25
      %s42 = sphi 0, %s26
      %s48 = sphi 0, %s50
      %s51 = sphi 0, %s48
      %s52 = sphi 0, %s51
      %s68 = sphi 0, %s52
      %s72 = sphi 0, %s72
      %s74 = sphi 0, %s72
      %s75 = sphi 0, %s74
      %s89 = sphi 0, %s75
      %s93 = sphi 0, %s93
      %s95 = sphi 0, %s93
      %s96 = sphi 0, %s95
      %s110 = sphi 0, %s96
      %s114 = sphi 0, %s114
      %s116 = sphi 0, %s114
      %s117 = sphi 0, %s116
      %s131 = sphi 0, %s117
      %s135 = sphi 0, %s135
      %s137 = sphi 0, %s135
      %s138 = sphi 0, %s137
      %s152 = sphi 0, %s138
    $region4: #{fishcnn_forward.7} parent=1 // loop_header_branch
      %15 = sbr.rel (%p13) target = $region8
    $region5: #{fishcnn_forward.7} parent=1 // loop_body
      %s17 = ssub.s32 %s12, 1
      %s18 = ssub.s32 %s12, 2
      %s19 = sadd.s32 %s12, 1
      %s20 = ssub.s32 %s12, %s19
      %p21 = scmp.eq.s32.totalorder %s20, 0
      %s23 = sadd.s32 %s22, 1
      %s24 = scalar_select %p21, %s22, %s23
      %p27 = pneg %p21
      %p28 = scmp.eq.s32.totalorder %s12, 3
      %p29 = por %p27, %p28
      %p30 = scmp.ne.s32.totalorder %s22, %s25
      %p31 = scmp.eq.s32.totalorder %s12, 0
      %p32 = por %p30, %p31
      %p33 = scmp.ne.s32.totalorder %s22, %s25
      %p34 = scmp.eq.s32.totalorder %s17, 3
      %p35 = por %p33, %p34
      %p36 = scmp.ne.s32.totalorder %s25, %s26
      %p37 = scmp.eq.s32.totalorder %s17, 0
      %p38 = por %p36, %p37
      %p39 = scmp.ne.s32.totalorder %s25, %s26
      %p40 = scmp.eq.s32.totalorder %s18, 3
      %p41 = por %p39, %p40
      %p43 = scmp.ne.s32.totalorder %s26, %s42
      %p44 = scmp.eq.s32.totalorder %s18, 0
      %p45 = por %p43, %p44
      %s46 = ssub.s32 %s12, %s19
      %p47 = scmp.eq.s32.totalorder %s46, 0
      %s49 = sadd.s32 %s48, 1
      %s50 = scalar_select %p47, %s48, %s49
      %p53 = pneg %p47
      %p54 = scmp.eq.s32.totalorder %s12, 3
      %p55 = por %p53, %p54
      %p56 = scmp.ne.s32.totalorder %s48, %s51
      %p57 = scmp.eq.s32.totalorder %s12, 0
      %p58 = por %p56, %p57
      %p59 = scmp.ne.s32.totalorder %s48, %s51
      %p60 = scmp.eq.s32.totalorder %s17, 3
      %p61 = por %p59, %p60
      %p62 = scmp.ne.s32.totalorder %s51, %s52
      %p63 = scmp.eq.s32.totalorder %s17, 0
      %p64 = por %p62, %p63
      %p65 = scmp.ne.s32.totalorder %s51, %s52
      %p66 = scmp.eq.s32.totalorder %s18, 3
      %p67 = por %p65, %p66
      %p69 = scmp.ne.s32.totalorder %s52, %s68
      %p70 = scmp.eq.s32.totalorder %s18, 0
      %p71 = por %p69, %p70
      %s73 = sadd.s32 %s72, 1
      %p76 = scmp.eq.s32.totalorder %s12, 3
      %p77 = scmp.ne.s32.totalorder %s72, %s74
      %p78 = scmp.eq.s32.totalorder %s12, 0
      %p79 = por %p77, %p78
      %p80 = scmp.ne.s32.totalorder %s72, %s74
      %p81 = scmp.eq.s32.totalorder %s17, 3
      %p82 = por %p80, %p81
      %p83 = scmp.ne.s32.totalorder %s74, %s75
      %p84 = scmp.eq.s32.totalorder %s17, 0
      %p85 = por %p83, %p84
      %p86 = scmp.ne.s32.totalorder %s74, %s75
      %p87 = scmp.eq.s32.totalorder %s18, 3
      %p88 = por %p86, %p87
      %p90 = scmp.ne.s32.totalorder %s75, %s89
      %p91 = scmp.eq.s32.totalorder %s18, 0
      %p92 = por %p90, %p91
      %s94 = sadd.s32 %s93, 1
      %p97 = scmp.eq.s32.totalorder %s12, 3
      %p98 = scmp.ne.s32.totalorder %s93, %s95
      %p99 = scmp.eq.s32.totalorder %s12, 0
      %p100 = por %p98, %p99
      %p101 = scmp.ne.s32.totalorder %s93, %s95
      %p102 = scmp.eq.s32.totalorder %s17, 3
      %p103 = por %p101, %p102
      %p104 = scmp.ne.s32.totalorder %s95, %s96
      %p105 = scmp.eq.s32.totalorder %s17, 0
      %p106 = por %p104, %p105
      %p107 = scmp.ne.s32.totalorder %s95, %s96
      %p108 = scmp.eq.s32.totalorder %s18, 3
      %p109 = por %p107, %p108
      %p111 = scmp.ne.s32.totalorder %s96, %s110
      %p112 = scmp.eq.s32.totalorder %s18, 0
      %p113 = por %p111, %p112
      %s115 = sadd.s32 %s114, 1
      %p118 = scmp.eq.s32.totalorder %s12, 3
      %p119 = scmp.ne.s32.totalorder %s114, %s116
      %p120 = scmp.eq.s32.totalorder %s12, 0
      %p121 = por %p119, %p120
      %p122 = scmp.ne.s32.totalorder %s114, %s116
      %p123 = scmp.eq.s32.totalorder %s17, 3
      %p124 = por %p122, %p123
      %p125 = scmp.ne.s32.totalorder %s116, %s117
      %p126 = scmp.eq.s32.totalorder %s17, 0
      %p127 = por %p125, %p126
      %p128 = scmp.ne.s32.totalorder %s116, %s117
      %p129 = scmp.eq.s32.totalorder %s18, 3
      %p130 = por %p128, %p129
      %p132 = scmp.ne.s32.totalorder %s117, %s131
      %p133 = scmp.eq.s32.totalorder %s18, 0
      %p134 = por %p132, %p133
      %s136 = sadd.s32 %s135, 1
      %p139 = scmp.eq.s32.totalorder %s12, 3
      %p140 = scmp.ne.s32.totalorder %s135, %s137
      %p141 = scmp.eq.s32.totalorder %s12, 0
      %p142 = por %p140, %p141
      %p143 = scmp.ne.s32.totalorder %s135, %s137
      %p144 = scmp.eq.s32.totalorder %s17, 3
      %p145 = por %p143, %p144
      %p146 = scmp.ne.s32.totalorder %s137, %s138
      %p147 = scmp.eq.s32.totalorder %s17, 0
      %p148 = por %p146, %p147
      %p149 = scmp.ne.s32.totalorder %s137, %s138
      %p150 = scmp.eq.s32.totalorder %s18, 3
      %p151 = por %p149, %p150
      %p153 = scmp.ne.s32.totalorder %s138, %s152
      %p154 = scmp.eq.s32.totalorder %s18, 0
      %p155 = por %p153, %p154
      %p156 = scmp.le.s32.totalorder 1, %s12
      %p157 = scmp.lt.s32.totalorder %s12, 5
      %p158 = pnand %p156, %p157
      %p159 = pneg %p158
      // Predicated region
      $region9: #{fishcnn_forward.7} parent=5 // pred_check
        _
      $region10: #{fishcnn_forward.7} parent=5 // pred_check_branch
        %161 = sbr.rel (%p158) target = $region12
      $region11: #{fishcnn_forward.7} parent=5 // pred_region
        %s162 = ssub.s32 %s12, 1
        // Predicated region
        $region13: #{fishcnn_forward.7} parent=11 // pred_check
          %p163 = pneg %p85
        $region14: #{fishcnn_forward.7} parent=11 // pred_check_branch
          %165 = sbr.rel (%p163) target = $region16
        $region15: #{fishcnn_forward.7} parent=11 // pred_region
          _
        $region16: #{fishcnn_forward.7} parent=11 // pred_fallthru
          _
        // Predicated region
        $region17: #{fishcnn_forward.7} parent=11 // pred_check
          %p166 = pneg %p106
        $region18: #{fishcnn_forward.7} parent=11 // pred_check_branch
          %168 = sbr.rel (%p166) target = $region20
        $region19: #{fishcnn_forward.7} parent=11 // pred_region
          _
        $region20: #{fishcnn_forward.7} parent=11 // pred_fallthru
          _
        // Predicated region
        $region21: #{fishcnn_forward.7} parent=11 // pred_check
          %p169 = pneg %p127
        $region22: #{fishcnn_forward.7} parent=11 // pred_check_branch
          %171 = sbr.rel (%p169) target = $region24
        $region23: #{fishcnn_forward.7} parent=11 // pred_region
          _
        $region24: #{fishcnn_forward.7} parent=11 // pred_fallthru
          _
      $region12: #{fishcnn_forward.7} parent=5 // pred_fallthru
        _
      %p172 = scmp.lt.s32.totalorder %s12, 4
      // Predicated region
      $region25: #{fishcnn_forward.7} parent=5 // pred_check
        %p173 = pneg %p172
      $region26: #{fishcnn_forward.7} parent=5 // pred_check_branch
        %175 = sbr.rel (%p173) target = $region28
      $region27: #{fishcnn_forward.7} parent=5 // pred_region
        // Predicated region
        $region29: #{fishcnn_forward.7} parent=27 // pred_check
          %p176 = pneg %p32
        $region30: #{fishcnn_forward.7} parent=27 // pred_check_branch
          %178 = sbr.rel (%p176) target = $region32
        $region31: #{fishcnn_forward.7} parent=27 // pred_region
          %s179 = smul.u32 64, %s12
          %p180 = scmp.lt.s32.totalorder %s179, 255
          %s181 = scalar_select %p180, %s179, 255
          %s182 = scalar_lea.vmem %s0, %s181
          %s183 = smul.u32 64, %s12
        $region32: #{fishcnn_forward.7} parent=27 // pred_fallthru
          _
        // Predicated region
        $region33: #{fishcnn_forward.7} parent=27 // pred_check
          %p184 = pneg %p58
        $region34: #{fishcnn_forward.7} parent=27 // pred_check_branch
          %186 = sbr.rel (%p184) target = $region36
        $region35: #{fishcnn_forward.7} parent=27 // pred_region
          %s187 = smul.u32 1024, %s12
          %p188 = scmp.lt.s32.totalorder %s187, 4095
          %s189 = scalar_select %p188, %s187, 4095
          %s190 = smul.addr %s189, 2
          %s191 = smul.addr %s190, 4
          %s192 = scalar_lea.vmem %s1, %s191
          %s193 = smul.u32 1024, %s12
        $region36: #{fishcnn_forward.7} parent=27 // pred_fallthru
          _
      $region28: #{fishcnn_forward.7} parent=5 // pred_fallthru
        _
      %p194 = scmp.le.s32.totalorder 1, %s12
      %p195 = scmp.lt.s32.totalorder %s12, 5
      %p196 = pnand %p194, %p195
      %p197 = pneg %p196
      // Predicated region
      $region37: #{fishcnn_forward.7} parent=5 // pred_check
        _
      $region38: #{fishcnn_forward.7} parent=5 // pred_check_branch
        %199 = sbr.rel (%p196) target = $region40
      $region39: #{fishcnn_forward.7} parent=5 // pred_region
        %s200 = ssub.s32 %s12, 1
        %s201 = smul.u32 64, %s17
        %p202 = scmp.lt.s32.totalorder %s201, 255
        %s203 = scalar_select %p202, %s201, 255
        %s204 = scalar_lea.vmem %s0, %s203
        %p205 = pneg %p38
        %p206 = pneg %p35
        %s207 = smul.u32 1024, %s17
        %p208 = scmp.lt.s32.totalorder %s207, 4095
        %s209 = scalar_select %p208, %s207, 4095
        %s210 = smul.addr %s209, 2
        %s211 = smul.addr %s210, 4
        %s212 = scalar_lea.vmem %s1, %s211
        %p213 = pneg %p64
        %p214 = pneg %p61
        %p215 = pneg %p85
        %p216 = pneg %p82
        %p217 = pneg %p106
        %p218 = pneg %p103
        %p219 = pneg %p127
        %p220 = pneg %p124
        %p221 = pneg %p148
        %p222 = pneg %p145
        %s223 = smul.u32 64, %s17
        %p224 = scmp.lt.s32.totalorder %s223, 255
        %s225 = scalar_select %p224, %s223, 255
        %s226 = scalar_lea.vmem %s0, %s225
        %s227 = smul.u32 64, %s17
        %s228 = smul.u32 1024, %s17
        %p229 = scmp.lt.s32.totalorder %s228, 4095
        %s230 = scalar_select %p229, %s228, 4095
        %s231 = smul.addr %s230, 2
        %s232 = smul.addr %s231, 4
        %s233 = scalar_lea.vmem %s1, %s232
        %s234 = smul.u32 1024, %s17
        %p235 = scmp.eq.s32.totalorder %s17, 0
        // Predicated region
        $region41: #{fishcnn_forward.7} parent=39 // pred_check
          %p236 = pneg %p235
        $region42: #{fishcnn_forward.7} parent=39 // pred_check_branch
          %238 = sbr.rel (%p236) target = $region44
        $region43: #{fishcnn_forward.7} parent=39 // pred_region
          %239 = vst [vmem:[#allocation2] sm:$0xf] 0.0
        $region44: #{fishcnn_forward.7} parent=39 // pred_fallthru
          _
        %v240 = vld [vmem:[#allocation2] sm:$0xf]
        %v241 = vld [vmem:[%s226] sm:$0xff]
        %v242 = vld [vmem:[%s226 + $0x8] sm:$0xff]
        %v243 = vld [vmem:[%s226 + $0x10] sm:$0xff]
        %v244 = vld [vmem:[%s226 + $0x18] sm:$0xff]
        %v245 = vld [vmem:[%s226 + $0x20] sm:$0xff]
        %v246 = vld [vmem:[%s226 + $0x28] sm:$0xff]
        %v247 = vld [vmem:[%s226 + $0x30] sm:$0xff]
        %v248 = vld [vmem:[%s226 + $0x38] sm:$0xff]
        %v249 = vld [vmem:[%s233] sm:$0xff]
        %v250 = vld [vmem:[%s233 + $0x8] sm:$0xff]
        %v251 = vld [vmem:[%s233 + $0x10] sm:$0xff]
        %v252 = vld [vmem:[%s233 + $0x18] sm:$0xff]
        %v253 = vld [vmem:[%s233 + $0x20] sm:$0xff]
        %v254 = vld [vmem:[%s233 + $0x28] sm:$0xff]
        %v255 = vld [vmem:[%s233 + $0x30] sm:$0xff]
        %v256 = vld [vmem:[%s233 + $0x38] sm:$0xff]
        %v257 = vld [vmem:[%s233 + $0x40] sm:$0xff]
        %v258 = vld [vmem:[%s233 + $0x48] sm:$0xff]
        %v259 = vld [vmem:[%s233 + $0x50] sm:$0xff]
        %v260 = vld [vmem:[%s233 + $0x58] sm:$0xff]
        %v261 = vld [vmem:[%s233 + $0x60] sm:$0xff]
        %v262 = vld [vmem:[%s233 + $0x68] sm:$0xff]
        %v263 = vld [vmem:[%s233 + $0x70] sm:$0xff]
        %v264 = vld [vmem:[%s233 + $0x78] sm:$0xff]
        %v265 = vld [vmem:[%s233 + $0x80] sm:$0xff]
        %v266 = vld [vmem:[%s233 + $0x88] sm:$0xff]
        %v267 = vld [vmem:[%s233 + $0x90] sm:$0xff]
        %v268 = vld [vmem:[%s233 + $0x98] sm:$0xff]
        %v269 = vld [vmem:[%s233 + $0xa0] sm:$0xff]
        %v270 = vld [vmem:[%s233 + $0xa8] sm:$0xff]
        %v271 = vld [vmem:[%s233 + $0xb0] sm:$0xff]
        %v272 = vld [vmem:[%s233 + $0xb8] sm:$0xff]
        %v273 = vld [vmem:[%s233 + $0xc0] sm:$0xff]
        %v274 = vld [vmem:[%s233 + $0xc8] sm:$0xff]
        %v275 = vld [vmem:[%s233 + $0xd0] sm:$0xff]
        %v276 = vld [vmem:[%s233 + $0xd8] sm:$0xff]
        %v277 = vld [vmem:[%s233 + $0xe0] sm:$0xff]
        %v278 = vld [vmem:[%s233 + $0xe8] sm:$0xff]
        %v279 = vld [vmem:[%s233 + $0xf0] sm:$0xff]
        %v280 = vld [vmem:[%s233 + $0xf8] sm:$0xff]
        %v281 = vld [vmem:[%s233 + $0x100] sm:$0xff]
        %v282 = vld [vmem:[%s233 + $0x108] sm:$0xff]
        %v283 = vld [vmem:[%s233 + $0x110] sm:$0xff]
        %v284 = vld [vmem:[%s233 + $0x118] sm:$0xff]
        %v285 = vld [vmem:[%s233 + $0x120] sm:$0xff]
        %v286 = vld [vmem:[%s233 + $0x128] sm:$0xff]
        %v287 = vld [vmem:[%s233 + $0x130] sm:$0xff]
        %v288 = vld [vmem:[%s233 + $0x138] sm:$0xff]
        %v289 = vld [vmem:[%s233 + $0x140] sm:$0xff]
        %v290 = vld [vmem:[%s233 + $0x148] sm:$0xff]
        %v291 = vld [vmem:[%s233 + $0x150] sm:$0xff]
        %v292 = vld [vmem:[%s233 + $0x158] sm:$0xff]
        %v293 = vld [vmem:[%s233 + $0x160] sm:$0xff]
        %v294 = vld [vmem:[%s233 + $0x168] sm:$0xff]
        %v295 = vld [vmem:[%s233 + $0x170] sm:$0xff]
        %v296 = vld [vmem:[%s233 + $0x178] sm:$0xff]
        %v297 = vld [vmem:[%s233 + $0x180] sm:$0xff]
        %v298 = vld [vmem:[%s233 + $0x188] sm:$0xff]
        %v299 = vld [vmem:[%s233 + $0x190] sm:$0xff]
        %v300 = vld [vmem:[%s233 + $0x198] sm:$0xff]
        %v301 = vld [vmem:[%s233 + $0x1a0] sm:$0xff]
        %v302 = vld [vmem:[%s233 + $0x1a8] sm:$0xff]
        %v303 = vld [vmem:[%s233 + $0x1b0] sm:$0xff]
        %v304 = vld [vmem:[%s233 + $0x1b8] sm:$0xff]
        %v305 = vld [vmem:[%s233 + $0x1c0] sm:$0xff]
        %v306 = vld [vmem:[%s233 + $0x1c8] sm:$0xff]
        %v307 = vld [vmem:[%s233 + $0x1d0] sm:$0xff]
        %v308 = vld [vmem:[%s233 + $0x1d8] sm:$0xff]
        %v309 = vld [vmem:[%s233 + $0x1e0] sm:$0xff]
        %v310 = vld [vmem:[%s233 + $0x1e8] sm:$0xff]
        %v311 = vld [vmem:[%s233 + $0x1f0] sm:$0xff]
        %v312 = vld [vmem:[%s233 + $0x1f8] sm:$0xff]
        %v313 = vld [vmem:[%s233 + $0x200] sm:$0xff]
        %v314 = vld [vmem:[%s233 + $0x208] sm:$0xff]
        %v315 = vld [vmem:[%s233 + $0x210] sm:$0xff]
        %v316 = vld [vmem:[%s233 + $0x218] sm:$0xff]
        %v317 = vld [vmem:[%s233 + $0x220] sm:$0xff]
        %v318 = vld [vmem:[%s233 + $0x228] sm:$0xff]
        %v319 = vld [vmem:[%s233 + $0x230] sm:$0xff]
        %v320 = vld [vmem:[%s233 + $0x238] sm:$0xff]
        %v321 = vld [vmem:[%s233 + $0x240] sm:$0xff]
        %v322 = vld [vmem:[%s233 + $0x248] sm:$0xff]
        %v323 = vld [vmem:[%s233 + $0x250] sm:$0xff]
        %v324 = vld [vmem:[%s233 + $0x258] sm:$0xff]
        %v325 = vld [vmem:[%s233 + $0x260] sm:$0xff]
        %v326 = vld [vmem:[%s233 + $0x268] sm:$0xff]
        %v327 = vld [vmem:[%s233 + $0x270] sm:$0xff]
        %v328 = vld [vmem:[%s233 + $0x278] sm:$0xff]
        %v329 = vld [vmem:[%s233 + $0x280] sm:$0xff]
        %v330 = vld [vmem:[%s233 + $0x288] sm:$0xff]
        %v331 = vld [vmem:[%s233 + $0x290] sm:$0xff]
        %v332 = vld [vmem:[%s233 + $0x298] sm:$0xff]
        %v333 = vld [vmem:[%s233 + $0x2a0] sm:$0xff]
        %v334 = vld [vmem:[%s233 + $0x2a8] sm:$0xff]
        %v335 = vld [vmem:[%s233 + $0x2b0] sm:$0xff]
        %v336 = vld [vmem:[%s233 + $0x2b8] sm:$0xff]
        %v337 = vld [vmem:[%s233 + $0x2c0] sm:$0xff]
        %v338 = vld [vmem:[%s233 + $0x2c8] sm:$0xff]
        %v339 = vld [vmem:[%s233 + $0x2d0] sm:$0xff]
        %v340 = vld [vmem:[%s233 + $0x2d8] sm:$0xff]
        %v341 = vld [vmem:[%s233 + $0x2e0] sm:$0xff]
        %v342 = vld [vmem:[%s233 + $0x2e8] sm:$0xff]
        %v343 = vld [vmem:[%s233 + $0x2f0] sm:$0xff]
        %v344 = vld [vmem:[%s233 + $0x2f8] sm:$0xff]
        %v345 = vld [vmem:[%s233 + $0x300] sm:$0xff]
        %v346 = vld [vmem:[%s233 + $0x308] sm:$0xff]
        %v347 = vld [vmem:[%s233 + $0x310] sm:$0xff]
        %v348 = vld [vmem:[%s233 + $0x318] sm:$0xff]
        %v349 = vld [vmem:[%s233 + $0x320] sm:$0xff]
        %v350 = vld [vmem:[%s233 + $0x328] sm:$0xff]
        %v351 = vld [vmem:[%s233 + $0x330] sm:$0xff]
        %v352 = vld [vmem:[%s233 + $0x338] sm:$0xff]
        %v353 = vld [vmem:[%s233 + $0x340] sm:$0xff]
        %v354 = vld [vmem:[%s233 + $0x348] sm:$0xff]
        %v355 = vld [vmem:[%s233 + $0x350] sm:$0xff]
        %v356 = vld [vmem:[%s233 + $0x358] sm:$0xff]
        %v357 = vld [vmem:[%s233 + $0x360] sm:$0xff]
        %v358 = vld [vmem:[%s233 + $0x368] sm:$0xff]
        %v359 = vld [vmem:[%s233 + $0x370] sm:$0xff]
        %v360 = vld [vmem:[%s233 + $0x378] sm:$0xff]
        %v361 = vld [vmem:[%s233 + $0x380] sm:$0xff]
        %v362 = vld [vmem:[%s233 + $0x388] sm:$0xff]
        %v363 = vld [vmem:[%s233 + $0x390] sm:$0xff]
        %v364 = vld [vmem:[%s233 + $0x398] sm:$0xff]
        %v365 = vld [vmem:[%s233 + $0x3a0] sm:$0xff]
        %v366 = vld [vmem:[%s233 + $0x3a8] sm:$0xff]
        %v367 = vld [vmem:[%s233 + $0x3b0] sm:$0xff]
        %v368 = vld [vmem:[%s233 + $0x3b8] sm:$0xff]
        %v369 = vld [vmem:[%s233 + $0x3c0] sm:$0xff]
        %v370 = vld [vmem:[%s233 + $0x3c8] sm:$0xff]
        %v371 = vld [vmem:[%s233 + $0x3d0] sm:$0xff]
        %v372 = vld [vmem:[%s233 + $0x3d8] sm:$0xff]
        %v373 = vld [vmem:[%s233 + $0x3e0] sm:$0xff]
        %v374 = vld [vmem:[%s233 + $0x3e8] sm:$0xff]
        %v375 = vld [vmem:[%s233 + $0x3f0] sm:$0xff]
        %v376 = vld [vmem:[%s233 + $0x3f8] sm:$0xff]
        %v377 = vld [vmem:[%s233 + $0x400] sm:$0xff]
        %v378 = vld [vmem:[%s233 + $0x408] sm:$0xff]
        %v379 = vld [vmem:[%s233 + $0x410] sm:$0xff]
        %v380 = vld [vmem:[%s233 + $0x418] sm:$0xff]
        %v381 = vld [vmem:[%s233 + $0x420] sm:$0xff]
        %v382 = vld [vmem:[%s233 + $0x428] sm:$0xff]
        %v383 = vld [vmem:[%s233 + $0x430] sm:$0xff]
        %v384 = vld [vmem:[%s233 + $0x438] sm:$0xff]
        %v385 = vld [vmem:[%s233 + $0x440] sm:$0xff]
        %v386 = vld [vmem:[%s233 + $0x448] sm:$0xff]
        %v387 = vld [vmem:[%s233 + $0x450] sm:$0xff]
        %v388 = vld [vmem:[%s233 + $0x458] sm:$0xff]
        %v389 = vld [vmem:[%s233 + $0x460] sm:$0xff]
        %v390 = vld [vmem:[%s233 + $0x468] sm:$0xff]
        %v391 = vld [vmem:[%s233 + $0x470] sm:$0xff]
        %v392 = vld [vmem:[%s233 + $0x478] sm:$0xff]
        %v393 = vld [vmem:[%s233 + $0x480] sm:$0xff]
        %v394 = vld [vmem:[%s233 + $0x488] sm:$0xff]
        %v395 = vld [vmem:[%s233 + $0x490] sm:$0xff]
        %v396 = vld [vmem:[%s233 + $0x498] sm:$0xff]
        %v397 = vld [vmem:[%s233 + $0x4a0] sm:$0xff]
        %v398 = vld [vmem:[%s233 + $0x4a8] sm:$0xff]
        %v399 = vld [vmem:[%s233 + $0x4b0] sm:$0xff]
        %v400 = vld [vmem:[%s233 + $0x4b8] sm:$0xff]
        %v401 = vld [vmem:[%s233 + $0x4c0] sm:$0xff]
        %v402 = vld [vmem:[%s233 + $0x4c8] sm:$0xff]
        %v403 = vld [vmem:[%s233 + $0x4d0] sm:$0xff]
        %v404 = vld [vmem:[%s233 + $0x4d8] sm:$0xff]
        %v405 = vld [vmem:[%s233 + $0x4e0] sm:$0xff]
        %v406 = vld [vmem:[%s233 + $0x4e8] sm:$0xff]
        %v407 = vld [vmem:[%s233 + $0x4f0] sm:$0xff]
        %v408 = vld [vmem:[%s233 + $0x4f8] sm:$0xff]
        %v409 = vld [vmem:[%s233 + $0x500] sm:$0xff]
        %v410 = vld [vmem:[%s233 + $0x508] sm:$0xff]
        %v411 = vld [vmem:[%s233 + $0x510] sm:$0xff]
        %v412 = vld [vmem:[%s233 + $0x518] sm:$0xff]
        %v413 = vld [vmem:[%s233 + $0x520] sm:$0xff]
        %v414 = vld [vmem:[%s233 + $0x528] sm:$0xff]
        %v415 = vld [vmem:[%s233 + $0x530] sm:$0xff]
        %v416 = vld [vmem:[%s233 + $0x538] sm:$0xff]
        %v417 = vld [vmem:[%s233 + $0x540] sm:$0xff]
        %v418 = vld [vmem:[%s233 + $0x548] sm:$0xff]
        %v419 = vld [vmem:[%s233 + $0x550] sm:$0xff]
        %v420 = vld [vmem:[%s233 + $0x558] sm:$0xff]
        %v421 = vld [vmem:[%s233 + $0x560] sm:$0xff]
        %v422 = vld [vmem:[%s233 + $0x568] sm:$0xff]
        %v423 = vld [vmem:[%s233 + $0x570] sm:$0xff]
        %v424 = vld [vmem:[%s233 + $0x578] sm:$0xff]
        %v425 = vld [vmem:[%s233 + $0x580] sm:$0xff]
        %v426 = vld [vmem:[%s233 + $0x588] sm:$0xff]
        %v427 = vld [vmem:[%s233 + $0x590] sm:$0xff]
        %v428 = vld [vmem:[%s233 + $0x598] sm:$0xff]
        %v429 = vld [vmem:[%s233 + $0x5a0] sm:$0xff]
        %v430 = vld [vmem:[%s233 + $0x5a8] sm:$0xff]
        %v431 = vld [vmem:[%s233 + $0x5b0] sm:$0xff]
        %v432 = vld [vmem:[%s233 + $0x5b8] sm:$0xff]
        %v433 = vld [vmem:[%s233 + $0x5c0] sm:$0xff]
        %v434 = vld [vmem:[%s233 + $0x5c8] sm:$0xff]
        %v435 = vld [vmem:[%s233 + $0x5d0] sm:$0xff]
        %v436 = vld [vmem:[%s233 + $0x5d8] sm:$0xff]
        %v437 = vld [vmem:[%s233 + $0x5e0] sm:$0xff]
        %v438 = vld [vmem:[%s233 + $0x5e8] sm:$0xff]
        %v439 = vld [vmem:[%s233 + $0x5f0] sm:$0xff]
        %v440 = vld [vmem:[%s233 + $0x5f8] sm:$0xff]
        %v441 = vld [vmem:[%s233 + $0x600] sm:$0xff]
        %v442 = vld [vmem:[%s233 + $0x608] sm:$0xff]
        %v443 = vld [vmem:[%s233 + $0x610] sm:$0xff]
        %v444 = vld [vmem:[%s233 + $0x618] sm:$0xff]
        %v445 = vld [vmem:[%s233 + $0x620] sm:$0xff]
        %v446 = vld [vmem:[%s233 + $0x628] sm:$0xff]
        %v447 = vld [vmem:[%s233 + $0x630] sm:$0xff]
        %v448 = vld [vmem:[%s233 + $0x638] sm:$0xff]
        %v449 = vld [vmem:[%s233 + $0x640] sm:$0xff]
        %v450 = vld [vmem:[%s233 + $0x648] sm:$0xff]
        %v451 = vld [vmem:[%s233 + $0x650] sm:$0xff]
        %v452 = vld [vmem:[%s233 + $0x658] sm:$0xff]
        %v453 = vld [vmem:[%s233 + $0x660] sm:$0xff]
        %v454 = vld [vmem:[%s233 + $0x668] sm:$0xff]
        %v455 = vld [vmem:[%s233 + $0x670] sm:$0xff]
        %v456 = vld [vmem:[%s233 + $0x678] sm:$0xff]
        %v457 = vld [vmem:[%s233 + $0x680] sm:$0xff]
        %v458 = vld [vmem:[%s233 + $0x688] sm:$0xff]
        %v459 = vld [vmem:[%s233 + $0x690] sm:$0xff]
        %v460 = vld [vmem:[%s233 + $0x698] sm:$0xff]
        %v461 = vld [vmem:[%s233 + $0x6a0] sm:$0xff]
        %v462 = vld [vmem:[%s233 + $0x6a8] sm:$0xff]
        %v463 = vld [vmem:[%s233 + $0x6b0] sm:$0xff]
        %v464 = vld [vmem:[%s233 + $0x6b8] sm:$0xff]
        %v465 = vld [vmem:[%s233 + $0x6c0] sm:$0xff]
        %v466 = vld [vmem:[%s233 + $0x6c8] sm:$0xff]
        %v467 = vld [vmem:[%s233 + $0x6d0] sm:$0xff]
        %v468 = vld [vmem:[%s233 + $0x6d8] sm:$0xff]
        %v469 = vld [vmem:[%s233 + $0x6e0] sm:$0xff]
        %v470 = vld [vmem:[%s233 + $0x6e8] sm:$0xff]
        %v471 = vld [vmem:[%s233 + $0x6f0] sm:$0xff]
        %v472 = vld [vmem:[%s233 + $0x6f8] sm:$0xff]
        %v473 = vld [vmem:[%s233 + $0x700] sm:$0xff]
        %v474 = vld [vmem:[%s233 + $0x708] sm:$0xff]
        %v475 = vld [vmem:[%s233 + $0x710] sm:$0xff]
        %v476 = vld [vmem:[%s233 + $0x718] sm:$0xff]
        %v477 = vld [vmem:[%s233 + $0x720] sm:$0xff]
        %v478 = vld [vmem:[%s233 + $0x728] sm:$0xff]
        %v479 = vld [vmem:[%s233 + $0x730] sm:$0xff]
        %v480 = vld [vmem:[%s233 + $0x738] sm:$0xff]
        %v481 = vld [vmem:[%s233 + $0x740] sm:$0xff]
        %v482 = vld [vmem:[%s233 + $0x748] sm:$0xff]
        %v483 = vld [vmem:[%s233 + $0x750] sm:$0xff]
        %v484 = vld [vmem:[%s233 + $0x758] sm:$0xff]
        %v485 = vld [vmem:[%s233 + $0x760] sm:$0xff]
        %v486 = vld [vmem:[%s233 + $0x768] sm:$0xff]
        %v487 = vld [vmem:[%s233 + $0x770] sm:$0xff]
        %v488 = vld [vmem:[%s233 + $0x778] sm:$0xff]
        %v489 = vld [vmem:[%s233 + $0x780] sm:$0xff]
        %v490 = vld [vmem:[%s233 + $0x788] sm:$0xff]
        %v491 = vld [vmem:[%s233 + $0x790] sm:$0xff]
        %v492 = vld [vmem:[%s233 + $0x798] sm:$0xff]
        %v493 = vld [vmem:[%s233 + $0x7a0] sm:$0xff]
        %v494 = vld [vmem:[%s233 + $0x7a8] sm:$0xff]
        %v495 = vld [vmem:[%s233 + $0x7b0] sm:$0xff]
        %v496 = vld [vmem:[%s233 + $0x7b8] sm:$0xff]
        %v497 = vld [vmem:[%s233 + $0x7c0] sm:$0xff]
        %v498 = vld [vmem:[%s233 + $0x7c8] sm:$0xff]
        %v499 = vld [vmem:[%s233 + $0x7d0] sm:$0xff]
        %v500 = vld [vmem:[%s233 + $0x7d8] sm:$0xff]
        %v501 = vld [vmem:[%s233 + $0x7e0] sm:$0xff]
        %v502 = vld [vmem:[%s233 + $0x7e8] sm:$0xff]
        %v503 = vld [vmem:[%s233 + $0x7f0] sm:$0xff]
        %v504 = vld [vmem:[%s233 + $0x7f8] sm:$0xff]
        %v505 = vld [vmem:[%s233 + $0x800] sm:$0xff]
        %v506 = vld [vmem:[%s233 + $0x808] sm:$0xff]
        %v507 = vld [vmem:[%s233 + $0x810] sm:$0xff]
        %v508 = vld [vmem:[%s233 + $0x818] sm:$0xff]
        %v509 = vld [vmem:[%s233 + $0x820] sm:$0xff]
        %v510 = vld [vmem:[%s233 + $0x828] sm:$0xff]
        %v511 = vld [vmem:[%s233 + $0x830] sm:$0xff]
        %v512 = vld [vmem:[%s233 + $0x838] sm:$0xff]
        %v513 = vld [vmem:[%s233 + $0x840] sm:$0xff]
        %v514 = vld [vmem:[%s233 + $0x848] sm:$0xff]
        %v515 = vld [vmem:[%s233 + $0x850] sm:$0xff]
        %v516 = vld [vmem:[%s233 + $0x858] sm:$0xff]
        %v517 = vld [vmem:[%s233 + $0x860] sm:$0xff]
        %v518 = vld [vmem:[%s233 + $0x868] sm:$0xff]
        %v519 = vld [vmem:[%s233 + $0x870] sm:$0xff]
        %v520 = vld [vmem:[%s233 + $0x878] sm:$0xff]
        %v521 = vld [vmem:[%s233 + $0x880] sm:$0xff]
        %v522 = vld [vmem:[%s233 + $0x888] sm:$0xff]
        %v523 = vld [vmem:[%s233 + $0x890] sm:$0xff]
        %v524 = vld [vmem:[%s233 + $0x898] sm:$0xff]
        %v525 = vld [vmem:[%s233 + $0x8a0] sm:$0xff]
        %v526 = vld [vmem:[%s233 + $0x8a8] sm:$0xff]
        %v527 = vld [vmem:[%s233 + $0x8b0] sm:$0xff]
        %v528 = vld [vmem:[%s233 + $0x8b8] sm:$0xff]
        %v529 = vld [vmem:[%s233 + $0x8c0] sm:$0xff]
        %v530 = vld [vmem:[%s233 + $0x8c8] sm:$0xff]
        %v531 = vld [vmem:[%s233 + $0x8d0] sm:$0xff]
        %v532 = vld [vmem:[%s233 + $0x8d8] sm:$0xff]
        %v533 = vld [vmem:[%s233 + $0x8e0] sm:$0xff]
        %v534 = vld [vmem:[%s233 + $0x8e8] sm:$0xff]
        %v535 = vld [vmem:[%s233 + $0x8f0] sm:$0xff]
        %v536 = vld [vmem:[%s233 + $0x8f8] sm:$0xff]
        %v537 = vld [vmem:[%s233 + $0x900] sm:$0xff]
        %v538 = vld [vmem:[%s233 + $0x908] sm:$0xff]
        %v539 = vld [vmem:[%s233 + $0x910] sm:$0xff]
        %v540 = vld [vmem:[%s233 + $0x918] sm:$0xff]
        %v541 = vld [vmem:[%s233 + $0x920] sm:$0xff]
        %v542 = vld [vmem:[%s233 + $0x928] sm:$0xff]
        %v543 = vld [vmem:[%s233 + $0x930] sm:$0xff]
        %v544 = vld [vmem:[%s233 + $0x938] sm:$0xff]
        %v545 = vld [vmem:[%s233 + $0x940] sm:$0xff]
        %v546 = vld [vmem:[%s233 + $0x948] sm:$0xff]
        %v547 = vld [vmem:[%s233 + $0x950] sm:$0xff]
        %v548 = vld [vmem:[%s233 + $0x958] sm:$0xff]
        %v549 = vld [vmem:[%s233 + $0x960] sm:$0xff]
        %v550 = vld [vmem:[%s233 + $0x968] sm:$0xff]
        %v551 = vld [vmem:[%s233 + $0x970] sm:$0xff]
        %v552 = vld [vmem:[%s233 + $0x978] sm:$0xff]
        %v553 = vld [vmem:[%s233 + $0x980] sm:$0xff]
        %v554 = vld [vmem:[%s233 + $0x988] sm:$0xff]
        %v555 = vld [vmem:[%s233 + $0x990] sm:$0xff]
        %v556 = vld [vmem:[%s233 + $0x998] sm:$0xff]
        %v557 = vld [vmem:[%s233 + $0x9a0] sm:$0xff]
        %v558 = vld [vmem:[%s233 + $0x9a8] sm:$0xff]
        %v559 = vld [vmem:[%s233 + $0x9b0] sm:$0xff]
        %v560 = vld [vmem:[%s233 + $0x9b8] sm:$0xff]
        %v561 = vld [vmem:[%s233 + $0x9c0] sm:$0xff]
        %v562 = vld [vmem:[%s233 + $0x9c8] sm:$0xff]
        %v563 = vld [vmem:[%s233 + $0x9d0] sm:$0xff]
        %v564 = vld [vmem:[%s233 + $0x9d8] sm:$0xff]
        %v565 = vld [vmem:[%s233 + $0x9e0] sm:$0xff]
        %v566 = vld [vmem:[%s233 + $0x9e8] sm:$0xff]
        %v567 = vld [vmem:[%s233 + $0x9f0] sm:$0xff]
        %v568 = vld [vmem:[%s233 + $0x9f8] sm:$0xff]
        %v569 = vld [vmem:[%s233 + $0xa00] sm:$0xff]
        %v570 = vld [vmem:[%s233 + $0xa08] sm:$0xff]
        %v571 = vld [vmem:[%s233 + $0xa10] sm:$0xff]
        %v572 = vld [vmem:[%s233 + $0xa18] sm:$0xff]
        %v573 = vld [vmem:[%s233 + $0xa20] sm:$0xff]
        %v574 = vld [vmem:[%s233 + $0xa28] sm:$0xff]
        %v575 = vld [vmem:[%s233 + $0xa30] sm:$0xff]
        %v576 = vld [vmem:[%s233 + $0xa38] sm:$0xff]
        %v577 = vld [vmem:[%s233 + $0xa40] sm:$0xff]
        %v578 = vld [vmem:[%s233 + $0xa48] sm:$0xff]
        %v579 = vld [vmem:[%s233 + $0xa50] sm:$0xff]
        %v580 = vld [vmem:[%s233 + $0xa58] sm:$0xff]
        %v581 = vld [vmem:[%s233 + $0xa60] sm:$0xff]
        %v582 = vld [vmem:[%s233 + $0xa68] sm:$0xff]
        %v583 = vld [vmem:[%s233 + $0xa70] sm:$0xff]
        %v584 = vld [vmem:[%s233 + $0xa78] sm:$0xff]
        %v585 = vld [vmem:[%s233 + $0xa80] sm:$0xff]
        %v586 = vld [vmem:[%s233 + $0xa88] sm:$0xff]
        %v587 = vld [vmem:[%s233 + $0xa90] sm:$0xff]
        %v588 = vld [vmem:[%s233 + $0xa98] sm:$0xff]
        %v589 = vld [vmem:[%s233 + $0xaa0] sm:$0xff]
        %v590 = vld [vmem:[%s233 + $0xaa8] sm:$0xff]
        %v591 = vld [vmem:[%s233 + $0xab0] sm:$0xff]
        %v592 = vld [vmem:[%s233 + $0xab8] sm:$0xff]
        %v593 = vld [vmem:[%s233 + $0xac0] sm:$0xff]
        %v594 = vld [vmem:[%s233 + $0xac8] sm:$0xff]
        %v595 = vld [vmem:[%s233 + $0xad0] sm:$0xff]
        %v596 = vld [vmem:[%s233 + $0xad8] sm:$0xff]
        %v597 = vld [vmem:[%s233 + $0xae0] sm:$0xff]
        %v598 = vld [vmem:[%s233 + $0xae8] sm:$0xff]
        %v599 = vld [vmem:[%s233 + $0xaf0] sm:$0xff]
        %v600 = vld [vmem:[%s233 + $0xaf8] sm:$0xff]
        %v601 = vld [vmem:[%s233 + $0xb00] sm:$0xff]
        %v602 = vld [vmem:[%s233 + $0xb08] sm:$0xff]
        %v603 = vld [vmem:[%s233 + $0xb10] sm:$0xff]
        %v604 = vld [vmem:[%s233 + $0xb18] sm:$0xff]
        %v605 = vld [vmem:[%s233 + $0xb20] sm:$0xff]
        %v606 = vld [vmem:[%s233 + $0xb28] sm:$0xff]
        %v607 = vld [vmem:[%s233 + $0xb30] sm:$0xff]
        %v608 = vld [vmem:[%s233 + $0xb38] sm:$0xff]
        %v609 = vld [vmem:[%s233 + $0xb40] sm:$0xff]
        %v610 = vld [vmem:[%s233 + $0xb48] sm:$0xff]
        %v611 = vld [vmem:[%s233 + $0xb50] sm:$0xff]
        %v612 = vld [vmem:[%s233 + $0xb58] sm:$0xff]
        %v613 = vld [vmem:[%s233 + $0xb60] sm:$0xff]
        %v614 = vld [vmem:[%s233 + $0xb68] sm:$0xff]
        %v615 = vld [vmem:[%s233 + $0xb70] sm:$0xff]
        %v616 = vld [vmem:[%s233 + $0xb78] sm:$0xff]
        %v617 = vld [vmem:[%s233 + $0xb80] sm:$0xff]
        %v618 = vld [vmem:[%s233 + $0xb88] sm:$0xff]
        %v619 = vld [vmem:[%s233 + $0xb90] sm:$0xff]
        %v620 = vld [vmem:[%s233 + $0xb98] sm:$0xff]
        %v621 = vld [vmem:[%s233 + $0xba0] sm:$0xff]
        %v622 = vld [vmem:[%s233 + $0xba8] sm:$0xff]
        %v623 = vld [vmem:[%s233 + $0xbb0] sm:$0xff]
        %v624 = vld [vmem:[%s233 + $0xbb8] sm:$0xff]
        %v625 = vld [vmem:[%s233 + $0xbc0] sm:$0xff]
        %v626 = vld [vmem:[%s233 + $0xbc8] sm:$0xff]
        %v627 = vld [vmem:[%s233 + $0xbd0] sm:$0xff]
        %v628 = vld [vmem:[%s233 + $0xbd8] sm:$0xff]
        %v629 = vld [vmem:[%s233 + $0xbe0] sm:$0xff]
        %v630 = vld [vmem:[%s233 + $0xbe8] sm:$0xff]
        %v631 = vld [vmem:[%s233 + $0xbf0] sm:$0xff]
        %v632 = vld [vmem:[%s233 + $0xbf8] sm:$0xff]
        %v633 = vld [vmem:[%s233 + $0xc00] sm:$0xff]
        %v634 = vld [vmem:[%s233 + $0xc08] sm:$0xff]
        %v635 = vld [vmem:[%s233 + $0xc10] sm:$0xff]
        %v636 = vld [vmem:[%s233 + $0xc18] sm:$0xff]
        %v637 = vld [vmem:[%s233 + $0xc20] sm:$0xff]
        %v638 = vld [vmem:[%s233 + $0xc28] sm:$0xff]
        %v639 = vld [vmem:[%s233 + $0xc30] sm:$0xff]
        %v640 = vld [vmem:[%s233 + $0xc38] sm:$0xff]
        %v641 = vld [vmem:[%s233 + $0xc40] sm:$0xff]
        %v642 = vld [vmem:[%s233 + $0xc48] sm:$0xff]
        %v643 = vld [vmem:[%s233 + $0xc50] sm:$0xff]
        %v644 = vld [vmem:[%s233 + $0xc58] sm:$0xff]
        %v645 = vld [vmem:[%s233 + $0xc60] sm:$0xff]
        %v646 = vld [vmem:[%s233 + $0xc68] sm:$0xff]
        %v647 = vld [vmem:[%s233 + $0xc70] sm:$0xff]
        %v648 = vld [vmem:[%s233 + $0xc78] sm:$0xff]
        %v649 = vld [vmem:[%s233 + $0xc80] sm:$0xff]
        %v650 = vld [vmem:[%s233 + $0xc88] sm:$0xff]
        %v651 = vld [vmem:[%s233 + $0xc90] sm:$0xff]
        %v652 = vld [vmem:[%s233 + $0xc98] sm:$0xff]
        %v653 = vld [vmem:[%s233 + $0xca0] sm:$0xff]
        %v654 = vld [vmem:[%s233 + $0xca8] sm:$0xff]
        %v655 = vld [vmem:[%s233 + $0xcb0] sm:$0xff]
        %v656 = vld [vmem:[%s233 + $0xcb8] sm:$0xff]
        %v657 = vld [vmem:[%s233 + $0xcc0] sm:$0xff]
        %v658 = vld [vmem:[%s233 + $0xcc8] sm:$0xff]
        %v659 = vld [vmem:[%s233 + $0xcd0] sm:$0xff]
        %v660 = vld [vmem:[%s233 + $0xcd8] sm:$0xff]
        %v661 = vld [vmem:[%s233 + $0xce0] sm:$0xff]
        %v662 = vld [vmem:[%s233 + $0xce8] sm:$0xff]
        %v663 = vld [vmem:[%s233 + $0xcf0] sm:$0xff]
        %v664 = vld [vmem:[%s233 + $0xcf8] sm:$0xff]
        %v665 = vld [vmem:[%s233 + $0xd00] sm:$0xff]
        %v666 = vld [vmem:[%s233 + $0xd08] sm:$0xff]
        %v667 = vld [vmem:[%s233 + $0xd10] sm:$0xff]
        %v668 = vld [vmem:[%s233 + $0xd18] sm:$0xff]
        %v669 = vld [vmem:[%s233 + $0xd20] sm:$0xff]
        %v670 = vld [vmem:[%s233 + $0xd28] sm:$0xff]
        %v671 = vld [vmem:[%s233 + $0xd30] sm:$0xff]
        %v672 = vld [vmem:[%s233 + $0xd38] sm:$0xff]
        %v673 = vld [vmem:[%s233 + $0xd40] sm:$0xff]
        %v674 = vld [vmem:[%s233 + $0xd48] sm:$0xff]
        %v675 = vld [vmem:[%s233 + $0xd50] sm:$0xff]
        %v676 = vld [vmem:[%s233 + $0xd58] sm:$0xff]
        %v677 = vld [vmem:[%s233 + $0xd60] sm:$0xff]
        %v678 = vld [vmem:[%s233 + $0xd68] sm:$0xff]
        %v679 = vld [vmem:[%s233 + $0xd70] sm:$0xff]
        %v680 = vld [vmem:[%s233 + $0xd78] sm:$0xff]
        %v681 = vld [vmem:[%s233 + $0xd80] sm:$0xff]
        %v682 = vld [vmem:[%s233 + $0xd88] sm:$0xff]
        %v683 = vld [vmem:[%s233 + $0xd90] sm:$0xff]
        %v684 = vld [vmem:[%s233 + $0xd98] sm:$0xff]
        %v685 = vld [vmem:[%s233 + $0xda0] sm:$0xff]
        %v686 = vld [vmem:[%s233 + $0xda8] sm:$0xff]
        %v687 = vld [vmem:[%s233 + $0xdb0] sm:$0xff]
        %v688 = vld [vmem:[%s233 + $0xdb8] sm:$0xff]
        %v689 = vld [vmem:[%s233 + $0xdc0] sm:$0xff]
        %v690 = vld [vmem:[%s233 + $0xdc8] sm:$0xff]
        %v691 = vld [vmem:[%s233 + $0xdd0] sm:$0xff]
        %v692 = vld [vmem:[%s233 + $0xdd8] sm:$0xff]
        %v693 = vld [vmem:[%s233 + $0xde0] sm:$0xff]
        %v694 = vld [vmem:[%s233 + $0xde8] sm:$0xff]
        %v695 = vld [vmem:[%s233 + $0xdf0] sm:$0xff]
        %v696 = vld [vmem:[%s233 + $0xdf8] sm:$0xff]
        %v697 = vld [vmem:[%s233 + $0xe00] sm:$0xff]
        %v698 = vld [vmem:[%s233 + $0xe08] sm:$0xff]
        %v699 = vld [vmem:[%s233 + $0xe10] sm:$0xff]
        %v700 = vld [vmem:[%s233 + $0xe18] sm:$0xff]
        %v701 = vld [vmem:[%s233 + $0xe20] sm:$0xff]
        %v702 = vld [vmem:[%s233 + $0xe28] sm:$0xff]
        %v703 = vld [vmem:[%s233 + $0xe30] sm:$0xff]
        %v704 = vld [vmem:[%s233 + $0xe38] sm:$0xff]
        %v705 = vld [vmem:[%s233 + $0xe40] sm:$0xff]
        %v706 = vld [vmem:[%s233 + $0xe48] sm:$0xff]
        %v707 = vld [vmem:[%s233 + $0xe50] sm:$0xff]
        %v708 = vld [vmem:[%s233 + $0xe58] sm:$0xff]
        %v709 = vld [vmem:[%s233 + $0xe60] sm:$0xff]
        %v710 = vld [vmem:[%s233 + $0xe68] sm:$0xff]
        %v711 = vld [vmem:[%s233 + $0xe70] sm:$0xff]
        %v712 = vld [vmem:[%s233 + $0xe78] sm:$0xff]
        %v713 = vld [vmem:[%s233 + $0xe80] sm:$0xff]
        %v714 = vld [vmem:[%s233 + $0xe88] sm:$0xff]
        %v715 = vld [vmem:[%s233 + $0xe90] sm:$0xff]
        %v716 = vld [vmem:[%s233 + $0xe98] sm:$0xff]
        %v717 = vld [vmem:[%s233 + $0xea0] sm:$0xff]
        %v718 = vld [vmem:[%s233 + $0xea8] sm:$0xff]
        %v719 = vld [vmem:[%s233 + $0xeb0] sm:$0xff]
        %v720 = vld [vmem:[%s233 + $0xeb8] sm:$0xff]
        %v721 = vld [vmem:[%s233 + $0xec0] sm:$0xff]
        %v722 = vld [vmem:[%s233 + $0xec8] sm:$0xff]
        %v723 = vld [vmem:[%s233 + $0xed0] sm:$0xff]
        %v724 = vld [vmem:[%s233 + $0xed8] sm:$0xff]
        %v725 = vld [vmem:[%s233 + $0xee0] sm:$0xff]
        %v726 = vld [vmem:[%s233 + $0xee8] sm:$0xff]
        %v727 = vld [vmem:[%s233 + $0xef0] sm:$0xff]
        %v728 = vld [vmem:[%s233 + $0xef8] sm:$0xff]
        %v729 = vld [vmem:[%s233 + $0xf00] sm:$0xff]
        %v730 = vld [vmem:[%s233 + $0xf08] sm:$0xff]
        %v731 = vld [vmem:[%s233 + $0xf10] sm:$0xff]
        %v732 = vld [vmem:[%s233 + $0xf18] sm:$0xff]
        %v733 = vld [vmem:[%s233 + $0xf20] sm:$0xff]
        %v734 = vld [vmem:[%s233 + $0xf28] sm:$0xff]
        %v735 = vld [vmem:[%s233 + $0xf30] sm:$0xff]
        %v736 = vld [vmem:[%s233 + $0xf38] sm:$0xff]
        %v737 = vld [vmem:[%s233 + $0xf40] sm:$0xff]
        %v738 = vld [vmem:[%s233 + $0xf48] sm:$0xff]
        %v739 = vld [vmem:[%s233 + $0xf50] sm:$0xff]
        %v740 = vld [vmem:[%s233 + $0xf58] sm:$0xff]
        %v741 = vld [vmem:[%s233 + $0xf60] sm:$0xff]
        %v742 = vld [vmem:[%s233 + $0xf68] sm:$0xff]
        %v743 = vld [vmem:[%s233 + $0xf70] sm:$0xff]
        %v744 = vld [vmem:[%s233 + $0xf78] sm:$0xff]
        %v745 = vld [vmem:[%s233 + $0xf80] sm:$0xff]
        %v746 = vld [vmem:[%s233 + $0xf88] sm:$0xff]
        %v747 = vld [vmem:[%s233 + $0xf90] sm:$0xff]
        %v748 = vld [vmem:[%s233 + $0xf98] sm:$0xff]
        %v749 = vld [vmem:[%s233 + $0xfa0] sm:$0xff]
        %v750 = vld [vmem:[%s233 + $0xfa8] sm:$0xff]
        %v751 = vld [vmem:[%s233 + $0xfb0] sm:$0xff]
        %v752 = vld [vmem:[%s233 + $0xfb8] sm:$0xff]
        %v753 = vld [vmem:[%s233 + $0xfc0] sm:$0xff]
        %v754 = vld [vmem:[%s233 + $0xfc8] sm:$0xff]
        %v755 = vld [vmem:[%s233 + $0xfd0] sm:$0xff]
        %v756 = vld [vmem:[%s233 + $0xfd8] sm:$0xff]
        %v757 = vld [vmem:[%s233 + $0xfe0] sm:$0xff]
        %v758 = vld [vmem:[%s233 + $0xfe8] sm:$0xff]
        %v759 = vld [vmem:[%s233 + $0xff0] sm:$0xff]
        %v760 = vld [vmem:[%s233 + $0xff8] sm:$0xff]
        %v761 = vld [vmem:[%s233 + $0x1000] sm:$0xff]
        %v762 = vld [vmem:[%s233 + $0x1008] sm:$0xff]
        %v763 = vld [vmem:[%s233 + $0x1010] sm:$0xff]
        %v764 = vld [vmem:[%s233 + $0x1018] sm:$0xff]
        %v765 = vld [vmem:[%s233 + $0x1020] sm:$0xff]
        %v766 = vld [vmem:[%s233 + $0x1028] sm:$0xff]
        %v767 = vld [vmem:[%s233 + $0x1030] sm:$0xff]
        %v768 = vld [vmem:[%s233 + $0x1038] sm:$0xff]
        %v769 = vld [vmem:[%s233 + $0x1040] sm:$0xff]
        %v770 = vld [vmem:[%s233 + $0x1048] sm:$0xff]
        %v771 = vld [vmem:[%s233 + $0x1050] sm:$0xff]
        %v772 = vld [vmem:[%s233 + $0x1058] sm:$0xff]
        %v773 = vld [vmem:[%s233 + $0x1060] sm:$0xff]
        %v774 = vld [vmem:[%s233 + $0x1068] sm:$0xff]
        %v775 = vld [vmem:[%s233 + $0x1070] sm:$0xff]
        %v776 = vld [vmem:[%s233 + $0x1078] sm:$0xff]
        %v777 = vld [vmem:[%s233 + $0x1080] sm:$0xff]
        %v778 = vld [vmem:[%s233 + $0x1088] sm:$0xff]
        %v779 = vld [vmem:[%s233 + $0x1090] sm:$0xff]
        %v780 = vld [vmem:[%s233 + $0x1098] sm:$0xff]
        %v781 = vld [vmem:[%s233 + $0x10a0] sm:$0xff]
        %v782 = vld [vmem:[%s233 + $0x10a8] sm:$0xff]
        %v783 = vld [vmem:[%s233 + $0x10b0] sm:$0xff]
        %v784 = vld [vmem:[%s233 + $0x10b8] sm:$0xff]
        %v785 = vld [vmem:[%s233 + $0x10c0] sm:$0xff]
        %v786 = vld [vmem:[%s233 + $0x10c8] sm:$0xff]
        %v787 = vld [vmem:[%s233 + $0x10d0] sm:$0xff]
        %v788 = vld [vmem:[%s233 + $0x10d8] sm:$0xff]
        %v789 = vld [vmem:[%s233 + $0x10e0] sm:$0xff]
        %v790 = vld [vmem:[%s233 + $0x10e8] sm:$0xff]
        %v791 = vld [vmem:[%s233 + $0x10f0] sm:$0xff]
        %v792 = vld [vmem:[%s233 + $0x10f8] sm:$0xff]
        %v793 = vld [vmem:[%s233 + $0x1100] sm:$0xff]
        %v794 = vld [vmem:[%s233 + $0x1108] sm:$0xff]
        %v795 = vld [vmem:[%s233 + $0x1110] sm:$0xff]
        %v796 = vld [vmem:[%s233 + $0x1118] sm:$0xff]
        %v797 = vld [vmem:[%s233 + $0x1120] sm:$0xff]
        %v798 = vld [vmem:[%s233 + $0x1128] sm:$0xff]
        %v799 = vld [vmem:[%s233 + $0x1130] sm:$0xff]
        %v800 = vld [vmem:[%s233 + $0x1138] sm:$0xff]
        %v801 = vld [vmem:[%s233 + $0x1140] sm:$0xff]
        %v802 = vld [vmem:[%s233 + $0x1148] sm:$0xff]
        %v803 = vld [vmem:[%s233 + $0x1150] sm:$0xff]
        %v804 = vld [vmem:[%s233 + $0x1158] sm:$0xff]
        %v805 = vld [vmem:[%s233 + $0x1160] sm:$0xff]
        %v806 = vld [vmem:[%s233 + $0x1168] sm:$0xff]
        %v807 = vld [vmem:[%s233 + $0x1170] sm:$0xff]
        %v808 = vld [vmem:[%s233 + $0x1178] sm:$0xff]
        %v809 = vld [vmem:[%s233 + $0x1180] sm:$0xff]
        %v810 = vld [vmem:[%s233 + $0x1188] sm:$0xff]
        %v811 = vld [vmem:[%s233 + $0x1190] sm:$0xff]
        %v812 = vld [vmem:[%s233 + $0x1198] sm:$0xff]
        %v813 = vld [vmem:[%s233 + $0x11a0] sm:$0xff]
        %v814 = vld [vmem:[%s233 + $0x11a8] sm:$0xff]
        %v815 = vld [vmem:[%s233 + $0x11b0] sm:$0xff]
        %v816 = vld [vmem:[%s233 + $0x11b8] sm:$0xff]
        %v817 = vld [vmem:[%s233 + $0x11c0] sm:$0xff]
        %v818 = vld [vmem:[%s233 + $0x11c8] sm:$0xff]
        %v819 = vld [vmem:[%s233 + $0x11d0] sm:$0xff]
        %v820 = vld [vmem:[%s233 + $0x11d8] sm:$0xff]
        %v821 = vld [vmem:[%s233 + $0x11e0] sm:$0xff]
        %v822 = vld [vmem:[%s233 + $0x11e8] sm:$0xff]
        %v823 = vld [vmem:[%s233 + $0x11f0] sm:$0xff]
        %v824 = vld [vmem:[%s233 + $0x11f8] sm:$0xff]
        %v825 = vld [vmem:[%s233 + $0x1200] sm:$0xff]
        %v826 = vld [vmem:[%s233 + $0x1208] sm:$0xff]
        %v827 = vld [vmem:[%s233 + $0x1210] sm:$0xff]
        %v828 = vld [vmem:[%s233 + $0x1218] sm:$0xff]
        %v829 = vld [vmem:[%s233 + $0x1220] sm:$0xff]
        %v830 = vld [vmem:[%s233 + $0x1228] sm:$0xff]
        %v831 = vld [vmem:[%s233 + $0x1230] sm:$0xff]
        %v832 = vld [vmem:[%s233 + $0x1238] sm:$0xff]
        %v833 = vld [vmem:[%s233 + $0x1240] sm:$0xff]
        %v834 = vld [vmem:[%s233 + $0x1248] sm:$0xff]
        %v835 = vld [vmem:[%s233 + $0x1250] sm:$0xff]
        %v836 = vld [vmem:[%s233 + $0x1258] sm:$0xff]
        %v837 = vld [vmem:[%s233 + $0x1260] sm:$0xff]
        %v838 = vld [vmem:[%s233 + $0x1268] sm:$0xff]
        %v839 = vld [vmem:[%s233 + $0x1270] sm:$0xff]
        %v840 = vld [vmem:[%s233 + $0x1278] sm:$0xff]
        %v841 = vld [vmem:[%s233 + $0x1280] sm:$0xff]
        %v842 = vld [vmem:[%s233 + $0x1288] sm:$0xff]
        %v843 = vld [vmem:[%s233 + $0x1290] sm:$0xff]
        %v844 = vld [vmem:[%s233 + $0x1298] sm:$0xff]
        %v845 = vld [vmem:[%s233 + $0x12a0] sm:$0xff]
        %v846 = vld [vmem:[%s233 + $0x12a8] sm:$0xff]
        %v847 = vld [vmem:[%s233 + $0x12b0] sm:$0xff]
        %v848 = vld [vmem:[%s233 + $0x12b8] sm:$0xff]
        %v849 = vld [vmem:[%s233 + $0x12c0] sm:$0xff]
        %v850 = vld [vmem:[%s233 + $0x12c8] sm:$0xff]
        %v851 = vld [vmem:[%s233 + $0x12d0] sm:$0xff]
        %v852 = vld [vmem:[%s233 + $0x12d8] sm:$0xff]
        %v853 = vld [vmem:[%s233 + $0x12e0] sm:$0xff]
        %v854 = vld [vmem:[%s233 + $0x12e8] sm:$0xff]
        %v855 = vld [vmem:[%s233 + $0x12f0] sm:$0xff]
        %v856 = vld [vmem:[%s233 + $0x12f8] sm:$0xff]
        %v857 = vld [vmem:[%s233 + $0x1300] sm:$0xff]
        %v858 = vld [vmem:[%s233 + $0x1308] sm:$0xff]
        %v859 = vld [vmem:[%s233 + $0x1310] sm:$0xff]
        %v860 = vld [vmem:[%s233 + $0x1318] sm:$0xff]
        %v861 = vld [vmem:[%s233 + $0x1320] sm:$0xff]
        %v862 = vld [vmem:[%s233 + $0x1328] sm:$0xff]
        %v863 = vld [vmem:[%s233 + $0x1330] sm:$0xff]
        %v864 = vld [vmem:[%s233 + $0x1338] sm:$0xff]
        %v865 = vld [vmem:[%s233 + $0x1340] sm:$0xff]
        %v866 = vld [vmem:[%s233 + $0x1348] sm:$0xff]
        %v867 = vld [vmem:[%s233 + $0x1350] sm:$0xff]
        %v868 = vld [vmem:[%s233 + $0x1358] sm:$0xff]
        %v869 = vld [vmem:[%s233 + $0x1360] sm:$0xff]
        %v870 = vld [vmem:[%s233 + $0x1368] sm:$0xff]
        %v871 = vld [vmem:[%s233 + $0x1370] sm:$0xff]
        %v872 = vld [vmem:[%s233 + $0x1378] sm:$0xff]
        %v873 = vld [vmem:[%s233 + $0x1380] sm:$0xff]
        %v874 = vld [vmem:[%s233 + $0x1388] sm:$0xff]
        %v875 = vld [vmem:[%s233 + $0x1390] sm:$0xff]
        %v876 = vld [vmem:[%s233 + $0x1398] sm:$0xff]
        %v877 = vld [vmem:[%s233 + $0x13a0] sm:$0xff]
        %v878 = vld [vmem:[%s233 + $0x13a8] sm:$0xff]
        %v879 = vld [vmem:[%s233 + $0x13b0] sm:$0xff]
        %v880 = vld [vmem:[%s233 + $0x13b8] sm:$0xff]
        %v881 = vld [vmem:[%s233 + $0x13c0] sm:$0xff]
        %v882 = vld [vmem:[%s233 + $0x13c8] sm:$0xff]
        %v883 = vld [vmem:[%s233 + $0x13d0] sm:$0xff]
        %v884 = vld [vmem:[%s233 + $0x13d8] sm:$0xff]
        %v885 = vld [vmem:[%s233 + $0x13e0] sm:$0xff]
        %v886 = vld [vmem:[%s233 + $0x13e8] sm:$0xff]
        %v887 = vld [vmem:[%s233 + $0x13f0] sm:$0xff]
        %v888 = vld [vmem:[%s233 + $0x13f8] sm:$0xff]
        %v889 = vld [vmem:[%s233 + $0x1400] sm:$0xff]
        %v890 = vld [vmem:[%s233 + $0x1408] sm:$0xff]
        %v891 = vld [vmem:[%s233 + $0x1410] sm:$0xff]
        %v892 = vld [vmem:[%s233 + $0x1418] sm:$0xff]
        %v893 = vld [vmem:[%s233 + $0x1420] sm:$0xff]
        %v894 = vld [vmem:[%s233 + $0x1428] sm:$0xff]
        %v895 = vld [vmem:[%s233 + $0x1430] sm:$0xff]
        %v896 = vld [vmem:[%s233 + $0x1438] sm:$0xff]
        %v897 = vld [vmem:[%s233 + $0x1440] sm:$0xff]
        %v898 = vld [vmem:[%s233 + $0x1448] sm:$0xff]
        %v899 = vld [vmem:[%s233 + $0x1450] sm:$0xff]
        %v900 = vld [vmem:[%s233 + $0x1458] sm:$0xff]
        %v901 = vld [vmem:[%s233 + $0x1460] sm:$0xff]
        %v902 = vld [vmem:[%s233 + $0x1468] sm:$0xff]
        %v903 = vld [vmem:[%s233 + $0x1470] sm:$0xff]
        %v904 = vld [vmem:[%s233 + $0x1478] sm:$0xff]
        %v905 = vld [vmem:[%s233 + $0x1480] sm:$0xff]
        %v906 = vld [vmem:[%s233 + $0x1488] sm:$0xff]
        %v907 = vld [vmem:[%s233 + $0x1490] sm:$0xff]
        %v908 = vld [vmem:[%s233 + $0x1498] sm:$0xff]
        %v909 = vld [vmem:[%s233 + $0x14a0] sm:$0xff]
        %v910 = vld [vmem:[%s233 + $0x14a8] sm:$0xff]
        %v911 = vld [vmem:[%s233 + $0x14b0] sm:$0xff]
        %v912 = vld [vmem:[%s233 + $0x14b8] sm:$0xff]
        %v913 = vld [vmem:[%s233 + $0x14c0] sm:$0xff]
        %v914 = vld [vmem:[%s233 + $0x14c8] sm:$0xff]
        %v915 = vld [vmem:[%s233 + $0x14d0] sm:$0xff]
        %v916 = vld [vmem:[%s233 + $0x14d8] sm:$0xff]
        %v917 = vld [vmem:[%s233 + $0x14e0] sm:$0xff]
        %v918 = vld [vmem:[%s233 + $0x14e8] sm:$0xff]
        %v919 = vld [vmem:[%s233 + $0x14f0] sm:$0xff]
        %v920 = vld [vmem:[%s233 + $0x14f8] sm:$0xff]
        %v921 = vld [vmem:[%s233 + $0x1500] sm:$0xff]
        %v922 = vld [vmem:[%s233 + $0x1508] sm:$0xff]
        %v923 = vld [vmem:[%s233 + $0x1510] sm:$0xff]
        %v924 = vld [vmem:[%s233 + $0x1518] sm:$0xff]
        %v925 = vld [vmem:[%s233 + $0x1520] sm:$0xff]
        %v926 = vld [vmem:[%s233 + $0x1528] sm:$0xff]
        %v927 = vld [vmem:[%s233 + $0x1530] sm:$0xff]
        %v928 = vld [vmem:[%s233 + $0x1538] sm:$0xff]
        %v929 = vld [vmem:[%s233 + $0x1540] sm:$0xff]
        %v930 = vld [vmem:[%s233 + $0x1548] sm:$0xff]
        %v931 = vld [vmem:[%s233 + $0x1550] sm:$0xff]
        %v932 = vld [vmem:[%s233 + $0x1558] sm:$0xff]
        %v933 = vld [vmem:[%s233 + $0x1560] sm:$0xff]
        %v934 = vld [vmem:[%s233 + $0x1568] sm:$0xff]
        %v935 = vld [vmem:[%s233 + $0x1570] sm:$0xff]
        %v936 = vld [vmem:[%s233 + $0x1578] sm:$0xff]
        %v937 = vld [vmem:[%s233 + $0x1580] sm:$0xff]
        %v938 = vld [vmem:[%s233 + $0x1588] sm:$0xff]
        %v939 = vld [vmem:[%s233 + $0x1590] sm:$0xff]
        %v940 = vld [vmem:[%s233 + $0x1598] sm:$0xff]
        %v941 = vld [vmem:[%s233 + $0x15a0] sm:$0xff]
        %v942 = vld [vmem:[%s233 + $0x15a8] sm:$0xff]
        %v943 = vld [vmem:[%s233 + $0x15b0] sm:$0xff]
        %v944 = vld [vmem:[%s233 + $0x15b8] sm:$0xff]
        %v945 = vld [vmem:[%s233 + $0x15c0] sm:$0xff]
        %v946 = vld [vmem:[%s233 + $0x15c8] sm:$0xff]
        %v947 = vld [vmem:[%s233 + $0x15d0] sm:$0xff]
        %v948 = vld [vmem:[%s233 + $0x15d8] sm:$0xff]
        %v949 = vld [vmem:[%s233 + $0x15e0] sm:$0xff]
        %v950 = vld [vmem:[%s233 + $0x15e8] sm:$0xff]
        %v951 = vld [vmem:[%s233 + $0x15f0] sm:$0xff]
        %v952 = vld [vmem:[%s233 + $0x15f8] sm:$0xff]
        %v953 = vld [vmem:[%s233 + $0x1600] sm:$0xff]
        %v954 = vld [vmem:[%s233 + $0x1608] sm:$0xff]
        %v955 = vld [vmem:[%s233 + $0x1610] sm:$0xff]
        %v956 = vld [vmem:[%s233 + $0x1618] sm:$0xff]
        %v957 = vld [vmem:[%s233 + $0x1620] sm:$0xff]
        %v958 = vld [vmem:[%s233 + $0x1628] sm:$0xff]
        %v959 = vld [vmem:[%s233 + $0x1630] sm:$0xff]
        %v960 = vld [vmem:[%s233 + $0x1638] sm:$0xff]
        %v961 = vld [vmem:[%s233 + $0x1640] sm:$0xff]
        %v962 = vld [vmem:[%s233 + $0x1648] sm:$0xff]
        %v963 = vld [vmem:[%s233 + $0x1650] sm:$0xff]
        %v964 = vld [vmem:[%s233 + $0x1658] sm:$0xff]
        %v965 = vld [vmem:[%s233 + $0x1660] sm:$0xff]
        %v966 = vld [vmem:[%s233 + $0x1668] sm:$0xff]
        %v967 = vld [vmem:[%s233 + $0x1670] sm:$0xff]
        %v968 = vld [vmem:[%s233 + $0x1678] sm:$0xff]
        %v969 = vld [vmem:[%s233 + $0x1680] sm:$0xff]
        %v970 = vld [vmem:[%s233 + $0x1688] sm:$0xff]
        %v971 = vld [vmem:[%s233 + $0x1690] sm:$0xff]
        %v972 = vld [vmem:[%s233 + $0x1698] sm:$0xff]
        %v973 = vld [vmem:[%s233 + $0x16a0] sm:$0xff]
        %v974 = vld [vmem:[%s233 + $0x16a8] sm:$0xff]
        %v975 = vld [vmem:[%s233 + $0x16b0] sm:$0xff]
        %v976 = vld [vmem:[%s233 + $0x16b8] sm:$0xff]
        %v977 = vld [vmem:[%s233 + $0x16c0] sm:$0xff]
        %v978 = vld [vmem:[%s233 + $0x16c8] sm:$0xff]
        %v979 = vld [vmem:[%s233 + $0x16d0] sm:$0xff]
        %v980 = vld [vmem:[%s233 + $0x16d8] sm:$0xff]
        %v981 = vld [vmem:[%s233 + $0x16e0] sm:$0xff]
        %v982 = vld [vmem:[%s233 + $0x16e8] sm:$0xff]
        %v983 = vld [vmem:[%s233 + $0x16f0] sm:$0xff]
        %v984 = vld [vmem:[%s233 + $0x16f8] sm:$0xff]
        %v985 = vld [vmem:[%s233 + $0x1700] sm:$0xff]
        %v986 = vld [vmem:[%s233 + $0x1708] sm:$0xff]
        %v987 = vld [vmem:[%s233 + $0x1710] sm:$0xff]
        %v988 = vld [vmem:[%s233 + $0x1718] sm:$0xff]
        %v989 = vld [vmem:[%s233 + $0x1720] sm:$0xff]
        %v990 = vld [vmem:[%s233 + $0x1728] sm:$0xff]
        %v991 = vld [vmem:[%s233 + $0x1730] sm:$0xff]
        %v992 = vld [vmem:[%s233 + $0x1738] sm:$0xff]
        %v993 = vld [vmem:[%s233 + $0x1740] sm:$0xff]
        %v994 = vld [vmem:[%s233 + $0x1748] sm:$0xff]
        %v995 = vld [vmem:[%s233 + $0x1750] sm:$0xff]
        %v996 = vld [vmem:[%s233 + $0x1758] sm:$0xff]
        %v997 = vld [vmem:[%s233 + $0x1760] sm:$0xff]
        %v998 = vld [vmem:[%s233 + $0x1768] sm:$0xff]
        %v999 = vld [vmem:[%s233 + $0x1770] sm:$0xff]
        %v1000 = vld [vmem:[%s233 + $0x1778] sm:$0xff]
        %v1001 = vld [vmem:[%s233 + $0x1780] sm:$0xff]
        %v1002 = vld [vmem:[%s233 + $0x1788] sm:$0xff]
        %v1003 = vld [vmem:[%s233 + $0x1790] sm:$0xff]
        %v1004 = vld [vmem:[%s233 + $0x1798] sm:$0xff]
        %v1005 = vld [vmem:[%s233 + $0x17a0] sm:$0xff]
        %v1006 = vld [vmem:[%s233 + $0x17a8] sm:$0xff]
        %v1007 = vld [vmem:[%s233 + $0x17b0] sm:$0xff]
        %v1008 = vld [vmem:[%s233 + $0x17b8] sm:$0xff]
        %v1009 = vld [vmem:[%s233 + $0x17c0] sm:$0xff]
        %v1010 = vld [vmem:[%s233 + $0x17c8] sm:$0xff]
        %v1011 = vld [vmem:[%s233 + $0x17d0] sm:$0xff]
        %v1012 = vld [vmem:[%s233 + $0x17d8] sm:$0xff]
        %v1013 = vld [vmem:[%s233 + $0x17e0] sm:$0xff]
        %v1014 = vld [vmem:[%s233 + $0x17e8] sm:$0xff]
        %v1015 = vld [vmem:[%s233 + $0x17f0] sm:$0xff]
        %v1016 = vld [vmem:[%s233 + $0x17f8] sm:$0xff]
        %v1017 = vld [vmem:[%s233 + $0x1800] sm:$0xff]
        %v1018 = vld [vmem:[%s233 + $0x1808] sm:$0xff]
        %v1019 = vld [vmem:[%s233 + $0x1810] sm:$0xff]
        %v1020 = vld [vmem:[%s233 + $0x1818] sm:$0xff]
        %v1021 = vld [vmem:[%s233 + $0x1820] sm:$0xff]
        %v1022 = vld [vmem:[%s233 + $0x1828] sm:$0xff]
        %v1023 = vld [vmem:[%s233 + $0x1830] sm:$0xff]
        %v1024 = vld [vmem:[%s233 + $0x1838] sm:$0xff]
        %v1025 = vld [vmem:[%s233 + $0x1840] sm:$0xff]
        %v1026 = vld [vmem:[%s233 + $0x1848] sm:$0xff]
        %v1027 = vld [vmem:[%s233 + $0x1850] sm:$0xff]
        %v1028 = vld [vmem:[%s233 + $0x1858] sm:$0xff]
        %v1029 = vld [vmem:[%s233 + $0x1860] sm:$0xff]
        %v1030 = vld [vmem:[%s233 + $0x1868] sm:$0xff]
        %v1031 = vld [vmem:[%s233 + $0x1870] sm:$0xff]
        %v1032 = vld [vmem:[%s233 + $0x1878] sm:$0xff]
        %v1033 = vld [vmem:[%s233 + $0x1880] sm:$0xff]
        %v1034 = vld [vmem:[%s233 + $0x1888] sm:$0xff]
        %v1035 = vld [vmem:[%s233 + $0x1890] sm:$0xff]
        %v1036 = vld [vmem:[%s233 + $0x1898] sm:$0xff]
        %v1037 = vld [vmem:[%s233 + $0x18a0] sm:$0xff]
        %v1038 = vld [vmem:[%s233 + $0x18a8] sm:$0xff]
        %v1039 = vld [vmem:[%s233 + $0x18b0] sm:$0xff]
        %v1040 = vld [vmem:[%s233 + $0x18b8] sm:$0xff]
        %v1041 = vld [vmem:[%s233 + $0x18c0] sm:$0xff]
        %v1042 = vld [vmem:[%s233 + $0x18c8] sm:$0xff]
        %v1043 = vld [vmem:[%s233 + $0x18d0] sm:$0xff]
        %v1044 = vld [vmem:[%s233 + $0x18d8] sm:$0xff]
        %v1045 = vld [vmem:[%s233 + $0x18e0] sm:$0xff]
        %v1046 = vld [vmem:[%s233 + $0x18e8] sm:$0xff]
        %v1047 = vld [vmem:[%s233 + $0x18f0] sm:$0xff]
        %v1048 = vld [vmem:[%s233 + $0x18f8] sm:$0xff]
        %v1049 = vld [vmem:[%s233 + $0x1900] sm:$0xff]
        %v1050 = vld [vmem:[%s233 + $0x1908] sm:$0xff]
        %v1051 = vld [vmem:[%s233 + $0x1910] sm:$0xff]
        %v1052 = vld [vmem:[%s233 + $0x1918] sm:$0xff]
        %v1053 = vld [vmem:[%s233 + $0x1920] sm:$0xff]
        %v1054 = vld [vmem:[%s233 + $0x1928] sm:$0xff]
        %v1055 = vld [vmem:[%s233 + $0x1930] sm:$0xff]
        %v1056 = vld [vmem:[%s233 + $0x1938] sm:$0xff]
        %v1057 = vld [vmem:[%s233 + $0x1940] sm:$0xff]
        %v1058 = vld [vmem:[%s233 + $0x1948] sm:$0xff]
        %v1059 = vld [vmem:[%s233 + $0x1950] sm:$0xff]
        %v1060 = vld [vmem:[%s233 + $0x1958] sm:$0xff]
        %v1061 = vld [vmem:[%s233 + $0x1960] sm:$0xff]
        %v1062 = vld [vmem:[%s233 + $0x1968] sm:$0xff]
        %v1063 = vld [vmem:[%s233 + $0x1970] sm:$0xff]
        %v1064 = vld [vmem:[%s233 + $0x1978] sm:$0xff]
        %v1065 = vld [vmem:[%s233 + $0x1980] sm:$0xff]
        %v1066 = vld [vmem:[%s233 + $0x1988] sm:$0xff]
        %v1067 = vld [vmem:[%s233 + $0x1990] sm:$0xff]
        %v1068 = vld [vmem:[%s233 + $0x1998] sm:$0xff]
        %v1069 = vld [vmem:[%s233 + $0x19a0] sm:$0xff]
        %v1070 = vld [vmem:[%s233 + $0x19a8] sm:$0xff]
        %v1071 = vld [vmem:[%s233 + $0x19b0] sm:$0xff]
        %v1072 = vld [vmem:[%s233 + $0x19b8] sm:$0xff]
        %v1073 = vld [vmem:[%s233 + $0x19c0] sm:$0xff]
        %v1074 = vld [vmem:[%s233 + $0x19c8] sm:$0xff]
        %v1075 = vld [vmem:[%s233 + $0x19d0] sm:$0xff]
        %v1076 = vld [vmem:[%s233 + $0x19d8] sm:$0xff]
        %v1077 = vld [vmem:[%s233 + $0x19e0] sm:$0xff]
        %v1078 = vld [vmem:[%s233 + $0x19e8] sm:$0xff]
        %v1079 = vld [vmem:[%s233 + $0x19f0] sm:$0xff]
        %v1080 = vld [vmem:[%s233 + $0x19f8] sm:$0xff]
        %v1081 = vld [vmem:[%s233 + $0x1a00] sm:$0xff]
        %v1082 = vld [vmem:[%s233 + $0x1a08] sm:$0xff]
        %v1083 = vld [vmem:[%s233 + $0x1a10] sm:$0xff]
        %v1084 = vld [vmem:[%s233 + $0x1a18] sm:$0xff]
        %v1085 = vld [vmem:[%s233 + $0x1a20] sm:$0xff]
        %v1086 = vld [vmem:[%s233 + $0x1a28] sm:$0xff]
        %v1087 = vld [vmem:[%s233 + $0x1a30] sm:$0xff]
        %v1088 = vld [vmem:[%s233 + $0x1a38] sm:$0xff]
        %v1089 = vld [vmem:[%s233 + $0x1a40] sm:$0xff]
        %v1090 = vld [vmem:[%s233 + $0x1a48] sm:$0xff]
        %v1091 = vld [vmem:[%s233 + $0x1a50] sm:$0xff]
        %v1092 = vld [vmem:[%s233 + $0x1a58] sm:$0xff]
        %v1093 = vld [vmem:[%s233 + $0x1a60] sm:$0xff]
        %v1094 = vld [vmem:[%s233 + $0x1a68] sm:$0xff]
        %v1095 = vld [vmem:[%s233 + $0x1a70] sm:$0xff]
        %v1096 = vld [vmem:[%s233 + $0x1a78] sm:$0xff]
        %v1097 = vld [vmem:[%s233 + $0x1a80] sm:$0xff]
        %v1098 = vld [vmem:[%s233 + $0x1a88] sm:$0xff]
        %v1099 = vld [vmem:[%s233 + $0x1a90] sm:$0xff]
        %v1100 = vld [vmem:[%s233 + $0x1a98] sm:$0xff]
        %v1101 = vld [vmem:[%s233 + $0x1aa0] sm:$0xff]
        %v1102 = vld [vmem:[%s233 + $0x1aa8] sm:$0xff]
        %v1103 = vld [vmem:[%s233 + $0x1ab0] sm:$0xff]
        %v1104 = vld [vmem:[%s233 + $0x1ab8] sm:$0xff]
        %v1105 = vld [vmem:[%s233 + $0x1ac0] sm:$0xff]
        %v1106 = vld [vmem:[%s233 + $0x1ac8] sm:$0xff]
        %v1107 = vld [vmem:[%s233 + $0x1ad0] sm:$0xff]
        %v1108 = vld [vmem:[%s233 + $0x1ad8] sm:$0xff]
        %v1109 = vld [vmem:[%s233 + $0x1ae0] sm:$0xff]
        %v1110 = vld [vmem:[%s233 + $0x1ae8] sm:$0xff]
        %v1111 = vld [vmem:[%s233 + $0x1af0] sm:$0xff]
        %v1112 = vld [vmem:[%s233 + $0x1af8] sm:$0xff]
        %v1113 = vld [vmem:[%s233 + $0x1b00] sm:$0xff]
        %v1114 = vld [vmem:[%s233 + $0x1b08] sm:$0xff]
        %v1115 = vld [vmem:[%s233 + $0x1b10] sm:$0xff]
        %v1116 = vld [vmem:[%s233 + $0x1b18] sm:$0xff]
        %v1117 = vld [vmem:[%s233 + $0x1b20] sm:$0xff]
        %v1118 = vld [vmem:[%s233 + $0x1b28] sm:$0xff]
        %v1119 = vld [vmem:[%s233 + $0x1b30] sm:$0xff]
        %v1120 = vld [vmem:[%s233 + $0x1b38] sm:$0xff]
        %v1121 = vld [vmem:[%s233 + $0x1b40] sm:$0xff]
        %v1122 = vld [vmem:[%s233 + $0x1b48] sm:$0xff]
        %v1123 = vld [vmem:[%s233 + $0x1b50] sm:$0xff]
        %v1124 = vld [vmem:[%s233 + $0x1b58] sm:$0xff]
        %v1125 = vld [vmem:[%s233 + $0x1b60] sm:$0xff]
        %v1126 = vld [vmem:[%s233 + $0x1b68] sm:$0xff]
        %v1127 = vld [vmem:[%s233 + $0x1b70] sm:$0xff]
        %v1128 = vld [vmem:[%s233 + $0x1b78] sm:$0xff]
        %v1129 = vld [vmem:[%s233 + $0x1b80] sm:$0xff]
        %v1130 = vld [vmem:[%s233 + $0x1b88] sm:$0xff]
        %v1131 = vld [vmem:[%s233 + $0x1b90] sm:$0xff]
        %v1132 = vld [vmem:[%s233 + $0x1b98] sm:$0xff]
        %v1133 = vld [vmem:[%s233 + $0x1ba0] sm:$0xff]
        %v1134 = vld [vmem:[%s233 + $0x1ba8] sm:$0xff]
        %v1135 = vld [vmem:[%s233 + $0x1bb0] sm:$0xff]
        %v1136 = vld [vmem:[%s233 + $0x1bb8] sm:$0xff]
        %v1137 = vld [vmem:[%s233 + $0x1bc0] sm:$0xff]
        %v1138 = vld [vmem:[%s233 + $0x1bc8] sm:$0xff]
        %v1139 = vld [vmem:[%s233 + $0x1bd0] sm:$0xff]
        %v1140 = vld [vmem:[%s233 + $0x1bd8] sm:$0xff]
        %v1141 = vld [vmem:[%s233 + $0x1be0] sm:$0xff]
        %v1142 = vld [vmem:[%s233 + $0x1be8] sm:$0xff]
        %v1143 = vld [vmem:[%s233 + $0x1bf0] sm:$0xff]
        %v1144 = vld [vmem:[%s233 + $0x1bf8] sm:$0xff]
        %v1145 = vld [vmem:[%s233 + $0x1c00] sm:$0xff]
        %v1146 = vld [vmem:[%s233 + $0x1c08] sm:$0xff]
        %v1147 = vld [vmem:[%s233 + $0x1c10] sm:$0xff]
        %v1148 = vld [vmem:[%s233 + $0x1c18] sm:$0xff]
        %v1149 = vld [vmem:[%s233 + $0x1c20] sm:$0xff]
        %v1150 = vld [vmem:[%s233 + $0x1c28] sm:$0xff]
        %v1151 = vld [vmem:[%s233 + $0x1c30] sm:$0xff]
        %v1152 = vld [vmem:[%s233 + $0x1c38] sm:$0xff]
        %v1153 = vld [vmem:[%s233 + $0x1c40] sm:$0xff]
        %v1154 = vld [vmem:[%s233 + $0x1c48] sm:$0xff]
        %v1155 = vld [vmem:[%s233 + $0x1c50] sm:$0xff]
        %v1156 = vld [vmem:[%s233 + $0x1c58] sm:$0xff]
        %v1157 = vld [vmem:[%s233 + $0x1c60] sm:$0xff]
        %v1158 = vld [vmem:[%s233 + $0x1c68] sm:$0xff]
        %v1159 = vld [vmem:[%s233 + $0x1c70] sm:$0xff]
        %v1160 = vld [vmem:[%s233 + $0x1c78] sm:$0xff]
        %v1161 = vld [vmem:[%s233 + $0x1c80] sm:$0xff]
        %v1162 = vld [vmem:[%s233 + $0x1c88] sm:$0xff]
        %v1163 = vld [vmem:[%s233 + $0x1c90] sm:$0xff]
        %v1164 = vld [vmem:[%s233 + $0x1c98] sm:$0xff]
        %v1165 = vld [vmem:[%s233 + $0x1ca0] sm:$0xff]
        %v1166 = vld [vmem:[%s233 + $0x1ca8] sm:$0xff]
        %v1167 = vld [vmem:[%s233 + $0x1cb0] sm:$0xff]
        %v1168 = vld [vmem:[%s233 + $0x1cb8] sm:$0xff]
        %v1169 = vld [vmem:[%s233 + $0x1cc0] sm:$0xff]
        %v1170 = vld [vmem:[%s233 + $0x1cc8] sm:$0xff]
        %v1171 = vld [vmem:[%s233 + $0x1cd0] sm:$0xff]
        %v1172 = vld [vmem:[%s233 + $0x1cd8] sm:$0xff]
        %v1173 = vld [vmem:[%s233 + $0x1ce0] sm:$0xff]
        %v1174 = vld [vmem:[%s233 + $0x1ce8] sm:$0xff]
        %v1175 = vld [vmem:[%s233 + $0x1cf0] sm:$0xff]
        %v1176 = vld [vmem:[%s233 + $0x1cf8] sm:$0xff]
        %v1177 = vld [vmem:[%s233 + $0x1d00] sm:$0xff]
        %v1178 = vld [vmem:[%s233 + $0x1d08] sm:$0xff]
        %v1179 = vld [vmem:[%s233 + $0x1d10] sm:$0xff]
        %v1180 = vld [vmem:[%s233 + $0x1d18] sm:$0xff]
        %v1181 = vld [vmem:[%s233 + $0x1d20] sm:$0xff]
        %v1182 = vld [vmem:[%s233 + $0x1d28] sm:$0xff]
        %v1183 = vld [vmem:[%s233 + $0x1d30] sm:$0xff]
        %v1184 = vld [vmem:[%s233 + $0x1d38] sm:$0xff]
        %v1185 = vld [vmem:[%s233 + $0x1d40] sm:$0xff]
        %v1186 = vld [vmem:[%s233 + $0x1d48] sm:$0xff]
        %v1187 = vld [vmem:[%s233 + $0x1d50] sm:$0xff]
        %v1188 = vld [vmem:[%s233 + $0x1d58] sm:$0xff]
        %v1189 = vld [vmem:[%s233 + $0x1d60] sm:$0xff]
        %v1190 = vld [vmem:[%s233 + $0x1d68] sm:$0xff]
        %v1191 = vld [vmem:[%s233 + $0x1d70] sm:$0xff]
        %v1192 = vld [vmem:[%s233 + $0x1d78] sm:$0xff]
        %v1193 = vld [vmem:[%s233 + $0x1d80] sm:$0xff]
        %v1194 = vld [vmem:[%s233 + $0x1d88] sm:$0xff]
        %v1195 = vld [vmem:[%s233 + $0x1d90] sm:$0xff]
        %v1196 = vld [vmem:[%s233 + $0x1d98] sm:$0xff]
        %v1197 = vld [vmem:[%s233 + $0x1da0] sm:$0xff]
        %v1198 = vld [vmem:[%s233 + $0x1da8] sm:$0xff]
        %v1199 = vld [vmem:[%s233 + $0x1db0] sm:$0xff]
        %v1200 = vld [vmem:[%s233 + $0x1db8] sm:$0xff]
        %v1201 = vld [vmem:[%s233 + $0x1dc0] sm:$0xff]
        %v1202 = vld [vmem:[%s233 + $0x1dc8] sm:$0xff]
        %v1203 = vld [vmem:[%s233 + $0x1dd0] sm:$0xff]
        %v1204 = vld [vmem:[%s233 + $0x1dd8] sm:$0xff]
        %v1205 = vld [vmem:[%s233 + $0x1de0] sm:$0xff]
        %v1206 = vld [vmem:[%s233 + $0x1de8] sm:$0xff]
        %v1207 = vld [vmem:[%s233 + $0x1df0] sm:$0xff]
        %v1208 = vld [vmem:[%s233 + $0x1df8] sm:$0xff]
        %v1209 = vld [vmem:[%s233 + $0x1e00] sm:$0xff]
        %v1210 = vld [vmem:[%s233 + $0x1e08] sm:$0xff]
        %v1211 = vld [vmem:[%s233 + $0x1e10] sm:$0xff]
        %v1212 = vld [vmem:[%s233 + $0x1e18] sm:$0xff]
        %v1213 = vld [vmem:[%s233 + $0x1e20] sm:$0xff]
        %v1214 = vld [vmem:[%s233 + $0x1e28] sm:$0xff]
        %v1215 = vld [vmem:[%s233 + $0x1e30] sm:$0xff]
        %v1216 = vld [vmem:[%s233 + $0x1e38] sm:$0xff]
        %v1217 = vld [vmem:[%s233 + $0x1e40] sm:$0xff]
        %v1218 = vld [vmem:[%s233 + $0x1e48] sm:$0xff]
        %v1219 = vld [vmem:[%s233 + $0x1e50] sm:$0xff]
        %v1220 = vld [vmem:[%s233 + $0x1e58] sm:$0xff]
        %v1221 = vld [vmem:[%s233 + $0x1e60] sm:$0xff]
        %v1222 = vld [vmem:[%s233 + $0x1e68] sm:$0xff]
        %v1223 = vld [vmem:[%s233 + $0x1e70] sm:$0xff]
        %v1224 = vld [vmem:[%s233 + $0x1e78] sm:$0xff]
        %v1225 = vld [vmem:[%s233 + $0x1e80] sm:$0xff]
        %v1226 = vld [vmem:[%s233 + $0x1e88] sm:$0xff]
        %v1227 = vld [vmem:[%s233 + $0x1e90] sm:$0xff]
        %v1228 = vld [vmem:[%s233 + $0x1e98] sm:$0xff]
        %v1229 = vld [vmem:[%s233 + $0x1ea0] sm:$0xff]
        %v1230 = vld [vmem:[%s233 + $0x1ea8] sm:$0xff]
        %v1231 = vld [vmem:[%s233 + $0x1eb0] sm:$0xff]
        %v1232 = vld [vmem:[%s233 + $0x1eb8] sm:$0xff]
        %v1233 = vld [vmem:[%s233 + $0x1ec0] sm:$0xff]
        %v1234 = vld [vmem:[%s233 + $0x1ec8] sm:$0xff]
        %v1235 = vld [vmem:[%s233 + $0x1ed0] sm:$0xff]
        %v1236 = vld [vmem:[%s233 + $0x1ed8] sm:$0xff]
        %v1237 = vld [vmem:[%s233 + $0x1ee0] sm:$0xff]
        %v1238 = vld [vmem:[%s233 + $0x1ee8] sm:$0xff]
        %v1239 = vld [vmem:[%s233 + $0x1ef0] sm:$0xff]
        %v1240 = vld [vmem:[%s233 + $0x1ef8] sm:$0xff]
        %v1241 = vld [vmem:[%s233 + $0x1f00] sm:$0xff]
        %v1242 = vld [vmem:[%s233 + $0x1f08] sm:$0xff]
        %v1243 = vld [vmem:[%s233 + $0x1f10] sm:$0xff]
        %v1244 = vld [vmem:[%s233 + $0x1f18] sm:$0xff]
        %v1245 = vld [vmem:[%s233 + $0x1f20] sm:$0xff]
        %v1246 = vld [vmem:[%s233 + $0x1f28] sm:$0xff]
        %v1247 = vld [vmem:[%s233 + $0x1f30] sm:$0xff]
        %v1248 = vld [vmem:[%s233 + $0x1f38] sm:$0xff]
        %v1249 = vld [vmem:[%s233 + $0x1f40] sm:$0xff]
        %v1250 = vld [vmem:[%s233 + $0x1f48] sm:$0xff]
        %v1251 = vld [vmem:[%s233 + $0x1f50] sm:$0xff]
        %v1252 = vld [vmem:[%s233 + $0x1f58] sm:$0xff]
        %v1253 = vld [vmem:[%s233 + $0x1f60] sm:$0xff]
        %v1254 = vld [vmem:[%s233 + $0x1f68] sm:$0xff]
        %v1255 = vld [vmem:[%s233 + $0x1f70] sm:$0xff]
        %v1256 = vld [vmem:[%s233 + $0x1f78] sm:$0xff]
        %v1257 = vld [vmem:[%s233 + $0x1f80] sm:$0xff]
        %v1258 = vld [vmem:[%s233 + $0x1f88] sm:$0xff]
        %v1259 = vld [vmem:[%s233 + $0x1f90] sm:$0xff]
        %v1260 = vld [vmem:[%s233 + $0x1f98] sm:$0xff]
        %v1261 = vld [vmem:[%s233 + $0x1fa0] sm:$0xff]
        %v1262 = vld [vmem:[%s233 + $0x1fa8] sm:$0xff]
        %v1263 = vld [vmem:[%s233 + $0x1fb0] sm:$0xff]
        %v1264 = vld [vmem:[%s233 + $0x1fb8] sm:$0xff]
        %v1265 = vld [vmem:[%s233 + $0x1fc0] sm:$0xff]
        %v1266 = vld [vmem:[%s233 + $0x1fc8] sm:$0xff]
        %v1267 = vld [vmem:[%s233 + $0x1fd0] sm:$0xff]
        %v1268 = vld [vmem:[%s233 + $0x1fd8] sm:$0xff]
        %v1269 = vld [vmem:[%s233 + $0x1fe0] sm:$0xff]
        %v1270 = vld [vmem:[%s233 + $0x1fe8] sm:$0xff]
        %v1271 = vld [vmem:[%s233 + $0x1ff0] sm:$0xff]
        %v1272 = vld [vmem:[%s233 + $0x1ff8] sm:$0xff]
        %1274 = vst [vmem:[#allocation1] ss:$9 sm:$0xff] %v241
        %v1275 = vld [vmem:[#allocation1] sm:$0xff]
        %v1276 = vld [vmem:[#allocation1 + $0x9] sm:$0xff]
        %v1277 = vld [vmem:[#allocation1 + $0x12] sm:$0xff]
        %v1278 = vld [vmem:[#allocation1 + $0x1b] sm:$0xff]
        %v1279 = vld [vmem:[#allocation1 + $0x24] sm:$0xff]
        %v1280 = vld [vmem:[#allocation1 + $0x2d] sm:$0xff]
        %v1281 = vld [vmem:[#allocation1 + $0x36] sm:$0xff]
        %v1282 = vld [vmem:[#allocation1 + $0x3f] sm:$0xff]
        %1284 = vst [vmem:[#allocation1] ss:$9 sm:$0xff] %v242
        %v1285 = vld [vmem:[#allocation1] sm:$0xff]
        %v1286 = vld [vmem:[#allocation1 + $0x9] sm:$0xff]
        %v1287 = vld [vmem:[#allocation1 + $0x12] sm:$0xff]
        %v1288 = vld [vmem:[#allocation1 + $0x1b] sm:$0xff]
        %v1289 = vld [vmem:[#allocation1 + $0x24] sm:$0xff]
        %v1290 = vld [vmem:[#allocation1 + $0x2d] sm:$0xff]
        %v1291 = vld [vmem:[#allocation1 + $0x36] sm:$0xff]
        %v1292 = vld [vmem:[#allocation1 + $0x3f] sm:$0xff]
        %1294 = vst [vmem:[#allocation1] ss:$9 sm:$0xff] %v243
        %v1295 = vld [vmem:[#allocation1] sm:$0xff]
        %v1296 = vld [vmem:[#allocation1 + $0x9] sm:$0xff]
        %v1297 = vld [vmem:[#allocation1 + $0x12] sm:$0xff]
        %v1298 = vld [vmem:[#allocation1 + $0x1b] sm:$0xff]
        %v1299 = vld [vmem:[#allocation1 + $0x24] sm:$0xff]
        %v1300 = vld [vmem:[#allocation1 + $0x2d] sm:$0xff]
        %v1301 = vld [vmem:[#allocation1 + $0x36] sm:$0xff]
        %v1302 = vld [vmem:[#allocation1 + $0x3f] sm:$0xff]
        %1304 = vst [vmem:[#allocation1] ss:$9 sm:$0xff] %v244
        %v1305 = vld [vmem:[#allocation1] sm:$0xff]
        %v1306 = vld [vmem:[#allocation1 + $0x9] sm:$0xff]
        %v1307 = vld [vmem:[#allocation1 + $0x12] sm:$0xff]
        %v1308 = vld [vmem:[#allocation1 + $0x1b] sm:$0xff]
        %v1309 = vld [vmem:[#allocation1 + $0x24] sm:$0xff]
        %v1310 = vld [vmem:[#allocation1 + $0x2d] sm:$0xff]
        %v1311 = vld [vmem:[#allocation1 + $0x36] sm:$0xff]
        %v1312 = vld [vmem:[#allocation1 + $0x3f] sm:$0xff]
        %1314 = vst [vmem:[#allocation1] ss:$9 sm:$0xff] %v245
        %v1315 = vld [vmem:[#allocation1] sm:$0xff]
        %v1316 = vld [vmem:[#allocation1 + $0x9] sm:$0xff]
        %v1317 = vld [vmem:[#allocation1 + $0x12] sm:$0xff]
        %v1318 = vld [vmem:[#allocation1 + $0x1b] sm:$0xff]
        %v1319 = vld [vmem:[#allocation1 + $0x24] sm:$0xff]
        %v1320 = vld [vmem:[#allocation1 + $0x2d] sm:$0xff]
        %v1321 = vld [vmem:[#allocation1 + $0x36] sm:$0xff]
        %v1322 = vld [vmem:[#allocation1 + $0x3f] sm:$0xff]
        %1324 = vst [vmem:[#allocation1] ss:$9 sm:$0xff] %v246
        %v1325 = vld [vmem:[#allocation1] sm:$0xff]
        %v1326 = vld [vmem:[#allocation1 + $0x9] sm:$0xff]
        %v1327 = vld [vmem:[#allocation1 + $0x12] sm:$0xff]
        %v1328 = vld [vmem:[#allocation1 + $0x1b] sm:$0xff]
        %v1329 = vld [vmem:[#allocation1 + $0x24] sm:$0xff]
        %v1330 = vld [vmem:[#allocation1 + $0x2d] sm:$0xff]
        %v1331 = vld [vmem:[#allocation1 + $0x36] sm:$0xff]
        %v1332 = vld [vmem:[#allocation1 + $0x3f] sm:$0xff]
        %1334 = vst [vmem:[#allocation1] ss:$9 sm:$0xff] %v247
        %v1335 = vld [vmem:[#allocation1] sm:$0xff]
        %v1336 = vld [vmem:[#allocation1 + $0x9] sm:$0xff]
        %v1337 = vld [vmem:[#allocation1 + $0x12] sm:$0xff]
        %v1338 = vld [vmem:[#allocation1 + $0x1b] sm:$0xff]
        %v1339 = vld [vmem:[#allocation1 + $0x24] sm:$0xff]
        %v1340 = vld [vmem:[#allocation1 + $0x2d] sm:$0xff]
        %v1341 = vld [vmem:[#allocation1 + $0x36] sm:$0xff]
        %v1342 = vld [vmem:[#allocation1 + $0x3f] sm:$0xff]
        %1344 = vst [vmem:[#allocation1] ss:$9 sm:$0xff] %v248
        %v1345 = vld [vmem:[#allocation1] sm:$0xff]
        %v1346 = vld [vmem:[#allocation1 + $0x9] sm:$0xff]
        %v1347 = vld [vmem:[#allocation1 + $0x12] sm:$0xff]
        %v1348 = vld [vmem:[#allocation1 + $0x1b] sm:$0xff]
        %v1349 = vld [vmem:[#allocation1 + $0x24] sm:$0xff]
        %v1350 = vld [vmem:[#allocation1 + $0x2d] sm:$0xff]
        %v1351 = vld [vmem:[#allocation1 + $0x36] sm:$0xff]
        %v1352 = vld [vmem:[#allocation1 + $0x3f] sm:$0xff]
        %v2441 = vunpack.c.l.b16 %v249
        %v2442 = vunpack.c.h.b16 %v249
        %v2443 = vunpack.c.l.b16 %v250
        %v2444 = vunpack.c.h.b16 %v250
        %v2445 = vunpack.c.l.b16 %v251
        %v2446 = vunpack.c.h.b16 %v251
        %v2447 = vunpack.c.l.b16 %v252
        %v2448 = vunpack.c.h.b16 %v252
        %v2449 = vunpack.c.l.b16 %v253
        %v2450 = vunpack.c.h.b16 %v253
        %v2451 = vunpack.c.l.b16 %v254
        %v2452 = vunpack.c.h.b16 %v254
        %v2453 = vunpack.c.l.b16 %v255
        %v2454 = vunpack.c.h.b16 %v255
        %v2455 = vunpack.c.l.b16 %v256
        %v2456 = vunpack.c.h.b16 %v256
        %v2457 = vunpack.c.l.b16 %v257
        %v2458 = vunpack.c.h.b16 %v257
        %v2459 = vunpack.c.l.b16 %v258
        %v2460 = vunpack.c.h.b16 %v258
        %v2461 = vunpack.c.l.b16 %v259
        %v2462 = vunpack.c.h.b16 %v259
        %v2463 = vunpack.c.l.b16 %v260
        %v2464 = vunpack.c.h.b16 %v260
        %v2465 = vunpack.c.l.b16 %v261
        %v2466 = vunpack.c.h.b16 %v261
        %v2467 = vunpack.c.l.b16 %v262
        %v2468 = vunpack.c.h.b16 %v262
        %v2469 = vunpack.c.l.b16 %v263
        %v2470 = vunpack.c.h.b16 %v263
        %v2471 = vunpack.c.l.b16 %v264
        %v2472 = vunpack.c.h.b16 %v264
        %v2473 = vunpack.c.l.b16 %v265
        %v2474 = vunpack.c.h.b16 %v265
        %v2475 = vunpack.c.l.b16 %v266
        %v2476 = vunpack.c.h.b16 %v266
        %v2477 = vunpack.c.l.b16 %v267
        %v2478 = vunpack.c.h.b16 %v267
        %v2479 = vunpack.c.l.b16 %v268
        %v2480 = vunpack.c.h.b16 %v268
        %v2481 = vunpack.c.l.b16 %v269
        %v2482 = vunpack.c.h.b16 %v269
        %v2483 = vunpack.c.l.b16 %v270
        %v2484 = vunpack.c.h.b16 %v270
        %v2485 = vunpack.c.l.b16 %v271
        %v2486 = vunpack.c.h.b16 %v271
        %v2487 = vunpack.c.l.b16 %v272
        %v2488 = vunpack.c.h.b16 %v272
        %v2489 = vunpack.c.l.b16 %v273
        %v2490 = vunpack.c.h.b16 %v273
        %v2491 = vunpack.c.l.b16 %v274
        %v2492 = vunpack.c.h.b16 %v274
        %v2493 = vunpack.c.l.b16 %v275
        %v2494 = vunpack.c.h.b16 %v275
        %v2495 = vunpack.c.l.b16 %v276
        %v2496 = vunpack.c.h.b16 %v276
        %v2497 = vunpack.c.l.b16 %v277
        %v2498 = vunpack.c.h.b16 %v277
        %v2499 = vunpack.c.l.b16 %v278
        %v2500 = vunpack.c.h.b16 %v278
        %v2501 = vunpack.c.l.b16 %v279
        %v2502 = vunpack.c.h.b16 %v279
        %v2503 = vunpack.c.l.b16 %v280
        %v2504 = vunpack.c.h.b16 %v280
        %v2505 = vunpack.c.l.b16 %v281
        %v2506 = vunpack.c.h.b16 %v281
        %v2507 = vunpack.c.l.b16 %v282
        %v2508 = vunpack.c.h.b16 %v282
        %v2509 = vunpack.c.l.b16 %v283
        %v2510 = vunpack.c.h.b16 %v283
        %v2511 = vunpack.c.l.b16 %v284
        %v2512 = vunpack.c.h.b16 %v284
        %v2513 = vunpack.c.l.b16 %v285
        %v2514 = vunpack.c.h.b16 %v285
        %v2515 = vunpack.c.l.b16 %v286
        %v2516 = vunpack.c.h.b16 %v286
        %v2517 = vunpack.c.l.b16 %v287
        %v2518 = vunpack.c.h.b16 %v287
        %v2519 = vunpack.c.l.b16 %v288
        %v2520 = vunpack.c.h.b16 %v288
        %v2521 = vunpack.c.l.b16 %v289
        %v2522 = vunpack.c.h.b16 %v289
        %v2523 = vunpack.c.l.b16 %v290
        %v2524 = vunpack.c.h.b16 %v290
        %v2525 = vunpack.c.l.b16 %v291
        %v2526 = vunpack.c.h.b16 %v291
        %v2527 = vunpack.c.l.b16 %v292
        %v2528 = vunpack.c.h.b16 %v292
        %v2529 = vunpack.c.l.b16 %v293
        %v2530 = vunpack.c.h.b16 %v293
        %v2531 = vunpack.c.l.b16 %v294
        %v2532 = vunpack.c.h.b16 %v294
        %v2533 = vunpack.c.l.b16 %v295
        %v2534 = vunpack.c.h.b16 %v295
        %v2535 = vunpack.c.l.b16 %v296
        %v2536 = vunpack.c.h.b16 %v296
        %v2537 = vunpack.c.l.b16 %v297
        %v2538 = vunpack.c.h.b16 %v297
        %v2539 = vunpack.c.l.b16 %v298
        %v2540 = vunpack.c.h.b16 %v298
        %v2541 = vunpack.c.l.b16 %v299
        %v2542 = vunpack.c.h.b16 %v299
        %v2543 = vunpack.c.l.b16 %v300
        %v2544 = vunpack.c.h.b16 %v300
        %v2545 = vunpack.c.l.b16 %v301
        %v2546 = vunpack.c.h.b16 %v301
        %v2547 = vunpack.c.l.b16 %v302
        %v2548 = vunpack.c.h.b16 %v302
        %v2549 = vunpack.c.l.b16 %v303
        %v2550 = vunpack.c.h.b16 %v303
        %v2551 = vunpack.c.l.b16 %v304
        %v2552 = vunpack.c.h.b16 %v304
        %v2553 = vunpack.c.l.b16 %v305
        %v2554 = vunpack.c.h.b16 %v305
        %v2555 = vunpack.c.l.b16 %v306
        %v2556 = vunpack.c.h.b16 %v306
        %v2557 = vunpack.c.l.b16 %v307
        %v2558 = vunpack.c.h.b16 %v307
        %v2559 = vunpack.c.l.b16 %v308
        %v2560 = vunpack.c.h.b16 %v308
        %v2561 = vunpack.c.l.b16 %v309
        %v2562 = vunpack.c.h.b16 %v309
        %v2563 = vunpack.c.l.b16 %v310
        %v2564 = vunpack.c.h.b16 %v310
        %v2565 = vunpack.c.l.b16 %v311
        %v2566 = vunpack.c.h.b16 %v311
        %v2567 = vunpack.c.l.b16 %v312
        %v2568 = vunpack.c.h.b16 %v312
        %v2569 = vunpack.c.l.b16 %v313
        %v2570 = vunpack.c.h.b16 %v313
        %v2571 = vunpack.c.l.b16 %v314
        %v2572 = vunpack.c.h.b16 %v314
        %v2573 = vunpack.c.l.b16 %v315
        %v2574 = vunpack.c.h.b16 %v315
        %v2575 = vunpack.c.l.b16 %v316
        %v2576 = vunpack.c.h.b16 %v316
        %v2577 = vunpack.c.l.b16 %v317
        %v2578 = vunpack.c.h.b16 %v317
        %v2579 = vunpack.c.l.b16 %v318
        %v2580 = vunpack.c.h.b16 %v318
        %v2581 = vunpack.c.l.b16 %v319
        %v2582 = vunpack.c.h.b16 %v319
        %v2583 = vunpack.c.l.b16 %v320
        %v2584 = vunpack.c.h.b16 %v320
        %v2585 = vunpack.c.l.b16 %v321
        %v2586 = vunpack.c.h.b16 %v321
        %v2587 = vunpack.c.l.b16 %v322
        %v2588 = vunpack.c.h.b16 %v322
        %v2589 = vunpack.c.l.b16 %v323
        %v2590 = vunpack.c.h.b16 %v323
        %v2591 = vunpack.c.l.b16 %v324
        %v2592 = vunpack.c.h.b16 %v324
        %v2593 = vunpack.c.l.b16 %v325
        %v2594 = vunpack.c.h.b16 %v325
        %v2595 = vunpack.c.l.b16 %v326
        %v2596 = vunpack.c.h.b16 %v326
        %v2597 = vunpack.c.l.b16 %v327
        %v2598 = vunpack.c.h.b16 %v327
        %v2599 = vunpack.c.l.b16 %v328
        %v2600 = vunpack.c.h.b16 %v328
        %v2601 = vunpack.c.l.b16 %v329
        %v2602 = vunpack.c.h.b16 %v329
        %v2603 = vunpack.c.l.b16 %v330
        %v2604 = vunpack.c.h.b16 %v330
        %v2605 = vunpack.c.l.b16 %v331
        %v2606 = vunpack.c.h.b16 %v331
        %v2607 = vunpack.c.l.b16 %v332
        %v2608 = vunpack.c.h.b16 %v332
        %v2609 = vunpack.c.l.b16 %v333
        %v2610 = vunpack.c.h.b16 %v333
        %v2611 = vunpack.c.l.b16 %v334
        %v2612 = vunpack.c.h.b16 %v334
        %v2613 = vunpack.c.l.b16 %v335
        %v2614 = vunpack.c.h.b16 %v335
        %v2615 = vunpack.c.l.b16 %v336
        %v2616 = vunpack.c.h.b16 %v336
        %v2617 = vunpack.c.l.b16 %v337
        %v2618 = vunpack.c.h.b16 %v337
        %v2619 = vunpack.c.l.b16 %v338
        %v2620 = vunpack.c.h.b16 %v338
        %v2621 = vunpack.c.l.b16 %v339
        %v2622 = vunpack.c.h.b16 %v339
        %v2623 = vunpack.c.l.b16 %v340
        %v2624 = vunpack.c.h.b16 %v340
        %v2625 = vunpack.c.l.b16 %v341
        %v2626 = vunpack.c.h.b16 %v341
        %v2627 = vunpack.c.l.b16 %v342
        %v2628 = vunpack.c.h.b16 %v342
        %v2629 = vunpack.c.l.b16 %v343
        %v2630 = vunpack.c.h.b16 %v343
        %v2631 = vunpack.c.l.b16 %v344
        %v2632 = vunpack.c.h.b16 %v344
        %v2633 = vunpack.c.l.b16 %v345
        %v2634 = vunpack.c.h.b16 %v345
        %v2635 = vunpack.c.l.b16 %v346
        %v2636 = vunpack.c.h.b16 %v346
        %v2637 = vunpack.c.l.b16 %v347
        %v2638 = vunpack.c.h.b16 %v347
        %v2639 = vunpack.c.l.b16 %v348
        %v2640 = vunpack.c.h.b16 %v348
        %v2641 = vunpack.c.l.b16 %v349
        %v2642 = vunpack.c.h.b16 %v349
        %v2643 = vunpack.c.l.b16 %v350
        %v2644 = vunpack.c.h.b16 %v350
        %v2645 = vunpack.c.l.b16 %v351
        %v2646 = vunpack.c.h.b16 %v351
        %v2647 = vunpack.c.l.b16 %v352
        %v2648 = vunpack.c.h.b16 %v352
        %v2649 = vunpack.c.l.b16 %v353
        %v2650 = vunpack.c.h.b16 %v353
        %v2651 = vunpack.c.l.b16 %v354
        %v2652 = vunpack.c.h.b16 %v354
        %v2653 = vunpack.c.l.b16 %v355
        %v2654 = vunpack.c.h.b16 %v355
        %v2655 = vunpack.c.l.b16 %v356
        %v2656 = vunpack.c.h.b16 %v356
        %v2657 = vunpack.c.l.b16 %v357
        %v2658 = vunpack.c.h.b16 %v357
        %v2659 = vunpack.c.l.b16 %v358
        %v2660 = vunpack.c.h.b16 %v358
        %v2661 = vunpack.c.l.b16 %v359
        %v2662 = vunpack.c.h.b16 %v359
        %v2663 = vunpack.c.l.b16 %v360
        %v2664 = vunpack.c.h.b16 %v360
        %v2665 = vunpack.c.l.b16 %v361
        %v2666 = vunpack.c.h.b16 %v361
        %v2667 = vunpack.c.l.b16 %v362
        %v2668 = vunpack.c.h.b16 %v362
        %v2669 = vunpack.c.l.b16 %v363
        %v2670 = vunpack.c.h.b16 %v363
        %v2671 = vunpack.c.l.b16 %v364
        %v2672 = vunpack.c.h.b16 %v364
        %v2673 = vunpack.c.l.b16 %v365
        %v2674 = vunpack.c.h.b16 %v365
        %v2675 = vunpack.c.l.b16 %v366
        %v2676 = vunpack.c.h.b16 %v366
        %v2677 = vunpack.c.l.b16 %v367
        %v2678 = vunpack.c.h.b16 %v367
        %v2679 = vunpack.c.l.b16 %v368
        %v2680 = vunpack.c.h.b16 %v368
        %v2681 = vunpack.c.l.b16 %v369
        %v2682 = vunpack.c.h.b16 %v369
        %v2683 = vunpack.c.l.b16 %v370
        %v2684 = vunpack.c.h.b16 %v370
        %v2685 = vunpack.c.l.b16 %v371
        %v2686 = vunpack.c.h.b16 %v371
        %v2687 = vunpack.c.l.b16 %v372
        %v2688 = vunpack.c.h.b16 %v372
        %v2689 = vunpack.c.l.b16 %v373
        %v2690 = vunpack.c.h.b16 %v373
        %v2691 = vunpack.c.l.b16 %v374
        %v2692 = vunpack.c.h.b16 %v374
        %v2693 = vunpack.c.l.b16 %v375
        %v2694 = vunpack.c.h.b16 %v375
        %v2695 = vunpack.c.l.b16 %v376
        %v2696 = vunpack.c.h.b16 %v376
        %v2697 = vunpack.c.l.b16 %v377
        %v2698 = vunpack.c.h.b16 %v377
        %v2699 = vunpack.c.l.b16 %v378
        %v2700 = vunpack.c.h.b16 %v378
        %v2701 = vunpack.c.l.b16 %v379
        %v2702 = vunpack.c.h.b16 %v379
        %v2703 = vunpack.c.l.b16 %v380
        %v2704 = vunpack.c.h.b16 %v380
        %v2705 = vunpack.c.l.b16 %v381
        %v2706 = vunpack.c.h.b16 %v381
        %v2707 = vunpack.c.l.b16 %v382
        %v2708 = vunpack.c.h.b16 %v382
        %v2709 = vunpack.c.l.b16 %v383
        %v2710 = vunpack.c.h.b16 %v383
        %v2711 = vunpack.c.l.b16 %v384
        %v2712 = vunpack.c.h.b16 %v384
        %v2713 = vunpack.c.l.b16 %v385
        %v2714 = vunpack.c.h.b16 %v385
        %v2715 = vunpack.c.l.b16 %v386
        %v2716 = vunpack.c.h.b16 %v386
        %v2717 = vunpack.c.l.b16 %v387
        %v2718 = vunpack.c.h.b16 %v387
        %v2719 = vunpack.c.l.b16 %v388
        %v2720 = vunpack.c.h.b16 %v388
        %v2721 = vunpack.c.l.b16 %v389
        %v2722 = vunpack.c.h.b16 %v389
        %v2723 = vunpack.c.l.b16 %v390
        %v2724 = vunpack.c.h.b16 %v390
        %v2725 = vunpack.c.l.b16 %v391
        %v2726 = vunpack.c.h.b16 %v391
        %v2727 = vunpack.c.l.b16 %v392
        %v2728 = vunpack.c.h.b16 %v392
        %v2729 = vunpack.c.l.b16 %v393
        %v2730 = vunpack.c.h.b16 %v393
        %v2731 = vunpack.c.l.b16 %v394
        %v2732 = vunpack.c.h.b16 %v394
        %v2733 = vunpack.c.l.b16 %v395
        %v2734 = vunpack.c.h.b16 %v395
        %v2735 = vunpack.c.l.b16 %v396
        %v2736 = vunpack.c.h.b16 %v396
        %v2737 = vunpack.c.l.b16 %v397
        %v2738 = vunpack.c.h.b16 %v397
        %v2739 = vunpack.c.l.b16 %v398
        %v2740 = vunpack.c.h.b16 %v398
        %v2741 = vunpack.c.l.b16 %v399
        %v2742 = vunpack.c.h.b16 %v399
        %v2743 = vunpack.c.l.b16 %v400
        %v2744 = vunpack.c.h.b16 %v400
        %v2745 = vunpack.c.l.b16 %v401
        %v2746 = vunpack.c.h.b16 %v401
        %v2747 = vunpack.c.l.b16 %v402
        %v2748 = vunpack.c.h.b16 %v402
        %v2749 = vunpack.c.l.b16 %v403
        %v2750 = vunpack.c.h.b16 %v403
        %v2751 = vunpack.c.l.b16 %v404
        %v2752 = vunpack.c.h.b16 %v404
        %v2753 = vunpack.c.l.b16 %v405
        %v2754 = vunpack.c.h.b16 %v405
        %v2755 = vunpack.c.l.b16 %v406
        %v2756 = vunpack.c.h.b16 %v406
        %v2757 = vunpack.c.l.b16 %v407
        %v2758 = vunpack.c.h.b16 %v407
        %v2759 = vunpack.c.l.b16 %v408
        %v2760 = vunpack.c.h.b16 %v408
        %v2761 = vunpack.c.l.b16 %v409
        %v2762 = vunpack.c.h.b16 %v409
        %v2763 = vunpack.c.l.b16 %v410
        %v2764 = vunpack.c.h.b16 %v410
        %v2765 = vunpack.c.l.b16 %v411
        %v2766 = vunpack.c.h.b16 %v411
        %v2767 = vunpack.c.l.b16 %v412
        %v2768 = vunpack.c.h.b16 %v412
        %v2769 = vunpack.c.l.b16 %v413
        %v2770 = vunpack.c.h.b16 %v413
        %v2771 = vunpack.c.l.b16 %v414
        %v2772 = vunpack.c.h.b16 %v414
        %v2773 = vunpack.c.l.b16 %v415
        %v2774 = vunpack.c.h.b16 %v415
        %v2775 = vunpack.c.l.b16 %v416
        %v2776 = vunpack.c.h.b16 %v416
        %v2777 = vunpack.c.l.b16 %v417
        %v2778 = vunpack.c.h.b16 %v417
        %v2779 = vunpack.c.l.b16 %v418
        %v2780 = vunpack.c.h.b16 %v418
        %v2781 = vunpack.c.l.b16 %v419
        %v2782 = vunpack.c.h.b16 %v419
        %v2783 = vunpack.c.l.b16 %v420
        %v2784 = vunpack.c.h.b16 %v420
        %v2785 = vunpack.c.l.b16 %v421
        %v2786 = vunpack.c.h.b16 %v421
        %v2787 = vunpack.c.l.b16 %v422
        %v2788 = vunpack.c.h.b16 %v422
        %v2789 = vunpack.c.l.b16 %v423
        %v2790 = vunpack.c.h.b16 %v423
        %v2791 = vunpack.c.l.b16 %v424
        %v2792 = vunpack.c.h.b16 %v424
        %v2793 = vunpack.c.l.b16 %v425
        %v2794 = vunpack.c.h.b16 %v425
        %v2795 = vunpack.c.l.b16 %v426
        %v2796 = vunpack.c.h.b16 %v426
        %v2797 = vunpack.c.l.b16 %v427
        %v2798 = vunpack.c.h.b16 %v427
        %v2799 = vunpack.c.l.b16 %v428
        %v2800 = vunpack.c.h.b16 %v428
        %v2801 = vunpack.c.l.b16 %v429
        %v2802 = vunpack.c.h.b16 %v429
        %v2803 = vunpack.c.l.b16 %v430
        %v2804 = vunpack.c.h.b16 %v430
        %v2805 = vunpack.c.l.b16 %v431
        %v2806 = vunpack.c.h.b16 %v431
        %v2807 = vunpack.c.l.b16 %v432
        %v2808 = vunpack.c.h.b16 %v432
        %v2809 = vunpack.c.l.b16 %v433
        %v2810 = vunpack.c.h.b16 %v433
        %v2811 = vunpack.c.l.b16 %v434
        %v2812 = vunpack.c.h.b16 %v434
        %v2813 = vunpack.c.l.b16 %v435
        %v2814 = vunpack.c.h.b16 %v435
        %v2815 = vunpack.c.l.b16 %v436
        %v2816 = vunpack.c.h.b16 %v436
        %v2817 = vunpack.c.l.b16 %v437
        %v2818 = vunpack.c.h.b16 %v437
        %v2819 = vunpack.c.l.b16 %v438
        %v2820 = vunpack.c.h.b16 %v438
        %v2821 = vunpack.c.l.b16 %v439
        %v2822 = vunpack.c.h.b16 %v439
        %v2823 = vunpack.c.l.b16 %v440
        %v2824 = vunpack.c.h.b16 %v440
        %v2825 = vunpack.c.l.b16 %v441
        %v2826 = vunpack.c.h.b16 %v441
        %v2827 = vunpack.c.l.b16 %v442
        %v2828 = vunpack.c.h.b16 %v442
        %v2829 = vunpack.c.l.b16 %v443
        %v2830 = vunpack.c.h.b16 %v443
        %v2831 = vunpack.c.l.b16 %v444
        %v2832 = vunpack.c.h.b16 %v444
        %v2833 = vunpack.c.l.b16 %v445
        %v2834 = vunpack.c.h.b16 %v445
        %v2835 = vunpack.c.l.b16 %v446
        %v2836 = vunpack.c.h.b16 %v446
        %v2837 = vunpack.c.l.b16 %v447
        %v2838 = vunpack.c.h.b16 %v447
        %v2839 = vunpack.c.l.b16 %v448
        %v2840 = vunpack.c.h.b16 %v448
        %v2841 = vunpack.c.l.b16 %v449
        %v2842 = vunpack.c.h.b16 %v449
        %v2843 = vunpack.c.l.b16 %v450
        %v2844 = vunpack.c.h.b16 %v450
        %v2845 = vunpack.c.l.b16 %v451
        %v2846 = vunpack.c.h.b16 %v451
        %v2847 = vunpack.c.l.b16 %v452
        %v2848 = vunpack.c.h.b16 %v452
        %v2849 = vunpack.c.l.b16 %v453
        %v2850 = vunpack.c.h.b16 %v453
        %v2851 = vunpack.c.l.b16 %v454
        %v2852 = vunpack.c.h.b16 %v454
        %v2853 = vunpack.c.l.b16 %v455
        %v2854 = vunpack.c.h.b16 %v455
        %v2855 = vunpack.c.l.b16 %v456
        %v2856 = vunpack.c.h.b16 %v456
        %v2857 = vunpack.c.l.b16 %v457
        %v2858 = vunpack.c.h.b16 %v457
        %v2859 = vunpack.c.l.b16 %v458
        %v2860 = vunpack.c.h.b16 %v458
        %v2861 = vunpack.c.l.b16 %v459
        %v2862 = vunpack.c.h.b16 %v459
        %v2863 = vunpack.c.l.b16 %v460
        %v2864 = vunpack.c.h.b16 %v460
        %v2865 = vunpack.c.l.b16 %v461
        %v2866 = vunpack.c.h.b16 %v461
        %v2867 = vunpack.c.l.b16 %v462
        %v2868 = vunpack.c.h.b16 %v462
        %v2869 = vunpack.c.l.b16 %v463
        %v2870 = vunpack.c.h.b16 %v463
        %v2871 = vunpack.c.l.b16 %v464
        %v2872 = vunpack.c.h.b16 %v464
        %v2873 = vunpack.c.l.b16 %v465
        %v2874 = vunpack.c.h.b16 %v465
        %v2875 = vunpack.c.l.b16 %v466
        %v2876 = vunpack.c.h.b16 %v466
        %v2877 = vunpack.c.l.b16 %v467
        %v2878 = vunpack.c.h.b16 %v467
        %v2879 = vunpack.c.l.b16 %v468
        %v2880 = vunpack.c.h.b16 %v468
        %v2881 = vunpack.c.l.b16 %v469
        %v2882 = vunpack.c.h.b16 %v469
        %v2883 = vunpack.c.l.b16 %v470
        %v2884 = vunpack.c.h.b16 %v470
        %v2885 = vunpack.c.l.b16 %v471
        %v2886 = vunpack.c.h.b16 %v471
        %v2887 = vunpack.c.l.b16 %v472
        %v2888 = vunpack.c.h.b16 %v472
        %v2889 = vunpack.c.l.b16 %v473
        %v2890 = vunpack.c.h.b16 %v473
        %v2891 = vunpack.c.l.b16 %v474
        %v2892 = vunpack.c.h.b16 %v474
        %v2893 = vunpack.c.l.b16 %v475
        %v2894 = vunpack.c.h.b16 %v475
        %v2895 = vunpack.c.l.b16 %v476
        %v2896 = vunpack.c.h.b16 %v476
        %v2897 = vunpack.c.l.b16 %v477
        %v2898 = vunpack.c.h.b16 %v477
        %v2899 = vunpack.c.l.b16 %v478
        %v2900 = vunpack.c.h.b16 %v478
        %v2901 = vunpack.c.l.b16 %v479
        %v2902 = vunpack.c.h.b16 %v479
        %v2903 = vunpack.c.l.b16 %v480
        %v2904 = vunpack.c.h.b16 %v480
        %v2905 = vunpack.c.l.b16 %v481
        %v2906 = vunpack.c.h.b16 %v481
        %v2907 = vunpack.c.l.b16 %v482
        %v2908 = vunpack.c.h.b16 %v482
        %v2909 = vunpack.c.l.b16 %v483
        %v2910 = vunpack.c.h.b16 %v483
        %v2911 = vunpack.c.l.b16 %v484
        %v2912 = vunpack.c.h.b16 %v484
        %v2913 = vunpack.c.l.b16 %v485
        %v2914 = vunpack.c.h.b16 %v485
        %v2915 = vunpack.c.l.b16 %v486
        %v2916 = vunpack.c.h.b16 %v486
        %v2917 = vunpack.c.l.b16 %v487
        %v2918 = vunpack.c.h.b16 %v487
        %v2919 = vunpack.c.l.b16 %v488
        %v2920 = vunpack.c.h.b16 %v488
        %v2921 = vunpack.c.l.b16 %v489
        %v2922 = vunpack.c.h.b16 %v489
        %v2923 = vunpack.c.l.b16 %v490
        %v2924 = vunpack.c.h.b16 %v490
        %v2925 = vunpack.c.l.b16 %v491
        %v2926 = vunpack.c.h.b16 %v491
        %v2927 = vunpack.c.l.b16 %v492
        %v2928 = vunpack.c.h.b16 %v492
        %v2929 = vunpack.c.l.b16 %v493
        %v2930 = vunpack.c.h.b16 %v493
        %v2931 = vunpack.c.l.b16 %v494
        %v2932 = vunpack.c.h.b16 %v494
        %v2933 = vunpack.c.l.b16 %v495
        %v2934 = vunpack.c.h.b16 %v495
        %v2935 = vunpack.c.l.b16 %v496
        %v2936 = vunpack.c.h.b16 %v496
        %v2937 = vunpack.c.l.b16 %v497
        %v2938 = vunpack.c.h.b16 %v497
        %v2939 = vunpack.c.l.b16 %v498
        %v2940 = vunpack.c.h.b16 %v498
        %v2941 = vunpack.c.l.b16 %v499
        %v2942 = vunpack.c.h.b16 %v499
        %v2943 = vunpack.c.l.b16 %v500
        %v2944 = vunpack.c.h.b16 %v500
        %v2945 = vunpack.c.l.b16 %v501
        %v2946 = vunpack.c.h.b16 %v501
        %v2947 = vunpack.c.l.b16 %v502
        %v2948 = vunpack.c.h.b16 %v502
        %v2949 = vunpack.c.l.b16 %v503
        %v2950 = vunpack.c.h.b16 %v503
        %v2951 = vunpack.c.l.b16 %v504
        %v2952 = vunpack.c.h.b16 %v504
        %v2953 = vunpack.c.l.b16 %v505
        %v2954 = vunpack.c.h.b16 %v505
        %v2955 = vunpack.c.l.b16 %v506
        %v2956 = vunpack.c.h.b16 %v506
        %v2957 = vunpack.c.l.b16 %v507
        %v2958 = vunpack.c.h.b16 %v507
        %v2959 = vunpack.c.l.b16 %v508
        %v2960 = vunpack.c.h.b16 %v508
        %v2961 = vunpack.c.l.b16 %v509
        %v2962 = vunpack.c.h.b16 %v509
        %v2963 = vunpack.c.l.b16 %v510
        %v2964 = vunpack.c.h.b16 %v510
        %v2965 = vunpack.c.l.b16 %v511
        %v2966 = vunpack.c.h.b16 %v511
        %v2967 = vunpack.c.l.b16 %v512
        %v2968 = vunpack.c.h.b16 %v512
        %v2969 = vunpack.c.l.b16 %v513
        %v2970 = vunpack.c.h.b16 %v513
        %v2971 = vunpack.c.l.b16 %v514
        %v2972 = vunpack.c.h.b16 %v514
        %v2973 = vunpack.c.l.b16 %v515
        %v2974 = vunpack.c.h.b16 %v515
        %v2975 = vunpack.c.l.b16 %v516
        %v2976 = vunpack.c.h.b16 %v516
        %v2977 = vunpack.c.l.b16 %v517
        %v2978 = vunpack.c.h.b16 %v517
        %v2979 = vunpack.c.l.b16 %v518
        %v2980 = vunpack.c.h.b16 %v518
        %v2981 = vunpack.c.l.b16 %v519
        %v2982 = vunpack.c.h.b16 %v519
        %v2983 = vunpack.c.l.b16 %v520
        %v2984 = vunpack.c.h.b16 %v520
        %v2985 = vunpack.c.l.b16 %v521
        %v2986 = vunpack.c.h.b16 %v521
        %v2987 = vunpack.c.l.b16 %v522
        %v2988 = vunpack.c.h.b16 %v522
        %v2989 = vunpack.c.l.b16 %v523
        %v2990 = vunpack.c.h.b16 %v523
        %v2991 = vunpack.c.l.b16 %v524
        %v2992 = vunpack.c.h.b16 %v524
        %v2993 = vunpack.c.l.b16 %v525
        %v2994 = vunpack.c.h.b16 %v525
        %v2995 = vunpack.c.l.b16 %v526
        %v2996 = vunpack.c.h.b16 %v526
        %v2997 = vunpack.c.l.b16 %v527
        %v2998 = vunpack.c.h.b16 %v527
        %v2999 = vunpack.c.l.b16 %v528
        %v3000 = vunpack.c.h.b16 %v528
        %v3001 = vunpack.c.l.b16 %v529
        %v3002 = vunpack.c.h.b16 %v529
        %v3003 = vunpack.c.l.b16 %v530
        %v3004 = vunpack.c.h.b16 %v530
        %v3005 = vunpack.c.l.b16 %v531
        %v3006 = vunpack.c.h.b16 %v531
        %v3007 = vunpack.c.l.b16 %v532
        %v3008 = vunpack.c.h.b16 %v532
        %v3009 = vunpack.c.l.b16 %v533
        %v3010 = vunpack.c.h.b16 %v533
        %v3011 = vunpack.c.l.b16 %v534
        %v3012 = vunpack.c.h.b16 %v534
        %v3013 = vunpack.c.l.b16 %v535
        %v3014 = vunpack.c.h.b16 %v535
        %v3015 = vunpack.c.l.b16 %v536
        %v3016 = vunpack.c.h.b16 %v536
        %v3017 = vunpack.c.l.b16 %v537
        %v3018 = vunpack.c.h.b16 %v537
        %v3019 = vunpack.c.l.b16 %v538
        %v3020 = vunpack.c.h.b16 %v538
        %v3021 = vunpack.c.l.b16 %v539
        %v3022 = vunpack.c.h.b16 %v539
        %v3023 = vunpack.c.l.b16 %v540
        %v3024 = vunpack.c.h.b16 %v540
        %v3025 = vunpack.c.l.b16 %v541
        %v3026 = vunpack.c.h.b16 %v541
        %v3027 = vunpack.c.l.b16 %v542
        %v3028 = vunpack.c.h.b16 %v542
        %v3029 = vunpack.c.l.b16 %v543
        %v3030 = vunpack.c.h.b16 %v543
        %v3031 = vunpack.c.l.b16 %v544
        %v3032 = vunpack.c.h.b16 %v544
        %v3033 = vunpack.c.l.b16 %v545
        %v3034 = vunpack.c.h.b16 %v545
        %v3035 = vunpack.c.l.b16 %v546
        %v3036 = vunpack.c.h.b16 %v546
        %v3037 = vunpack.c.l.b16 %v547
        %v3038 = vunpack.c.h.b16 %v547
        %v3039 = vunpack.c.l.b16 %v548
        %v3040 = vunpack.c.h.b16 %v548
        %v3041 = vunpack.c.l.b16 %v549
        %v3042 = vunpack.c.h.b16 %v549
        %v3043 = vunpack.c.l.b16 %v550
        %v3044 = vunpack.c.h.b16 %v550
        %v3045 = vunpack.c.l.b16 %v551
        %v3046 = vunpack.c.h.b16 %v551
        %v3047 = vunpack.c.l.b16 %v552
        %v3048 = vunpack.c.h.b16 %v552
        %v3049 = vunpack.c.l.b16 %v553
        %v3050 = vunpack.c.h.b16 %v553
        %v3051 = vunpack.c.l.b16 %v554
        %v3052 = vunpack.c.h.b16 %v554
        %v3053 = vunpack.c.l.b16 %v555
        %v3054 = vunpack.c.h.b16 %v555
        %v3055 = vunpack.c.l.b16 %v556
        %v3056 = vunpack.c.h.b16 %v556
        %v3057 = vunpack.c.l.b16 %v557
        %v3058 = vunpack.c.h.b16 %v557
        %v3059 = vunpack.c.l.b16 %v558
        %v3060 = vunpack.c.h.b16 %v558
        %v3061 = vunpack.c.l.b16 %v559
        %v3062 = vunpack.c.h.b16 %v559
        %v3063 = vunpack.c.l.b16 %v560
        %v3064 = vunpack.c.h.b16 %v560
        %v3065 = vunpack.c.l.b16 %v561
        %v3066 = vunpack.c.h.b16 %v561
        %v3067 = vunpack.c.l.b16 %v562
        %v3068 = vunpack.c.h.b16 %v562
        %v3069 = vunpack.c.l.b16 %v563
        %v3070 = vunpack.c.h.b16 %v563
        %v3071 = vunpack.c.l.b16 %v564
        %v3072 = vunpack.c.h.b16 %v564
        %v3073 = vunpack.c.l.b16 %v565
        %v3074 = vunpack.c.h.b16 %v565
        %v3075 = vunpack.c.l.b16 %v566
        %v3076 = vunpack.c.h.b16 %v566
        %v3077 = vunpack.c.l.b16 %v567
        %v3078 = vunpack.c.h.b16 %v567
        %v3079 = vunpack.c.l.b16 %v568
        %v3080 = vunpack.c.h.b16 %v568
        %v3081 = vunpack.c.l.b16 %v569
        %v3082 = vunpack.c.h.b16 %v569
        %v3083 = vunpack.c.l.b16 %v570
        %v3084 = vunpack.c.h.b16 %v570
        %v3085 = vunpack.c.l.b16 %v571
        %v3086 = vunpack.c.h.b16 %v571
        %v3087 = vunpack.c.l.b16 %v572
        %v3088 = vunpack.c.h.b16 %v572
        %v3089 = vunpack.c.l.b16 %v573
        %v3090 = vunpack.c.h.b16 %v573
        %v3091 = vunpack.c.l.b16 %v574
        %v3092 = vunpack.c.h.b16 %v574
        %v3093 = vunpack.c.l.b16 %v575
        %v3094 = vunpack.c.h.b16 %v575
        %v3095 = vunpack.c.l.b16 %v576
        %v3096 = vunpack.c.h.b16 %v576
        %v3097 = vunpack.c.l.b16 %v577
        %v3098 = vunpack.c.h.b16 %v577
        %v3099 = vunpack.c.l.b16 %v578
        %v3100 = vunpack.c.h.b16 %v578
        %v3101 = vunpack.c.l.b16 %v579
        %v3102 = vunpack.c.h.b16 %v579
        %v3103 = vunpack.c.l.b16 %v580
        %v3104 = vunpack.c.h.b16 %v580
        %v3105 = vunpack.c.l.b16 %v581
        %v3106 = vunpack.c.h.b16 %v581
        %v3107 = vunpack.c.l.b16 %v582
        %v3108 = vunpack.c.h.b16 %v582
        %v3109 = vunpack.c.l.b16 %v583
        %v3110 = vunpack.c.h.b16 %v583
        %v3111 = vunpack.c.l.b16 %v584
        %v3112 = vunpack.c.h.b16 %v584
        %v3113 = vunpack.c.l.b16 %v585
        %v3114 = vunpack.c.h.b16 %v585
        %v3115 = vunpack.c.l.b16 %v586
        %v3116 = vunpack.c.h.b16 %v586
        %v3117 = vunpack.c.l.b16 %v587
        %v3118 = vunpack.c.h.b16 %v587
        %v3119 = vunpack.c.l.b16 %v588
        %v3120 = vunpack.c.h.b16 %v588
        %v3121 = vunpack.c.l.b16 %v589
        %v3122 = vunpack.c.h.b16 %v589
        %v3123 = vunpack.c.l.b16 %v590
        %v3124 = vunpack.c.h.b16 %v590
        %v3125 = vunpack.c.l.b16 %v591
        %v3126 = vunpack.c.h.b16 %v591
        %v3127 = vunpack.c.l.b16 %v592
        %v3128 = vunpack.c.h.b16 %v592
        %v3129 = vunpack.c.l.b16 %v593
        %v3130 = vunpack.c.h.b16 %v593
        %v3131 = vunpack.c.l.b16 %v594
        %v3132 = vunpack.c.h.b16 %v594
        %v3133 = vunpack.c.l.b16 %v595
        %v3134 = vunpack.c.h.b16 %v595
        %v3135 = vunpack.c.l.b16 %v596
        %v3136 = vunpack.c.h.b16 %v596
        %v3137 = vunpack.c.l.b16 %v597
        %v3138 = vunpack.c.h.b16 %v597
        %v3139 = vunpack.c.l.b16 %v598
        %v3140 = vunpack.c.h.b16 %v598
        %v3141 = vunpack.c.l.b16 %v599
        %v3142 = vunpack.c.h.b16 %v599
        %v3143 = vunpack.c.l.b16 %v600
        %v3144 = vunpack.c.h.b16 %v600
        %v3145 = vunpack.c.l.b16 %v601
        %v3146 = vunpack.c.h.b16 %v601
        %v3147 = vunpack.c.l.b16 %v602
        %v3148 = vunpack.c.h.b16 %v602
        %v3149 = vunpack.c.l.b16 %v603
        %v3150 = vunpack.c.h.b16 %v603
        %v3151 = vunpack.c.l.b16 %v604
        %v3152 = vunpack.c.h.b16 %v604
        %v3153 = vunpack.c.l.b16 %v605
        %v3154 = vunpack.c.h.b16 %v605
        %v3155 = vunpack.c.l.b16 %v606
        %v3156 = vunpack.c.h.b16 %v606
        %v3157 = vunpack.c.l.b16 %v607
        %v3158 = vunpack.c.h.b16 %v607
        %v3159 = vunpack.c.l.b16 %v608
        %v3160 = vunpack.c.h.b16 %v608
        %v3161 = vunpack.c.l.b16 %v609
        %v3162 = vunpack.c.h.b16 %v609
        %v3163 = vunpack.c.l.b16 %v610
        %v3164 = vunpack.c.h.b16 %v610
        %v3165 = vunpack.c.l.b16 %v611
        %v3166 = vunpack.c.h.b16 %v611
        %v3167 = vunpack.c.l.b16 %v612
        %v3168 = vunpack.c.h.b16 %v612
        %v3169 = vunpack.c.l.b16 %v613
        %v3170 = vunpack.c.h.b16 %v613
        %v3171 = vunpack.c.l.b16 %v614
        %v3172 = vunpack.c.h.b16 %v614
        %v3173 = vunpack.c.l.b16 %v615
        %v3174 = vunpack.c.h.b16 %v615
        %v3175 = vunpack.c.l.b16 %v616
        %v3176 = vunpack.c.h.b16 %v616
        %v3177 = vunpack.c.l.b16 %v617
        %v3178 = vunpack.c.h.b16 %v617
        %v3179 = vunpack.c.l.b16 %v618
        %v3180 = vunpack.c.h.b16 %v618
        %v3181 = vunpack.c.l.b16 %v619
        %v3182 = vunpack.c.h.b16 %v619
        %v3183 = vunpack.c.l.b16 %v620
        %v3184 = vunpack.c.h.b16 %v620
        %v3185 = vunpack.c.l.b16 %v621
        %v3186 = vunpack.c.h.b16 %v621
        %v3187 = vunpack.c.l.b16 %v622
        %v3188 = vunpack.c.h.b16 %v622
        %v3189 = vunpack.c.l.b16 %v623
        %v3190 = vunpack.c.h.b16 %v623
        %v3191 = vunpack.c.l.b16 %v624
        %v3192 = vunpack.c.h.b16 %v624
        %v3193 = vunpack.c.l.b16 %v625
        %v3194 = vunpack.c.h.b16 %v625
        %v3195 = vunpack.c.l.b16 %v626
        %v3196 = vunpack.c.h.b16 %v626
        %v3197 = vunpack.c.l.b16 %v627
        %v3198 = vunpack.c.h.b16 %v627
        %v3199 = vunpack.c.l.b16 %v628
        %v3200 = vunpack.c.h.b16 %v628
        %v3201 = vunpack.c.l.b16 %v629
        %v3202 = vunpack.c.h.b16 %v629
        %v3203 = vunpack.c.l.b16 %v630
        %v3204 = vunpack.c.h.b16 %v630
        %v3205 = vunpack.c.l.b16 %v631
        %v3206 = vunpack.c.h.b16 %v631
        %v3207 = vunpack.c.l.b16 %v632
        %v3208 = vunpack.c.h.b16 %v632
        %v3209 = vunpack.c.l.b16 %v633
        %v3210 = vunpack.c.h.b16 %v633
        %v3211 = vunpack.c.l.b16 %v634
        %v3212 = vunpack.c.h.b16 %v634
        %v3213 = vunpack.c.l.b16 %v635
        %v3214 = vunpack.c.h.b16 %v635
        %v3215 = vunpack.c.l.b16 %v636
        %v3216 = vunpack.c.h.b16 %v636
        %v3217 = vunpack.c.l.b16 %v637
        %v3218 = vunpack.c.h.b16 %v637
        %v3219 = vunpack.c.l.b16 %v638
        %v3220 = vunpack.c.h.b16 %v638
        %v3221 = vunpack.c.l.b16 %v639
        %v3222 = vunpack.c.h.b16 %v639
        %v3223 = vunpack.c.l.b16 %v640
        %v3224 = vunpack.c.h.b16 %v640
        %v3225 = vunpack.c.l.b16 %v641
        %v3226 = vunpack.c.h.b16 %v641
        %v3227 = vunpack.c.l.b16 %v642
        %v3228 = vunpack.c.h.b16 %v642
        %v3229 = vunpack.c.l.b16 %v643
        %v3230 = vunpack.c.h.b16 %v643
        %v3231 = vunpack.c.l.b16 %v644
        %v3232 = vunpack.c.h.b16 %v644
        %v3233 = vunpack.c.l.b16 %v645
        %v3234 = vunpack.c.h.b16 %v645
        %v3235 = vunpack.c.l.b16 %v646
        %v3236 = vunpack.c.h.b16 %v646
        %v3237 = vunpack.c.l.b16 %v647
        %v3238 = vunpack.c.h.b16 %v647
        %v3239 = vunpack.c.l.b16 %v648
        %v3240 = vunpack.c.h.b16 %v648
        %v3241 = vunpack.c.l.b16 %v649
        %v3242 = vunpack.c.h.b16 %v649
        %v3243 = vunpack.c.l.b16 %v650
        %v3244 = vunpack.c.h.b16 %v650
        %v3245 = vunpack.c.l.b16 %v651
        %v3246 = vunpack.c.h.b16 %v651
        %v3247 = vunpack.c.l.b16 %v652
        %v3248 = vunpack.c.h.b16 %v652
        %v3249 = vunpack.c.l.b16 %v653
        %v3250 = vunpack.c.h.b16 %v653
        %v3251 = vunpack.c.l.b16 %v654
        %v3252 = vunpack.c.h.b16 %v654
        %v3253 = vunpack.c.l.b16 %v655
        %v3254 = vunpack.c.h.b16 %v655
        %v3255 = vunpack.c.l.b16 %v656
        %v3256 = vunpack.c.h.b16 %v656
        %v3257 = vunpack.c.l.b16 %v657
        %v3258 = vunpack.c.h.b16 %v657
        %v3259 = vunpack.c.l.b16 %v658
        %v3260 = vunpack.c.h.b16 %v658
        %v3261 = vunpack.c.l.b16 %v659
        %v3262 = vunpack.c.h.b16 %v659
        %v3263 = vunpack.c.l.b16 %v660
        %v3264 = vunpack.c.h.b16 %v660
        %v3265 = vunpack.c.l.b16 %v661
        %v3266 = vunpack.c.h.b16 %v661
        %v3267 = vunpack.c.l.b16 %v662
        %v3268 = vunpack.c.h.b16 %v662
        %v3269 = vunpack.c.l.b16 %v663
        %v3270 = vunpack.c.h.b16 %v663
        %v3271 = vunpack.c.l.b16 %v664
        %v3272 = vunpack.c.h.b16 %v664
        %v3273 = vunpack.c.l.b16 %v665
        %v3274 = vunpack.c.h.b16 %v665
        %v3275 = vunpack.c.l.b16 %v666
        %v3276 = vunpack.c.h.b16 %v666
        %v3277 = vunpack.c.l.b16 %v667
        %v3278 = vunpack.c.h.b16 %v667
        %v3279 = vunpack.c.l.b16 %v668
        %v3280 = vunpack.c.h.b16 %v668
        %v3281 = vunpack.c.l.b16 %v669
        %v3282 = vunpack.c.h.b16 %v669
        %v3283 = vunpack.c.l.b16 %v670
        %v3284 = vunpack.c.h.b16 %v670
        %v3285 = vunpack.c.l.b16 %v671
        %v3286 = vunpack.c.h.b16 %v671
        %v3287 = vunpack.c.l.b16 %v672
        %v3288 = vunpack.c.h.b16 %v672
        %v3289 = vunpack.c.l.b16 %v673
        %v3290 = vunpack.c.h.b16 %v673
        %v3291 = vunpack.c.l.b16 %v674
        %v3292 = vunpack.c.h.b16 %v674
        %v3293 = vunpack.c.l.b16 %v675
        %v3294 = vunpack.c.h.b16 %v675
        %v3295 = vunpack.c.l.b16 %v676
        %v3296 = vunpack.c.h.b16 %v676
        %v3297 = vunpack.c.l.b16 %v677
        %v3298 = vunpack.c.h.b16 %v677
        %v3299 = vunpack.c.l.b16 %v678
        %v3300 = vunpack.c.h.b16 %v678
        %v3301 = vunpack.c.l.b16 %v679
        %v3302 = vunpack.c.h.b16 %v679
        %v3303 = vunpack.c.l.b16 %v680
        %v3304 = vunpack.c.h.b16 %v680
        %v3305 = vunpack.c.l.b16 %v681
        %v3306 = vunpack.c.h.b16 %v681
        %v3307 = vunpack.c.l.b16 %v682
        %v3308 = vunpack.c.h.b16 %v682
        %v3309 = vunpack.c.l.b16 %v683
        %v3310 = vunpack.c.h.b16 %v683
        %v3311 = vunpack.c.l.b16 %v684
        %v3312 = vunpack.c.h.b16 %v684
        %v3313 = vunpack.c.l.b16 %v685
        %v3314 = vunpack.c.h.b16 %v685
        %v3315 = vunpack.c.l.b16 %v686
        %v3316 = vunpack.c.h.b16 %v686
        %v3317 = vunpack.c.l.b16 %v687
        %v3318 = vunpack.c.h.b16 %v687
        %v3319 = vunpack.c.l.b16 %v688
        %v3320 = vunpack.c.h.b16 %v688
        %v3321 = vunpack.c.l.b16 %v689
        %v3322 = vunpack.c.h.b16 %v689
        %v3323 = vunpack.c.l.b16 %v690
        %v3324 = vunpack.c.h.b16 %v690
        %v3325 = vunpack.c.l.b16 %v691
        %v3326 = vunpack.c.h.b16 %v691
        %v3327 = vunpack.c.l.b16 %v692
        %v3328 = vunpack.c.h.b16 %v692
        %v3329 = vunpack.c.l.b16 %v693
        %v3330 = vunpack.c.h.b16 %v693
        %v3331 = vunpack.c.l.b16 %v694
        %v3332 = vunpack.c.h.b16 %v694
        %v3333 = vunpack.c.l.b16 %v695
        %v3334 = vunpack.c.h.b16 %v695
        %v3335 = vunpack.c.l.b16 %v696
        %v3336 = vunpack.c.h.b16 %v696
        %v3337 = vunpack.c.l.b16 %v697
        %v3338 = vunpack.c.h.b16 %v697
        %v3339 = vunpack.c.l.b16 %v698
        %v3340 = vunpack.c.h.b16 %v698
        %v3341 = vunpack.c.l.b16 %v699
        %v3342 = vunpack.c.h.b16 %v699
        %v3343 = vunpack.c.l.b16 %v700
        %v3344 = vunpack.c.h.b16 %v700
        %v3345 = vunpack.c.l.b16 %v701
        %v3346 = vunpack.c.h.b16 %v701
        %v3347 = vunpack.c.l.b16 %v702
        %v3348 = vunpack.c.h.b16 %v702
        %v3349 = vunpack.c.l.b16 %v703
        %v3350 = vunpack.c.h.b16 %v703
        %v3351 = vunpack.c.l.b16 %v704
        %v3352 = vunpack.c.h.b16 %v704
        %v3353 = vunpack.c.l.b16 %v705
        %v3354 = vunpack.c.h.b16 %v705
        %v3355 = vunpack.c.l.b16 %v706
        %v3356 = vunpack.c.h.b16 %v706
        %v3357 = vunpack.c.l.b16 %v707
        %v3358 = vunpack.c.h.b16 %v707
        %v3359 = vunpack.c.l.b16 %v708
        %v3360 = vunpack.c.h.b16 %v708
        %v3361 = vunpack.c.l.b16 %v709
        %v3362 = vunpack.c.h.b16 %v709
        %v3363 = vunpack.c.l.b16 %v710
        %v3364 = vunpack.c.h.b16 %v710
        %v3365 = vunpack.c.l.b16 %v711
        %v3366 = vunpack.c.h.b16 %v711
        %v3367 = vunpack.c.l.b16 %v712
        %v3368 = vunpack.c.h.b16 %v712
        %v3369 = vunpack.c.l.b16 %v713
        %v3370 = vunpack.c.h.b16 %v713
        %v3371 = vunpack.c.l.b16 %v714
        %v3372 = vunpack.c.h.b16 %v714
        %v3373 = vunpack.c.l.b16 %v715
        %v3374 = vunpack.c.h.b16 %v715
        %v3375 = vunpack.c.l.b16 %v716
        %v3376 = vunpack.c.h.b16 %v716
        %v3377 = vunpack.c.l.b16 %v717
        %v3378 = vunpack.c.h.b16 %v717
        %v3379 = vunpack.c.l.b16 %v718
        %v3380 = vunpack.c.h.b16 %v718
        %v3381 = vunpack.c.l.b16 %v719
        %v3382 = vunpack.c.h.b16 %v719
        %v3383 = vunpack.c.l.b16 %v720
        %v3384 = vunpack.c.h.b16 %v720
        %v3385 = vunpack.c.l.b16 %v721
        %v3386 = vunpack.c.h.b16 %v721
        %v3387 = vunpack.c.l.b16 %v722
        %v3388 = vunpack.c.h.b16 %v722
        %v3389 = vunpack.c.l.b16 %v723
        %v3390 = vunpack.c.h.b16 %v723
        %v3391 = vunpack.c.l.b16 %v724
        %v3392 = vunpack.c.h.b16 %v724
        %v3393 = vunpack.c.l.b16 %v725
        %v3394 = vunpack.c.h.b16 %v725
        %v3395 = vunpack.c.l.b16 %v726
        %v3396 = vunpack.c.h.b16 %v726
        %v3397 = vunpack.c.l.b16 %v727
        %v3398 = vunpack.c.h.b16 %v727
        %v3399 = vunpack.c.l.b16 %v728
        %v3400 = vunpack.c.h.b16 %v728
        %v3401 = vunpack.c.l.b16 %v729
        %v3402 = vunpack.c.h.b16 %v729
        %v3403 = vunpack.c.l.b16 %v730
        %v3404 = vunpack.c.h.b16 %v730
        %v3405 = vunpack.c.l.b16 %v731
        %v3406 = vunpack.c.h.b16 %v731
        %v3407 = vunpack.c.l.b16 %v732
        %v3408 = vunpack.c.h.b16 %v732
        %v3409 = vunpack.c.l.b16 %v733
        %v3410 = vunpack.c.h.b16 %v733
        %v3411 = vunpack.c.l.b16 %v734
        %v3412 = vunpack.c.h.b16 %v734
        %v3413 = vunpack.c.l.b16 %v735
        %v3414 = vunpack.c.h.b16 %v735
        %v3415 = vunpack.c.l.b16 %v736
        %v3416 = vunpack.c.h.b16 %v736
        %v3417 = vunpack.c.l.b16 %v737
        %v3418 = vunpack.c.h.b16 %v737
        %v3419 = vunpack.c.l.b16 %v738
        %v3420 = vunpack.c.h.b16 %v738
        %v3421 = vunpack.c.l.b16 %v739
        %v3422 = vunpack.c.h.b16 %v739
        %v3423 = vunpack.c.l.b16 %v740
        %v3424 = vunpack.c.h.b16 %v740
        %v3425 = vunpack.c.l.b16 %v741
        %v3426 = vunpack.c.h.b16 %v741
        %v3427 = vunpack.c.l.b16 %v742
        %v3428 = vunpack.c.h.b16 %v742
        %v3429 = vunpack.c.l.b16 %v743
        %v3430 = vunpack.c.h.b16 %v743
        %v3431 = vunpack.c.l.b16 %v744
        %v3432 = vunpack.c.h.b16 %v744
        %v3433 = vunpack.c.l.b16 %v745
        %v3434 = vunpack.c.h.b16 %v745
        %v3435 = vunpack.c.l.b16 %v746
        %v3436 = vunpack.c.h.b16 %v746
        %v3437 = vunpack.c.l.b16 %v747
        %v3438 = vunpack.c.h.b16 %v747
        %v3439 = vunpack.c.l.b16 %v748
        %v3440 = vunpack.c.h.b16 %v748
        %v3441 = vunpack.c.l.b16 %v749
        %v3442 = vunpack.c.h.b16 %v749
        %v3443 = vunpack.c.l.b16 %v750
        %v3444 = vunpack.c.h.b16 %v750
        %v3445 = vunpack.c.l.b16 %v751
        %v3446 = vunpack.c.h.b16 %v751
        %v3447 = vunpack.c.l.b16 %v752
        %v3448 = vunpack.c.h.b16 %v752
        %v3449 = vunpack.c.l.b16 %v753
        %v3450 = vunpack.c.h.b16 %v753
        %v3451 = vunpack.c.l.b16 %v754
        %v3452 = vunpack.c.h.b16 %v754
        %v3453 = vunpack.c.l.b16 %v755
        %v3454 = vunpack.c.h.b16 %v755
        %v3455 = vunpack.c.l.b16 %v756
        %v3456 = vunpack.c.h.b16 %v756
        %v3457 = vunpack.c.l.b16 %v757
        %v3458 = vunpack.c.h.b16 %v757
        %v3459 = vunpack.c.l.b16 %v758
        %v3460 = vunpack.c.h.b16 %v758
        %v3461 = vunpack.c.l.b16 %v759
        %v3462 = vunpack.c.h.b16 %v759
        %v3463 = vunpack.c.l.b16 %v760
        %v3464 = vunpack.c.h.b16 %v760
        %v3465 = vunpack.c.l.b16 %v761
        %v3466 = vunpack.c.h.b16 %v761
        %v3467 = vunpack.c.l.b16 %v762
        %v3468 = vunpack.c.h.b16 %v762
        %v3469 = vunpack.c.l.b16 %v763
        %v3470 = vunpack.c.h.b16 %v763
        %v3471 = vunpack.c.l.b16 %v764
        %v3472 = vunpack.c.h.b16 %v764
        %v3473 = vunpack.c.l.b16 %v765
        %v3474 = vunpack.c.h.b16 %v765
        %v3475 = vunpack.c.l.b16 %v766
        %v3476 = vunpack.c.h.b16 %v766
        %v3477 = vunpack.c.l.b16 %v767
        %v3478 = vunpack.c.h.b16 %v767
        %v3479 = vunpack.c.l.b16 %v768
        %v3480 = vunpack.c.h.b16 %v768
        %v3481 = vunpack.c.l.b16 %v769
        %v3482 = vunpack.c.h.b16 %v769
        %v3483 = vunpack.c.l.b16 %v770
        %v3484 = vunpack.c.h.b16 %v770
        %v3485 = vunpack.c.l.b16 %v771
        %v3486 = vunpack.c.h.b16 %v771
        %v3487 = vunpack.c.l.b16 %v772
        %v3488 = vunpack.c.h.b16 %v772
        %v3489 = vunpack.c.l.b16 %v773
        %v3490 = vunpack.c.h.b16 %v773
        %v3491 = vunpack.c.l.b16 %v774
        %v3492 = vunpack.c.h.b16 %v774
        %v3493 = vunpack.c.l.b16 %v775
        %v3494 = vunpack.c.h.b16 %v775
        %v3495 = vunpack.c.l.b16 %v776
        %v3496 = vunpack.c.h.b16 %v776
        %v3497 = vunpack.c.l.b16 %v777
        %v3498 = vunpack.c.h.b16 %v777
        %v3499 = vunpack.c.l.b16 %v778
        %v3500 = vunpack.c.h.b16 %v778
        %v3501 = vunpack.c.l.b16 %v779
        %v3502 = vunpack.c.h.b16 %v779
        %v3503 = vunpack.c.l.b16 %v780
        %v3504 = vunpack.c.h.b16 %v780
        %v3505 = vunpack.c.l.b16 %v781
        %v3506 = vunpack.c.h.b16 %v781
        %v3507 = vunpack.c.l.b16 %v782
        %v3508 = vunpack.c.h.b16 %v782
        %v3509 = vunpack.c.l.b16 %v783
        %v3510 = vunpack.c.h.b16 %v783
        %v3511 = vunpack.c.l.b16 %v784
        %v3512 = vunpack.c.h.b16 %v784
        %v3513 = vunpack.c.l.b16 %v785
        %v3514 = vunpack.c.h.b16 %v785
        %v3515 = vunpack.c.l.b16 %v786
        %v3516 = vunpack.c.h.b16 %v786
        %v3517 = vunpack.c.l.b16 %v787
        %v3518 = vunpack.c.h.b16 %v787
        %v3519 = vunpack.c.l.b16 %v788
        %v3520 = vunpack.c.h.b16 %v788
        %v3521 = vunpack.c.l.b16 %v789
        %v3522 = vunpack.c.h.b16 %v789
        %v3523 = vunpack.c.l.b16 %v790
        %v3524 = vunpack.c.h.b16 %v790
        %v3525 = vunpack.c.l.b16 %v791
        %v3526 = vunpack.c.h.b16 %v791
        %v3527 = vunpack.c.l.b16 %v792
        %v3528 = vunpack.c.h.b16 %v792
        %v3529 = vunpack.c.l.b16 %v793
        %v3530 = vunpack.c.h.b16 %v793
        %v3531 = vunpack.c.l.b16 %v794
        %v3532 = vunpack.c.h.b16 %v794
        %v3533 = vunpack.c.l.b16 %v795
        %v3534 = vunpack.c.h.b16 %v795
        %v3535 = vunpack.c.l.b16 %v796
        %v3536 = vunpack.c.h.b16 %v796
        %v3537 = vunpack.c.l.b16 %v797
        %v3538 = vunpack.c.h.b16 %v797
        %v3539 = vunpack.c.l.b16 %v798
        %v3540 = vunpack.c.h.b16 %v798
        %v3541 = vunpack.c.l.b16 %v799
        %v3542 = vunpack.c.h.b16 %v799
        %v3543 = vunpack.c.l.b16 %v800
        %v3544 = vunpack.c.h.b16 %v800
        %v3545 = vunpack.c.l.b16 %v801
        %v3546 = vunpack.c.h.b16 %v801
        %v3547 = vunpack.c.l.b16 %v802
        %v3548 = vunpack.c.h.b16 %v802
        %v3549 = vunpack.c.l.b16 %v803
        %v3550 = vunpack.c.h.b16 %v803
        %v3551 = vunpack.c.l.b16 %v804
        %v3552 = vunpack.c.h.b16 %v804
        %v3553 = vunpack.c.l.b16 %v805
        %v3554 = vunpack.c.h.b16 %v805
        %v3555 = vunpack.c.l.b16 %v806
        %v3556 = vunpack.c.h.b16 %v806
        %v3557 = vunpack.c.l.b16 %v807
        %v3558 = vunpack.c.h.b16 %v807
        %v3559 = vunpack.c.l.b16 %v808
        %v3560 = vunpack.c.h.b16 %v808
        %v3561 = vunpack.c.l.b16 %v809
        %v3562 = vunpack.c.h.b16 %v809
        %v3563 = vunpack.c.l.b16 %v810
        %v3564 = vunpack.c.h.b16 %v810
        %v3565 = vunpack.c.l.b16 %v811
        %v3566 = vunpack.c.h.b16 %v811
        %v3567 = vunpack.c.l.b16 %v812
        %v3568 = vunpack.c.h.b16 %v812
        %v3569 = vunpack.c.l.b16 %v813
        %v3570 = vunpack.c.h.b16 %v813
        %v3571 = vunpack.c.l.b16 %v814
        %v3572 = vunpack.c.h.b16 %v814
        %v3573 = vunpack.c.l.b16 %v815
        %v3574 = vunpack.c.h.b16 %v815
        %v3575 = vunpack.c.l.b16 %v816
        %v3576 = vunpack.c.h.b16 %v816
        %v3577 = vunpack.c.l.b16 %v817
        %v3578 = vunpack.c.h.b16 %v817
        %v3579 = vunpack.c.l.b16 %v818
        %v3580 = vunpack.c.h.b16 %v818
        %v3581 = vunpack.c.l.b16 %v819
        %v3582 = vunpack.c.h.b16 %v819
        %v3583 = vunpack.c.l.b16 %v820
        %v3584 = vunpack.c.h.b16 %v820
        %v3585 = vunpack.c.l.b16 %v821
        %v3586 = vunpack.c.h.b16 %v821
        %v3587 = vunpack.c.l.b16 %v822
        %v3588 = vunpack.c.h.b16 %v822
        %v3589 = vunpack.c.l.b16 %v823
        %v3590 = vunpack.c.h.b16 %v823
        %v3591 = vunpack.c.l.b16 %v824
        %v3592 = vunpack.c.h.b16 %v824
        %v3593 = vunpack.c.l.b16 %v825
        %v3594 = vunpack.c.h.b16 %v825
        %v3595 = vunpack.c.l.b16 %v826
        %v3596 = vunpack.c.h.b16 %v826
        %v3597 = vunpack.c.l.b16 %v827
        %v3598 = vunpack.c.h.b16 %v827
        %v3599 = vunpack.c.l.b16 %v828
        %v3600 = vunpack.c.h.b16 %v828
        %v3601 = vunpack.c.l.b16 %v829
        %v3602 = vunpack.c.h.b16 %v829
        %v3603 = vunpack.c.l.b16 %v830
        %v3604 = vunpack.c.h.b16 %v830
        %v3605 = vunpack.c.l.b16 %v831
        %v3606 = vunpack.c.h.b16 %v831
        %v3607 = vunpack.c.l.b16 %v832
        %v3608 = vunpack.c.h.b16 %v832
        %v3609 = vunpack.c.l.b16 %v833
        %v3610 = vunpack.c.h.b16 %v833
        %v3611 = vunpack.c.l.b16 %v834
        %v3612 = vunpack.c.h.b16 %v834
        %v3613 = vunpack.c.l.b16 %v835
        %v3614 = vunpack.c.h.b16 %v835
        %v3615 = vunpack.c.l.b16 %v836
        %v3616 = vunpack.c.h.b16 %v836
        %v3617 = vunpack.c.l.b16 %v837
        %v3618 = vunpack.c.h.b16 %v837
        %v3619 = vunpack.c.l.b16 %v838
        %v3620 = vunpack.c.h.b16 %v838
        %v3621 = vunpack.c.l.b16 %v839
        %v3622 = vunpack.c.h.b16 %v839
        %v3623 = vunpack.c.l.b16 %v840
        %v3624 = vunpack.c.h.b16 %v840
        %v3625 = vunpack.c.l.b16 %v841
        %v3626 = vunpack.c.h.b16 %v841
        %v3627 = vunpack.c.l.b16 %v842
        %v3628 = vunpack.c.h.b16 %v842
        %v3629 = vunpack.c.l.b16 %v843
        %v3630 = vunpack.c.h.b16 %v843
        %v3631 = vunpack.c.l.b16 %v844
        %v3632 = vunpack.c.h.b16 %v844
        %v3633 = vunpack.c.l.b16 %v845
        %v3634 = vunpack.c.h.b16 %v845
        %v3635 = vunpack.c.l.b16 %v846
        %v3636 = vunpack.c.h.b16 %v846
        %v3637 = vunpack.c.l.b16 %v847
        %v3638 = vunpack.c.h.b16 %v847
        %v3639 = vunpack.c.l.b16 %v848
        %v3640 = vunpack.c.h.b16 %v848
        %v3641 = vunpack.c.l.b16 %v849
        %v3642 = vunpack.c.h.b16 %v849
        %v3643 = vunpack.c.l.b16 %v850
        %v3644 = vunpack.c.h.b16 %v850
        %v3645 = vunpack.c.l.b16 %v851
        %v3646 = vunpack.c.h.b16 %v851
        %v3647 = vunpack.c.l.b16 %v852
        %v3648 = vunpack.c.h.b16 %v852
        %v3649 = vunpack.c.l.b16 %v853
        %v3650 = vunpack.c.h.b16 %v853
        %v3651 = vunpack.c.l.b16 %v854
        %v3652 = vunpack.c.h.b16 %v854
        %v3653 = vunpack.c.l.b16 %v855
        %v3654 = vunpack.c.h.b16 %v855
        %v3655 = vunpack.c.l.b16 %v856
        %v3656 = vunpack.c.h.b16 %v856
        %v3657 = vunpack.c.l.b16 %v857
        %v3658 = vunpack.c.h.b16 %v857
        %v3659 = vunpack.c.l.b16 %v858
        %v3660 = vunpack.c.h.b16 %v858
        %v3661 = vunpack.c.l.b16 %v859
        %v3662 = vunpack.c.h.b16 %v859
        %v3663 = vunpack.c.l.b16 %v860
        %v3664 = vunpack.c.h.b16 %v860
        %v3665 = vunpack.c.l.b16 %v861
        %v3666 = vunpack.c.h.b16 %v861
        %v3667 = vunpack.c.l.b16 %v862
        %v3668 = vunpack.c.h.b16 %v862
        %v3669 = vunpack.c.l.b16 %v863
        %v3670 = vunpack.c.h.b16 %v863
        %v3671 = vunpack.c.l.b16 %v864
        %v3672 = vunpack.c.h.b16 %v864
        %v3673 = vunpack.c.l.b16 %v865
        %v3674 = vunpack.c.h.b16 %v865
        %v3675 = vunpack.c.l.b16 %v866
        %v3676 = vunpack.c.h.b16 %v866
        %v3677 = vunpack.c.l.b16 %v867
        %v3678 = vunpack.c.h.b16 %v867
        %v3679 = vunpack.c.l.b16 %v868
        %v3680 = vunpack.c.h.b16 %v868
        %v3681 = vunpack.c.l.b16 %v869
        %v3682 = vunpack.c.h.b16 %v869
        %v3683 = vunpack.c.l.b16 %v870
        %v3684 = vunpack.c.h.b16 %v870
        %v3685 = vunpack.c.l.b16 %v871
        %v3686 = vunpack.c.h.b16 %v871
        %v3687 = vunpack.c.l.b16 %v872
        %v3688 = vunpack.c.h.b16 %v872
        %v3689 = vunpack.c.l.b16 %v873
        %v3690 = vunpack.c.h.b16 %v873
        %v3691 = vunpack.c.l.b16 %v874
        %v3692 = vunpack.c.h.b16 %v874
        %v3693 = vunpack.c.l.b16 %v875
        %v3694 = vunpack.c.h.b16 %v875
        %v3695 = vunpack.c.l.b16 %v876
        %v3696 = vunpack.c.h.b16 %v876
        %v3697 = vunpack.c.l.b16 %v877
        %v3698 = vunpack.c.h.b16 %v877
        %v3699 = vunpack.c.l.b16 %v878
        %v3700 = vunpack.c.h.b16 %v878
        %v3701 = vunpack.c.l.b16 %v879
        %v3702 = vunpack.c.h.b16 %v879
        %v3703 = vunpack.c.l.b16 %v880
        %v3704 = vunpack.c.h.b16 %v880
        %v3705 = vunpack.c.l.b16 %v881
        %v3706 = vunpack.c.h.b16 %v881
        %v3707 = vunpack.c.l.b16 %v882
        %v3708 = vunpack.c.h.b16 %v882
        %v3709 = vunpack.c.l.b16 %v883
        %v3710 = vunpack.c.h.b16 %v883
        %v3711 = vunpack.c.l.b16 %v884
        %v3712 = vunpack.c.h.b16 %v884
        %v3713 = vunpack.c.l.b16 %v885
        %v3714 = vunpack.c.h.b16 %v885
        %v3715 = vunpack.c.l.b16 %v886
        %v3716 = vunpack.c.h.b16 %v886
        %v3717 = vunpack.c.l.b16 %v887
        %v3718 = vunpack.c.h.b16 %v887
        %v3719 = vunpack.c.l.b16 %v888
        %v3720 = vunpack.c.h.b16 %v888
        %v3721 = vunpack.c.l.b16 %v889
        %v3722 = vunpack.c.h.b16 %v889
        %v3723 = vunpack.c.l.b16 %v890
        %v3724 = vunpack.c.h.b16 %v890
        %v3725 = vunpack.c.l.b16 %v891
        %v3726 = vunpack.c.h.b16 %v891
        %v3727 = vunpack.c.l.b16 %v892
        %v3728 = vunpack.c.h.b16 %v892
        %v3729 = vunpack.c.l.b16 %v893
        %v3730 = vunpack.c.h.b16 %v893
        %v3731 = vunpack.c.l.b16 %v894
        %v3732 = vunpack.c.h.b16 %v894
        %v3733 = vunpack.c.l.b16 %v895
        %v3734 = vunpack.c.h.b16 %v895
        %v3735 = vunpack.c.l.b16 %v896
        %v3736 = vunpack.c.h.b16 %v896
        %v3737 = vunpack.c.l.b16 %v897
        %v3738 = vunpack.c.h.b16 %v897
        %v3739 = vunpack.c.l.b16 %v898
        %v3740 = vunpack.c.h.b16 %v898
        %v3741 = vunpack.c.l.b16 %v899
        %v3742 = vunpack.c.h.b16 %v899
        %v3743 = vunpack.c.l.b16 %v900
        %v3744 = vunpack.c.h.b16 %v900
        %v3745 = vunpack.c.l.b16 %v901
        %v3746 = vunpack.c.h.b16 %v901
        %v3747 = vunpack.c.l.b16 %v902
        %v3748 = vunpack.c.h.b16 %v902
        %v3749 = vunpack.c.l.b16 %v903
        %v3750 = vunpack.c.h.b16 %v903
        %v3751 = vunpack.c.l.b16 %v904
        %v3752 = vunpack.c.h.b16 %v904
        %v3753 = vunpack.c.l.b16 %v905
        %v3754 = vunpack.c.h.b16 %v905
        %v3755 = vunpack.c.l.b16 %v906
        %v3756 = vunpack.c.h.b16 %v906
        %v3757 = vunpack.c.l.b16 %v907
        %v3758 = vunpack.c.h.b16 %v907
        %v3759 = vunpack.c.l.b16 %v908
        %v3760 = vunpack.c.h.b16 %v908
        %v3761 = vunpack.c.l.b16 %v909
        %v3762 = vunpack.c.h.b16 %v909
        %v3763 = vunpack.c.l.b16 %v910
        %v3764 = vunpack.c.h.b16 %v910
        %v3765 = vunpack.c.l.b16 %v911
        %v3766 = vunpack.c.h.b16 %v911
        %v3767 = vunpack.c.l.b16 %v912
        %v3768 = vunpack.c.h.b16 %v912
        %v3769 = vunpack.c.l.b16 %v913
        %v3770 = vunpack.c.h.b16 %v913
        %v3771 = vunpack.c.l.b16 %v914
        %v3772 = vunpack.c.h.b16 %v914
        %v3773 = vunpack.c.l.b16 %v915
        %v3774 = vunpack.c.h.b16 %v915
        %v3775 = vunpack.c.l.b16 %v916
        %v3776 = vunpack.c.h.b16 %v916
        %v3777 = vunpack.c.l.b16 %v917
        %v3778 = vunpack.c.h.b16 %v917
        %v3779 = vunpack.c.l.b16 %v918
        %v3780 = vunpack.c.h.b16 %v918
        %v3781 = vunpack.c.l.b16 %v919
        %v3782 = vunpack.c.h.b16 %v919
        %v3783 = vunpack.c.l.b16 %v920
        %v3784 = vunpack.c.h.b16 %v920
        %v3785 = vunpack.c.l.b16 %v921
        %v3786 = vunpack.c.h.b16 %v921
        %v3787 = vunpack.c.l.b16 %v922
        %v3788 = vunpack.c.h.b16 %v922
        %v3789 = vunpack.c.l.b16 %v923
        %v3790 = vunpack.c.h.b16 %v923
        %v3791 = vunpack.c.l.b16 %v924
        %v3792 = vunpack.c.h.b16 %v924
        %v3793 = vunpack.c.l.b16 %v925
        %v3794 = vunpack.c.h.b16 %v925
        %v3795 = vunpack.c.l.b16 %v926
        %v3796 = vunpack.c.h.b16 %v926
        %v3797 = vunpack.c.l.b16 %v927
        %v3798 = vunpack.c.h.b16 %v927
        %v3799 = vunpack.c.l.b16 %v928
        %v3800 = vunpack.c.h.b16 %v928
        %v3801 = vunpack.c.l.b16 %v929
        %v3802 = vunpack.c.h.b16 %v929
        %v3803 = vunpack.c.l.b16 %v930
        %v3804 = vunpack.c.h.b16 %v930
        %v3805 = vunpack.c.l.b16 %v931
        %v3806 = vunpack.c.h.b16 %v931
        %v3807 = vunpack.c.l.b16 %v932
        %v3808 = vunpack.c.h.b16 %v932
        %v3809 = vunpack.c.l.b16 %v933
        %v3810 = vunpack.c.h.b16 %v933
        %v3811 = vunpack.c.l.b16 %v934
        %v3812 = vunpack.c.h.b16 %v934
        %v3813 = vunpack.c.l.b16 %v935
        %v3814 = vunpack.c.h.b16 %v935
        %v3815 = vunpack.c.l.b16 %v936
        %v3816 = vunpack.c.h.b16 %v936
        %v3817 = vunpack.c.l.b16 %v937
        %v3818 = vunpack.c.h.b16 %v937
        %v3819 = vunpack.c.l.b16 %v938
        %v3820 = vunpack.c.h.b16 %v938
        %v3821 = vunpack.c.l.b16 %v939
        %v3822 = vunpack.c.h.b16 %v939
        %v3823 = vunpack.c.l.b16 %v940
        %v3824 = vunpack.c.h.b16 %v940
        %v3825 = vunpack.c.l.b16 %v941
        %v3826 = vunpack.c.h.b16 %v941
        %v3827 = vunpack.c.l.b16 %v942
        %v3828 = vunpack.c.h.b16 %v942
        %v3829 = vunpack.c.l.b16 %v943
        %v3830 = vunpack.c.h.b16 %v943
        %v3831 = vunpack.c.l.b16 %v944
        %v3832 = vunpack.c.h.b16 %v944
        %v3833 = vunpack.c.l.b16 %v945
        %v3834 = vunpack.c.h.b16 %v945
        %v3835 = vunpack.c.l.b16 %v946
        %v3836 = vunpack.c.h.b16 %v946
        %v3837 = vunpack.c.l.b16 %v947
        %v3838 = vunpack.c.h.b16 %v947
        %v3839 = vunpack.c.l.b16 %v948
        %v3840 = vunpack.c.h.b16 %v948
        %v3841 = vunpack.c.l.b16 %v949
        %v3842 = vunpack.c.h.b16 %v949
        %v3843 = vunpack.c.l.b16 %v950
        %v3844 = vunpack.c.h.b16 %v950
        %v3845 = vunpack.c.l.b16 %v951
        %v3846 = vunpack.c.h.b16 %v951
        %v3847 = vunpack.c.l.b16 %v952
        %v3848 = vunpack.c.h.b16 %v952
        %v3849 = vunpack.c.l.b16 %v953
        %v3850 = vunpack.c.h.b16 %v953
        %v3851 = vunpack.c.l.b16 %v954
        %v3852 = vunpack.c.h.b16 %v954
        %v3853 = vunpack.c.l.b16 %v955
        %v3854 = vunpack.c.h.b16 %v955
        %v3855 = vunpack.c.l.b16 %v956
        %v3856 = vunpack.c.h.b16 %v956
        %v3857 = vunpack.c.l.b16 %v957
        %v3858 = vunpack.c.h.b16 %v957
        %v3859 = vunpack.c.l.b16 %v958
        %v3860 = vunpack.c.h.b16 %v958
        %v3861 = vunpack.c.l.b16 %v959
        %v3862 = vunpack.c.h.b16 %v959
        %v3863 = vunpack.c.l.b16 %v960
        %v3864 = vunpack.c.h.b16 %v960
        %v3865 = vunpack.c.l.b16 %v961
        %v3866 = vunpack.c.h.b16 %v961
        %v3867 = vunpack.c.l.b16 %v962
        %v3868 = vunpack.c.h.b16 %v962
        %v3869 = vunpack.c.l.b16 %v963
        %v3870 = vunpack.c.h.b16 %v963
        %v3871 = vunpack.c.l.b16 %v964
        %v3872 = vunpack.c.h.b16 %v964
        %v3873 = vunpack.c.l.b16 %v965
        %v3874 = vunpack.c.h.b16 %v965
        %v3875 = vunpack.c.l.b16 %v966
        %v3876 = vunpack.c.h.b16 %v966
        %v3877 = vunpack.c.l.b16 %v967
        %v3878 = vunpack.c.h.b16 %v967
        %v3879 = vunpack.c.l.b16 %v968
        %v3880 = vunpack.c.h.b16 %v968
        %v3881 = vunpack.c.l.b16 %v969
        %v3882 = vunpack.c.h.b16 %v969
        %v3883 = vunpack.c.l.b16 %v970
        %v3884 = vunpack.c.h.b16 %v970
        %v3885 = vunpack.c.l.b16 %v971
        %v3886 = vunpack.c.h.b16 %v971
        %v3887 = vunpack.c.l.b16 %v972
        %v3888 = vunpack.c.h.b16 %v972
        %v3889 = vunpack.c.l.b16 %v973
        %v3890 = vunpack.c.h.b16 %v973
        %v3891 = vunpack.c.l.b16 %v974
        %v3892 = vunpack.c.h.b16 %v974
        %v3893 = vunpack.c.l.b16 %v975
        %v3894 = vunpack.c.h.b16 %v975
        %v3895 = vunpack.c.l.b16 %v976
        %v3896 = vunpack.c.h.b16 %v976
        %v3897 = vunpack.c.l.b16 %v977
        %v3898 = vunpack.c.h.b16 %v977
        %v3899 = vunpack.c.l.b16 %v978
        %v3900 = vunpack.c.h.b16 %v978
        %v3901 = vunpack.c.l.b16 %v979
        %v3902 = vunpack.c.h.b16 %v979
        %v3903 = vunpack.c.l.b16 %v980
        %v3904 = vunpack.c.h.b16 %v980
        %v3905 = vunpack.c.l.b16 %v981
        %v3906 = vunpack.c.h.b16 %v981
        %v3907 = vunpack.c.l.b16 %v982
        %v3908 = vunpack.c.h.b16 %v982
        %v3909 = vunpack.c.l.b16 %v983
        %v3910 = vunpack.c.h.b16 %v983
        %v3911 = vunpack.c.l.b16 %v984
        %v3912 = vunpack.c.h.b16 %v984
        %v3913 = vunpack.c.l.b16 %v985
        %v3914 = vunpack.c.h.b16 %v985
        %v3915 = vunpack.c.l.b16 %v986
        %v3916 = vunpack.c.h.b16 %v986
        %v3917 = vunpack.c.l.b16 %v987
        %v3918 = vunpack.c.h.b16 %v987
        %v3919 = vunpack.c.l.b16 %v988
        %v3920 = vunpack.c.h.b16 %v988
        %v3921 = vunpack.c.l.b16 %v989
        %v3922 = vunpack.c.h.b16 %v989
        %v3923 = vunpack.c.l.b16 %v990
        %v3924 = vunpack.c.h.b16 %v990
        %v3925 = vunpack.c.l.b16 %v991
        %v3926 = vunpack.c.h.b16 %v991
        %v3927 = vunpack.c.l.b16 %v992
        %v3928 = vunpack.c.h.b16 %v992
        %v3929 = vunpack.c.l.b16 %v993
        %v3930 = vunpack.c.h.b16 %v993
        %v3931 = vunpack.c.l.b16 %v994
        %v3932 = vunpack.c.h.b16 %v994
        %v3933 = vunpack.c.l.b16 %v995
        %v3934 = vunpack.c.h.b16 %v995
        %v3935 = vunpack.c.l.b16 %v996
        %v3936 = vunpack.c.h.b16 %v996
        %v3937 = vunpack.c.l.b16 %v997
        %v3938 = vunpack.c.h.b16 %v997
        %v3939 = vunpack.c.l.b16 %v998
        %v3940 = vunpack.c.h.b16 %v998
        %v3941 = vunpack.c.l.b16 %v999
        %v3942 = vunpack.c.h.b16 %v999
        %v3943 = vunpack.c.l.b16 %v1000
        %v3944 = vunpack.c.h.b16 %v1000
        %v3945 = vunpack.c.l.b16 %v1001
        %v3946 = vunpack.c.h.b16 %v1001
        %v3947 = vunpack.c.l.b16 %v1002
        %v3948 = vunpack.c.h.b16 %v1002
        %v3949 = vunpack.c.l.b16 %v1003
        %v3950 = vunpack.c.h.b16 %v1003
        %v3951 = vunpack.c.l.b16 %v1004
        %v3952 = vunpack.c.h.b16 %v1004
        %v3953 = vunpack.c.l.b16 %v1005
        %v3954 = vunpack.c.h.b16 %v1005
        %v3955 = vunpack.c.l.b16 %v1006
        %v3956 = vunpack.c.h.b16 %v1006
        %v3957 = vunpack.c.l.b16 %v1007
        %v3958 = vunpack.c.h.b16 %v1007
        %v3959 = vunpack.c.l.b16 %v1008
        %v3960 = vunpack.c.h.b16 %v1008
        %v3961 = vunpack.c.l.b16 %v1009
        %v3962 = vunpack.c.h.b16 %v1009
        %v3963 = vunpack.c.l.b16 %v1010
        %v3964 = vunpack.c.h.b16 %v1010
        %v3965 = vunpack.c.l.b16 %v1011
        %v3966 = vunpack.c.h.b16 %v1011
        %v3967 = vunpack.c.l.b16 %v1012
        %v3968 = vunpack.c.h.b16 %v1012
        %v3969 = vunpack.c.l.b16 %v1013
        %v3970 = vunpack.c.h.b16 %v1013
        %v3971 = vunpack.c.l.b16 %v1014
        %v3972 = vunpack.c.h.b16 %v1014
        %v3973 = vunpack.c.l.b16 %v1015
        %v3974 = vunpack.c.h.b16 %v1015
        %v3975 = vunpack.c.l.b16 %v1016
        %v3976 = vunpack.c.h.b16 %v1016
        %v3977 = vunpack.c.l.b16 %v1017
        %v3978 = vunpack.c.h.b16 %v1017
        %v3979 = vunpack.c.l.b16 %v1018
        %v3980 = vunpack.c.h.b16 %v1018
        %v3981 = vunpack.c.l.b16 %v1019
        %v3982 = vunpack.c.h.b16 %v1019
        %v3983 = vunpack.c.l.b16 %v1020
        %v3984 = vunpack.c.h.b16 %v1020
        %v3985 = vunpack.c.l.b16 %v1021
        %v3986 = vunpack.c.h.b16 %v1021
        %v3987 = vunpack.c.l.b16 %v1022
        %v3988 = vunpack.c.h.b16 %v1022
        %v3989 = vunpack.c.l.b16 %v1023
        %v3990 = vunpack.c.h.b16 %v1023
        %v3991 = vunpack.c.l.b16 %v1024
        %v3992 = vunpack.c.h.b16 %v1024
        %v3993 = vunpack.c.l.b16 %v1025
        %v3994 = vunpack.c.h.b16 %v1025
        %v3995 = vunpack.c.l.b16 %v1026
        %v3996 = vunpack.c.h.b16 %v1026
        %v3997 = vunpack.c.l.b16 %v1027
        %v3998 = vunpack.c.h.b16 %v1027
        %v3999 = vunpack.c.l.b16 %v1028
        %v4000 = vunpack.c.h.b16 %v1028
        %v4001 = vunpack.c.l.b16 %v1029
        %v4002 = vunpack.c.h.b16 %v1029
        %v4003 = vunpack.c.l.b16 %v1030
        %v4004 = vunpack.c.h.b16 %v1030
        %v4005 = vunpack.c.l.b16 %v1031
        %v4006 = vunpack.c.h.b16 %v1031
        %v4007 = vunpack.c.l.b16 %v1032
        %v4008 = vunpack.c.h.b16 %v1032
        %v4009 = vunpack.c.l.b16 %v1033
        %v4010 = vunpack.c.h.b16 %v1033
        %v4011 = vunpack.c.l.b16 %v1034
        %v4012 = vunpack.c.h.b16 %v1034
        %v4013 = vunpack.c.l.b16 %v1035
        %v4014 = vunpack.c.h.b16 %v1035
        %v4015 = vunpack.c.l.b16 %v1036
        %v4016 = vunpack.c.h.b16 %v1036
        %v4017 = vunpack.c.l.b16 %v1037
        %v4018 = vunpack.c.h.b16 %v1037
        %v4019 = vunpack.c.l.b16 %v1038
        %v4020 = vunpack.c.h.b16 %v1038
        %v4021 = vunpack.c.l.b16 %v1039
        %v4022 = vunpack.c.h.b16 %v1039
        %v4023 = vunpack.c.l.b16 %v1040
        %v4024 = vunpack.c.h.b16 %v1040
        %v4025 = vunpack.c.l.b16 %v1041
        %v4026 = vunpack.c.h.b16 %v1041
        %v4027 = vunpack.c.l.b16 %v1042
        %v4028 = vunpack.c.h.b16 %v1042
        %v4029 = vunpack.c.l.b16 %v1043
        %v4030 = vunpack.c.h.b16 %v1043
        %v4031 = vunpack.c.l.b16 %v1044
        %v4032 = vunpack.c.h.b16 %v1044
        %v4033 = vunpack.c.l.b16 %v1045
        %v4034 = vunpack.c.h.b16 %v1045
        %v4035 = vunpack.c.l.b16 %v1046
        %v4036 = vunpack.c.h.b16 %v1046
        %v4037 = vunpack.c.l.b16 %v1047
        %v4038 = vunpack.c.h.b16 %v1047
        %v4039 = vunpack.c.l.b16 %v1048
        %v4040 = vunpack.c.h.b16 %v1048
        %v4041 = vunpack.c.l.b16 %v1049
        %v4042 = vunpack.c.h.b16 %v1049
        %v4043 = vunpack.c.l.b16 %v1050
        %v4044 = vunpack.c.h.b16 %v1050
        %v4045 = vunpack.c.l.b16 %v1051
        %v4046 = vunpack.c.h.b16 %v1051
        %v4047 = vunpack.c.l.b16 %v1052
        %v4048 = vunpack.c.h.b16 %v1052
        %v4049 = vunpack.c.l.b16 %v1053
        %v4050 = vunpack.c.h.b16 %v1053
        %v4051 = vunpack.c.l.b16 %v1054
        %v4052 = vunpack.c.h.b16 %v1054
        %v4053 = vunpack.c.l.b16 %v1055
        %v4054 = vunpack.c.h.b16 %v1055
        %v4055 = vunpack.c.l.b16 %v1056
        %v4056 = vunpack.c.h.b16 %v1056
        %v4057 = vunpack.c.l.b16 %v1057
        %v4058 = vunpack.c.h.b16 %v1057
        %v4059 = vunpack.c.l.b16 %v1058
        %v4060 = vunpack.c.h.b16 %v1058
        %v4061 = vunpack.c.l.b16 %v1059
        %v4062 = vunpack.c.h.b16 %v1059
        %v4063 = vunpack.c.l.b16 %v1060
        %v4064 = vunpack.c.h.b16 %v1060
        %v4065 = vunpack.c.l.b16 %v1061
        %v4066 = vunpack.c.h.b16 %v1061
        %v4067 = vunpack.c.l.b16 %v1062
        %v4068 = vunpack.c.h.b16 %v1062
        %v4069 = vunpack.c.l.b16 %v1063
        %v4070 = vunpack.c.h.b16 %v1063
        %v4071 = vunpack.c.l.b16 %v1064
        %v4072 = vunpack.c.h.b16 %v1064
        %v4073 = vunpack.c.l.b16 %v1065
        %v4074 = vunpack.c.h.b16 %v1065
        %v4075 = vunpack.c.l.b16 %v1066
        %v4076 = vunpack.c.h.b16 %v1066
        %v4077 = vunpack.c.l.b16 %v1067
        %v4078 = vunpack.c.h.b16 %v1067
        %v4079 = vunpack.c.l.b16 %v1068
        %v4080 = vunpack.c.h.b16 %v1068
        %v4081 = vunpack.c.l.b16 %v1069
        %v4082 = vunpack.c.h.b16 %v1069
        %v4083 = vunpack.c.l.b16 %v1070
        %v4084 = vunpack.c.h.b16 %v1070
        %v4085 = vunpack.c.l.b16 %v1071
        %v4086 = vunpack.c.h.b16 %v1071
        %v4087 = vunpack.c.l.b16 %v1072
        %v4088 = vunpack.c.h.b16 %v1072
        %v4089 = vunpack.c.l.b16 %v1073
        %v4090 = vunpack.c.h.b16 %v1073
        %v4091 = vunpack.c.l.b16 %v1074
        %v4092 = vunpack.c.h.b16 %v1074
        %v4093 = vunpack.c.l.b16 %v1075
        %v4094 = vunpack.c.h.b16 %v1075
        %v4095 = vunpack.c.l.b16 %v1076
        %v4096 = vunpack.c.h.b16 %v1076
        %v4097 = vunpack.c.l.b16 %v1077
        %v4098 = vunpack.c.h.b16 %v1077
        %v4099 = vunpack.c.l.b16 %v1078
        %v4100 = vunpack.c.h.b16 %v1078
        %v4101 = vunpack.c.l.b16 %v1079
        %v4102 = vunpack.c.h.b16 %v1079
        %v4103 = vunpack.c.l.b16 %v1080
        %v4104 = vunpack.c.h.b16 %v1080
        %v4105 = vunpack.c.l.b16 %v1081
        %v4106 = vunpack.c.h.b16 %v1081
        %v4107 = vunpack.c.l.b16 %v1082
        %v4108 = vunpack.c.h.b16 %v1082
        %v4109 = vunpack.c.l.b16 %v1083
        %v4110 = vunpack.c.h.b16 %v1083
        %v4111 = vunpack.c.l.b16 %v1084
        %v4112 = vunpack.c.h.b16 %v1084
        %v4113 = vunpack.c.l.b16 %v1085
        %v4114 = vunpack.c.h.b16 %v1085
        %v4115 = vunpack.c.l.b16 %v1086
        %v4116 = vunpack.c.h.b16 %v1086
        %v4117 = vunpack.c.l.b16 %v1087
        %v4118 = vunpack.c.h.b16 %v1087
        %v4119 = vunpack.c.l.b16 %v1088
        %v4120 = vunpack.c.h.b16 %v1088
        %v4121 = vunpack.c.l.b16 %v1089
        %v4122 = vunpack.c.h.b16 %v1089
        %v4123 = vunpack.c.l.b16 %v1090
        %v4124 = vunpack.c.h.b16 %v1090
        %v4125 = vunpack.c.l.b16 %v1091
        %v4126 = vunpack.c.h.b16 %v1091
        %v4127 = vunpack.c.l.b16 %v1092
        %v4128 = vunpack.c.h.b16 %v1092
        %v4129 = vunpack.c.l.b16 %v1093
        %v4130 = vunpack.c.h.b16 %v1093
        %v4131 = vunpack.c.l.b16 %v1094
        %v4132 = vunpack.c.h.b16 %v1094
        %v4133 = vunpack.c.l.b16 %v1095
        %v4134 = vunpack.c.h.b16 %v1095
        %v4135 = vunpack.c.l.b16 %v1096
        %v4136 = vunpack.c.h.b16 %v1096
        %v4137 = vunpack.c.l.b16 %v1097
        %v4138 = vunpack.c.h.b16 %v1097
        %v4139 = vunpack.c.l.b16 %v1098
        %v4140 = vunpack.c.h.b16 %v1098
        %v4141 = vunpack.c.l.b16 %v1099
        %v4142 = vunpack.c.h.b16 %v1099
        %v4143 = vunpack.c.l.b16 %v1100
        %v4144 = vunpack.c.h.b16 %v1100
        %v4145 = vunpack.c.l.b16 %v1101
        %v4146 = vunpack.c.h.b16 %v1101
        %v4147 = vunpack.c.l.b16 %v1102
        %v4148 = vunpack.c.h.b16 %v1102
        %v4149 = vunpack.c.l.b16 %v1103
        %v4150 = vunpack.c.h.b16 %v1103
        %v4151 = vunpack.c.l.b16 %v1104
        %v4152 = vunpack.c.h.b16 %v1104
        %v4153 = vunpack.c.l.b16 %v1105
        %v4154 = vunpack.c.h.b16 %v1105
        %v4155 = vunpack.c.l.b16 %v1106
        %v4156 = vunpack.c.h.b16 %v1106
        %v4157 = vunpack.c.l.b16 %v1107
        %v4158 = vunpack.c.h.b16 %v1107
        %v4159 = vunpack.c.l.b16 %v1108
        %v4160 = vunpack.c.h.b16 %v1108
        %v4161 = vunpack.c.l.b16 %v1109
        %v4162 = vunpack.c.h.b16 %v1109
        %v4163 = vunpack.c.l.b16 %v1110
        %v4164 = vunpack.c.h.b16 %v1110
        %v4165 = vunpack.c.l.b16 %v1111
        %v4166 = vunpack.c.h.b16 %v1111
        %v4167 = vunpack.c.l.b16 %v1112
        %v4168 = vunpack.c.h.b16 %v1112
        %v4169 = vunpack.c.l.b16 %v1113
        %v4170 = vunpack.c.h.b16 %v1113
        %v4171 = vunpack.c.l.b16 %v1114
        %v4172 = vunpack.c.h.b16 %v1114
        %v4173 = vunpack.c.l.b16 %v1115
        %v4174 = vunpack.c.h.b16 %v1115
        %v4175 = vunpack.c.l.b16 %v1116
        %v4176 = vunpack.c.h.b16 %v1116
        %v4177 = vunpack.c.l.b16 %v1117
        %v4178 = vunpack.c.h.b16 %v1117
        %v4179 = vunpack.c.l.b16 %v1118
        %v4180 = vunpack.c.h.b16 %v1118
        %v4181 = vunpack.c.l.b16 %v1119
        %v4182 = vunpack.c.h.b16 %v1119
        %v4183 = vunpack.c.l.b16 %v1120
        %v4184 = vunpack.c.h.b16 %v1120
        %v4185 = vunpack.c.l.b16 %v1121
        %v4186 = vunpack.c.h.b16 %v1121
        %v4187 = vunpack.c.l.b16 %v1122
        %v4188 = vunpack.c.h.b16 %v1122
        %v4189 = vunpack.c.l.b16 %v1123
        %v4190 = vunpack.c.h.b16 %v1123
        %v4191 = vunpack.c.l.b16 %v1124
        %v4192 = vunpack.c.h.b16 %v1124
        %v4193 = vunpack.c.l.b16 %v1125
        %v4194 = vunpack.c.h.b16 %v1125
        %v4195 = vunpack.c.l.b16 %v1126
        %v4196 = vunpack.c.h.b16 %v1126
        %v4197 = vunpack.c.l.b16 %v1127
        %v4198 = vunpack.c.h.b16 %v1127
        %v4199 = vunpack.c.l.b16 %v1128
        %v4200 = vunpack.c.h.b16 %v1128
        %v4201 = vunpack.c.l.b16 %v1129
        %v4202 = vunpack.c.h.b16 %v1129
        %v4203 = vunpack.c.l.b16 %v1130
        %v4204 = vunpack.c.h.b16 %v1130
        %v4205 = vunpack.c.l.b16 %v1131
        %v4206 = vunpack.c.h.b16 %v1131
        %v4207 = vunpack.c.l.b16 %v1132
        %v4208 = vunpack.c.h.b16 %v1132
        %v4209 = vunpack.c.l.b16 %v1133
        %v4210 = vunpack.c.h.b16 %v1133
        %v4211 = vunpack.c.l.b16 %v1134
        %v4212 = vunpack.c.h.b16 %v1134
        %v4213 = vunpack.c.l.b16 %v1135
        %v4214 = vunpack.c.h.b16 %v1135
        %v4215 = vunpack.c.l.b16 %v1136
        %v4216 = vunpack.c.h.b16 %v1136
        %v4217 = vunpack.c.l.b16 %v1137
        %v4218 = vunpack.c.h.b16 %v1137
        %v4219 = vunpack.c.l.b16 %v1138
        %v4220 = vunpack.c.h.b16 %v1138
        %v4221 = vunpack.c.l.b16 %v1139
        %v4222 = vunpack.c.h.b16 %v1139
        %v4223 = vunpack.c.l.b16 %v1140
        %v4224 = vunpack.c.h.b16 %v1140
        %v4225 = vunpack.c.l.b16 %v1141
        %v4226 = vunpack.c.h.b16 %v1141
        %v4227 = vunpack.c.l.b16 %v1142
        %v4228 = vunpack.c.h.b16 %v1142
        %v4229 = vunpack.c.l.b16 %v1143
        %v4230 = vunpack.c.h.b16 %v1143
        %v4231 = vunpack.c.l.b16 %v1144
        %v4232 = vunpack.c.h.b16 %v1144
        %v4233 = vunpack.c.l.b16 %v1145
        %v4234 = vunpack.c.h.b16 %v1145
        %v4235 = vunpack.c.l.b16 %v1146
        %v4236 = vunpack.c.h.b16 %v1146
        %v4237 = vunpack.c.l.b16 %v1147
        %v4238 = vunpack.c.h.b16 %v1147
        %v4239 = vunpack.c.l.b16 %v1148
        %v4240 = vunpack.c.h.b16 %v1148
        %v4241 = vunpack.c.l.b16 %v1149
        %v4242 = vunpack.c.h.b16 %v1149
        %v4243 = vunpack.c.l.b16 %v1150
        %v4244 = vunpack.c.h.b16 %v1150
        %v4245 = vunpack.c.l.b16 %v1151
        %v4246 = vunpack.c.h.b16 %v1151
        %v4247 = vunpack.c.l.b16 %v1152
        %v4248 = vunpack.c.h.b16 %v1152
        %v4249 = vunpack.c.l.b16 %v1153
        %v4250 = vunpack.c.h.b16 %v1153
        %v4251 = vunpack.c.l.b16 %v1154
        %v4252 = vunpack.c.h.b16 %v1154
        %v4253 = vunpack.c.l.b16 %v1155
        %v4254 = vunpack.c.h.b16 %v1155
        %v4255 = vunpack.c.l.b16 %v1156
        %v4256 = vunpack.c.h.b16 %v1156
        %v4257 = vunpack.c.l.b16 %v1157
        %v4258 = vunpack.c.h.b16 %v1157
        %v4259 = vunpack.c.l.b16 %v1158
        %v4260 = vunpack.c.h.b16 %v1158
        %v4261 = vunpack.c.l.b16 %v1159
        %v4262 = vunpack.c.h.b16 %v1159
        %v4263 = vunpack.c.l.b16 %v1160
        %v4264 = vunpack.c.h.b16 %v1160
        %v4265 = vunpack.c.l.b16 %v1161
        %v4266 = vunpack.c.h.b16 %v1161
        %v4267 = vunpack.c.l.b16 %v1162
        %v4268 = vunpack.c.h.b16 %v1162
        %v4269 = vunpack.c.l.b16 %v1163
        %v4270 = vunpack.c.h.b16 %v1163
        %v4271 = vunpack.c.l.b16 %v1164
        %v4272 = vunpack.c.h.b16 %v1164
        %v4273 = vunpack.c.l.b16 %v1165
        %v4274 = vunpack.c.h.b16 %v1165
        %v4275 = vunpack.c.l.b16 %v1166
        %v4276 = vunpack.c.h.b16 %v1166
        %v4277 = vunpack.c.l.b16 %v1167
        %v4278 = vunpack.c.h.b16 %v1167
        %v4279 = vunpack.c.l.b16 %v1168
        %v4280 = vunpack.c.h.b16 %v1168
        %v4281 = vunpack.c.l.b16 %v1169
        %v4282 = vunpack.c.h.b16 %v1169
        %v4283 = vunpack.c.l.b16 %v1170
        %v4284 = vunpack.c.h.b16 %v1170
        %v4285 = vunpack.c.l.b16 %v1171
        %v4286 = vunpack.c.h.b16 %v1171
        %v4287 = vunpack.c.l.b16 %v1172
        %v4288 = vunpack.c.h.b16 %v1172
        %v4289 = vunpack.c.l.b16 %v1173
        %v4290 = vunpack.c.h.b16 %v1173
        %v4291 = vunpack.c.l.b16 %v1174
        %v4292 = vunpack.c.h.b16 %v1174
        %v4293 = vunpack.c.l.b16 %v1175
        %v4294 = vunpack.c.h.b16 %v1175
        %v4295 = vunpack.c.l.b16 %v1176
        %v4296 = vunpack.c.h.b16 %v1176
        %v4297 = vunpack.c.l.b16 %v1177
        %v4298 = vunpack.c.h.b16 %v1177
        %v4299 = vunpack.c.l.b16 %v1178
        %v4300 = vunpack.c.h.b16 %v1178
        %v4301 = vunpack.c.l.b16 %v1179
        %v4302 = vunpack.c.h.b16 %v1179
        %v4303 = vunpack.c.l.b16 %v1180
        %v4304 = vunpack.c.h.b16 %v1180
        %v4305 = vunpack.c.l.b16 %v1181
        %v4306 = vunpack.c.h.b16 %v1181
        %v4307 = vunpack.c.l.b16 %v1182
        %v4308 = vunpack.c.h.b16 %v1182
        %v4309 = vunpack.c.l.b16 %v1183
        %v4310 = vunpack.c.h.b16 %v1183
        %v4311 = vunpack.c.l.b16 %v1184
        %v4312 = vunpack.c.h.b16 %v1184
        %v4313 = vunpack.c.l.b16 %v1185
        %v4314 = vunpack.c.h.b16 %v1185
        %v4315 = vunpack.c.l.b16 %v1186
        %v4316 = vunpack.c.h.b16 %v1186
        %v4317 = vunpack.c.l.b16 %v1187
        %v4318 = vunpack.c.h.b16 %v1187
        %v4319 = vunpack.c.l.b16 %v1188
        %v4320 = vunpack.c.h.b16 %v1188
        %v4321 = vunpack.c.l.b16 %v1189
        %v4322 = vunpack.c.h.b16 %v1189
        %v4323 = vunpack.c.l.b16 %v1190
        %v4324 = vunpack.c.h.b16 %v1190
        %v4325 = vunpack.c.l.b16 %v1191
        %v4326 = vunpack.c.h.b16 %v1191
        %v4327 = vunpack.c.l.b16 %v1192
        %v4328 = vunpack.c.h.b16 %v1192
        %v4329 = vunpack.c.l.b16 %v1193
        %v4330 = vunpack.c.h.b16 %v1193
        %v4331 = vunpack.c.l.b16 %v1194
        %v4332 = vunpack.c.h.b16 %v1194
        %v4333 = vunpack.c.l.b16 %v1195
        %v4334 = vunpack.c.h.b16 %v1195
        %v4335 = vunpack.c.l.b16 %v1196
        %v4336 = vunpack.c.h.b16 %v1196
        %v4337 = vunpack.c.l.b16 %v1197
        %v4338 = vunpack.c.h.b16 %v1197
        %v4339 = vunpack.c.l.b16 %v1198
        %v4340 = vunpack.c.h.b16 %v1198
        %v4341 = vunpack.c.l.b16 %v1199
        %v4342 = vunpack.c.h.b16 %v1199
        %v4343 = vunpack.c.l.b16 %v1200
        %v4344 = vunpack.c.h.b16 %v1200
        %v4345 = vunpack.c.l.b16 %v1201
        %v4346 = vunpack.c.h.b16 %v1201
        %v4347 = vunpack.c.l.b16 %v1202
        %v4348 = vunpack.c.h.b16 %v1202
        %v4349 = vunpack.c.l.b16 %v1203
        %v4350 = vunpack.c.h.b16 %v1203
        %v4351 = vunpack.c.l.b16 %v1204
        %v4352 = vunpack.c.h.b16 %v1204
        %v4353 = vunpack.c.l.b16 %v1205
        %v4354 = vunpack.c.h.b16 %v1205
        %v4355 = vunpack.c.l.b16 %v1206
        %v4356 = vunpack.c.h.b16 %v1206
        %v4357 = vunpack.c.l.b16 %v1207
        %v4358 = vunpack.c.h.b16 %v1207
        %v4359 = vunpack.c.l.b16 %v1208
        %v4360 = vunpack.c.h.b16 %v1208
        %v4361 = vunpack.c.l.b16 %v1209
        %v4362 = vunpack.c.h.b16 %v1209
        %v4363 = vunpack.c.l.b16 %v1210
        %v4364 = vunpack.c.h.b16 %v1210
        %v4365 = vunpack.c.l.b16 %v1211
        %v4366 = vunpack.c.h.b16 %v1211
        %v4367 = vunpack.c.l.b16 %v1212
        %v4368 = vunpack.c.h.b16 %v1212
        %v4369 = vunpack.c.l.b16 %v1213
        %v4370 = vunpack.c.h.b16 %v1213
        %v4371 = vunpack.c.l.b16 %v1214
        %v4372 = vunpack.c.h.b16 %v1214
        %v4373 = vunpack.c.l.b16 %v1215
        %v4374 = vunpack.c.h.b16 %v1215
        %v4375 = vunpack.c.l.b16 %v1216
        %v4376 = vunpack.c.h.b16 %v1216
        %v4377 = vunpack.c.l.b16 %v1217
        %v4378 = vunpack.c.h.b16 %v1217
        %v4379 = vunpack.c.l.b16 %v1218
        %v4380 = vunpack.c.h.b16 %v1218
        %v4381 = vunpack.c.l.b16 %v1219
        %v4382 = vunpack.c.h.b16 %v1219
        %v4383 = vunpack.c.l.b16 %v1220
        %v4384 = vunpack.c.h.b16 %v1220
        %v4385 = vunpack.c.l.b16 %v1221
        %v4386 = vunpack.c.h.b16 %v1221
        %v4387 = vunpack.c.l.b16 %v1222
        %v4388 = vunpack.c.h.b16 %v1222
        %v4389 = vunpack.c.l.b16 %v1223
        %v4390 = vunpack.c.h.b16 %v1223
        %v4391 = vunpack.c.l.b16 %v1224
        %v4392 = vunpack.c.h.b16 %v1224
        %v4393 = vunpack.c.l.b16 %v1225
        %v4394 = vunpack.c.h.b16 %v1225
        %v4395 = vunpack.c.l.b16 %v1226
        %v4396 = vunpack.c.h.b16 %v1226
        %v4397 = vunpack.c.l.b16 %v1227
        %v4398 = vunpack.c.h.b16 %v1227
        %v4399 = vunpack.c.l.b16 %v1228
        %v4400 = vunpack.c.h.b16 %v1228
        %v4401 = vunpack.c.l.b16 %v1229
        %v4402 = vunpack.c.h.b16 %v1229
        %v4403 = vunpack.c.l.b16 %v1230
        %v4404 = vunpack.c.h.b16 %v1230
        %v4405 = vunpack.c.l.b16 %v1231
        %v4406 = vunpack.c.h.b16 %v1231
        %v4407 = vunpack.c.l.b16 %v1232
        %v4408 = vunpack.c.h.b16 %v1232
        %v4409 = vunpack.c.l.b16 %v1233
        %v4410 = vunpack.c.h.b16 %v1233
        %v4411 = vunpack.c.l.b16 %v1234
        %v4412 = vunpack.c.h.b16 %v1234
        %v4413 = vunpack.c.l.b16 %v1235
        %v4414 = vunpack.c.h.b16 %v1235
        %v4415 = vunpack.c.l.b16 %v1236
        %v4416 = vunpack.c.h.b16 %v1236
        %v4417 = vunpack.c.l.b16 %v1237
        %v4418 = vunpack.c.h.b16 %v1237
        %v4419 = vunpack.c.l.b16 %v1238
        %v4420 = vunpack.c.h.b16 %v1238
        %v4421 = vunpack.c.l.b16 %v1239
        %v4422 = vunpack.c.h.b16 %v1239
        %v4423 = vunpack.c.l.b16 %v1240
        %v4424 = vunpack.c.h.b16 %v1240
        %v4425 = vunpack.c.l.b16 %v1241
        %v4426 = vunpack.c.h.b16 %v1241
        %v4427 = vunpack.c.l.b16 %v1242
        %v4428 = vunpack.c.h.b16 %v1242
        %v4429 = vunpack.c.l.b16 %v1243
        %v4430 = vunpack.c.h.b16 %v1243
        %v4431 = vunpack.c.l.b16 %v1244
        %v4432 = vunpack.c.h.b16 %v1244
        %v4433 = vunpack.c.l.b16 %v1245
        %v4434 = vunpack.c.h.b16 %v1245
        %v4435 = vunpack.c.l.b16 %v1246
        %v4436 = vunpack.c.h.b16 %v1246
        %v4437 = vunpack.c.l.b16 %v1247
        %v4438 = vunpack.c.h.b16 %v1247
        %v4439 = vunpack.c.l.b16 %v1248
        %v4440 = vunpack.c.h.b16 %v1248
        %v4441 = vunpack.c.l.b16 %v1249
        %v4442 = vunpack.c.h.b16 %v1249
        %v4443 = vunpack.c.l.b16 %v1250
        %v4444 = vunpack.c.h.b16 %v1250
        %v4445 = vunpack.c.l.b16 %v1251
        %v4446 = vunpack.c.h.b16 %v1251
        %v4447 = vunpack.c.l.b16 %v1252
        %v4448 = vunpack.c.h.b16 %v1252
        %v4449 = vunpack.c.l.b16 %v1253
        %v4450 = vunpack.c.h.b16 %v1253
        %v4451 = vunpack.c.l.b16 %v1254
        %v4452 = vunpack.c.h.b16 %v1254
        %v4453 = vunpack.c.l.b16 %v1255
        %v4454 = vunpack.c.h.b16 %v1255
        %v4455 = vunpack.c.l.b16 %v1256
        %v4456 = vunpack.c.h.b16 %v1256
        %v4457 = vunpack.c.l.b16 %v1257
        %v4458 = vunpack.c.h.b16 %v1257
        %v4459 = vunpack.c.l.b16 %v1258
        %v4460 = vunpack.c.h.b16 %v1258
        %v4461 = vunpack.c.l.b16 %v1259
        %v4462 = vunpack.c.h.b16 %v1259
        %v4463 = vunpack.c.l.b16 %v1260
        %v4464 = vunpack.c.h.b16 %v1260
        %v4465 = vunpack.c.l.b16 %v1261
        %v4466 = vunpack.c.h.b16 %v1261
        %v4467 = vunpack.c.l.b16 %v1262
        %v4468 = vunpack.c.h.b16 %v1262
        %v4469 = vunpack.c.l.b16 %v1263
        %v4470 = vunpack.c.h.b16 %v1263
        %v4471 = vunpack.c.l.b16 %v1264
        %v4472 = vunpack.c.h.b16 %v1264
        %v4473 = vunpack.c.l.b16 %v1265
        %v4474 = vunpack.c.h.b16 %v1265
        %v4475 = vunpack.c.l.b16 %v1266
        %v4476 = vunpack.c.h.b16 %v1266
        %v4477 = vunpack.c.l.b16 %v1267
        %v4478 = vunpack.c.h.b16 %v1267
        %v4479 = vunpack.c.l.b16 %v1268
        %v4480 = vunpack.c.h.b16 %v1268
        %v4481 = vunpack.c.l.b16 %v1269
        %v4482 = vunpack.c.h.b16 %v1269
        %v4483 = vunpack.c.l.b16 %v1270
        %v4484 = vunpack.c.h.b16 %v1270
        %v4485 = vunpack.c.l.b16 %v1271
        %v4486 = vunpack.c.h.b16 %v1271
        %v4487 = vunpack.c.l.b16 %v1272
        %v4488 = vunpack.c.h.b16 %v1272
        %v4489 = vpack.c.b16 %v2443, %v2441
        %v4490 = vpack.c.b16 %v2444, %v2442
        %v4491 = vpack.c.b16 %v2447, %v2445
        %v4492 = vpack.c.b16 %v2448, %v2446
        %v4493 = vpack.c.b16 %v2451, %v2449
        %v4494 = vpack.c.b16 %v2452, %v2450
        %v4495 = vpack.c.b16 %v2455, %v2453
        %v4496 = vpack.c.b16 %v2456, %v2454
        %v4497 = vpack.c.b16 %v2459, %v2457
        %v4498 = vpack.c.b16 %v2460, %v2458
        %v4499 = vpack.c.b16 %v2463, %v2461
        %v4500 = vpack.c.b16 %v2464, %v2462
        %v4501 = vpack.c.b16 %v2467, %v2465
        %v4502 = vpack.c.b16 %v2468, %v2466
        %v4503 = vpack.c.b16 %v2471, %v2469
        %v4504 = vpack.c.b16 %v2472, %v2470
        %v4505 = vpack.c.b16 %v2475, %v2473
        %v4506 = vpack.c.b16 %v2476, %v2474
        %v4507 = vpack.c.b16 %v2479, %v2477
        %v4508 = vpack.c.b16 %v2480, %v2478
        %v4509 = vpack.c.b16 %v2483, %v2481
        %v4510 = vpack.c.b16 %v2484, %v2482
        %v4511 = vpack.c.b16 %v2487, %v2485
        %v4512 = vpack.c.b16 %v2488, %v2486
        %v4513 = vpack.c.b16 %v2491, %v2489
        %v4514 = vpack.c.b16 %v2492, %v2490
        %v4515 = vpack.c.b16 %v2495, %v2493
        %v4516 = vpack.c.b16 %v2496, %v2494
        %v4517 = vpack.c.b16 %v2499, %v2497
        %v4518 = vpack.c.b16 %v2500, %v2498
        %v4519 = vpack.c.b16 %v2503, %v2501
        %v4520 = vpack.c.b16 %v2504, %v2502
        %v4521 = vpack.c.b16 %v2507, %v2505
        %v4522 = vpack.c.b16 %v2508, %v2506
        %v4523 = vpack.c.b16 %v2511, %v2509
        %v4524 = vpack.c.b16 %v2512, %v2510
        %v4525 = vpack.c.b16 %v2515, %v2513
        %v4526 = vpack.c.b16 %v2516, %v2514
        %v4527 = vpack.c.b16 %v2519, %v2517
        %v4528 = vpack.c.b16 %v2520, %v2518
        %v4529 = vpack.c.b16 %v2523, %v2521
        %v4530 = vpack.c.b16 %v2524, %v2522
        %v4531 = vpack.c.b16 %v2527, %v2525
        %v4532 = vpack.c.b16 %v2528, %v2526
        %v4533 = vpack.c.b16 %v2531, %v2529
        %v4534 = vpack.c.b16 %v2532, %v2530
        %v4535 = vpack.c.b16 %v2535, %v2533
        %v4536 = vpack.c.b16 %v2536, %v2534
        %v4537 = vpack.c.b16 %v2539, %v2537
        %v4538 = vpack.c.b16 %v2540, %v2538
        %v4539 = vpack.c.b16 %v2543, %v2541
        %v4540 = vpack.c.b16 %v2544, %v2542
        %v4541 = vpack.c.b16 %v2547, %v2545
        %v4542 = vpack.c.b16 %v2548, %v2546
        %v4543 = vpack.c.b16 %v2551, %v2549
        %v4544 = vpack.c.b16 %v2552, %v2550
        %v4545 = vpack.c.b16 %v2555, %v2553
        %v4546 = vpack.c.b16 %v2556, %v2554
        %v4547 = vpack.c.b16 %v2559, %v2557
        %v4548 = vpack.c.b16 %v2560, %v2558
        %v4549 = vpack.c.b16 %v2563, %v2561
        %v4550 = vpack.c.b16 %v2564, %v2562
        %v4551 = vpack.c.b16 %v2567, %v2565
        %v4552 = vpack.c.b16 %v2568, %v2566
        %v4553 = vpack.c.b16 %v2571, %v2569
        %v4554 = vpack.c.b16 %v2572, %v2570
        %v4555 = vpack.c.b16 %v2575, %v2573
        %v4556 = vpack.c.b16 %v2576, %v2574
        %v4557 = vpack.c.b16 %v2579, %v2577
        %v4558 = vpack.c.b16 %v2580, %v2578
        %v4559 = vpack.c.b16 %v2583, %v2581
        %v4560 = vpack.c.b16 %v2584, %v2582
        %v4561 = vpack.c.b16 %v2587, %v2585
        %v4562 = vpack.c.b16 %v2588, %v2586
        %v4563 = vpack.c.b16 %v2591, %v2589
        %v4564 = vpack.c.b16 %v2592, %v2590
        %v4565 = vpack.c.b16 %v2595, %v2593
        %v4566 = vpack.c.b16 %v2596, %v2594
        %v4567 = vpack.c.b16 %v2599, %v2597
        %v4568 = vpack.c.b16 %v2600, %v2598
        %v4569 = vpack.c.b16 %v2603, %v2601
        %v4570 = vpack.c.b16 %v2604, %v2602
        %v4571 = vpack.c.b16 %v2607, %v2605
        %v4572 = vpack.c.b16 %v2608, %v2606
        %v4573 = vpack.c.b16 %v2611, %v2609
        %v4574 = vpack.c.b16 %v2612, %v2610
        %v4575 = vpack.c.b16 %v2615, %v2613
        %v4576 = vpack.c.b16 %v2616, %v2614
        %v4577 = vpack.c.b16 %v2619, %v2617
        %v4578 = vpack.c.b16 %v2620, %v2618
        %v4579 = vpack.c.b16 %v2623, %v2621
        %v4580 = vpack.c.b16 %v2624, %v2622
        %v4581 = vpack.c.b16 %v2627, %v2625
        %v4582 = vpack.c.b16 %v2628, %v2626
        %v4583 = vpack.c.b16 %v2631, %v2629
        %v4584 = vpack.c.b16 %v2632, %v2630
        %v4585 = vpack.c.b16 %v2635, %v2633
        %v4586 = vpack.c.b16 %v2636, %v2634
        %v4587 = vpack.c.b16 %v2639, %v2637
        %v4588 = vpack.c.b16 %v2640, %v2638
        %v4589 = vpack.c.b16 %v2643, %v2641
        %v4590 = vpack.c.b16 %v2644, %v2642
        %v4591 = vpack.c.b16 %v2647, %v2645
        %v4592 = vpack.c.b16 %v2648, %v2646
        %v4593 = vpack.c.b16 %v2651, %v2649
        %v4594 = vpack.c.b16 %v2652, %v2650
        %v4595 = vpack.c.b16 %v2655, %v2653
        %v4596 = vpack.c.b16 %v2656, %v2654
        %v4597 = vpack.c.b16 %v2659, %v2657
        %v4598 = vpack.c.b16 %v2660, %v2658
        %v4599 = vpack.c.b16 %v2663, %v2661
        %v4600 = vpack.c.b16 %v2664, %v2662
        %v4601 = vpack.c.b16 %v2667, %v2665
        %v4602 = vpack.c.b16 %v2668, %v2666
        %v4603 = vpack.c.b16 %v2671, %v2669
        %v4604 = vpack.c.b16 %v2672, %v2670
        %v4605 = vpack.c.b16 %v2675, %v2673
        %v4606 = vpack.c.b16 %v2676, %v2674
        %v4607 = vpack.c.b16 %v2679, %v2677
        %v4608 = vpack.c.b16 %v2680, %v2678
        %v4609 = vpack.c.b16 %v2683, %v2681
        %v4610 = vpack.c.b16 %v2684, %v2682
        %v4611 = vpack.c.b16 %v2687, %v2685
        %v4612 = vpack.c.b16 %v2688, %v2686
        %v4613 = vpack.c.b16 %v2691, %v2689
        %v4614 = vpack.c.b16 %v2692, %v2690
        %v4615 = vpack.c.b16 %v2695, %v2693
        %v4616 = vpack.c.b16 %v2696, %v2694
        %v4617 = vpack.c.b16 %v2699, %v2697
        %v4618 = vpack.c.b16 %v2700, %v2698
        %v4619 = vpack.c.b16 %v2703, %v2701
        %v4620 = vpack.c.b16 %v2704, %v2702
        %v4621 = vpack.c.b16 %v2707, %v2705
        %v4622 = vpack.c.b16 %v2708, %v2706
        %v4623 = vpack.c.b16 %v2711, %v2709
        %v4624 = vpack.c.b16 %v2712, %v2710
        %v4625 = vpack.c.b16 %v2715, %v2713
        %v4626 = vpack.c.b16 %v2716, %v2714
        %v4627 = vpack.c.b16 %v2719, %v2717
        %v4628 = vpack.c.b16 %v2720, %v2718
        %v4629 = vpack.c.b16 %v2723, %v2721
        %v4630 = vpack.c.b16 %v2724, %v2722
        %v4631 = vpack.c.b16 %v2727, %v2725
        %v4632 = vpack.c.b16 %v2728, %v2726
        %v4633 = vpack.c.b16 %v2731, %v2729
        %v4634 = vpack.c.b16 %v2732, %v2730
        %v4635 = vpack.c.b16 %v2735, %v2733
        %v4636 = vpack.c.b16 %v2736, %v2734
        %v4637 = vpack.c.b16 %v2739, %v2737
        %v4638 = vpack.c.b16 %v2740, %v2738
        %v4639 = vpack.c.b16 %v2743, %v2741
        %v4640 = vpack.c.b16 %v2744, %v2742
        %v4641 = vpack.c.b16 %v2747, %v2745
        %v4642 = vpack.c.b16 %v2748, %v2746
        %v4643 = vpack.c.b16 %v2751, %v2749
        %v4644 = vpack.c.b16 %v2752, %v2750
        %v4645 = vpack.c.b16 %v2755, %v2753
        %v4646 = vpack.c.b16 %v2756, %v2754
        %v4647 = vpack.c.b16 %v2759, %v2757
        %v4648 = vpack.c.b16 %v2760, %v2758
        %v4649 = vpack.c.b16 %v2763, %v2761
        %v4650 = vpack.c.b16 %v2764, %v2762
        %v4651 = vpack.c.b16 %v2767, %v2765
        %v4652 = vpack.c.b16 %v2768, %v2766
        %v4653 = vpack.c.b16 %v2771, %v2769
        %v4654 = vpack.c.b16 %v2772, %v2770
        %v4655 = vpack.c.b16 %v2775, %v2773
        %v4656 = vpack.c.b16 %v2776, %v2774
        %v4657 = vpack.c.b16 %v2779, %v2777
        %v4658 = vpack.c.b16 %v2780, %v2778
        %v4659 = vpack.c.b16 %v2783, %v2781
        %v4660 = vpack.c.b16 %v2784, %v2782
        %v4661 = vpack.c.b16 %v2787, %v2785
        %v4662 = vpack.c.b16 %v2788, %v2786
        %v4663 = vpack.c.b16 %v2791, %v2789
        %v4664 = vpack.c.b16 %v2792, %v2790
        %v4665 = vpack.c.b16 %v2795, %v2793
        %v4666 = vpack.c.b16 %v2796, %v2794
        %v4667 = vpack.c.b16 %v2799, %v2797
        %v4668 = vpack.c.b16 %v2800, %v2798
        %v4669 = vpack.c.b16 %v2803, %v2801
        %v4670 = vpack.c.b16 %v2804, %v2802
        %v4671 = vpack.c.b16 %v2807, %v2805
        %v4672 = vpack.c.b16 %v2808, %v2806
        %v4673 = vpack.c.b16 %v2811, %v2809
        %v4674 = vpack.c.b16 %v2812, %v2810
        %v4675 = vpack.c.b16 %v2815, %v2813
        %v4676 = vpack.c.b16 %v2816, %v2814
        %v4677 = vpack.c.b16 %v2819, %v2817
        %v4678 = vpack.c.b16 %v2820, %v2818
        %v4679 = vpack.c.b16 %v2823, %v2821
        %v4680 = vpack.c.b16 %v2824, %v2822
        %v4681 = vpack.c.b16 %v2827, %v2825
        %v4682 = vpack.c.b16 %v2828, %v2826
        %v4683 = vpack.c.b16 %v2831, %v2829
        %v4684 = vpack.c.b16 %v2832, %v2830
        %v4685 = vpack.c.b16 %v2835, %v2833
        %v4686 = vpack.c.b16 %v2836, %v2834
        %v4687 = vpack.c.b16 %v2839, %v2837
        %v4688 = vpack.c.b16 %v2840, %v2838
        %v4689 = vpack.c.b16 %v2843, %v2841
        %v4690 = vpack.c.b16 %v2844, %v2842
        %v4691 = vpack.c.b16 %v2847, %v2845
        %v4692 = vpack.c.b16 %v2848, %v2846
        %v4693 = vpack.c.b16 %v2851, %v2849
        %v4694 = vpack.c.b16 %v2852, %v2850
        %v4695 = vpack.c.b16 %v2855, %v2853
        %v4696 = vpack.c.b16 %v2856, %v2854
        %v4697 = vpack.c.b16 %v2859, %v2857
        %v4698 = vpack.c.b16 %v2860, %v2858
        %v4699 = vpack.c.b16 %v2863, %v2861
        %v4700 = vpack.c.b16 %v2864, %v2862
        %v4701 = vpack.c.b16 %v2867, %v2865
        %v4702 = vpack.c.b16 %v2868, %v2866
        %v4703 = vpack.c.b16 %v2871, %v2869
        %v4704 = vpack.c.b16 %v2872, %v2870
        %v4705 = vpack.c.b16 %v2875, %v2873
        %v4706 = vpack.c.b16 %v2876, %v2874
        %v4707 = vpack.c.b16 %v2879, %v2877
        %v4708 = vpack.c.b16 %v2880, %v2878
        %v4709 = vpack.c.b16 %v2883, %v2881
        %v4710 = vpack.c.b16 %v2884, %v2882
        %v4711 = vpack.c.b16 %v2887, %v2885
        %v4712 = vpack.c.b16 %v2888, %v2886
        %v4713 = vpack.c.b16 %v2891, %v2889
        %v4714 = vpack.c.b16 %v2892, %v2890
        %v4715 = vpack.c.b16 %v2895, %v2893
        %v4716 = vpack.c.b16 %v2896, %v2894
        %v4717 = vpack.c.b16 %v2899, %v2897
        %v4718 = vpack.c.b16 %v2900, %v2898
        %v4719 = vpack.c.b16 %v2903, %v2901
        %v4720 = vpack.c.b16 %v2904, %v2902
        %v4721 = vpack.c.b16 %v2907, %v2905
        %v4722 = vpack.c.b16 %v2908, %v2906
        %v4723 = vpack.c.b16 %v2911, %v2909
        %v4724 = vpack.c.b16 %v2912, %v2910
        %v4725 = vpack.c.b16 %v2915, %v2913
        %v4726 = vpack.c.b16 %v2916, %v2914
        %v4727 = vpack.c.b16 %v2919, %v2917
        %v4728 = vpack.c.b16 %v2920, %v2918
        %v4729 = vpack.c.b16 %v2923, %v2921
        %v4730 = vpack.c.b16 %v2924, %v2922
        %v4731 = vpack.c.b16 %v2927, %v2925
        %v4732 = vpack.c.b16 %v2928, %v2926
        %v4733 = vpack.c.b16 %v2931, %v2929
        %v4734 = vpack.c.b16 %v2932, %v2930
        %v4735 = vpack.c.b16 %v2935, %v2933
        %v4736 = vpack.c.b16 %v2936, %v2934
        %v4737 = vpack.c.b16 %v2939, %v2937
        %v4738 = vpack.c.b16 %v2940, %v2938
        %v4739 = vpack.c.b16 %v2943, %v2941
        %v4740 = vpack.c.b16 %v2944, %v2942
        %v4741 = vpack.c.b16 %v2947, %v2945
        %v4742 = vpack.c.b16 %v2948, %v2946
        %v4743 = vpack.c.b16 %v2951, %v2949
        %v4744 = vpack.c.b16 %v2952, %v2950
        %v4745 = vpack.c.b16 %v2955, %v2953
        %v4746 = vpack.c.b16 %v2956, %v2954
        %v4747 = vpack.c.b16 %v2959, %v2957
        %v4748 = vpack.c.b16 %v2960, %v2958
        %v4749 = vpack.c.b16 %v2963, %v2961
        %v4750 = vpack.c.b16 %v2964, %v2962
        %v4751 = vpack.c.b16 %v2967, %v2965
        %v4752 = vpack.c.b16 %v2968, %v2966
        %v4753 = vpack.c.b16 %v2971, %v2969
        %v4754 = vpack.c.b16 %v2972, %v2970
        %v4755 = vpack.c.b16 %v2975, %v2973
        %v4756 = vpack.c.b16 %v2976, %v2974
        %v4757 = vpack.c.b16 %v2979, %v2977
        %v4758 = vpack.c.b16 %v2980, %v2978
        %v4759 = vpack.c.b16 %v2983, %v2981
        %v4760 = vpack.c.b16 %v2984, %v2982
        %v4761 = vpack.c.b16 %v2987, %v2985
        %v4762 = vpack.c.b16 %v2988, %v2986
        %v4763 = vpack.c.b16 %v2991, %v2989
        %v4764 = vpack.c.b16 %v2992, %v2990
        %v4765 = vpack.c.b16 %v2995, %v2993
        %v4766 = vpack.c.b16 %v2996, %v2994
        %v4767 = vpack.c.b16 %v2999, %v2997
        %v4768 = vpack.c.b16 %v3000, %v2998
        %v4769 = vpack.c.b16 %v3003, %v3001
        %v4770 = vpack.c.b16 %v3004, %v3002
        %v4771 = vpack.c.b16 %v3007, %v3005
        %v4772 = vpack.c.b16 %v3008, %v3006
        %v4773 = vpack.c.b16 %v3011, %v3009
        %v4774 = vpack.c.b16 %v3012, %v3010
        %v4775 = vpack.c.b16 %v3015, %v3013
        %v4776 = vpack.c.b16 %v3016, %v3014
        %v4777 = vpack.c.b16 %v3019, %v3017
        %v4778 = vpack.c.b16 %v3020, %v3018
        %v4779 = vpack.c.b16 %v3023, %v3021
        %v4780 = vpack.c.b16 %v3024, %v3022
        %v4781 = vpack.c.b16 %v3027, %v3025
        %v4782 = vpack.c.b16 %v3028, %v3026
        %v4783 = vpack.c.b16 %v3031, %v3029
        %v4784 = vpack.c.b16 %v3032, %v3030
        %v4785 = vpack.c.b16 %v3035, %v3033
        %v4786 = vpack.c.b16 %v3036, %v3034
        %v4787 = vpack.c.b16 %v3039, %v3037
        %v4788 = vpack.c.b16 %v3040, %v3038
        %v4789 = vpack.c.b16 %v3043, %v3041
        %v4790 = vpack.c.b16 %v3044, %v3042
        %v4791 = vpack.c.b16 %v3047, %v3045
        %v4792 = vpack.c.b16 %v3048, %v3046
        %v4793 = vpack.c.b16 %v3051, %v3049
        %v4794 = vpack.c.b16 %v3052, %v3050
        %v4795 = vpack.c.b16 %v3055, %v3053
        %v4796 = vpack.c.b16 %v3056, %v3054
        %v4797 = vpack.c.b16 %v3059, %v3057
        %v4798 = vpack.c.b16 %v3060, %v3058
        %v4799 = vpack.c.b16 %v3063, %v3061
        %v4800 = vpack.c.b16 %v3064, %v3062
        %v4801 = vpack.c.b16 %v3067, %v3065
        %v4802 = vpack.c.b16 %v3068, %v3066
        %v4803 = vpack.c.b16 %v3071, %v3069
        %v4804 = vpack.c.b16 %v3072, %v3070
        %v4805 = vpack.c.b16 %v3075, %v3073
        %v4806 = vpack.c.b16 %v3076, %v3074
        %v4807 = vpack.c.b16 %v3079, %v3077
        %v4808 = vpack.c.b16 %v3080, %v3078
        %v4809 = vpack.c.b16 %v3083, %v3081
        %v4810 = vpack.c.b16 %v3084, %v3082
        %v4811 = vpack.c.b16 %v3087, %v3085
        %v4812 = vpack.c.b16 %v3088, %v3086
        %v4813 = vpack.c.b16 %v3091, %v3089
        %v4814 = vpack.c.b16 %v3092, %v3090
        %v4815 = vpack.c.b16 %v3095, %v3093
        %v4816 = vpack.c.b16 %v3096, %v3094
        %v4817 = vpack.c.b16 %v3099, %v3097
        %v4818 = vpack.c.b16 %v3100, %v3098
        %v4819 = vpack.c.b16 %v3103, %v3101
        %v4820 = vpack.c.b16 %v3104, %v3102
        %v4821 = vpack.c.b16 %v3107, %v3105
        %v4822 = vpack.c.b16 %v3108, %v3106
        %v4823 = vpack.c.b16 %v3111, %v3109
        %v4824 = vpack.c.b16 %v3112, %v3110
        %v4825 = vpack.c.b16 %v3115, %v3113
        %v4826 = vpack.c.b16 %v3116, %v3114
        %v4827 = vpack.c.b16 %v3119, %v3117
        %v4828 = vpack.c.b16 %v3120, %v3118
        %v4829 = vpack.c.b16 %v3123, %v3121
        %v4830 = vpack.c.b16 %v3124, %v3122
        %v4831 = vpack.c.b16 %v3127, %v3125
        %v4832 = vpack.c.b16 %v3128, %v3126
        %v4833 = vpack.c.b16 %v3131, %v3129
        %v4834 = vpack.c.b16 %v3132, %v3130
        %v4835 = vpack.c.b16 %v3135, %v3133
        %v4836 = vpack.c.b16 %v3136, %v3134
        %v4837 = vpack.c.b16 %v3139, %v3137
        %v4838 = vpack.c.b16 %v3140, %v3138
        %v4839 = vpack.c.b16 %v3143, %v3141
        %v4840 = vpack.c.b16 %v3144, %v3142
        %v4841 = vpack.c.b16 %v3147, %v3145
        %v4842 = vpack.c.b16 %v3148, %v3146
        %v4843 = vpack.c.b16 %v3151, %v3149
        %v4844 = vpack.c.b16 %v3152, %v3150
        %v4845 = vpack.c.b16 %v3155, %v3153
        %v4846 = vpack.c.b16 %v3156, %v3154
        %v4847 = vpack.c.b16 %v3159, %v3157
        %v4848 = vpack.c.b16 %v3160, %v3158
        %v4849 = vpack.c.b16 %v3163, %v3161
        %v4850 = vpack.c.b16 %v3164, %v3162
        %v4851 = vpack.c.b16 %v3167, %v3165
        %v4852 = vpack.c.b16 %v3168, %v3166
        %v4853 = vpack.c.b16 %v3171, %v3169
        %v4854 = vpack.c.b16 %v3172, %v3170
        %v4855 = vpack.c.b16 %v3175, %v3173
        %v4856 = vpack.c.b16 %v3176, %v3174
        %v4857 = vpack.c.b16 %v3179, %v3177
        %v4858 = vpack.c.b16 %v3180, %v3178
        %v4859 = vpack.c.b16 %v3183, %v3181
        %v4860 = vpack.c.b16 %v3184, %v3182
        %v4861 = vpack.c.b16 %v3187, %v3185
        %v4862 = vpack.c.b16 %v3188, %v3186
        %v4863 = vpack.c.b16 %v3191, %v3189
        %v4864 = vpack.c.b16 %v3192, %v3190
        %v4865 = vpack.c.b16 %v3195, %v3193
        %v4866 = vpack.c.b16 %v3196, %v3194
        %v4867 = vpack.c.b16 %v3199, %v3197
        %v4868 = vpack.c.b16 %v3200, %v3198
        %v4869 = vpack.c.b16 %v3203, %v3201
        %v4870 = vpack.c.b16 %v3204, %v3202
        %v4871 = vpack.c.b16 %v3207, %v3205
        %v4872 = vpack.c.b16 %v3208, %v3206
        %v4873 = vpack.c.b16 %v3211, %v3209
        %v4874 = vpack.c.b16 %v3212, %v3210
        %v4875 = vpack.c.b16 %v3215, %v3213
        %v4876 = vpack.c.b16 %v3216, %v3214
        %v4877 = vpack.c.b16 %v3219, %v3217
        %v4878 = vpack.c.b16 %v3220, %v3218
        %v4879 = vpack.c.b16 %v3223, %v3221
        %v4880 = vpack.c.b16 %v3224, %v3222
        %v4881 = vpack.c.b16 %v3227, %v3225
        %v4882 = vpack.c.b16 %v3228, %v3226
        %v4883 = vpack.c.b16 %v3231, %v3229
        %v4884 = vpack.c.b16 %v3232, %v3230
        %v4885 = vpack.c.b16 %v3235, %v3233
        %v4886 = vpack.c.b16 %v3236, %v3234
        %v4887 = vpack.c.b16 %v3239, %v3237
        %v4888 = vpack.c.b16 %v3240, %v3238
        %v4889 = vpack.c.b16 %v3243, %v3241
        %v4890 = vpack.c.b16 %v3244, %v3242
        %v4891 = vpack.c.b16 %v3247, %v3245
        %v4892 = vpack.c.b16 %v3248, %v3246
        %v4893 = vpack.c.b16 %v3251, %v3249
        %v4894 = vpack.c.b16 %v3252, %v3250
        %v4895 = vpack.c.b16 %v3255, %v3253
        %v4896 = vpack.c.b16 %v3256, %v3254
        %v4897 = vpack.c.b16 %v3259, %v3257
        %v4898 = vpack.c.b16 %v3260, %v3258
        %v4899 = vpack.c.b16 %v3263, %v3261
        %v4900 = vpack.c.b16 %v3264, %v3262
        %v4901 = vpack.c.b16 %v3267, %v3265
        %v4902 = vpack.c.b16 %v3268, %v3266
        %v4903 = vpack.c.b16 %v3271, %v3269
        %v4904 = vpack.c.b16 %v3272, %v3270
        %v4905 = vpack.c.b16 %v3275, %v3273
        %v4906 = vpack.c.b16 %v3276, %v3274
        %v4907 = vpack.c.b16 %v3279, %v3277
        %v4908 = vpack.c.b16 %v3280, %v3278
        %v4909 = vpack.c.b16 %v3283, %v3281
        %v4910 = vpack.c.b16 %v3284, %v3282
        %v4911 = vpack.c.b16 %v3287, %v3285
        %v4912 = vpack.c.b16 %v3288, %v3286
        %v4913 = vpack.c.b16 %v3291, %v3289
        %v4914 = vpack.c.b16 %v3292, %v3290
        %v4915 = vpack.c.b16 %v3295, %v3293
        %v4916 = vpack.c.b16 %v3296, %v3294
        %v4917 = vpack.c.b16 %v3299, %v3297
        %v4918 = vpack.c.b16 %v3300, %v3298
        %v4919 = vpack.c.b16 %v3303, %v3301
        %v4920 = vpack.c.b16 %v3304, %v3302
        %v4921 = vpack.c.b16 %v3307, %v3305
        %v4922 = vpack.c.b16 %v3308, %v3306
        %v4923 = vpack.c.b16 %v3311, %v3309
        %v4924 = vpack.c.b16 %v3312, %v3310
        %v4925 = vpack.c.b16 %v3315, %v3313
        %v4926 = vpack.c.b16 %v3316, %v3314
        %v4927 = vpack.c.b16 %v3319, %v3317
        %v4928 = vpack.c.b16 %v3320, %v3318
        %v4929 = vpack.c.b16 %v3323, %v3321
        %v4930 = vpack.c.b16 %v3324, %v3322
        %v4931 = vpack.c.b16 %v3327, %v3325
        %v4932 = vpack.c.b16 %v3328, %v3326
        %v4933 = vpack.c.b16 %v3331, %v3329
        %v4934 = vpack.c.b16 %v3332, %v3330
        %v4935 = vpack.c.b16 %v3335, %v3333
        %v4936 = vpack.c.b16 %v3336, %v3334
        %v4937 = vpack.c.b16 %v3339, %v3337
        %v4938 = vpack.c.b16 %v3340, %v3338
        %v4939 = vpack.c.b16 %v3343, %v3341
        %v4940 = vpack.c.b16 %v3344, %v3342
        %v4941 = vpack.c.b16 %v3347, %v3345
        %v4942 = vpack.c.b16 %v3348, %v3346
        %v4943 = vpack.c.b16 %v3351, %v3349
        %v4944 = vpack.c.b16 %v3352, %v3350
        %v4945 = vpack.c.b16 %v3355, %v3353
        %v4946 = vpack.c.b16 %v3356, %v3354
        %v4947 = vpack.c.b16 %v3359, %v3357
        %v4948 = vpack.c.b16 %v3360, %v3358
        %v4949 = vpack.c.b16 %v3363, %v3361
        %v4950 = vpack.c.b16 %v3364, %v3362
        %v4951 = vpack.c.b16 %v3367, %v3365
        %v4952 = vpack.c.b16 %v3368, %v3366
        %v4953 = vpack.c.b16 %v3371, %v3369
        %v4954 = vpack.c.b16 %v3372, %v3370
        %v4955 = vpack.c.b16 %v3375, %v3373
        %v4956 = vpack.c.b16 %v3376, %v3374
        %v4957 = vpack.c.b16 %v3379, %v3377
        %v4958 = vpack.c.b16 %v3380, %v3378
        %v4959 = vpack.c.b16 %v3383, %v3381
        %v4960 = vpack.c.b16 %v3384, %v3382
        %v4961 = vpack.c.b16 %v3387, %v3385
        %v4962 = vpack.c.b16 %v3388, %v3386
        %v4963 = vpack.c.b16 %v3391, %v3389
        %v4964 = vpack.c.b16 %v3392, %v3390
        %v4965 = vpack.c.b16 %v3395, %v3393
        %v4966 = vpack.c.b16 %v3396, %v3394
        %v4967 = vpack.c.b16 %v3399, %v3397
        %v4968 = vpack.c.b16 %v3400, %v3398
        %v4969 = vpack.c.b16 %v3403, %v3401
        %v4970 = vpack.c.b16 %v3404, %v3402
        %v4971 = vpack.c.b16 %v3407, %v3405
        %v4972 = vpack.c.b16 %v3408, %v3406
        %v4973 = vpack.c.b16 %v3411, %v3409
        %v4974 = vpack.c.b16 %v3412, %v3410
        %v4975 = vpack.c.b16 %v3415, %v3413
        %v4976 = vpack.c.b16 %v3416, %v3414
        %v4977 = vpack.c.b16 %v3419, %v3417
        %v4978 = vpack.c.b16 %v3420, %v3418
        %v4979 = vpack.c.b16 %v3423, %v3421
        %v4980 = vpack.c.b16 %v3424, %v3422
        %v4981 = vpack.c.b16 %v3427, %v3425
        %v4982 = vpack.c.b16 %v3428, %v3426
        %v4983 = vpack.c.b16 %v3431, %v3429
        %v4984 = vpack.c.b16 %v3432, %v3430
        %v4985 = vpack.c.b16 %v3435, %v3433
        %v4986 = vpack.c.b16 %v3436, %v3434
        %v4987 = vpack.c.b16 %v3439, %v3437
        %v4988 = vpack.c.b16 %v3440, %v3438
        %v4989 = vpack.c.b16 %v3443, %v3441
        %v4990 = vpack.c.b16 %v3444, %v3442
        %v4991 = vpack.c.b16 %v3447, %v3445
        %v4992 = vpack.c.b16 %v3448, %v3446
        %v4993 = vpack.c.b16 %v3451, %v3449
        %v4994 = vpack.c.b16 %v3452, %v3450
        %v4995 = vpack.c.b16 %v3455, %v3453
        %v4996 = vpack.c.b16 %v3456, %v3454
        %v4997 = vpack.c.b16 %v3459, %v3457
        %v4998 = vpack.c.b16 %v3460, %v3458
        %v4999 = vpack.c.b16 %v3463, %v3461
        %v5000 = vpack.c.b16 %v3464, %v3462
        %v5001 = vpack.c.b16 %v3467, %v3465
        %v5002 = vpack.c.b16 %v3468, %v3466
        %v5003 = vpack.c.b16 %v3471, %v3469
        %v5004 = vpack.c.b16 %v3472, %v3470
        %v5005 = vpack.c.b16 %v3475, %v3473
        %v5006 = vpack.c.b16 %v3476, %v3474
        %v5007 = vpack.c.b16 %v3479, %v3477
        %v5008 = vpack.c.b16 %v3480, %v3478
        %v5009 = vpack.c.b16 %v3483, %v3481
        %v5010 = vpack.c.b16 %v3484, %v3482
        %v5011 = vpack.c.b16 %v3487, %v3485
        %v5012 = vpack.c.b16 %v3488, %v3486
        %v5013 = vpack.c.b16 %v3491, %v3489
        %v5014 = vpack.c.b16 %v3492, %v3490
        %v5015 = vpack.c.b16 %v3495, %v3493
        %v5016 = vpack.c.b16 %v3496, %v3494
        %v5017 = vpack.c.b16 %v3499, %v3497
        %v5018 = vpack.c.b16 %v3500, %v3498
        %v5019 = vpack.c.b16 %v3503, %v3501
        %v5020 = vpack.c.b16 %v3504, %v3502
        %v5021 = vpack.c.b16 %v3507, %v3505
        %v5022 = vpack.c.b16 %v3508, %v3506
        %v5023 = vpack.c.b16 %v3511, %v3509
        %v5024 = vpack.c.b16 %v3512, %v3510
        %v5025 = vpack.c.b16 %v3515, %v3513
        %v5026 = vpack.c.b16 %v3516, %v3514
        %v5027 = vpack.c.b16 %v3519, %v3517
        %v5028 = vpack.c.b16 %v3520, %v3518
        %v5029 = vpack.c.b16 %v3523, %v3521
        %v5030 = vpack.c.b16 %v3524, %v3522
        %v5031 = vpack.c.b16 %v3527, %v3525
        %v5032 = vpack.c.b16 %v3528, %v3526
        %v5033 = vpack.c.b16 %v3531, %v3529
        %v5034 = vpack.c.b16 %v3532, %v3530
        %v5035 = vpack.c.b16 %v3535, %v3533
        %v5036 = vpack.c.b16 %v3536, %v3534
        %v5037 = vpack.c.b16 %v3539, %v3537
        %v5038 = vpack.c.b16 %v3540, %v3538
        %v5039 = vpack.c.b16 %v3543, %v3541
        %v5040 = vpack.c.b16 %v3544, %v3542
        %v5041 = vpack.c.b16 %v3547, %v3545
        %v5042 = vpack.c.b16 %v3548, %v3546
        %v5043 = vpack.c.b16 %v3551, %v3549
        %v5044 = vpack.c.b16 %v3552, %v3550
        %v5045 = vpack.c.b16 %v3555, %v3553
        %v5046 = vpack.c.b16 %v3556, %v3554
        %v5047 = vpack.c.b16 %v3559, %v3557
        %v5048 = vpack.c.b16 %v3560, %v3558
        %v5049 = vpack.c.b16 %v3563, %v3561
        %v5050 = vpack.c.b16 %v3564, %v3562
        %v5051 = vpack.c.b16 %v3567, %v3565
        %v5052 = vpack.c.b16 %v3568, %v3566
        %v5053 = vpack.c.b16 %v3571, %v3569
        %v5054 = vpack.c.b16 %v3572, %v3570
        %v5055 = vpack.c.b16 %v3575, %v3573
        %v5056 = vpack.c.b16 %v3576, %v3574
        %v5057 = vpack.c.b16 %v3579, %v3577
        %v5058 = vpack.c.b16 %v3580, %v3578
        %v5059 = vpack.c.b16 %v3583, %v3581
        %v5060 = vpack.c.b16 %v3584, %v3582
        %v5061 = vpack.c.b16 %v3587, %v3585
        %v5062 = vpack.c.b16 %v3588, %v3586
        %v5063 = vpack.c.b16 %v3591, %v3589
        %v5064 = vpack.c.b16 %v3592, %v3590
        %v5065 = vpack.c.b16 %v3595, %v3593
        %v5066 = vpack.c.b16 %v3596, %v3594
        %v5067 = vpack.c.b16 %v3599, %v3597
        %v5068 = vpack.c.b16 %v3600, %v3598
        %v5069 = vpack.c.b16 %v3603, %v3601
        %v5070 = vpack.c.b16 %v3604, %v3602
        %v5071 = vpack.c.b16 %v3607, %v3605
        %v5072 = vpack.c.b16 %v3608, %v3606
        %v5073 = vpack.c.b16 %v3611, %v3609
        %v5074 = vpack.c.b16 %v3612, %v3610
        %v5075 = vpack.c.b16 %v3615, %v3613
        %v5076 = vpack.c.b16 %v3616, %v3614
        %v5077 = vpack.c.b16 %v3619, %v3617
        %v5078 = vpack.c.b16 %v3620, %v3618
        %v5079 = vpack.c.b16 %v3623, %v3621
        %v5080 = vpack.c.b16 %v3624, %v3622
        %v5081 = vpack.c.b16 %v3627, %v3625
        %v5082 = vpack.c.b16 %v3628, %v3626
        %v5083 = vpack.c.b16 %v3631, %v3629
        %v5084 = vpack.c.b16 %v3632, %v3630
        %v5085 = vpack.c.b16 %v3635, %v3633
        %v5086 = vpack.c.b16 %v3636, %v3634
        %v5087 = vpack.c.b16 %v3639, %v3637
        %v5088 = vpack.c.b16 %v3640, %v3638
        %v5089 = vpack.c.b16 %v3643, %v3641
        %v5090 = vpack.c.b16 %v3644, %v3642
        %v5091 = vpack.c.b16 %v3647, %v3645
        %v5092 = vpack.c.b16 %v3648, %v3646
        %v5093 = vpack.c.b16 %v3651, %v3649
        %v5094 = vpack.c.b16 %v3652, %v3650
        %v5095 = vpack.c.b16 %v3655, %v3653
        %v5096 = vpack.c.b16 %v3656, %v3654
        %v5097 = vpack.c.b16 %v3659, %v3657
        %v5098 = vpack.c.b16 %v3660, %v3658
        %v5099 = vpack.c.b16 %v3663, %v3661
        %v5100 = vpack.c.b16 %v3664, %v3662
        %v5101 = vpack.c.b16 %v3667, %v3665
        %v5102 = vpack.c.b16 %v3668, %v3666
        %v5103 = vpack.c.b16 %v3671, %v3669
        %v5104 = vpack.c.b16 %v3672, %v3670
        %v5105 = vpack.c.b16 %v3675, %v3673
        %v5106 = vpack.c.b16 %v3676, %v3674
        %v5107 = vpack.c.b16 %v3679, %v3677
        %v5108 = vpack.c.b16 %v3680, %v3678
        %v5109 = vpack.c.b16 %v3683, %v3681
        %v5110 = vpack.c.b16 %v3684, %v3682
        %v5111 = vpack.c.b16 %v3687, %v3685
        %v5112 = vpack.c.b16 %v3688, %v3686
        %v5113 = vpack.c.b16 %v3691, %v3689
        %v5114 = vpack.c.b16 %v3692, %v3690
        %v5115 = vpack.c.b16 %v3695, %v3693
        %v5116 = vpack.c.b16 %v3696, %v3694
        %v5117 = vpack.c.b16 %v3699, %v3697
        %v5118 = vpack.c.b16 %v3700, %v3698
        %v5119 = vpack.c.b16 %v3703, %v3701
        %v5120 = vpack.c.b16 %v3704, %v3702
        %v5121 = vpack.c.b16 %v3707, %v3705
        %v5122 = vpack.c.b16 %v3708, %v3706
        %v5123 = vpack.c.b16 %v3711, %v3709
        %v5124 = vpack.c.b16 %v3712, %v3710
        %v5125 = vpack.c.b16 %v3715, %v3713
        %v5126 = vpack.c.b16 %v3716, %v3714
        %v5127 = vpack.c.b16 %v3719, %v3717
        %v5128 = vpack.c.b16 %v3720, %v3718
        %v5129 = vpack.c.b16 %v3723, %v3721
        %v5130 = vpack.c.b16 %v3724, %v3722
        %v5131 = vpack.c.b16 %v3727, %v3725
        %v5132 = vpack.c.b16 %v3728, %v3726
        %v5133 = vpack.c.b16 %v3731, %v3729
        %v5134 = vpack.c.b16 %v3732, %v3730
        %v5135 = vpack.c.b16 %v3735, %v3733
        %v5136 = vpack.c.b16 %v3736, %v3734
        %v5137 = vpack.c.b16 %v3739, %v3737
        %v5138 = vpack.c.b16 %v3740, %v3738
        %v5139 = vpack.c.b16 %v3743, %v3741
        %v5140 = vpack.c.b16 %v3744, %v3742
        %v5141 = vpack.c.b16 %v3747, %v3745
        %v5142 = vpack.c.b16 %v3748, %v3746
        %v5143 = vpack.c.b16 %v3751, %v3749
        %v5144 = vpack.c.b16 %v3752, %v3750
        %v5145 = vpack.c.b16 %v3755, %v3753
        %v5146 = vpack.c.b16 %v3756, %v3754
        %v5147 = vpack.c.b16 %v3759, %v3757
        %v5148 = vpack.c.b16 %v3760, %v3758
        %v5149 = vpack.c.b16 %v3763, %v3761
        %v5150 = vpack.c.b16 %v3764, %v3762
        %v5151 = vpack.c.b16 %v3767, %v3765
        %v5152 = vpack.c.b16 %v3768, %v3766
        %v5153 = vpack.c.b16 %v3771, %v3769
        %v5154 = vpack.c.b16 %v3772, %v3770
        %v5155 = vpack.c.b16 %v3775, %v3773
        %v5156 = vpack.c.b16 %v3776, %v3774
        %v5157 = vpack.c.b16 %v3779, %v3777
        %v5158 = vpack.c.b16 %v3780, %v3778
        %v5159 = vpack.c.b16 %v3783, %v3781
        %v5160 = vpack.c.b16 %v3784, %v3782
        %v5161 = vpack.c.b16 %v3787, %v3785
        %v5162 = vpack.c.b16 %v3788, %v3786
        %v5163 = vpack.c.b16 %v3791, %v3789
        %v5164 = vpack.c.b16 %v3792, %v3790
        %v5165 = vpack.c.b16 %v3795, %v3793
        %v5166 = vpack.c.b16 %v3796, %v3794
        %v5167 = vpack.c.b16 %v3799, %v3797
        %v5168 = vpack.c.b16 %v3800, %v3798
        %v5169 = vpack.c.b16 %v3803, %v3801
        %v5170 = vpack.c.b16 %v3804, %v3802
        %v5171 = vpack.c.b16 %v3807, %v3805
        %v5172 = vpack.c.b16 %v3808, %v3806
        %v5173 = vpack.c.b16 %v3811, %v3809
        %v5174 = vpack.c.b16 %v3812, %v3810
        %v5175 = vpack.c.b16 %v3815, %v3813
        %v5176 = vpack.c.b16 %v3816, %v3814
        %v5177 = vpack.c.b16 %v3819, %v3817
        %v5178 = vpack.c.b16 %v3820, %v3818
        %v5179 = vpack.c.b16 %v3823, %v3821
        %v5180 = vpack.c.b16 %v3824, %v3822
        %v5181 = vpack.c.b16 %v3827, %v3825
        %v5182 = vpack.c.b16 %v3828, %v3826
        %v5183 = vpack.c.b16 %v3831, %v3829
        %v5184 = vpack.c.b16 %v3832, %v3830
        %v5185 = vpack.c.b16 %v3835, %v3833
        %v5186 = vpack.c.b16 %v3836, %v3834
        %v5187 = vpack.c.b16 %v3839, %v3837
        %v5188 = vpack.c.b16 %v3840, %v3838
        %v5189 = vpack.c.b16 %v3843, %v3841
        %v5190 = vpack.c.b16 %v3844, %v3842
        %v5191 = vpack.c.b16 %v3847, %v3845
        %v5192 = vpack.c.b16 %v3848, %v3846
        %v5193 = vpack.c.b16 %v3851, %v3849
        %v5194 = vpack.c.b16 %v3852, %v3850
        %v5195 = vpack.c.b16 %v3855, %v3853
        %v5196 = vpack.c.b16 %v3856, %v3854
        %v5197 = vpack.c.b16 %v3859, %v3857
        %v5198 = vpack.c.b16 %v3860, %v3858
        %v5199 = vpack.c.b16 %v3863, %v3861
        %v5200 = vpack.c.b16 %v3864, %v3862
        %v5201 = vpack.c.b16 %v3867, %v3865
        %v5202 = vpack.c.b16 %v3868, %v3866
        %v5203 = vpack.c.b16 %v3871, %v3869
        %v5204 = vpack.c.b16 %v3872, %v3870
        %v5205 = vpack.c.b16 %v3875, %v3873
        %v5206 = vpack.c.b16 %v3876, %v3874
        %v5207 = vpack.c.b16 %v3879, %v3877
        %v5208 = vpack.c.b16 %v3880, %v3878
        %v5209 = vpack.c.b16 %v3883, %v3881
        %v5210 = vpack.c.b16 %v3884, %v3882
        %v5211 = vpack.c.b16 %v3887, %v3885
        %v5212 = vpack.c.b16 %v3888, %v3886
        %v5213 = vpack.c.b16 %v3891, %v3889
        %v5214 = vpack.c.b16 %v3892, %v3890
        %v5215 = vpack.c.b16 %v3895, %v3893
        %v5216 = vpack.c.b16 %v3896, %v3894
        %v5217 = vpack.c.b16 %v3899, %v3897
        %v5218 = vpack.c.b16 %v3900, %v3898
        %v5219 = vpack.c.b16 %v3903, %v3901
        %v5220 = vpack.c.b16 %v3904, %v3902
        %v5221 = vpack.c.b16 %v3907, %v3905
        %v5222 = vpack.c.b16 %v3908, %v3906
        %v5223 = vpack.c.b16 %v3911, %v3909
        %v5224 = vpack.c.b16 %v3912, %v3910
        %v5225 = vpack.c.b16 %v3915, %v3913
        %v5226 = vpack.c.b16 %v3916, %v3914
        %v5227 = vpack.c.b16 %v3919, %v3917
        %v5228 = vpack.c.b16 %v3920, %v3918
        %v5229 = vpack.c.b16 %v3923, %v3921
        %v5230 = vpack.c.b16 %v3924, %v3922
        %v5231 = vpack.c.b16 %v3927, %v3925
        %v5232 = vpack.c.b16 %v3928, %v3926
        %v5233 = vpack.c.b16 %v3931, %v3929
        %v5234 = vpack.c.b16 %v3932, %v3930
        %v5235 = vpack.c.b16 %v3935, %v3933
        %v5236 = vpack.c.b16 %v3936, %v3934
        %v5237 = vpack.c.b16 %v3939, %v3937
        %v5238 = vpack.c.b16 %v3940, %v3938
        %v5239 = vpack.c.b16 %v3943, %v3941
        %v5240 = vpack.c.b16 %v3944, %v3942
        %v5241 = vpack.c.b16 %v3947, %v3945
        %v5242 = vpack.c.b16 %v3948, %v3946
        %v5243 = vpack.c.b16 %v3951, %v3949
        %v5244 = vpack.c.b16 %v3952, %v3950
        %v5245 = vpack.c.b16 %v3955, %v3953
        %v5246 = vpack.c.b16 %v3956, %v3954
        %v5247 = vpack.c.b16 %v3959, %v3957
        %v5248 = vpack.c.b16 %v3960, %v3958
        %v5249 = vpack.c.b16 %v3963, %v3961
        %v5250 = vpack.c.b16 %v3964, %v3962
        %v5251 = vpack.c.b16 %v3967, %v3965
        %v5252 = vpack.c.b16 %v3968, %v3966
        %v5253 = vpack.c.b16 %v3971, %v3969
        %v5254 = vpack.c.b16 %v3972, %v3970
        %v5255 = vpack.c.b16 %v3975, %v3973
        %v5256 = vpack.c.b16 %v3976, %v3974
        %v5257 = vpack.c.b16 %v3979, %v3977
        %v5258 = vpack.c.b16 %v3980, %v3978
        %v5259 = vpack.c.b16 %v3983, %v3981
        %v5260 = vpack.c.b16 %v3984, %v3982
        %v5261 = vpack.c.b16 %v3987, %v3985
        %v5262 = vpack.c.b16 %v3988, %v3986
        %v5263 = vpack.c.b16 %v3991, %v3989
        %v5264 = vpack.c.b16 %v3992, %v3990
        %v5265 = vpack.c.b16 %v3995, %v3993
        %v5266 = vpack.c.b16 %v3996, %v3994
        %v5267 = vpack.c.b16 %v3999, %v3997
        %v5268 = vpack.c.b16 %v4000, %v3998
        %v5269 = vpack.c.b16 %v4003, %v4001
        %v5270 = vpack.c.b16 %v4004, %v4002
        %v5271 = vpack.c.b16 %v4007, %v4005
        %v5272 = vpack.c.b16 %v4008, %v4006
        %v5273 = vpack.c.b16 %v4011, %v4009
        %v5274 = vpack.c.b16 %v4012, %v4010
        %v5275 = vpack.c.b16 %v4015, %v4013
        %v5276 = vpack.c.b16 %v4016, %v4014
        %v5277 = vpack.c.b16 %v4019, %v4017
        %v5278 = vpack.c.b16 %v4020, %v4018
        %v5279 = vpack.c.b16 %v4023, %v4021
        %v5280 = vpack.c.b16 %v4024, %v4022
        %v5281 = vpack.c.b16 %v4027, %v4025
        %v5282 = vpack.c.b16 %v4028, %v4026
        %v5283 = vpack.c.b16 %v4031, %v4029
        %v5284 = vpack.c.b16 %v4032, %v4030
        %v5285 = vpack.c.b16 %v4035, %v4033
        %v5286 = vpack.c.b16 %v4036, %v4034
        %v5287 = vpack.c.b16 %v4039, %v4037
        %v5288 = vpack.c.b16 %v4040, %v4038
        %v5289 = vpack.c.b16 %v4043, %v4041
        %v5290 = vpack.c.b16 %v4044, %v4042
        %v5291 = vpack.c.b16 %v4047, %v4045
        %v5292 = vpack.c.b16 %v4048, %v4046
        %v5293 = vpack.c.b16 %v4051, %v4049
        %v5294 = vpack.c.b16 %v4052, %v4050
        %v5295 = vpack.c.b16 %v4055, %v4053
        %v5296 = vpack.c.b16 %v4056, %v4054
        %v5297 = vpack.c.b16 %v4059, %v4057
        %v5298 = vpack.c.b16 %v4060, %v4058
        %v5299 = vpack.c.b16 %v4063, %v4061
        %v5300 = vpack.c.b16 %v4064, %v4062
        %v5301 = vpack.c.b16 %v4067, %v4065
        %v5302 = vpack.c.b16 %v4068, %v4066
        %v5303 = vpack.c.b16 %v4071, %v4069
        %v5304 = vpack.c.b16 %v4072, %v4070
        %v5305 = vpack.c.b16 %v4075, %v4073
        %v5306 = vpack.c.b16 %v4076, %v4074
        %v5307 = vpack.c.b16 %v4079, %v4077
        %v5308 = vpack.c.b16 %v4080, %v4078
        %v5309 = vpack.c.b16 %v4083, %v4081
        %v5310 = vpack.c.b16 %v4084, %v4082
        %v5311 = vpack.c.b16 %v4087, %v4085
        %v5312 = vpack.c.b16 %v4088, %v4086
        %v5313 = vpack.c.b16 %v4091, %v4089
        %v5314 = vpack.c.b16 %v4092, %v4090
        %v5315 = vpack.c.b16 %v4095, %v4093
        %v5316 = vpack.c.b16 %v4096, %v4094
        %v5317 = vpack.c.b16 %v4099, %v4097
        %v5318 = vpack.c.b16 %v4100, %v4098
        %v5319 = vpack.c.b16 %v4103, %v4101
        %v5320 = vpack.c.b16 %v4104, %v4102
        %v5321 = vpack.c.b16 %v4107, %v4105
        %v5322 = vpack.c.b16 %v4108, %v4106
        %v5323 = vpack.c.b16 %v4111, %v4109
        %v5324 = vpack.c.b16 %v4112, %v4110
        %v5325 = vpack.c.b16 %v4115, %v4113
        %v5326 = vpack.c.b16 %v4116, %v4114
        %v5327 = vpack.c.b16 %v4119, %v4117
        %v5328 = vpack.c.b16 %v4120, %v4118
        %v5329 = vpack.c.b16 %v4123, %v4121
        %v5330 = vpack.c.b16 %v4124, %v4122
        %v5331 = vpack.c.b16 %v4127, %v4125
        %v5332 = vpack.c.b16 %v4128, %v4126
        %v5333 = vpack.c.b16 %v4131, %v4129
        %v5334 = vpack.c.b16 %v4132, %v4130
        %v5335 = vpack.c.b16 %v4135, %v4133
        %v5336 = vpack.c.b16 %v4136, %v4134
        %v5337 = vpack.c.b16 %v4139, %v4137
        %v5338 = vpack.c.b16 %v4140, %v4138
        %v5339 = vpack.c.b16 %v4143, %v4141
        %v5340 = vpack.c.b16 %v4144, %v4142
        %v5341 = vpack.c.b16 %v4147, %v4145
        %v5342 = vpack.c.b16 %v4148, %v4146
        %v5343 = vpack.c.b16 %v4151, %v4149
        %v5344 = vpack.c.b16 %v4152, %v4150
        %v5345 = vpack.c.b16 %v4155, %v4153
        %v5346 = vpack.c.b16 %v4156, %v4154
        %v5347 = vpack.c.b16 %v4159, %v4157
        %v5348 = vpack.c.b16 %v4160, %v4158
        %v5349 = vpack.c.b16 %v4163, %v4161
        %v5350 = vpack.c.b16 %v4164, %v4162
        %v5351 = vpack.c.b16 %v4167, %v4165
        %v5352 = vpack.c.b16 %v4168, %v4166
        %v5353 = vpack.c.b16 %v4171, %v4169
        %v5354 = vpack.c.b16 %v4172, %v4170
        %v5355 = vpack.c.b16 %v4175, %v4173
        %v5356 = vpack.c.b16 %v4176, %v4174
        %v5357 = vpack.c.b16 %v4179, %v4177
        %v5358 = vpack.c.b16 %v4180, %v4178
        %v5359 = vpack.c.b16 %v4183, %v4181
        %v5360 = vpack.c.b16 %v4184, %v4182
        %v5361 = vpack.c.b16 %v4187, %v4185
        %v5362 = vpack.c.b16 %v4188, %v4186
        %v5363 = vpack.c.b16 %v4191, %v4189
        %v5364 = vpack.c.b16 %v4192, %v4190
        %v5365 = vpack.c.b16 %v4195, %v4193
        %v5366 = vpack.c.b16 %v4196, %v4194
        %v5367 = vpack.c.b16 %v4199, %v4197
        %v5368 = vpack.c.b16 %v4200, %v4198
        %v5369 = vpack.c.b16 %v4203, %v4201
        %v5370 = vpack.c.b16 %v4204, %v4202
        %v5371 = vpack.c.b16 %v4207, %v4205
        %v5372 = vpack.c.b16 %v4208, %v4206
        %v5373 = vpack.c.b16 %v4211, %v4209
        %v5374 = vpack.c.b16 %v4212, %v4210
        %v5375 = vpack.c.b16 %v4215, %v4213
        %v5376 = vpack.c.b16 %v4216, %v4214
        %v5377 = vpack.c.b16 %v4219, %v4217
        %v5378 = vpack.c.b16 %v4220, %v4218
        %v5379 = vpack.c.b16 %v4223, %v4221
        %v5380 = vpack.c.b16 %v4224, %v4222
        %v5381 = vpack.c.b16 %v4227, %v4225
        %v5382 = vpack.c.b16 %v4228, %v4226
        %v5383 = vpack.c.b16 %v4231, %v4229
        %v5384 = vpack.c.b16 %v4232, %v4230
        %v5385 = vpack.c.b16 %v4235, %v4233
        %v5386 = vpack.c.b16 %v4236, %v4234
        %v5387 = vpack.c.b16 %v4239, %v4237
        %v5388 = vpack.c.b16 %v4240, %v4238
        %v5389 = vpack.c.b16 %v4243, %v4241
        %v5390 = vpack.c.b16 %v4244, %v4242
        %v5391 = vpack.c.b16 %v4247, %v4245
        %v5392 = vpack.c.b16 %v4248, %v4246
        %v5393 = vpack.c.b16 %v4251, %v4249
        %v5394 = vpack.c.b16 %v4252, %v4250
        %v5395 = vpack.c.b16 %v4255, %v4253
        %v5396 = vpack.c.b16 %v4256, %v4254
        %v5397 = vpack.c.b16 %v4259, %v4257
        %v5398 = vpack.c.b16 %v4260, %v4258
        %v5399 = vpack.c.b16 %v4263, %v4261
        %v5400 = vpack.c.b16 %v4264, %v4262
        %v5401 = vpack.c.b16 %v4267, %v4265
        %v5402 = vpack.c.b16 %v4268, %v4266
        %v5403 = vpack.c.b16 %v4271, %v4269
        %v5404 = vpack.c.b16 %v4272, %v4270
        %v5405 = vpack.c.b16 %v4275, %v4273
        %v5406 = vpack.c.b16 %v4276, %v4274
        %v5407 = vpack.c.b16 %v4279, %v4277
        %v5408 = vpack.c.b16 %v4280, %v4278
        %v5409 = vpack.c.b16 %v4283, %v4281
        %v5410 = vpack.c.b16 %v4284, %v4282
        %v5411 = vpack.c.b16 %v4287, %v4285
        %v5412 = vpack.c.b16 %v4288, %v4286
        %v5413 = vpack.c.b16 %v4291, %v4289
        %v5414 = vpack.c.b16 %v4292, %v4290
        %v5415 = vpack.c.b16 %v4295, %v4293
        %v5416 = vpack.c.b16 %v4296, %v4294
        %v5417 = vpack.c.b16 %v4299, %v4297
        %v5418 = vpack.c.b16 %v4300, %v4298
        %v5419 = vpack.c.b16 %v4303, %v4301
        %v5420 = vpack.c.b16 %v4304, %v4302
        %v5421 = vpack.c.b16 %v4307, %v4305
        %v5422 = vpack.c.b16 %v4308, %v4306
        %v5423 = vpack.c.b16 %v4311, %v4309
        %v5424 = vpack.c.b16 %v4312, %v4310
        %v5425 = vpack.c.b16 %v4315, %v4313
        %v5426 = vpack.c.b16 %v4316, %v4314
        %v5427 = vpack.c.b16 %v4319, %v4317
        %v5428 = vpack.c.b16 %v4320, %v4318
        %v5429 = vpack.c.b16 %v4323, %v4321
        %v5430 = vpack.c.b16 %v4324, %v4322
        %v5431 = vpack.c.b16 %v4327, %v4325
        %v5432 = vpack.c.b16 %v4328, %v4326
        %v5433 = vpack.c.b16 %v4331, %v4329
        %v5434 = vpack.c.b16 %v4332, %v4330
        %v5435 = vpack.c.b16 %v4335, %v4333
        %v5436 = vpack.c.b16 %v4336, %v4334
        %v5437 = vpack.c.b16 %v4339, %v4337
        %v5438 = vpack.c.b16 %v4340, %v4338
        %v5439 = vpack.c.b16 %v4343, %v4341
        %v5440 = vpack.c.b16 %v4344, %v4342
        %v5441 = vpack.c.b16 %v4347, %v4345
        %v5442 = vpack.c.b16 %v4348, %v4346
        %v5443 = vpack.c.b16 %v4351, %v4349
        %v5444 = vpack.c.b16 %v4352, %v4350
        %v5445 = vpack.c.b16 %v4355, %v4353
        %v5446 = vpack.c.b16 %v4356, %v4354
        %v5447 = vpack.c.b16 %v4359, %v4357
        %v5448 = vpack.c.b16 %v4360, %v4358
        %v5449 = vpack.c.b16 %v4363, %v4361
        %v5450 = vpack.c.b16 %v4364, %v4362
        %v5451 = vpack.c.b16 %v4367, %v4365
        %v5452 = vpack.c.b16 %v4368, %v4366
        %v5453 = vpack.c.b16 %v4371, %v4369
        %v5454 = vpack.c.b16 %v4372, %v4370
        %v5455 = vpack.c.b16 %v4375, %v4373
        %v5456 = vpack.c.b16 %v4376, %v4374
        %v5457 = vpack.c.b16 %v4379, %v4377
        %v5458 = vpack.c.b16 %v4380, %v4378
        %v5459 = vpack.c.b16 %v4383, %v4381
        %v5460 = vpack.c.b16 %v4384, %v4382
        %v5461 = vpack.c.b16 %v4387, %v4385
        %v5462 = vpack.c.b16 %v4388, %v4386
        %v5463 = vpack.c.b16 %v4391, %v4389
        %v5464 = vpack.c.b16 %v4392, %v4390
        %v5465 = vpack.c.b16 %v4395, %v4393
        %v5466 = vpack.c.b16 %v4396, %v4394
        %v5467 = vpack.c.b16 %v4399, %v4397
        %v5468 = vpack.c.b16 %v4400, %v4398
        %v5469 = vpack.c.b16 %v4403, %v4401
        %v5470 = vpack.c.b16 %v4404, %v4402
        %v5471 = vpack.c.b16 %v4407, %v4405
        %v5472 = vpack.c.b16 %v4408, %v4406
        %v5473 = vpack.c.b16 %v4411, %v4409
        %v5474 = vpack.c.b16 %v4412, %v4410
        %v5475 = vpack.c.b16 %v4415, %v4413
        %v5476 = vpack.c.b16 %v4416, %v4414
        %v5477 = vpack.c.b16 %v4419, %v4417
        %v5478 = vpack.c.b16 %v4420, %v4418
        %v5479 = vpack.c.b16 %v4423, %v4421
        %v5480 = vpack.c.b16 %v4424, %v4422
        %v5481 = vpack.c.b16 %v4427, %v4425
        %v5482 = vpack.c.b16 %v4428, %v4426
        %v5483 = vpack.c.b16 %v4431, %v4429
        %v5484 = vpack.c.b16 %v4432, %v4430
        %v5485 = vpack.c.b16 %v4435, %v4433
        %v5486 = vpack.c.b16 %v4436, %v4434
        %v5487 = vpack.c.b16 %v4439, %v4437
        %v5488 = vpack.c.b16 %v4440, %v4438
        %v5489 = vpack.c.b16 %v4443, %v4441
        %v5490 = vpack.c.b16 %v4444, %v4442
        %v5491 = vpack.c.b16 %v4447, %v4445
        %v5492 = vpack.c.b16 %v4448, %v4446
        %v5493 = vpack.c.b16 %v4451, %v4449
        %v5494 = vpack.c.b16 %v4452, %v4450
        %v5495 = vpack.c.b16 %v4455, %v4453
        %v5496 = vpack.c.b16 %v4456, %v4454
        %v5497 = vpack.c.b16 %v4459, %v4457
        %v5498 = vpack.c.b16 %v4460, %v4458
        %v5499 = vpack.c.b16 %v4463, %v4461
        %v5500 = vpack.c.b16 %v4464, %v4462
        %v5501 = vpack.c.b16 %v4467, %v4465
        %v5502 = vpack.c.b16 %v4468, %v4466
        %v5503 = vpack.c.b16 %v4471, %v4469
        %v5504 = vpack.c.b16 %v4472, %v4470
        %v5505 = vpack.c.b16 %v4475, %v4473
        %v5506 = vpack.c.b16 %v4476, %v4474
        %v5507 = vpack.c.b16 %v4479, %v4477
        %v5508 = vpack.c.b16 %v4480, %v4478
        %v5509 = vpack.c.b16 %v4483, %v4481
        %v5510 = vpack.c.b16 %v4484, %v4482
        %v5511 = vpack.c.b16 %v4487, %v4485
        %v5512 = vpack.c.b16 %v4488, %v4486
        %6537 = vmatpush.bf16.msra.mxu0 %v4503
        %6538 = vmatpush.bf16.msra.mxu0 %v4501
        %6539 = vmatpush.bf16.msra.mxu0 %v4499
        %6540 = vmatpush.bf16.msra.mxu0 %v4497
        %6541 = vmatpush.bf16.msra.mxu0 %v4495
        %6542 = vmatpush.bf16.msra.mxu0 %v4493
        %6543 = vmatpush.bf16.msra.mxu0 %v4491
        %6544 = vmatpush.bf16.msra.mxu0 %v4489
        %6545 = vmatmul.bf16.gmra.mxu0 %v1275
        %v6546 = vpop.f32.mrf.mxu0
        %v6547 = vadd.f32 0.0, %v6546
        %v6548 = vpop.f32.mrf.mxu0
        %6549 = vdwg.mxu0
        %6550 = vmatpush.bf16.msra.mxu0 %v4519
        %6551 = vmatpush.bf16.msra.mxu0 %v4517
        %6552 = vmatpush.bf16.msra.mxu0 %v4515
        %6553 = vmatpush.bf16.msra.mxu0 %v4513
        %6554 = vmatpush.bf16.msra.mxu0 %v4511
        %6555 = vmatpush.bf16.msra.mxu0 %v4509
        %6556 = vmatpush.bf16.msra.mxu0 %v4507
        %6557 = vmatpush.bf16.msra.mxu0 %v4505
        %6558 = vmatmul.bf16.gmra.mxu0 %v1276
        %v6559 = vpop.f32.mrf.mxu0
        %v6560 = vadd.f32 %v6547, %v6559
        %v6561 = vpop.f32.mrf.mxu0
        %6562 = vdwg.mxu0
        %6563 = vmatpush.bf16.msra.mxu0 %v4535
        %6564 = vmatpush.bf16.msra.mxu0 %v4533
        %6565 = vmatpush.bf16.msra.mxu0 %v4531
        %6566 = vmatpush.bf16.msra.mxu0 %v4529
        %6567 = vmatpush.bf16.msra.mxu0 %v4527
        %6568 = vmatpush.bf16.msra.mxu0 %v4525
        %6569 = vmatpush.bf16.msra.mxu0 %v4523
        %6570 = vmatpush.bf16.msra.mxu0 %v4521
        %6571 = vmatmul.bf16.gmra.mxu0 %v1277
        %v6572 = vpop.f32.mrf.mxu0
        %v6573 = vadd.f32 %v6560, %v6572
        %v6574 = vpop.f32.mrf.mxu0
        %6575 = vdwg.mxu0
        %6576 = vmatpush.bf16.msra.mxu0 %v4551
        %6577 = vmatpush.bf16.msra.mxu0 %v4549
        %6578 = vmatpush.bf16.msra.mxu0 %v4547
        %6579 = vmatpush.bf16.msra.mxu0 %v4545
        %6580 = vmatpush.bf16.msra.mxu0 %v4543
        %6581 = vmatpush.bf16.msra.mxu0 %v4541
        %6582 = vmatpush.bf16.msra.mxu0 %v4539
        %6583 = vmatpush.bf16.msra.mxu0 %v4537
        %6584 = vmatmul.bf16.gmra.mxu0 %v1278
        %v6585 = vpop.f32.mrf.mxu0
        %v6586 = vadd.f32 %v6573, %v6585
        %v6587 = vpop.f32.mrf.mxu0
        %6588 = vdwg.mxu0
        %6589 = vmatpush.bf16.msra.mxu0 %v4567
        %6590 = vmatpush.bf16.msra.mxu0 %v4565
        %6591 = vmatpush.bf16.msra.mxu0 %v4563
        %6592 = vmatpush.bf16.msra.mxu0 %v4561
        %6593 = vmatpush.bf16.msra.mxu0 %v4559
        %6594 = vmatpush.bf16.msra.mxu0 %v4557
        %6595 = vmatpush.bf16.msra.mxu0 %v4555
        %6596 = vmatpush.bf16.msra.mxu0 %v4553
        %6597 = vmatmul.bf16.gmra.mxu0 %v1279
        %v6598 = vpop.f32.mrf.mxu0
        %v6599 = vadd.f32 %v6586, %v6598
        %v6600 = vpop.f32.mrf.mxu0
        %6601 = vdwg.mxu0
        %6602 = vmatpush.bf16.msra.mxu0 %v4583
        %6603 = vmatpush.bf16.msra.mxu0 %v4581
        %6604 = vmatpush.bf16.msra.mxu0 %v4579
        %6605 = vmatpush.bf16.msra.mxu0 %v4577
        %6606 = vmatpush.bf16.msra.mxu0 %v4575
        %6607 = vmatpush.bf16.msra.mxu0 %v4573
        %6608 = vmatpush.bf16.msra.mxu0 %v4571
        %6609 = vmatpush.bf16.msra.mxu0 %v4569
        %6610 = vmatmul.bf16.gmra.mxu0 %v1280
        %v6611 = vpop.f32.mrf.mxu0
        %v6612 = vadd.f32 %v6599, %v6611
        %v6613 = vpop.f32.mrf.mxu0
        %6614 = vdwg.mxu0
        %6615 = vmatpush.bf16.msra.mxu0 %v4599
        %6616 = vmatpush.bf16.msra.mxu0 %v4597
        %6617 = vmatpush.bf16.msra.mxu0 %v4595
        %6618 = vmatpush.bf16.msra.mxu0 %v4593
        %6619 = vmatpush.bf16.msra.mxu0 %v4591
        %6620 = vmatpush.bf16.msra.mxu0 %v4589
        %6621 = vmatpush.bf16.msra.mxu0 %v4587
        %6622 = vmatpush.bf16.msra.mxu0 %v4585
        %6623 = vmatmul.bf16.gmra.mxu0 %v1281
        %v6624 = vpop.f32.mrf.mxu0
        %v6625 = vadd.f32 %v6612, %v6624
        %v6626 = vpop.f32.mrf.mxu0
        %6627 = vdwg.mxu0
        %6628 = vmatpush.bf16.msra.mxu0 %v4615
        %6629 = vmatpush.bf16.msra.mxu0 %v4613
        %6630 = vmatpush.bf16.msra.mxu0 %v4611
        %6631 = vmatpush.bf16.msra.mxu0 %v4609
        %6632 = vmatpush.bf16.msra.mxu0 %v4607
        %6633 = vmatpush.bf16.msra.mxu0 %v4605
        %6634 = vmatpush.bf16.msra.mxu0 %v4603
        %6635 = vmatpush.bf16.msra.mxu0 %v4601
        %6636 = vmatmul.bf16.gmra.mxu0 %v1282
        %v6637 = vpop.f32.mrf.mxu0
        %v6638 = vadd.f32 %v6625, %v6637
        %v6639 = vpop.f32.mrf.mxu0
        %6640 = vdwg.mxu0
        %6641 = vmatpush.bf16.msra.mxu0 %v4631
        %6642 = vmatpush.bf16.msra.mxu0 %v4629
        %6643 = vmatpush.bf16.msra.mxu0 %v4627
        %6644 = vmatpush.bf16.msra.mxu0 %v4625
        %6645 = vmatpush.bf16.msra.mxu0 %v4623
        %6646 = vmatpush.bf16.msra.mxu0 %v4621
        %6647 = vmatpush.bf16.msra.mxu0 %v4619
        %6648 = vmatpush.bf16.msra.mxu0 %v4617
        %6649 = vmatmul.bf16.gmra.mxu0 %v1285
        %v6650 = vpop.f32.mrf.mxu0
        %v6651 = vadd.f32 %v6638, %v6650
        %v6652 = vpop.f32.mrf.mxu0
        %6653 = vdwg.mxu0
        %6654 = vmatpush.bf16.msra.mxu0 %v4647
        %6655 = vmatpush.bf16.msra.mxu0 %v4645
        %6656 = vmatpush.bf16.msra.mxu0 %v4643
        %6657 = vmatpush.bf16.msra.mxu0 %v4641
        %6658 = vmatpush.bf16.msra.mxu0 %v4639
        %6659 = vmatpush.bf16.msra.mxu0 %v4637
        %6660 = vmatpush.bf16.msra.mxu0 %v4635
        %6661 = vmatpush.bf16.msra.mxu0 %v4633
        %6662 = vmatmul.bf16.gmra.mxu0 %v1286
        %v6663 = vpop.f32.mrf.mxu0
        %v6664 = vadd.f32 %v6651, %v6663
        %v6665 = vpop.f32.mrf.mxu0
        %6666 = vdwg.mxu0
        %6667 = vmatpush.bf16.msra.mxu0 %v4663
        %6668 = vmatpush.bf16.msra.mxu0 %v4661
        %6669 = vmatpush.bf16.msra.mxu0 %v4659
        %6670 = vmatpush.bf16.msra.mxu0 %v4657
        %6671 = vmatpush.bf16.msra.mxu0 %v4655
        %6672 = vmatpush.bf16.msra.mxu0 %v4653
        %6673 = vmatpush.bf16.msra.mxu0 %v4651
        %6674 = vmatpush.bf16.msra.mxu0 %v4649
        %6675 = vmatmul.bf16.gmra.mxu0 %v1287
        %v6676 = vpop.f32.mrf.mxu0
        %v6677 = vadd.f32 %v6664, %v6676
        %v6678 = vpop.f32.mrf.mxu0
        %6679 = vdwg.mxu0
        %6680 = vmatpush.bf16.msra.mxu0 %v4679
        %6681 = vmatpush.bf16.msra.mxu0 %v4677
        %6682 = vmatpush.bf16.msra.mxu0 %v4675
        %6683 = vmatpush.bf16.msra.mxu0 %v4673
        %6684 = vmatpush.bf16.msra.mxu0 %v4671
        %6685 = vmatpush.bf16.msra.mxu0 %v4669
        %6686 = vmatpush.bf16.msra.mxu0 %v4667
        %6687 = vmatpush.bf16.msra.mxu0 %v4665
        %6688 = vmatmul.bf16.gmra.mxu0 %v1288
        %v6689 = vpop.f32.mrf.mxu0
        %v6690 = vadd.f32 %v6677, %v6689
        %v6691 = vpop.f32.mrf.mxu0
        %6692 = vdwg.mxu0
        %6693 = vmatpush.bf16.msra.mxu0 %v4695
        %6694 = vmatpush.bf16.msra.mxu0 %v4693
        %6695 = vmatpush.bf16.msra.mxu0 %v4691
        %6696 = vmatpush.bf16.msra.mxu0 %v4689
        %6697 = vmatpush.bf16.msra.mxu0 %v4687
        %6698 = vmatpush.bf16.msra.mxu0 %v4685
        %6699 = vmatpush.bf16.msra.mxu0 %v4683
        %6700 = vmatpush.bf16.msra.mxu0 %v4681
        %6701 = vmatmul.bf16.gmra.mxu0 %v1289
        %v6702 = vpop.f32.mrf.mxu0
        %v6703 = vadd.f32 %v6690, %v6702
        %v6704 = vpop.f32.mrf.mxu0
        %6705 = vdwg.mxu0
        %6706 = vmatpush.bf16.msra.mxu0 %v4711
        %6707 = vmatpush.bf16.msra.mxu0 %v4709
        %6708 = vmatpush.bf16.msra.mxu0 %v4707
        %6709 = vmatpush.bf16.msra.mxu0 %v4705
        %6710 = vmatpush.bf16.msra.mxu0 %v4703
        %6711 = vmatpush.bf16.msra.mxu0 %v4701
        %6712 = vmatpush.bf16.msra.mxu0 %v4699
        %6713 = vmatpush.bf16.msra.mxu0 %v4697
        %6714 = vmatmul.bf16.gmra.mxu0 %v1290
        %v6715 = vpop.f32.mrf.mxu0
        %v6716 = vadd.f32 %v6703, %v6715
        %v6717 = vpop.f32.mrf.mxu0
        %6718 = vdwg.mxu0
        %6719 = vmatpush.bf16.msra.mxu0 %v4727
        %6720 = vmatpush.bf16.msra.mxu0 %v4725
        %6721 = vmatpush.bf16.msra.mxu0 %v4723
        %6722 = vmatpush.bf16.msra.mxu0 %v4721
        %6723 = vmatpush.bf16.msra.mxu0 %v4719
        %6724 = vmatpush.bf16.msra.mxu0 %v4717
        %6725 = vmatpush.bf16.msra.mxu0 %v4715
        %6726 = vmatpush.bf16.msra.mxu0 %v4713
        %6727 = vmatmul.bf16.gmra.mxu0 %v1291
        %v6728 = vpop.f32.mrf.mxu0
        %v6729 = vadd.f32 %v6716, %v6728
        %v6730 = vpop.f32.mrf.mxu0
        %6731 = vdwg.mxu0
        %6732 = vmatpush.bf16.msra.mxu0 %v4743
        %6733 = vmatpush.bf16.msra.mxu0 %v4741
        %6734 = vmatpush.bf16.msra.mxu0 %v4739
        %6735 = vmatpush.bf16.msra.mxu0 %v4737
        %6736 = vmatpush.bf16.msra.mxu0 %v4735
        %6737 = vmatpush.bf16.msra.mxu0 %v4733
        %6738 = vmatpush.bf16.msra.mxu0 %v4731
        %6739 = vmatpush.bf16.msra.mxu0 %v4729
        %6740 = vmatmul.bf16.gmra.mxu0 %v1292
        %v6741 = vpop.f32.mrf.mxu0
        %v6742 = vadd.f32 %v6729, %v6741
        %v6743 = vpop.f32.mrf.mxu0
        %6744 = vdwg.mxu0
        %6745 = vmatpush.bf16.msra.mxu0 %v4759
        %6746 = vmatpush.bf16.msra.mxu0 %v4757
        %6747 = vmatpush.bf16.msra.mxu0 %v4755
        %6748 = vmatpush.bf16.msra.mxu0 %v4753
        %6749 = vmatpush.bf16.msra.mxu0 %v4751
        %6750 = vmatpush.bf16.msra.mxu0 %v4749
        %6751 = vmatpush.bf16.msra.mxu0 %v4747
        %6752 = vmatpush.bf16.msra.mxu0 %v4745
        %6753 = vmatmul.bf16.gmra.mxu0 %v1295
        %v6754 = vpop.f32.mrf.mxu0
        %v6755 = vadd.f32 %v6742, %v6754
        %v6756 = vpop.f32.mrf.mxu0
        %6757 = vdwg.mxu0
        %6758 = vmatpush.bf16.msra.mxu0 %v4775
        %6759 = vmatpush.bf16.msra.mxu0 %v4773
        %6760 = vmatpush.bf16.msra.mxu0 %v4771
        %6761 = vmatpush.bf16.msra.mxu0 %v4769
        %6762 = vmatpush.bf16.msra.mxu0 %v4767
        %6763 = vmatpush.bf16.msra.mxu0 %v4765
        %6764 = vmatpush.bf16.msra.mxu0 %v4763
        %6765 = vmatpush.bf16.msra.mxu0 %v4761
        %6766 = vmatmul.bf16.gmra.mxu0 %v1296
        %v6767 = vpop.f32.mrf.mxu0
        %v6768 = vadd.f32 %v6755, %v6767
        %v6769 = vpop.f32.mrf.mxu0
        %6770 = vdwg.mxu0
        %6771 = vmatpush.bf16.msra.mxu0 %v4791
        %6772 = vmatpush.bf16.msra.mxu0 %v4789
        %6773 = vmatpush.bf16.msra.mxu0 %v4787
        %6774 = vmatpush.bf16.msra.mxu0 %v4785
        %6775 = vmatpush.bf16.msra.mxu0 %v4783
        %6776 = vmatpush.bf16.msra.mxu0 %v4781
        %6777 = vmatpush.bf16.msra.mxu0 %v4779
        %6778 = vmatpush.bf16.msra.mxu0 %v4777
        %6779 = vmatmul.bf16.gmra.mxu0 %v1297
        %v6780 = vpop.f32.mrf.mxu0
        %v6781 = vadd.f32 %v6768, %v6780
        %v6782 = vpop.f32.mrf.mxu0
        %6783 = vdwg.mxu0
        %6784 = vmatpush.bf16.msra.mxu0 %v4807
        %6785 = vmatpush.bf16.msra.mxu0 %v4805
        %6786 = vmatpush.bf16.msra.mxu0 %v4803
        %6787 = vmatpush.bf16.msra.mxu0 %v4801
        %6788 = vmatpush.bf16.msra.mxu0 %v4799
        %6789 = vmatpush.bf16.msra.mxu0 %v4797
        %6790 = vmatpush.bf16.msra.mxu0 %v4795
        %6791 = vmatpush.bf16.msra.mxu0 %v4793
        %6792 = vmatmul.bf16.gmra.mxu0 %v1298
        %v6793 = vpop.f32.mrf.mxu0
        %v6794 = vadd.f32 %v6781, %v6793
        %v6795 = vpop.f32.mrf.mxu0
        %6796 = vdwg.mxu0
        %6797 = vmatpush.bf16.msra.mxu0 %v4823
        %6798 = vmatpush.bf16.msra.mxu0 %v4821
        %6799 = vmatpush.bf16.msra.mxu0 %v4819
        %6800 = vmatpush.bf16.msra.mxu0 %v4817
        %6801 = vmatpush.bf16.msra.mxu0 %v4815
        %6802 = vmatpush.bf16.msra.mxu0 %v4813
        %6803 = vmatpush.bf16.msra.mxu0 %v4811
        %6804 = vmatpush.bf16.msra.mxu0 %v4809
        %6805 = vmatmul.bf16.gmra.mxu0 %v1299
        %v6806 = vpop.f32.mrf.mxu0
        %v6807 = vadd.f32 %v6794, %v6806
        %v6808 = vpop.f32.mrf.mxu0
        %6809 = vdwg.mxu0
        %6810 = vmatpush.bf16.msra.mxu0 %v4839
        %6811 = vmatpush.bf16.msra.mxu0 %v4837
        %6812 = vmatpush.bf16.msra.mxu0 %v4835
        %6813 = vmatpush.bf16.msra.mxu0 %v4833
        %6814 = vmatpush.bf16.msra.mxu0 %v4831
        %6815 = vmatpush.bf16.msra.mxu0 %v4829
        %6816 = vmatpush.bf16.msra.mxu0 %v4827
        %6817 = vmatpush.bf16.msra.mxu0 %v4825
        %6818 = vmatmul.bf16.gmra.mxu0 %v1300
        %v6819 = vpop.f32.mrf.mxu0
        %v6820 = vadd.f32 %v6807, %v6819
        %v6821 = vpop.f32.mrf.mxu0
        %6822 = vdwg.mxu0
        %6823 = vmatpush.bf16.msra.mxu0 %v4855
        %6824 = vmatpush.bf16.msra.mxu0 %v4853
        %6825 = vmatpush.bf16.msra.mxu0 %v4851
        %6826 = vmatpush.bf16.msra.mxu0 %v4849
        %6827 = vmatpush.bf16.msra.mxu0 %v4847
        %6828 = vmatpush.bf16.msra.mxu0 %v4845
        %6829 = vmatpush.bf16.msra.mxu0 %v4843
        %6830 = vmatpush.bf16.msra.mxu0 %v4841
        %6831 = vmatmul.bf16.gmra.mxu0 %v1301
        %v6832 = vpop.f32.mrf.mxu0
        %v6833 = vadd.f32 %v6820, %v6832
        %v6834 = vpop.f32.mrf.mxu0
        %6835 = vdwg.mxu0
        %6836 = vmatpush.bf16.msra.mxu0 %v4871
        %6837 = vmatpush.bf16.msra.mxu0 %v4869
        %6838 = vmatpush.bf16.msra.mxu0 %v4867
        %6839 = vmatpush.bf16.msra.mxu0 %v4865
        %6840 = vmatpush.bf16.msra.mxu0 %v4863
        %6841 = vmatpush.bf16.msra.mxu0 %v4861
        %6842 = vmatpush.bf16.msra.mxu0 %v4859
        %6843 = vmatpush.bf16.msra.mxu0 %v4857
        %6844 = vmatmul.bf16.gmra.mxu0 %v1302
        %v6845 = vpop.f32.mrf.mxu0
        %v6846 = vadd.f32 %v6833, %v6845
        %v6847 = vpop.f32.mrf.mxu0
        %6848 = vdwg.mxu0
        %6849 = vmatpush.bf16.msra.mxu0 %v4887
        %6850 = vmatpush.bf16.msra.mxu0 %v4885
        %6851 = vmatpush.bf16.msra.mxu0 %v4883
        %6852 = vmatpush.bf16.msra.mxu0 %v4881
        %6853 = vmatpush.bf16.msra.mxu0 %v4879
        %6854 = vmatpush.bf16.msra.mxu0 %v4877
        %6855 = vmatpush.bf16.msra.mxu0 %v4875
        %6856 = vmatpush.bf16.msra.mxu0 %v4873
        %6857 = vmatmul.bf16.gmra.mxu0 %v1305
        %v6858 = vpop.f32.mrf.mxu0
        %v6859 = vadd.f32 %v6846, %v6858
        %v6860 = vpop.f32.mrf.mxu0
        %6861 = vdwg.mxu0
        %6862 = vmatpush.bf16.msra.mxu0 %v4903
        %6863 = vmatpush.bf16.msra.mxu0 %v4901
        %6864 = vmatpush.bf16.msra.mxu0 %v4899
        %6865 = vmatpush.bf16.msra.mxu0 %v4897
        %6866 = vmatpush.bf16.msra.mxu0 %v4895
        %6867 = vmatpush.bf16.msra.mxu0 %v4893
        %6868 = vmatpush.bf16.msra.mxu0 %v4891
        %6869 = vmatpush.bf16.msra.mxu0 %v4889
        %6870 = vmatmul.bf16.gmra.mxu0 %v1306
        %v6871 = vpop.f32.mrf.mxu0
        %v6872 = vadd.f32 %v6859, %v6871
        %v6873 = vpop.f32.mrf.mxu0
        %6874 = vdwg.mxu0
        %6875 = vmatpush.bf16.msra.mxu0 %v4919
        %6876 = vmatpush.bf16.msra.mxu0 %v4917
        %6877 = vmatpush.bf16.msra.mxu0 %v4915
        %6878 = vmatpush.bf16.msra.mxu0 %v4913
        %6879 = vmatpush.bf16.msra.mxu0 %v4911
        %6880 = vmatpush.bf16.msra.mxu0 %v4909
        %6881 = vmatpush.bf16.msra.mxu0 %v4907
        %6882 = vmatpush.bf16.msra.mxu0 %v4905
        %6883 = vmatmul.bf16.gmra.mxu0 %v1307
        %v6884 = vpop.f32.mrf.mxu0
        %v6885 = vadd.f32 %v6872, %v6884
        %v6886 = vpop.f32.mrf.mxu0
        %6887 = vdwg.mxu0
        %6888 = vmatpush.bf16.msra.mxu0 %v4935
        %6889 = vmatpush.bf16.msra.mxu0 %v4933
        %6890 = vmatpush.bf16.msra.mxu0 %v4931
        %6891 = vmatpush.bf16.msra.mxu0 %v4929
        %6892 = vmatpush.bf16.msra.mxu0 %v4927
        %6893 = vmatpush.bf16.msra.mxu0 %v4925
        %6894 = vmatpush.bf16.msra.mxu0 %v4923
        %6895 = vmatpush.bf16.msra.mxu0 %v4921
        %6896 = vmatmul.bf16.gmra.mxu0 %v1308
        %v6897 = vpop.f32.mrf.mxu0
        %v6898 = vadd.f32 %v6885, %v6897
        %v6899 = vpop.f32.mrf.mxu0
        %6900 = vdwg.mxu0
        %6901 = vmatpush.bf16.msra.mxu0 %v4951
        %6902 = vmatpush.bf16.msra.mxu0 %v4949
        %6903 = vmatpush.bf16.msra.mxu0 %v4947
        %6904 = vmatpush.bf16.msra.mxu0 %v4945
        %6905 = vmatpush.bf16.msra.mxu0 %v4943
        %6906 = vmatpush.bf16.msra.mxu0 %v4941
        %6907 = vmatpush.bf16.msra.mxu0 %v4939
        %6908 = vmatpush.bf16.msra.mxu0 %v4937
        %6909 = vmatmul.bf16.gmra.mxu0 %v1309
        %v6910 = vpop.f32.mrf.mxu0
        %v6911 = vadd.f32 %v6898, %v6910
        %v6912 = vpop.f32.mrf.mxu0
        %6913 = vdwg.mxu0
        %6914 = vmatpush.bf16.msra.mxu0 %v4967
        %6915 = vmatpush.bf16.msra.mxu0 %v4965
        %6916 = vmatpush.bf16.msra.mxu0 %v4963
        %6917 = vmatpush.bf16.msra.mxu0 %v4961
        %6918 = vmatpush.bf16.msra.mxu0 %v4959
        %6919 = vmatpush.bf16.msra.mxu0 %v4957
        %6920 = vmatpush.bf16.msra.mxu0 %v4955
        %6921 = vmatpush.bf16.msra.mxu0 %v4953
        %6922 = vmatmul.bf16.gmra.mxu0 %v1310
        %v6923 = vpop.f32.mrf.mxu0
        %v6924 = vadd.f32 %v6911, %v6923
        %v6925 = vpop.f32.mrf.mxu0
        %6926 = vdwg.mxu0
        %6927 = vmatpush.bf16.msra.mxu0 %v4983
        %6928 = vmatpush.bf16.msra.mxu0 %v4981
        %6929 = vmatpush.bf16.msra.mxu0 %v4979
        %6930 = vmatpush.bf16.msra.mxu0 %v4977
        %6931 = vmatpush.bf16.msra.mxu0 %v4975
        %6932 = vmatpush.bf16.msra.mxu0 %v4973
        %6933 = vmatpush.bf16.msra.mxu0 %v4971
        %6934 = vmatpush.bf16.msra.mxu0 %v4969
        %6935 = vmatmul.bf16.gmra.mxu0 %v1311
        %v6936 = vpop.f32.mrf.mxu0
        %v6937 = vadd.f32 %v6924, %v6936
        %v6938 = vpop.f32.mrf.mxu0
        %6939 = vdwg.mxu0
        %6940 = vmatpush.bf16.msra.mxu0 %v4999
        %6941 = vmatpush.bf16.msra.mxu0 %v4997
        %6942 = vmatpush.bf16.msra.mxu0 %v4995
        %6943 = vmatpush.bf16.msra.mxu0 %v4993
        %6944 = vmatpush.bf16.msra.mxu0 %v4991
        %6945 = vmatpush.bf16.msra.mxu0 %v4989
        %6946 = vmatpush.bf16.msra.mxu0 %v4987
        %6947 = vmatpush.bf16.msra.mxu0 %v4985
        %6948 = vmatmul.bf16.gmra.mxu0 %v1312
        %v6949 = vpop.f32.mrf.mxu0
        %v6950 = vadd.f32 %v6937, %v6949
        %v6951 = vpop.f32.mrf.mxu0
        %6952 = vdwg.mxu0
        %6953 = vmatpush.bf16.msra.mxu0 %v5015
        %6954 = vmatpush.bf16.msra.mxu0 %v5013
        %6955 = vmatpush.bf16.msra.mxu0 %v5011
        %6956 = vmatpush.bf16.msra.mxu0 %v5009
        %6957 = vmatpush.bf16.msra.mxu0 %v5007
        %6958 = vmatpush.bf16.msra.mxu0 %v5005
        %6959 = vmatpush.bf16.msra.mxu0 %v5003
        %6960 = vmatpush.bf16.msra.mxu0 %v5001
        %6961 = vmatmul.bf16.gmra.mxu0 %v1315
        %v6962 = vpop.f32.mrf.mxu0
        %v6963 = vadd.f32 %v6950, %v6962
        %v6964 = vpop.f32.mrf.mxu0
        %6965 = vdwg.mxu0
        %6966 = vmatpush.bf16.msra.mxu0 %v5031
        %6967 = vmatpush.bf16.msra.mxu0 %v5029
        %6968 = vmatpush.bf16.msra.mxu0 %v5027
        %6969 = vmatpush.bf16.msra.mxu0 %v5025
        %6970 = vmatpush.bf16.msra.mxu0 %v5023
        %6971 = vmatpush.bf16.msra.mxu0 %v5021
        %6972 = vmatpush.bf16.msra.mxu0 %v5019
        %6973 = vmatpush.bf16.msra.mxu0 %v5017
        %6974 = vmatmul.bf16.gmra.mxu0 %v1316
        %v6975 = vpop.f32.mrf.mxu0
        %v6976 = vadd.f32 %v6963, %v6975
        %v6977 = vpop.f32.mrf.mxu0
        %6978 = vdwg.mxu0
        %6979 = vmatpush.bf16.msra.mxu0 %v5047
        %6980 = vmatpush.bf16.msra.mxu0 %v5045
        %6981 = vmatpush.bf16.msra.mxu0 %v5043
        %6982 = vmatpush.bf16.msra.mxu0 %v5041
        %6983 = vmatpush.bf16.msra.mxu0 %v5039
        %6984 = vmatpush.bf16.msra.mxu0 %v5037
        %6985 = vmatpush.bf16.msra.mxu0 %v5035
        %6986 = vmatpush.bf16.msra.mxu0 %v5033
        %6987 = vmatmul.bf16.gmra.mxu0 %v1317
        %v6988 = vpop.f32.mrf.mxu0
        %v6989 = vadd.f32 %v6976, %v6988
        %v6990 = vpop.f32.mrf.mxu0
        %6991 = vdwg.mxu0
        %6992 = vmatpush.bf16.msra.mxu0 %v5063
        %6993 = vmatpush.bf16.msra.mxu0 %v5061
        %6994 = vmatpush.bf16.msra.mxu0 %v5059
        %6995 = vmatpush.bf16.msra.mxu0 %v5057
        %6996 = vmatpush.bf16.msra.mxu0 %v5055
        %6997 = vmatpush.bf16.msra.mxu0 %v5053
        %6998 = vmatpush.bf16.msra.mxu0 %v5051
        %6999 = vmatpush.bf16.msra.mxu0 %v5049
        %7000 = vmatmul.bf16.gmra.mxu0 %v1318
        %v7001 = vpop.f32.mrf.mxu0
        %v7002 = vadd.f32 %v6989, %v7001
        %v7003 = vpop.f32.mrf.mxu0
        %7004 = vdwg.mxu0
        %7005 = vmatpush.bf16.msra.mxu0 %v5079
        %7006 = vmatpush.bf16.msra.mxu0 %v5077
        %7007 = vmatpush.bf16.msra.mxu0 %v5075
        %7008 = vmatpush.bf16.msra.mxu0 %v5073
        %7009 = vmatpush.bf16.msra.mxu0 %v5071
        %7010 = vmatpush.bf16.msra.mxu0 %v5069
        %7011 = vmatpush.bf16.msra.mxu0 %v5067
        %7012 = vmatpush.bf16.msra.mxu0 %v5065
        %7013 = vmatmul.bf16.gmra.mxu0 %v1319
        %v7014 = vpop.f32.mrf.mxu0
        %v7015 = vadd.f32 %v7002, %v7014
        %v7016 = vpop.f32.mrf.mxu0
        %7017 = vdwg.mxu0
        %7018 = vmatpush.bf16.msra.mxu0 %v5095
        %7019 = vmatpush.bf16.msra.mxu0 %v5093
        %7020 = vmatpush.bf16.msra.mxu0 %v5091
        %7021 = vmatpush.bf16.msra.mxu0 %v5089
        %7022 = vmatpush.bf16.msra.mxu0 %v5087
        %7023 = vmatpush.bf16.msra.mxu0 %v5085
        %7024 = vmatpush.bf16.msra.mxu0 %v5083
        %7025 = vmatpush.bf16.msra.mxu0 %v5081
        %7026 = vmatmul.bf16.gmra.mxu0 %v1320
        %v7027 = vpop.f32.mrf.mxu0
        %v7028 = vadd.f32 %v7015, %v7027
        %v7029 = vpop.f32.mrf.mxu0
        %7030 = vdwg.mxu0
        %7031 = vmatpush.bf16.msra.mxu0 %v5111
        %7032 = vmatpush.bf16.msra.mxu0 %v5109
        %7033 = vmatpush.bf16.msra.mxu0 %v5107
        %7034 = vmatpush.bf16.msra.mxu0 %v5105
        %7035 = vmatpush.bf16.msra.mxu0 %v5103
        %7036 = vmatpush.bf16.msra.mxu0 %v5101
        %7037 = vmatpush.bf16.msra.mxu0 %v5099
        %7038 = vmatpush.bf16.msra.mxu0 %v5097
        %7039 = vmatmul.bf16.gmra.mxu0 %v1321
        %v7040 = vpop.f32.mrf.mxu0
        %v7041 = vadd.f32 %v7028, %v7040
        %v7042 = vpop.f32.mrf.mxu0
        %7043 = vdwg.mxu0
        %7044 = vmatpush.bf16.msra.mxu0 %v5127
        %7045 = vmatpush.bf16.msra.mxu0 %v5125
        %7046 = vmatpush.bf16.msra.mxu0 %v5123
        %7047 = vmatpush.bf16.msra.mxu0 %v5121
        %7048 = vmatpush.bf16.msra.mxu0 %v5119
        %7049 = vmatpush.bf16.msra.mxu0 %v5117
        %7050 = vmatpush.bf16.msra.mxu0 %v5115
        %7051 = vmatpush.bf16.msra.mxu0 %v5113
        %7052 = vmatmul.bf16.gmra.mxu0 %v1322
        %v7053 = vpop.f32.mrf.mxu0
        %v7054 = vadd.f32 %v7041, %v7053
        %v7055 = vpop.f32.mrf.mxu0
        %7056 = vdwg.mxu0
        %7057 = vmatpush.bf16.msra.mxu0 %v5143
        %7058 = vmatpush.bf16.msra.mxu0 %v5141
        %7059 = vmatpush.bf16.msra.mxu0 %v5139
        %7060 = vmatpush.bf16.msra.mxu0 %v5137
        %7061 = vmatpush.bf16.msra.mxu0 %v5135
        %7062 = vmatpush.bf16.msra.mxu0 %v5133
        %7063 = vmatpush.bf16.msra.mxu0 %v5131
        %7064 = vmatpush.bf16.msra.mxu0 %v5129
        %7065 = vmatmul.bf16.gmra.mxu0 %v1325
        %v7066 = vpop.f32.mrf.mxu0
        %v7067 = vadd.f32 %v7054, %v7066
        %v7068 = vpop.f32.mrf.mxu0
        %7069 = vdwg.mxu0
        %7070 = vmatpush.bf16.msra.mxu0 %v5159
        %7071 = vmatpush.bf16.msra.mxu0 %v5157
        %7072 = vmatpush.bf16.msra.mxu0 %v5155
        %7073 = vmatpush.bf16.msra.mxu0 %v5153
        %7074 = vmatpush.bf16.msra.mxu0 %v5151
        %7075 = vmatpush.bf16.msra.mxu0 %v5149
        %7076 = vmatpush.bf16.msra.mxu0 %v5147
        %7077 = vmatpush.bf16.msra.mxu0 %v5145
        %7078 = vmatmul.bf16.gmra.mxu0 %v1326
        %v7079 = vpop.f32.mrf.mxu0
        %v7080 = vadd.f32 %v7067, %v7079
        %v7081 = vpop.f32.mrf.mxu0
        %7082 = vdwg.mxu0
        %7083 = vmatpush.bf16.msra.mxu0 %v5175
        %7084 = vmatpush.bf16.msra.mxu0 %v5173
        %7085 = vmatpush.bf16.msra.mxu0 %v5171
        %7086 = vmatpush.bf16.msra.mxu0 %v5169
        %7087 = vmatpush.bf16.msra.mxu0 %v5167
        %7088 = vmatpush.bf16.msra.mxu0 %v5165
        %7089 = vmatpush.bf16.msra.mxu0 %v5163
        %7090 = vmatpush.bf16.msra.mxu0 %v5161
        %7091 = vmatmul.bf16.gmra.mxu0 %v1327
        %v7092 = vpop.f32.mrf.mxu0
        %v7093 = vadd.f32 %v7080, %v7092
        %v7094 = vpop.f32.mrf.mxu0
        %7095 = vdwg.mxu0
        %7096 = vmatpush.bf16.msra.mxu0 %v5191
        %7097 = vmatpush.bf16.msra.mxu0 %v5189
        %7098 = vmatpush.bf16.msra.mxu0 %v5187
        %7099 = vmatpush.bf16.msra.mxu0 %v5185
        %7100 = vmatpush.bf16.msra.mxu0 %v5183
        %7101 = vmatpush.bf16.msra.mxu0 %v5181
        %7102 = vmatpush.bf16.msra.mxu0 %v5179
        %7103 = vmatpush.bf16.msra.mxu0 %v5177
        %7104 = vmatmul.bf16.gmra.mxu0 %v1328
        %v7105 = vpop.f32.mrf.mxu0
        %v7106 = vadd.f32 %v7093, %v7105
        %v7107 = vpop.f32.mrf.mxu0
        %7108 = vdwg.mxu0
        %7109 = vmatpush.bf16.msra.mxu0 %v5207
        %7110 = vmatpush.bf16.msra.mxu0 %v5205
        %7111 = vmatpush.bf16.msra.mxu0 %v5203
        %7112 = vmatpush.bf16.msra.mxu0 %v5201
        %7113 = vmatpush.bf16.msra.mxu0 %v5199
        %7114 = vmatpush.bf16.msra.mxu0 %v5197
        %7115 = vmatpush.bf16.msra.mxu0 %v5195
        %7116 = vmatpush.bf16.msra.mxu0 %v5193
        %7117 = vmatmul.bf16.gmra.mxu0 %v1329
        %v7118 = vpop.f32.mrf.mxu0
        %v7119 = vadd.f32 %v7106, %v7118
        %v7120 = vpop.f32.mrf.mxu0
        %7121 = vdwg.mxu0
        %7122 = vmatpush.bf16.msra.mxu0 %v5223
        %7123 = vmatpush.bf16.msra.mxu0 %v5221
        %7124 = vmatpush.bf16.msra.mxu0 %v5219
        %7125 = vmatpush.bf16.msra.mxu0 %v5217
        %7126 = vmatpush.bf16.msra.mxu0 %v5215
        %7127 = vmatpush.bf16.msra.mxu0 %v5213
        %7128 = vmatpush.bf16.msra.mxu0 %v5211
        %7129 = vmatpush.bf16.msra.mxu0 %v5209
        %7130 = vmatmul.bf16.gmra.mxu0 %v1330
        %v7131 = vpop.f32.mrf.mxu0
        %v7132 = vadd.f32 %v7119, %v7131
        %v7133 = vpop.f32.mrf.mxu0
        %7134 = vdwg.mxu0
        %7135 = vmatpush.bf16.msra.mxu0 %v5239
        %7136 = vmatpush.bf16.msra.mxu0 %v5237
        %7137 = vmatpush.bf16.msra.mxu0 %v5235
        %7138 = vmatpush.bf16.msra.mxu0 %v5233
        %7139 = vmatpush.bf16.msra.mxu0 %v5231
        %7140 = vmatpush.bf16.msra.mxu0 %v5229
        %7141 = vmatpush.bf16.msra.mxu0 %v5227
        %7142 = vmatpush.bf16.msra.mxu0 %v5225
        %7143 = vmatmul.bf16.gmra.mxu0 %v1331
        %v7144 = vpop.f32.mrf.mxu0
        %v7145 = vadd.f32 %v7132, %v7144
        %v7146 = vpop.f32.mrf.mxu0
        %7147 = vdwg.mxu0
        %7148 = vmatpush.bf16.msra.mxu0 %v5255
        %7149 = vmatpush.bf16.msra.mxu0 %v5253
        %7150 = vmatpush.bf16.msra.mxu0 %v5251
        %7151 = vmatpush.bf16.msra.mxu0 %v5249
        %7152 = vmatpush.bf16.msra.mxu0 %v5247
        %7153 = vmatpush.bf16.msra.mxu0 %v5245
        %7154 = vmatpush.bf16.msra.mxu0 %v5243
        %7155 = vmatpush.bf16.msra.mxu0 %v5241
        %7156 = vmatmul.bf16.gmra.mxu0 %v1332
        %v7157 = vpop.f32.mrf.mxu0
        %v7158 = vadd.f32 %v7145, %v7157
        %v7159 = vpop.f32.mrf.mxu0
        %7160 = vdwg.mxu0
        %7161 = vmatpush.bf16.msra.mxu0 %v5271
        %7162 = vmatpush.bf16.msra.mxu0 %v5269
        %7163 = vmatpush.bf16.msra.mxu0 %v5267
        %7164 = vmatpush.bf16.msra.mxu0 %v5265
        %7165 = vmatpush.bf16.msra.mxu0 %v5263
        %7166 = vmatpush.bf16.msra.mxu0 %v5261
        %7167 = vmatpush.bf16.msra.mxu0 %v5259
        %7168 = vmatpush.bf16.msra.mxu0 %v5257
        %7169 = vmatmul.bf16.gmra.mxu0 %v1335
        %v7170 = vpop.f32.mrf.mxu0
        %v7171 = vadd.f32 %v7158, %v7170
        %v7172 = vpop.f32.mrf.mxu0
        %7173 = vdwg.mxu0
        %7174 = vmatpush.bf16.msra.mxu0 %v5287
        %7175 = vmatpush.bf16.msra.mxu0 %v5285
        %7176 = vmatpush.bf16.msra.mxu0 %v5283
        %7177 = vmatpush.bf16.msra.mxu0 %v5281
        %7178 = vmatpush.bf16.msra.mxu0 %v5279
        %7179 = vmatpush.bf16.msra.mxu0 %v5277
        %7180 = vmatpush.bf16.msra.mxu0 %v5275
        %7181 = vmatpush.bf16.msra.mxu0 %v5273
        %7182 = vmatmul.bf16.gmra.mxu0 %v1336
        %v7183 = vpop.f32.mrf.mxu0
        %v7184 = vadd.f32 %v7171, %v7183
        %v7185 = vpop.f32.mrf.mxu0
        %7186 = vdwg.mxu0
        %7187 = vmatpush.bf16.msra.mxu0 %v5303
        %7188 = vmatpush.bf16.msra.mxu0 %v5301
        %7189 = vmatpush.bf16.msra.mxu0 %v5299
        %7190 = vmatpush.bf16.msra.mxu0 %v5297
        %7191 = vmatpush.bf16.msra.mxu0 %v5295
        %7192 = vmatpush.bf16.msra.mxu0 %v5293
        %7193 = vmatpush.bf16.msra.mxu0 %v5291
        %7194 = vmatpush.bf16.msra.mxu0 %v5289
        %7195 = vmatmul.bf16.gmra.mxu0 %v1337
        %v7196 = vpop.f32.mrf.mxu0
        %v7197 = vadd.f32 %v7184, %v7196
        %v7198 = vpop.f32.mrf.mxu0
        %7199 = vdwg.mxu0
        %7200 = vmatpush.bf16.msra.mxu0 %v5319
        %7201 = vmatpush.bf16.msra.mxu0 %v5317
        %7202 = vmatpush.bf16.msra.mxu0 %v5315
        %7203 = vmatpush.bf16.msra.mxu0 %v5313
        %7204 = vmatpush.bf16.msra.mxu0 %v5311
        %7205 = vmatpush.bf16.msra.mxu0 %v5309
        %7206 = vmatpush.bf16.msra.mxu0 %v5307
        %7207 = vmatpush.bf16.msra.mxu0 %v5305
        %7208 = vmatmul.bf16.gmra.mxu0 %v1338
        %v7209 = vpop.f32.mrf.mxu0
        %v7210 = vadd.f32 %v7197, %v7209
        %v7211 = vpop.f32.mrf.mxu0
        %7212 = vdwg.mxu0
        %7213 = vmatpush.bf16.msra.mxu0 %v5335
        %7214 = vmatpush.bf16.msra.mxu0 %v5333
        %7215 = vmatpush.bf16.msra.mxu0 %v5331
        %7216 = vmatpush.bf16.msra.mxu0 %v5329
        %7217 = vmatpush.bf16.msra.mxu0 %v5327
        %7218 = vmatpush.bf16.msra.mxu0 %v5325
        %7219 = vmatpush.bf16.msra.mxu0 %v5323
        %7220 = vmatpush.bf16.msra.mxu0 %v5321
        %7221 = vmatmul.bf16.gmra.mxu0 %v1339
        %v7222 = vpop.f32.mrf.mxu0
        %v7223 = vadd.f32 %v7210, %v7222
        %v7224 = vpop.f32.mrf.mxu0
        %7225 = vdwg.mxu0
        %7226 = vmatpush.bf16.msra.mxu0 %v5351
        %7227 = vmatpush.bf16.msra.mxu0 %v5349
        %7228 = vmatpush.bf16.msra.mxu0 %v5347
        %7229 = vmatpush.bf16.msra.mxu0 %v5345
        %7230 = vmatpush.bf16.msra.mxu0 %v5343
        %7231 = vmatpush.bf16.msra.mxu0 %v5341
        %7232 = vmatpush.bf16.msra.mxu0 %v5339
        %7233 = vmatpush.bf16.msra.mxu0 %v5337
        %7234 = vmatmul.bf16.gmra.mxu0 %v1340
        %v7235 = vpop.f32.mrf.mxu0
        %v7236 = vadd.f32 %v7223, %v7235
        %v7237 = vpop.f32.mrf.mxu0
        %7238 = vdwg.mxu0
        %7239 = vmatpush.bf16.msra.mxu0 %v5367
        %7240 = vmatpush.bf16.msra.mxu0 %v5365
        %7241 = vmatpush.bf16.msra.mxu0 %v5363
        %7242 = vmatpush.bf16.msra.mxu0 %v5361
        %7243 = vmatpush.bf16.msra.mxu0 %v5359
        %7244 = vmatpush.bf16.msra.mxu0 %v5357
        %7245 = vmatpush.bf16.msra.mxu0 %v5355
        %7246 = vmatpush.bf16.msra.mxu0 %v5353
        %7247 = vmatmul.bf16.gmra.mxu0 %v1341
        %v7248 = vpop.f32.mrf.mxu0
        %v7249 = vadd.f32 %v7236, %v7248
        %v7250 = vpop.f32.mrf.mxu0
        %7251 = vdwg.mxu0
        %7252 = vmatpush.bf16.msra.mxu0 %v5383
        %7253 = vmatpush.bf16.msra.mxu0 %v5381
        %7254 = vmatpush.bf16.msra.mxu0 %v5379
        %7255 = vmatpush.bf16.msra.mxu0 %v5377
        %7256 = vmatpush.bf16.msra.mxu0 %v5375
        %7257 = vmatpush.bf16.msra.mxu0 %v5373
        %7258 = vmatpush.bf16.msra.mxu0 %v5371
        %7259 = vmatpush.bf16.msra.mxu0 %v5369
        %7260 = vmatmul.bf16.gmra.mxu0 %v1342
        %v7261 = vpop.f32.mrf.mxu0
        %v7262 = vadd.f32 %v7249, %v7261
        %v7263 = vpop.f32.mrf.mxu0
        %7264 = vdwg.mxu0
        %7265 = vmatpush.bf16.msra.mxu0 %v5399
        %7266 = vmatpush.bf16.msra.mxu0 %v5397
        %7267 = vmatpush.bf16.msra.mxu0 %v5395
        %7268 = vmatpush.bf16.msra.mxu0 %v5393
        %7269 = vmatpush.bf16.msra.mxu0 %v5391
        %7270 = vmatpush.bf16.msra.mxu0 %v5389
        %7271 = vmatpush.bf16.msra.mxu0 %v5387
        %7272 = vmatpush.bf16.msra.mxu0 %v5385
        %7273 = vmatmul.bf16.gmra.mxu0 %v1345
        %v7274 = vpop.f32.mrf.mxu0
        %v7275 = vadd.f32 %v7262, %v7274
        %v7276 = vpop.f32.mrf.mxu0
        %7277 = vdwg.mxu0
        %7278 = vmatpush.bf16.msra.mxu0 %v5415
        %7279 = vmatpush.bf16.msra.mxu0 %v5413
        %7280 = vmatpush.bf16.msra.mxu0 %v5411
        %7281 = vmatpush.bf16.msra.mxu0 %v5409
        %7282 = vmatpush.bf16.msra.mxu0 %v5407
        %7283 = vmatpush.bf16.msra.mxu0 %v5405
        %7284 = vmatpush.bf16.msra.mxu0 %v5403
        %7285 = vmatpush.bf16.msra.mxu0 %v5401
        %7286 = vmatmul.bf16.gmra.mxu0 %v1346
        %v7287 = vpop.f32.mrf.mxu0
        %v7288 = vadd.f32 %v7275, %v7287
        %v7289 = vpop.f32.mrf.mxu0
        %7290 = vdwg.mxu0
        %7291 = vmatpush.bf16.msra.mxu0 %v5431
        %7292 = vmatpush.bf16.msra.mxu0 %v5429
        %7293 = vmatpush.bf16.msra.mxu0 %v5427
        %7294 = vmatpush.bf16.msra.mxu0 %v5425
        %7295 = vmatpush.bf16.msra.mxu0 %v5423
        %7296 = vmatpush.bf16.msra.mxu0 %v5421
        %7297 = vmatpush.bf16.msra.mxu0 %v5419
        %7298 = vmatpush.bf16.msra.mxu0 %v5417
        %7299 = vmatmul.bf16.gmra.mxu0 %v1347
        %v7300 = vpop.f32.mrf.mxu0
        %v7301 = vadd.f32 %v7288, %v7300
        %v7302 = vpop.f32.mrf.mxu0
        %7303 = vdwg.mxu0
        %7304 = vmatpush.bf16.msra.mxu0 %v5447
        %7305 = vmatpush.bf16.msra.mxu0 %v5445
        %7306 = vmatpush.bf16.msra.mxu0 %v5443
        %7307 = vmatpush.bf16.msra.mxu0 %v5441
        %7308 = vmatpush.bf16.msra.mxu0 %v5439
        %7309 = vmatpush.bf16.msra.mxu0 %v5437
        %7310 = vmatpush.bf16.msra.mxu0 %v5435
        %7311 = vmatpush.bf16.msra.mxu0 %v5433
        %7312 = vmatmul.bf16.gmra.mxu0 %v1348
        %v7313 = vpop.f32.mrf.mxu0
        %v7314 = vadd.f32 %v7301, %v7313
        %v7315 = vpop.f32.mrf.mxu0
        %7316 = vdwg.mxu0
        %7317 = vmatpush.bf16.msra.mxu0 %v5463
        %7318 = vmatpush.bf16.msra.mxu0 %v5461
        %7319 = vmatpush.bf16.msra.mxu0 %v5459
        %7320 = vmatpush.bf16.msra.mxu0 %v5457
        %7321 = vmatpush.bf16.msra.mxu0 %v5455
        %7322 = vmatpush.bf16.msra.mxu0 %v5453
        %7323 = vmatpush.bf16.msra.mxu0 %v5451
        %7324 = vmatpush.bf16.msra.mxu0 %v5449
        %7325 = vmatmul.bf16.gmra.mxu0 %v1349
        %v7326 = vpop.f32.mrf.mxu0
        %v7327 = vadd.f32 %v7314, %v7326
        %v7328 = vpop.f32.mrf.mxu0
        %7329 = vdwg.mxu0
        %7330 = vmatpush.bf16.msra.mxu0 %v5479
        %7331 = vmatpush.bf16.msra.mxu0 %v5477
        %7332 = vmatpush.bf16.msra.mxu0 %v5475
        %7333 = vmatpush.bf16.msra.mxu0 %v5473
        %7334 = vmatpush.bf16.msra.mxu0 %v5471
        %7335 = vmatpush.bf16.msra.mxu0 %v5469
        %7336 = vmatpush.bf16.msra.mxu0 %v5467
        %7337 = vmatpush.bf16.msra.mxu0 %v5465
        %7338 = vmatmul.bf16.gmra.mxu0 %v1350
        %v7339 = vpop.f32.mrf.mxu0
        %v7340 = vadd.f32 %v7327, %v7339
        %v7341 = vpop.f32.mrf.mxu0
        %7342 = vdwg.mxu0
        %7343 = vmatpush.bf16.msra.mxu0 %v5495
        %7344 = vmatpush.bf16.msra.mxu0 %v5493
        %7345 = vmatpush.bf16.msra.mxu0 %v5491
        %7346 = vmatpush.bf16.msra.mxu0 %v5489
        %7347 = vmatpush.bf16.msra.mxu0 %v5487
        %7348 = vmatpush.bf16.msra.mxu0 %v5485
        %7349 = vmatpush.bf16.msra.mxu0 %v5483
        %7350 = vmatpush.bf16.msra.mxu0 %v5481
        %7351 = vmatmul.bf16.gmra.mxu0 %v1351
        %v7352 = vpop.f32.mrf.mxu0
        %v7353 = vadd.f32 %v7340, %v7352
        %v7354 = vpop.f32.mrf.mxu0
        %7355 = vdwg.mxu0
        %7356 = vmatpush.bf16.msra.mxu0 %v5511
        %7357 = vmatpush.bf16.msra.mxu0 %v5509
        %7358 = vmatpush.bf16.msra.mxu0 %v5507
        %7359 = vmatpush.bf16.msra.mxu0 %v5505
        %7360 = vmatpush.bf16.msra.mxu0 %v5503
        %7361 = vmatpush.bf16.msra.mxu0 %v5501
        %7362 = vmatpush.bf16.msra.mxu0 %v5499
        %7363 = vmatpush.bf16.msra.mxu0 %v5497
        %7364 = vmatmul.bf16.gmra.mxu0 %v1352
        %v7365 = vpop.f32.mrf.mxu0
        %v7366 = vadd.f32 %v7353, %v7365
        %v7367 = vpop.f32.mrf.mxu0
        %7368 = vdwg.mxu0
        %7369 = vmatpush.bf16.msra.mxu0 %v4504
        %7370 = vmatpush.bf16.msra.mxu0 %v4502
        %7371 = vmatpush.bf16.msra.mxu0 %v4500
        %7372 = vmatpush.bf16.msra.mxu0 %v4498
        %7373 = vmatpush.bf16.msra.mxu0 %v4496
        %7374 = vmatpush.bf16.msra.mxu0 %v4494
        %7375 = vmatpush.bf16.msra.mxu0 %v4492
        %7376 = vmatpush.bf16.msra.mxu0 %v4490
        %7377 = vmatmul.bf16.gmra.mxu0 %v1275
        %v7378 = vpop.f32.mrf.mxu0
        %v7379 = vadd.f32 0.0, %v7378
        %v7380 = vpop.f32.mrf.mxu0
        %7381 = vdwg.mxu0
        %7382 = vmatpush.bf16.msra.mxu0 %v4520
        %7383 = vmatpush.bf16.msra.mxu0 %v4518
        %7384 = vmatpush.bf16.msra.mxu0 %v4516
        %7385 = vmatpush.bf16.msra.mxu0 %v4514
        %7386 = vmatpush.bf16.msra.mxu0 %v4512
        %7387 = vmatpush.bf16.msra.mxu0 %v4510
        %7388 = vmatpush.bf16.msra.mxu0 %v4508
        %7389 = vmatpush.bf16.msra.mxu0 %v4506
        %7390 = vmatmul.bf16.gmra.mxu0 %v1276
        %v7391 = vpop.f32.mrf.mxu0
        %v7392 = vadd.f32 %v7379, %v7391
        %v7393 = vpop.f32.mrf.mxu0
        %7394 = vdwg.mxu0
        %7395 = vmatpush.bf16.msra.mxu0 %v4536
        %7396 = vmatpush.bf16.msra.mxu0 %v4534
        %7397 = vmatpush.bf16.msra.mxu0 %v4532
        %7398 = vmatpush.bf16.msra.mxu0 %v4530
        %7399 = vmatpush.bf16.msra.mxu0 %v4528
        %7400 = vmatpush.bf16.msra.mxu0 %v4526
        %7401 = vmatpush.bf16.msra.mxu0 %v4524
        %7402 = vmatpush.bf16.msra.mxu0 %v4522
        %7403 = vmatmul.bf16.gmra.mxu0 %v1277
        %v7404 = vpop.f32.mrf.mxu0
        %v7405 = vadd.f32 %v7392, %v7404
        %v7406 = vpop.f32.mrf.mxu0
        %7407 = vdwg.mxu0
        %7408 = vmatpush.bf16.msra.mxu0 %v4552
        %7409 = vmatpush.bf16.msra.mxu0 %v4550
        %7410 = vmatpush.bf16.msra.mxu0 %v4548
        %7411 = vmatpush.bf16.msra.mxu0 %v4546
        %7412 = vmatpush.bf16.msra.mxu0 %v4544
        %7413 = vmatpush.bf16.msra.mxu0 %v4542
        %7414 = vmatpush.bf16.msra.mxu0 %v4540
        %7415 = vmatpush.bf16.msra.mxu0 %v4538
        %7416 = vmatmul.bf16.gmra.mxu0 %v1278
        %v7417 = vpop.f32.mrf.mxu0
        %v7418 = vadd.f32 %v7405, %v7417
        %v7419 = vpop.f32.mrf.mxu0
        %7420 = vdwg.mxu0
        %7421 = vmatpush.bf16.msra.mxu0 %v4568
        %7422 = vmatpush.bf16.msra.mxu0 %v4566
        %7423 = vmatpush.bf16.msra.mxu0 %v4564
        %7424 = vmatpush.bf16.msra.mxu0 %v4562
        %7425 = vmatpush.bf16.msra.mxu0 %v4560
        %7426 = vmatpush.bf16.msra.mxu0 %v4558
        %7427 = vmatpush.bf16.msra.mxu0 %v4556
        %7428 = vmatpush.bf16.msra.mxu0 %v4554
        %7429 = vmatmul.bf16.gmra.mxu0 %v1279
        %v7430 = vpop.f32.mrf.mxu0
        %v7431 = vadd.f32 %v7418, %v7430
        %v7432 = vpop.f32.mrf.mxu0
        %7433 = vdwg.mxu0
        %7434 = vmatpush.bf16.msra.mxu0 %v4584
        %7435 = vmatpush.bf16.msra.mxu0 %v4582
        %7436 = vmatpush.bf16.msra.mxu0 %v4580
        %7437 = vmatpush.bf16.msra.mxu0 %v4578
        %7438 = vmatpush.bf16.msra.mxu0 %v4576
        %7439 = vmatpush.bf16.msra.mxu0 %v4574
        %7440 = vmatpush.bf16.msra.mxu0 %v4572
        %7441 = vmatpush.bf16.msra.mxu0 %v4570
        %7442 = vmatmul.bf16.gmra.mxu0 %v1280
        %v7443 = vpop.f32.mrf.mxu0
        %v7444 = vadd.f32 %v7431, %v7443
        %v7445 = vpop.f32.mrf.mxu0
        %7446 = vdwg.mxu0
        %7447 = vmatpush.bf16.msra.mxu0 %v4600
        %7448 = vmatpush.bf16.msra.mxu0 %v4598
        %7449 = vmatpush.bf16.msra.mxu0 %v4596
        %7450 = vmatpush.bf16.msra.mxu0 %v4594
        %7451 = vmatpush.bf16.msra.mxu0 %v4592
        %7452 = vmatpush.bf16.msra.mxu0 %v4590
        %7453 = vmatpush.bf16.msra.mxu0 %v4588
        %7454 = vmatpush.bf16.msra.mxu0 %v4586
        %7455 = vmatmul.bf16.gmra.mxu0 %v1281
        %v7456 = vpop.f32.mrf.mxu0
        %v7457 = vadd.f32 %v7444, %v7456
        %v7458 = vpop.f32.mrf.mxu0
        %7459 = vdwg.mxu0
        %7460 = vmatpush.bf16.msra.mxu0 %v4616
        %7461 = vmatpush.bf16.msra.mxu0 %v4614
        %7462 = vmatpush.bf16.msra.mxu0 %v4612
        %7463 = vmatpush.bf16.msra.mxu0 %v4610
        %7464 = vmatpush.bf16.msra.mxu0 %v4608
        %7465 = vmatpush.bf16.msra.mxu0 %v4606
        %7466 = vmatpush.bf16.msra.mxu0 %v4604
        %7467 = vmatpush.bf16.msra.mxu0 %v4602
        %7468 = vmatmul.bf16.gmra.mxu0 %v1282
        %v7469 = vpop.f32.mrf.mxu0
        %v7470 = vadd.f32 %v7457, %v7469
        %v7471 = vpop.f32.mrf.mxu0
        %7472 = vdwg.mxu0
        %7473 = vmatpush.bf16.msra.mxu0 %v4632
        %7474 = vmatpush.bf16.msra.mxu0 %v4630
        %7475 = vmatpush.bf16.msra.mxu0 %v4628
        %7476 = vmatpush.bf16.msra.mxu0 %v4626
        %7477 = vmatpush.bf16.msra.mxu0 %v4624
        %7478 = vmatpush.bf16.msra.mxu0 %v4622
        %7479 = vmatpush.bf16.msra.mxu0 %v4620
        %7480 = vmatpush.bf16.msra.mxu0 %v4618
        %7481 = vmatmul.bf16.gmra.mxu0 %v1285
        %v7482 = vpop.f32.mrf.mxu0
        %v7483 = vadd.f32 %v7470, %v7482
        %v7484 = vpop.f32.mrf.mxu0
        %7485 = vdwg.mxu0
        %7486 = vmatpush.bf16.msra.mxu0 %v4648
        %7487 = vmatpush.bf16.msra.mxu0 %v4646
        %7488 = vmatpush.bf16.msra.mxu0 %v4644
        %7489 = vmatpush.bf16.msra.mxu0 %v4642
        %7490 = vmatpush.bf16.msra.mxu0 %v4640
        %7491 = vmatpush.bf16.msra.mxu0 %v4638
        %7492 = vmatpush.bf16.msra.mxu0 %v4636
        %7493 = vmatpush.bf16.msra.mxu0 %v4634
        %7494 = vmatmul.bf16.gmra.mxu0 %v1286
        %v7495 = vpop.f32.mrf.mxu0
        %v7496 = vadd.f32 %v7483, %v7495
        %v7497 = vpop.f32.mrf.mxu0
        %7498 = vdwg.mxu0
        %7499 = vmatpush.bf16.msra.mxu0 %v4664
        %7500 = vmatpush.bf16.msra.mxu0 %v4662
        %7501 = vmatpush.bf16.msra.mxu0 %v4660
        %7502 = vmatpush.bf16.msra.mxu0 %v4658
        %7503 = vmatpush.bf16.msra.mxu0 %v4656
        %7504 = vmatpush.bf16.msra.mxu0 %v4654
        %7505 = vmatpush.bf16.msra.mxu0 %v4652
        %7506 = vmatpush.bf16.msra.mxu0 %v4650
        %7507 = vmatmul.bf16.gmra.mxu0 %v1287
        %v7508 = vpop.f32.mrf.mxu0
        %v7509 = vadd.f32 %v7496, %v7508
        %v7510 = vpop.f32.mrf.mxu0
        %7511 = vdwg.mxu0
        %7512 = vmatpush.bf16.msra.mxu0 %v4680
        %7513 = vmatpush.bf16.msra.mxu0 %v4678
        %7514 = vmatpush.bf16.msra.mxu0 %v4676
        %7515 = vmatpush.bf16.msra.mxu0 %v4674
        %7516 = vmatpush.bf16.msra.mxu0 %v4672
        %7517 = vmatpush.bf16.msra.mxu0 %v4670
        %7518 = vmatpush.bf16.msra.mxu0 %v4668
        %7519 = vmatpush.bf16.msra.mxu0 %v4666
        %7520 = vmatmul.bf16.gmra.mxu0 %v1288
        %v7521 = vpop.f32.mrf.mxu0
        %v7522 = vadd.f32 %v7509, %v7521
        %v7523 = vpop.f32.mrf.mxu0
        %7524 = vdwg.mxu0
        %7525 = vmatpush.bf16.msra.mxu0 %v4696
        %7526 = vmatpush.bf16.msra.mxu0 %v4694
        %7527 = vmatpush.bf16.msra.mxu0 %v4692
        %7528 = vmatpush.bf16.msra.mxu0 %v4690
        %7529 = vmatpush.bf16.msra.mxu0 %v4688
        %7530 = vmatpush.bf16.msra.mxu0 %v4686
        %7531 = vmatpush.bf16.msra.mxu0 %v4684
        %7532 = vmatpush.bf16.msra.mxu0 %v4682
        %7533 = vmatmul.bf16.gmra.mxu0 %v1289
        %v7534 = vpop.f32.mrf.mxu0
        %v7535 = vadd.f32 %v7522, %v7534
        %v7536 = vpop.f32.mrf.mxu0
        %7537 = vdwg.mxu0
        %7538 = vmatpush.bf16.msra.mxu0 %v4712
        %7539 = vmatpush.bf16.msra.mxu0 %v4710
        %7540 = vmatpush.bf16.msra.mxu0 %v4708
        %7541 = vmatpush.bf16.msra.mxu0 %v4706
        %7542 = vmatpush.bf16.msra.mxu0 %v4704
        %7543 = vmatpush.bf16.msra.mxu0 %v4702
        %7544 = vmatpush.bf16.msra.mxu0 %v4700
        %7545 = vmatpush.bf16.msra.mxu0 %v4698
        %7546 = vmatmul.bf16.gmra.mxu0 %v1290
        %v7547 = vpop.f32.mrf.mxu0
        %v7548 = vadd.f32 %v7535, %v7547
        %v7549 = vpop.f32.mrf.mxu0
        %7550 = vdwg.mxu0
        %7551 = vmatpush.bf16.msra.mxu0 %v4728
        %7552 = vmatpush.bf16.msra.mxu0 %v4726
        %7553 = vmatpush.bf16.msra.mxu0 %v4724
        %7554 = vmatpush.bf16.msra.mxu0 %v4722
        %7555 = vmatpush.bf16.msra.mxu0 %v4720
        %7556 = vmatpush.bf16.msra.mxu0 %v4718
        %7557 = vmatpush.bf16.msra.mxu0 %v4716
        %7558 = vmatpush.bf16.msra.mxu0 %v4714
        %7559 = vmatmul.bf16.gmra.mxu0 %v1291
        %v7560 = vpop.f32.mrf.mxu0
        %v7561 = vadd.f32 %v7548, %v7560
        %v7562 = vpop.f32.mrf.mxu0
        %7563 = vdwg.mxu0
        %7564 = vmatpush.bf16.msra.mxu0 %v4744
        %7565 = vmatpush.bf16.msra.mxu0 %v4742
        %7566 = vmatpush.bf16.msra.mxu0 %v4740
        %7567 = vmatpush.bf16.msra.mxu0 %v4738
        %7568 = vmatpush.bf16.msra.mxu0 %v4736
        %7569 = vmatpush.bf16.msra.mxu0 %v4734
        %7570 = vmatpush.bf16.msra.mxu0 %v4732
        %7571 = vmatpush.bf16.msra.mxu0 %v4730
        %7572 = vmatmul.bf16.gmra.mxu0 %v1292
        %v7573 = vpop.f32.mrf.mxu0
        %v7574 = vadd.f32 %v7561, %v7573
        %v7575 = vpop.f32.mrf.mxu0
        %7576 = vdwg.mxu0
        %7577 = vmatpush.bf16.msra.mxu0 %v4760
        %7578 = vmatpush.bf16.msra.mxu0 %v4758
        %7579 = vmatpush.bf16.msra.mxu0 %v4756
        %7580 = vmatpush.bf16.msra.mxu0 %v4754
        %7581 = vmatpush.bf16.msra.mxu0 %v4752
        %7582 = vmatpush.bf16.msra.mxu0 %v4750
        %7583 = vmatpush.bf16.msra.mxu0 %v4748
        %7584 = vmatpush.bf16.msra.mxu0 %v4746
        %7585 = vmatmul.bf16.gmra.mxu0 %v1295
        %v7586 = vpop.f32.mrf.mxu0
        %v7587 = vadd.f32 %v7574, %v7586
        %v7588 = vpop.f32.mrf.mxu0
        %7589 = vdwg.mxu0
        %7590 = vmatpush.bf16.msra.mxu0 %v4776
        %7591 = vmatpush.bf16.msra.mxu0 %v4774
        %7592 = vmatpush.bf16.msra.mxu0 %v4772
        %7593 = vmatpush.bf16.msra.mxu0 %v4770
        %7594 = vmatpush.bf16.msra.mxu0 %v4768
        %7595 = vmatpush.bf16.msra.mxu0 %v4766
        %7596 = vmatpush.bf16.msra.mxu0 %v4764
        %7597 = vmatpush.bf16.msra.mxu0 %v4762
        %7598 = vmatmul.bf16.gmra.mxu0 %v1296
        %v7599 = vpop.f32.mrf.mxu0
        %v7600 = vadd.f32 %v7587, %v7599
        %v7601 = vpop.f32.mrf.mxu0
        %7602 = vdwg.mxu0
        %7603 = vmatpush.bf16.msra.mxu0 %v4792
        %7604 = vmatpush.bf16.msra.mxu0 %v4790
        %7605 = vmatpush.bf16.msra.mxu0 %v4788
        %7606 = vmatpush.bf16.msra.mxu0 %v4786
        %7607 = vmatpush.bf16.msra.mxu0 %v4784
        %7608 = vmatpush.bf16.msra.mxu0 %v4782
        %7609 = vmatpush.bf16.msra.mxu0 %v4780
        %7610 = vmatpush.bf16.msra.mxu0 %v4778
        %7611 = vmatmul.bf16.gmra.mxu0 %v1297
        %v7612 = vpop.f32.mrf.mxu0
        %v7613 = vadd.f32 %v7600, %v7612
        %v7614 = vpop.f32.mrf.mxu0
        %7615 = vdwg.mxu0
        %7616 = vmatpush.bf16.msra.mxu0 %v4808
        %7617 = vmatpush.bf16.msra.mxu0 %v4806
        %7618 = vmatpush.bf16.msra.mxu0 %v4804
        %7619 = vmatpush.bf16.msra.mxu0 %v4802
        %7620 = vmatpush.bf16.msra.mxu0 %v4800
        %7621 = vmatpush.bf16.msra.mxu0 %v4798
        %7622 = vmatpush.bf16.msra.mxu0 %v4796
        %7623 = vmatpush.bf16.msra.mxu0 %v4794
        %7624 = vmatmul.bf16.gmra.mxu0 %v1298
        %v7625 = vpop.f32.mrf.mxu0
        %v7626 = vadd.f32 %v7613, %v7625
        %v7627 = vpop.f32.mrf.mxu0
        %7628 = vdwg.mxu0
        %7629 = vmatpush.bf16.msra.mxu0 %v4824
        %7630 = vmatpush.bf16.msra.mxu0 %v4822
        %7631 = vmatpush.bf16.msra.mxu0 %v4820
        %7632 = vmatpush.bf16.msra.mxu0 %v4818
        %7633 = vmatpush.bf16.msra.mxu0 %v4816
        %7634 = vmatpush.bf16.msra.mxu0 %v4814
        %7635 = vmatpush.bf16.msra.mxu0 %v4812
        %7636 = vmatpush.bf16.msra.mxu0 %v4810
        %7637 = vmatmul.bf16.gmra.mxu0 %v1299
        %v7638 = vpop.f32.mrf.mxu0
        %v7639 = vadd.f32 %v7626, %v7638
        %v7640 = vpop.f32.mrf.mxu0
        %7641 = vdwg.mxu0
        %7642 = vmatpush.bf16.msra.mxu0 %v4840
        %7643 = vmatpush.bf16.msra.mxu0 %v4838
        %7644 = vmatpush.bf16.msra.mxu0 %v4836
        %7645 = vmatpush.bf16.msra.mxu0 %v4834
        %7646 = vmatpush.bf16.msra.mxu0 %v4832
        %7647 = vmatpush.bf16.msra.mxu0 %v4830
        %7648 = vmatpush.bf16.msra.mxu0 %v4828
        %7649 = vmatpush.bf16.msra.mxu0 %v4826
        %7650 = vmatmul.bf16.gmra.mxu0 %v1300
        %v7651 = vpop.f32.mrf.mxu0
        %v7652 = vadd.f32 %v7639, %v7651
        %v7653 = vpop.f32.mrf.mxu0
        %7654 = vdwg.mxu0
        %7655 = vmatpush.bf16.msra.mxu0 %v4856
        %7656 = vmatpush.bf16.msra.mxu0 %v4854
        %7657 = vmatpush.bf16.msra.mxu0 %v4852
        %7658 = vmatpush.bf16.msra.mxu0 %v4850
        %7659 = vmatpush.bf16.msra.mxu0 %v4848
        %7660 = vmatpush.bf16.msra.mxu0 %v4846
        %7661 = vmatpush.bf16.msra.mxu0 %v4844
        %7662 = vmatpush.bf16.msra.mxu0 %v4842
        %7663 = vmatmul.bf16.gmra.mxu0 %v1301
        %v7664 = vpop.f32.mrf.mxu0
        %v7665 = vadd.f32 %v7652, %v7664
        %v7666 = vpop.f32.mrf.mxu0
        %7667 = vdwg.mxu0
        %7668 = vmatpush.bf16.msra.mxu0 %v4872
        %7669 = vmatpush.bf16.msra.mxu0 %v4870
        %7670 = vmatpush.bf16.msra.mxu0 %v4868
        %7671 = vmatpush.bf16.msra.mxu0 %v4866
        %7672 = vmatpush.bf16.msra.mxu0 %v4864
        %7673 = vmatpush.bf16.msra.mxu0 %v4862
        %7674 = vmatpush.bf16.msra.mxu0 %v4860
        %7675 = vmatpush.bf16.msra.mxu0 %v4858
        %7676 = vmatmul.bf16.gmra.mxu0 %v1302
        %v7677 = vpop.f32.mrf.mxu0
        %v7678 = vadd.f32 %v7665, %v7677
        %v7679 = vpop.f32.mrf.mxu0
        %7680 = vdwg.mxu0
        %7681 = vmatpush.bf16.msra.mxu0 %v4888
        %7682 = vmatpush.bf16.msra.mxu0 %v4886
        %7683 = vmatpush.bf16.msra.mxu0 %v4884
        %7684 = vmatpush.bf16.msra.mxu0 %v4882
        %7685 = vmatpush.bf16.msra.mxu0 %v4880
        %7686 = vmatpush.bf16.msra.mxu0 %v4878
        %7687 = vmatpush.bf16.msra.mxu0 %v4876
        %7688 = vmatpush.bf16.msra.mxu0 %v4874
        %7689 = vmatmul.bf16.gmra.mxu0 %v1305
        %v7690 = vpop.f32.mrf.mxu0
        %v7691 = vadd.f32 %v7678, %v7690
        %v7692 = vpop.f32.mrf.mxu0
        %7693 = vdwg.mxu0
        %7694 = vmatpush.bf16.msra.mxu0 %v4904
        %7695 = vmatpush.bf16.msra.mxu0 %v4902
        %7696 = vmatpush.bf16.msra.mxu0 %v4900
        %7697 = vmatpush.bf16.msra.mxu0 %v4898
        %7698 = vmatpush.bf16.msra.mxu0 %v4896
        %7699 = vmatpush.bf16.msra.mxu0 %v4894
        %7700 = vmatpush.bf16.msra.mxu0 %v4892
        %7701 = vmatpush.bf16.msra.mxu0 %v4890
        %7702 = vmatmul.bf16.gmra.mxu0 %v1306
        %v7703 = vpop.f32.mrf.mxu0
        %v7704 = vadd.f32 %v7691, %v7703
        %v7705 = vpop.f32.mrf.mxu0
        %7706 = vdwg.mxu0
        %7707 = vmatpush.bf16.msra.mxu0 %v4920
        %7708 = vmatpush.bf16.msra.mxu0 %v4918
        %7709 = vmatpush.bf16.msra.mxu0 %v4916
        %7710 = vmatpush.bf16.msra.mxu0 %v4914
        %7711 = vmatpush.bf16.msra.mxu0 %v4912
        %7712 = vmatpush.bf16.msra.mxu0 %v4910
        %7713 = vmatpush.bf16.msra.mxu0 %v4908
        %7714 = vmatpush.bf16.msra.mxu0 %v4906
        %7715 = vmatmul.bf16.gmra.mxu0 %v1307
        %v7716 = vpop.f32.mrf.mxu0
        %v7717 = vadd.f32 %v7704, %v7716
        %v7718 = vpop.f32.mrf.mxu0
        %7719 = vdwg.mxu0
        %7720 = vmatpush.bf16.msra.mxu0 %v4936
        %7721 = vmatpush.bf16.msra.mxu0 %v4934
        %7722 = vmatpush.bf16.msra.mxu0 %v4932
        %7723 = vmatpush.bf16.msra.mxu0 %v4930
        %7724 = vmatpush.bf16.msra.mxu0 %v4928
        %7725 = vmatpush.bf16.msra.mxu0 %v4926
        %7726 = vmatpush.bf16.msra.mxu0 %v4924
        %7727 = vmatpush.bf16.msra.mxu0 %v4922
        %7728 = vmatmul.bf16.gmra.mxu0 %v1308
        %v7729 = vpop.f32.mrf.mxu0
        %v7730 = vadd.f32 %v7717, %v7729
        %v7731 = vpop.f32.mrf.mxu0
        %7732 = vdwg.mxu0
        %7733 = vmatpush.bf16.msra.mxu0 %v4952
        %7734 = vmatpush.bf16.msra.mxu0 %v4950
        %7735 = vmatpush.bf16.msra.mxu0 %v4948
        %7736 = vmatpush.bf16.msra.mxu0 %v4946
        %7737 = vmatpush.bf16.msra.mxu0 %v4944
        %7738 = vmatpush.bf16.msra.mxu0 %v4942
        %7739 = vmatpush.bf16.msra.mxu0 %v4940
        %7740 = vmatpush.bf16.msra.mxu0 %v4938
        %7741 = vmatmul.bf16.gmra.mxu0 %v1309
        %v7742 = vpop.f32.mrf.mxu0
        %v7743 = vadd.f32 %v7730, %v7742
        %v7744 = vpop.f32.mrf.mxu0
        %7745 = vdwg.mxu0
        %7746 = vmatpush.bf16.msra.mxu0 %v4968
        %7747 = vmatpush.bf16.msra.mxu0 %v4966
        %7748 = vmatpush.bf16.msra.mxu0 %v4964
        %7749 = vmatpush.bf16.msra.mxu0 %v4962
        %7750 = vmatpush.bf16.msra.mxu0 %v4960
        %7751 = vmatpush.bf16.msra.mxu0 %v4958
        %7752 = vmatpush.bf16.msra.mxu0 %v4956
        %7753 = vmatpush.bf16.msra.mxu0 %v4954
        %7754 = vmatmul.bf16.gmra.mxu0 %v1310
        %v7755 = vpop.f32.mrf.mxu0
        %v7756 = vadd.f32 %v7743, %v7755
        %v7757 = vpop.f32.mrf.mxu0
        %7758 = vdwg.mxu0
        %7759 = vmatpush.bf16.msra.mxu0 %v4984
        %7760 = vmatpush.bf16.msra.mxu0 %v4982
        %7761 = vmatpush.bf16.msra.mxu0 %v4980
        %7762 = vmatpush.bf16.msra.mxu0 %v4978
        %7763 = vmatpush.bf16.msra.mxu0 %v4976
        %7764 = vmatpush.bf16.msra.mxu0 %v4974
        %7765 = vmatpush.bf16.msra.mxu0 %v4972
        %7766 = vmatpush.bf16.msra.mxu0 %v4970
        %7767 = vmatmul.bf16.gmra.mxu0 %v1311
        %v7768 = vpop.f32.mrf.mxu0
        %v7769 = vadd.f32 %v7756, %v7768
        %v7770 = vpop.f32.mrf.mxu0
        %7771 = vdwg.mxu0
        %7772 = vmatpush.bf16.msra.mxu0 %v5000
        %7773 = vmatpush.bf16.msra.mxu0 %v4998
        %7774 = vmatpush.bf16.msra.mxu0 %v4996
        %7775 = vmatpush.bf16.msra.mxu0 %v4994
        %7776 = vmatpush.bf16.msra.mxu0 %v4992
        %7777 = vmatpush.bf16.msra.mxu0 %v4990
        %7778 = vmatpush.bf16.msra.mxu0 %v4988
        %7779 = vmatpush.bf16.msra.mxu0 %v4986
        %7780 = vmatmul.bf16.gmra.mxu0 %v1312
        %v7781 = vpop.f32.mrf.mxu0
        %v7782 = vadd.f32 %v7769, %v7781
        %v7783 = vpop.f32.mrf.mxu0
        %7784 = vdwg.mxu0
        %7785 = vmatpush.bf16.msra.mxu0 %v5016
        %7786 = vmatpush.bf16.msra.mxu0 %v5014
        %7787 = vmatpush.bf16.msra.mxu0 %v5012
        %7788 = vmatpush.bf16.msra.mxu0 %v5010
        %7789 = vmatpush.bf16.msra.mxu0 %v5008
        %7790 = vmatpush.bf16.msra.mxu0 %v5006
        %7791 = vmatpush.bf16.msra.mxu0 %v5004
        %7792 = vmatpush.bf16.msra.mxu0 %v5002
        %7793 = vmatmul.bf16.gmra.mxu0 %v1315
        %v7794 = vpop.f32.mrf.mxu0
        %v7795 = vadd.f32 %v7782, %v7794
        %v7796 = vpop.f32.mrf.mxu0
        %7797 = vdwg.mxu0
        %7798 = vmatpush.bf16.msra.mxu0 %v5032
        %7799 = vmatpush.bf16.msra.mxu0 %v5030
        %7800 = vmatpush.bf16.msra.mxu0 %v5028
        %7801 = vmatpush.bf16.msra.mxu0 %v5026
        %7802 = vmatpush.bf16.msra.mxu0 %v5024
        %7803 = vmatpush.bf16.msra.mxu0 %v5022
        %7804 = vmatpush.bf16.msra.mxu0 %v5020
        %7805 = vmatpush.bf16.msra.mxu0 %v5018
        %7806 = vmatmul.bf16.gmra.mxu0 %v1316
        %v7807 = vpop.f32.mrf.mxu0
        %v7808 = vadd.f32 %v7795, %v7807
        %v7809 = vpop.f32.mrf.mxu0
        %7810 = vdwg.mxu0
        %7811 = vmatpush.bf16.msra.mxu0 %v5048
        %7812 = vmatpush.bf16.msra.mxu0 %v5046
        %7813 = vmatpush.bf16.msra.mxu0 %v5044
        %7814 = vmatpush.bf16.msra.mxu0 %v5042
        %7815 = vmatpush.bf16.msra.mxu0 %v5040
        %7816 = vmatpush.bf16.msra.mxu0 %v5038
        %7817 = vmatpush.bf16.msra.mxu0 %v5036
        %7818 = vmatpush.bf16.msra.mxu0 %v5034
        %7819 = vmatmul.bf16.gmra.mxu0 %v1317
        %v7820 = vpop.f32.mrf.mxu0
        %v7821 = vadd.f32 %v7808, %v7820
        %v7822 = vpop.f32.mrf.mxu0
        %7823 = vdwg.mxu0
        %7824 = vmatpush.bf16.msra.mxu0 %v5064
        %7825 = vmatpush.bf16.msra.mxu0 %v5062
        %7826 = vmatpush.bf16.msra.mxu0 %v5060
        %7827 = vmatpush.bf16.msra.mxu0 %v5058
        %7828 = vmatpush.bf16.msra.mxu0 %v5056
        %7829 = vmatpush.bf16.msra.mxu0 %v5054
        %7830 = vmatpush.bf16.msra.mxu0 %v5052
        %7831 = vmatpush.bf16.msra.mxu0 %v5050
        %7832 = vmatmul.bf16.gmra.mxu0 %v1318
        %v7833 = vpop.f32.mrf.mxu0
        %v7834 = vadd.f32 %v7821, %v7833
        %v7835 = vpop.f32.mrf.mxu0
        %7836 = vdwg.mxu0
        %7837 = vmatpush.bf16.msra.mxu0 %v5080
        %7838 = vmatpush.bf16.msra.mxu0 %v5078
        %7839 = vmatpush.bf16.msra.mxu0 %v5076
        %7840 = vmatpush.bf16.msra.mxu0 %v5074
        %7841 = vmatpush.bf16.msra.mxu0 %v5072
        %7842 = vmatpush.bf16.msra.mxu0 %v5070
        %7843 = vmatpush.bf16.msra.mxu0 %v5068
        %7844 = vmatpush.bf16.msra.mxu0 %v5066
        %7845 = vmatmul.bf16.gmra.mxu0 %v1319
        %v7846 = vpop.f32.mrf.mxu0
        %v7847 = vadd.f32 %v7834, %v7846
        %v7848 = vpop.f32.mrf.mxu0
        %7849 = vdwg.mxu0
        %7850 = vmatpush.bf16.msra.mxu0 %v5096
        %7851 = vmatpush.bf16.msra.mxu0 %v5094
        %7852 = vmatpush.bf16.msra.mxu0 %v5092
        %7853 = vmatpush.bf16.msra.mxu0 %v5090
        %7854 = vmatpush.bf16.msra.mxu0 %v5088
        %7855 = vmatpush.bf16.msra.mxu0 %v5086
        %7856 = vmatpush.bf16.msra.mxu0 %v5084
        %7857 = vmatpush.bf16.msra.mxu0 %v5082
        %7858 = vmatmul.bf16.gmra.mxu0 %v1320
        %v7859 = vpop.f32.mrf.mxu0
        %v7860 = vadd.f32 %v7847, %v7859
        %v7861 = vpop.f32.mrf.mxu0
        %7862 = vdwg.mxu0
        %7863 = vmatpush.bf16.msra.mxu0 %v5112
        %7864 = vmatpush.bf16.msra.mxu0 %v5110
        %7865 = vmatpush.bf16.msra.mxu0 %v5108
        %7866 = vmatpush.bf16.msra.mxu0 %v5106
        %7867 = vmatpush.bf16.msra.mxu0 %v5104
        %7868 = vmatpush.bf16.msra.mxu0 %v5102
        %7869 = vmatpush.bf16.msra.mxu0 %v5100
        %7870 = vmatpush.bf16.msra.mxu0 %v5098
        %7871 = vmatmul.bf16.gmra.mxu0 %v1321
        %v7872 = vpop.f32.mrf.mxu0
        %v7873 = vadd.f32 %v7860, %v7872
        %v7874 = vpop.f32.mrf.mxu0
        %7875 = vdwg.mxu0
        %7876 = vmatpush.bf16.msra.mxu0 %v5128
        %7877 = vmatpush.bf16.msra.mxu0 %v5126
        %7878 = vmatpush.bf16.msra.mxu0 %v5124
        %7879 = vmatpush.bf16.msra.mxu0 %v5122
        %7880 = vmatpush.bf16.msra.mxu0 %v5120
        %7881 = vmatpush.bf16.msra.mxu0 %v5118
        %7882 = vmatpush.bf16.msra.mxu0 %v5116
        %7883 = vmatpush.bf16.msra.mxu0 %v5114
        %7884 = vmatmul.bf16.gmra.mxu0 %v1322
        %v7885 = vpop.f32.mrf.mxu0
        %v7886 = vadd.f32 %v7873, %v7885
        %v7887 = vpop.f32.mrf.mxu0
        %7888 = vdwg.mxu0
        %7889 = vmatpush.bf16.msra.mxu0 %v5144
        %7890 = vmatpush.bf16.msra.mxu0 %v5142
        %7891 = vmatpush.bf16.msra.mxu0 %v5140
        %7892 = vmatpush.bf16.msra.mxu0 %v5138
        %7893 = vmatpush.bf16.msra.mxu0 %v5136
        %7894 = vmatpush.bf16.msra.mxu0 %v5134
        %7895 = vmatpush.bf16.msra.mxu0 %v5132
        %7896 = vmatpush.bf16.msra.mxu0 %v5130
        %7897 = vmatmul.bf16.gmra.mxu0 %v1325
        %v7898 = vpop.f32.mrf.mxu0
        %v7899 = vadd.f32 %v7886, %v7898
        %v7900 = vpop.f32.mrf.mxu0
        %7901 = vdwg.mxu0
        %7902 = vmatpush.bf16.msra.mxu0 %v5160
        %7903 = vmatpush.bf16.msra.mxu0 %v5158
        %7904 = vmatpush.bf16.msra.mxu0 %v5156
        %7905 = vmatpush.bf16.msra.mxu0 %v5154
        %7906 = vmatpush.bf16.msra.mxu0 %v5152
        %7907 = vmatpush.bf16.msra.mxu0 %v5150
        %7908 = vmatpush.bf16.msra.mxu0 %v5148
        %7909 = vmatpush.bf16.msra.mxu0 %v5146
        %7910 = vmatmul.bf16.gmra.mxu0 %v1326
        %v7911 = vpop.f32.mrf.mxu0
        %v7912 = vadd.f32 %v7899, %v7911
        %v7913 = vpop.f32.mrf.mxu0
        %7914 = vdwg.mxu0
        %7915 = vmatpush.bf16.msra.mxu0 %v5176
        %7916 = vmatpush.bf16.msra.mxu0 %v5174
        %7917 = vmatpush.bf16.msra.mxu0 %v5172
        %7918 = vmatpush.bf16.msra.mxu0 %v5170
        %7919 = vmatpush.bf16.msra.mxu0 %v5168
        %7920 = vmatpush.bf16.msra.mxu0 %v5166
        %7921 = vmatpush.bf16.msra.mxu0 %v5164
        %7922 = vmatpush.bf16.msra.mxu0 %v5162
        %7923 = vmatmul.bf16.gmra.mxu0 %v1327
        %v7924 = vpop.f32.mrf.mxu0
        %v7925 = vadd.f32 %v7912, %v7924
        %v7926 = vpop.f32.mrf.mxu0
        %7927 = vdwg.mxu0
        %7928 = vmatpush.bf16.msra.mxu0 %v5192
        %7929 = vmatpush.bf16.msra.mxu0 %v5190
        %7930 = vmatpush.bf16.msra.mxu0 %v5188
        %7931 = vmatpush.bf16.msra.mxu0 %v5186
        %7932 = vmatpush.bf16.msra.mxu0 %v5184
        %7933 = vmatpush.bf16.msra.mxu0 %v5182
        %7934 = vmatpush.bf16.msra.mxu0 %v5180
        %7935 = vmatpush.bf16.msra.mxu0 %v5178
        %7936 = vmatmul.bf16.gmra.mxu0 %v1328
        %v7937 = vpop.f32.mrf.mxu0
        %v7938 = vadd.f32 %v7925, %v7937
        %v7939 = vpop.f32.mrf.mxu0
        %7940 = vdwg.mxu0
        %7941 = vmatpush.bf16.msra.mxu0 %v5208
        %7942 = vmatpush.bf16.msra.mxu0 %v5206
        %7943 = vmatpush.bf16.msra.mxu0 %v5204
        %7944 = vmatpush.bf16.msra.mxu0 %v5202
        %7945 = vmatpush.bf16.msra.mxu0 %v5200
        %7946 = vmatpush.bf16.msra.mxu0 %v5198
        %7947 = vmatpush.bf16.msra.mxu0 %v5196
        %7948 = vmatpush.bf16.msra.mxu0 %v5194
        %7949 = vmatmul.bf16.gmra.mxu0 %v1329
        %v7950 = vpop.f32.mrf.mxu0
        %v7951 = vadd.f32 %v7938, %v7950
        %v7952 = vpop.f32.mrf.mxu0
        %7953 = vdwg.mxu0
        %7954 = vmatpush.bf16.msra.mxu0 %v5224
        %7955 = vmatpush.bf16.msra.mxu0 %v5222
        %7956 = vmatpush.bf16.msra.mxu0 %v5220
        %7957 = vmatpush.bf16.msra.mxu0 %v5218
        %7958 = vmatpush.bf16.msra.mxu0 %v5216
        %7959 = vmatpush.bf16.msra.mxu0 %v5214
        %7960 = vmatpush.bf16.msra.mxu0 %v5212
        %7961 = vmatpush.bf16.msra.mxu0 %v5210
        %7962 = vmatmul.bf16.gmra.mxu0 %v1330
        %v7963 = vpop.f32.mrf.mxu0
        %v7964 = vadd.f32 %v7951, %v7963
        %v7965 = vpop.f32.mrf.mxu0
        %7966 = vdwg.mxu0
        %7967 = vmatpush.bf16.msra.mxu0 %v5240
        %7968 = vmatpush.bf16.msra.mxu0 %v5238
        %7969 = vmatpush.bf16.msra.mxu0 %v5236
        %7970 = vmatpush.bf16.msra.mxu0 %v5234
        %7971 = vmatpush.bf16.msra.mxu0 %v5232
        %7972 = vmatpush.bf16.msra.mxu0 %v5230
        %7973 = vmatpush.bf16.msra.mxu0 %v5228
        %7974 = vmatpush.bf16.msra.mxu0 %v5226
        %7975 = vmatmul.bf16.gmra.mxu0 %v1331
        %v7976 = vpop.f32.mrf.mxu0
        %v7977 = vadd.f32 %v7964, %v7976
        %v7978 = vpop.f32.mrf.mxu0
        %7979 = vdwg.mxu0
        %7980 = vmatpush.bf16.msra.mxu0 %v5256
        %7981 = vmatpush.bf16.msra.mxu0 %v5254
        %7982 = vmatpush.bf16.msra.mxu0 %v5252
        %7983 = vmatpush.bf16.msra.mxu0 %v5250
        %7984 = vmatpush.bf16.msra.mxu0 %v5248
        %7985 = vmatpush.bf16.msra.mxu0 %v5246
        %7986 = vmatpush.bf16.msra.mxu0 %v5244
        %7987 = vmatpush.bf16.msra.mxu0 %v5242
        %7988 = vmatmul.bf16.gmra.mxu0 %v1332
        %v7989 = vpop.f32.mrf.mxu0
        %v7990 = vadd.f32 %v7977, %v7989
        %v7991 = vpop.f32.mrf.mxu0
        %7992 = vdwg.mxu0
        %7993 = vmatpush.bf16.msra.mxu0 %v5272
        %7994 = vmatpush.bf16.msra.mxu0 %v5270
        %7995 = vmatpush.bf16.msra.mxu0 %v5268
        %7996 = vmatpush.bf16.msra.mxu0 %v5266
        %7997 = vmatpush.bf16.msra.mxu0 %v5264
        %7998 = vmatpush.bf16.msra.mxu0 %v5262
        %7999 = vmatpush.bf16.msra.mxu0 %v5260
        %8000 = vmatpush.bf16.msra.mxu0 %v5258
        %8001 = vmatmul.bf16.gmra.mxu0 %v1335
        %v8002 = vpop.f32.mrf.mxu0
        %v8003 = vadd.f32 %v7990, %v8002
        %v8004 = vpop.f32.mrf.mxu0
        %8005 = vdwg.mxu0
        %8006 = vmatpush.bf16.msra.mxu0 %v5288
        %8007 = vmatpush.bf16.msra.mxu0 %v5286
        %8008 = vmatpush.bf16.msra.mxu0 %v5284
        %8009 = vmatpush.bf16.msra.mxu0 %v5282
        %8010 = vmatpush.bf16.msra.mxu0 %v5280
        %8011 = vmatpush.bf16.msra.mxu0 %v5278
        %8012 = vmatpush.bf16.msra.mxu0 %v5276
        %8013 = vmatpush.bf16.msra.mxu0 %v5274
        %8014 = vmatmul.bf16.gmra.mxu0 %v1336
        %v8015 = vpop.f32.mrf.mxu0
        %v8016 = vadd.f32 %v8003, %v8015
        %v8017 = vpop.f32.mrf.mxu0
        %8018 = vdwg.mxu0
        %8019 = vmatpush.bf16.msra.mxu0 %v5304
        %8020 = vmatpush.bf16.msra.mxu0 %v5302
        %8021 = vmatpush.bf16.msra.mxu0 %v5300
        %8022 = vmatpush.bf16.msra.mxu0 %v5298
        %8023 = vmatpush.bf16.msra.mxu0 %v5296
        %8024 = vmatpush.bf16.msra.mxu0 %v5294
        %8025 = vmatpush.bf16.msra.mxu0 %v5292
        %8026 = vmatpush.bf16.msra.mxu0 %v5290
        %8027 = vmatmul.bf16.gmra.mxu0 %v1337
        %v8028 = vpop.f32.mrf.mxu0
        %v8029 = vadd.f32 %v8016, %v8028
        %v8030 = vpop.f32.mrf.mxu0
        %8031 = vdwg.mxu0
        %8032 = vmatpush.bf16.msra.mxu0 %v5320
        %8033 = vmatpush.bf16.msra.mxu0 %v5318
        %8034 = vmatpush.bf16.msra.mxu0 %v5316
        %8035 = vmatpush.bf16.msra.mxu0 %v5314
        %8036 = vmatpush.bf16.msra.mxu0 %v5312
        %8037 = vmatpush.bf16.msra.mxu0 %v5310
        %8038 = vmatpush.bf16.msra.mxu0 %v5308
        %8039 = vmatpush.bf16.msra.mxu0 %v5306
        %8040 = vmatmul.bf16.gmra.mxu0 %v1338
        %v8041 = vpop.f32.mrf.mxu0
        %v8042 = vadd.f32 %v8029, %v8041
        %v8043 = vpop.f32.mrf.mxu0
        %8044 = vdwg.mxu0
        %8045 = vmatpush.bf16.msra.mxu0 %v5336
        %8046 = vmatpush.bf16.msra.mxu0 %v5334
        %8047 = vmatpush.bf16.msra.mxu0 %v5332
        %8048 = vmatpush.bf16.msra.mxu0 %v5330
        %8049 = vmatpush.bf16.msra.mxu0 %v5328
        %8050 = vmatpush.bf16.msra.mxu0 %v5326
        %8051 = vmatpush.bf16.msra.mxu0 %v5324
        %8052 = vmatpush.bf16.msra.mxu0 %v5322
        %8053 = vmatmul.bf16.gmra.mxu0 %v1339
        %v8054 = vpop.f32.mrf.mxu0
        %v8055 = vadd.f32 %v8042, %v8054
        %v8056 = vpop.f32.mrf.mxu0
        %8057 = vdwg.mxu0
        %8058 = vmatpush.bf16.msra.mxu0 %v5352
        %8059 = vmatpush.bf16.msra.mxu0 %v5350
        %8060 = vmatpush.bf16.msra.mxu0 %v5348
        %8061 = vmatpush.bf16.msra.mxu0 %v5346
        %8062 = vmatpush.bf16.msra.mxu0 %v5344
        %8063 = vmatpush.bf16.msra.mxu0 %v5342
        %8064 = vmatpush.bf16.msra.mxu0 %v5340
        %8065 = vmatpush.bf16.msra.mxu0 %v5338
        %8066 = vmatmul.bf16.gmra.mxu0 %v1340
        %v8067 = vpop.f32.mrf.mxu0
        %v8068 = vadd.f32 %v8055, %v8067
        %v8069 = vpop.f32.mrf.mxu0
        %8070 = vdwg.mxu0
        %8071 = vmatpush.bf16.msra.mxu0 %v5368
        %8072 = vmatpush.bf16.msra.mxu0 %v5366
        %8073 = vmatpush.bf16.msra.mxu0 %v5364
        %8074 = vmatpush.bf16.msra.mxu0 %v5362
        %8075 = vmatpush.bf16.msra.mxu0 %v5360
        %8076 = vmatpush.bf16.msra.mxu0 %v5358
        %8077 = vmatpush.bf16.msra.mxu0 %v5356
        %8078 = vmatpush.bf16.msra.mxu0 %v5354
        %8079 = vmatmul.bf16.gmra.mxu0 %v1341
        %v8080 = vpop.f32.mrf.mxu0
        %v8081 = vadd.f32 %v8068, %v8080
        %v8082 = vpop.f32.mrf.mxu0
        %8083 = vdwg.mxu0
        %8084 = vmatpush.bf16.msra.mxu0 %v5384
        %8085 = vmatpush.bf16.msra.mxu0 %v5382
        %8086 = vmatpush.bf16.msra.mxu0 %v5380
        %8087 = vmatpush.bf16.msra.mxu0 %v5378
        %8088 = vmatpush.bf16.msra.mxu0 %v5376
        %8089 = vmatpush.bf16.msra.mxu0 %v5374
        %8090 = vmatpush.bf16.msra.mxu0 %v5372
        %8091 = vmatpush.bf16.msra.mxu0 %v5370
        %8092 = vmatmul.bf16.gmra.mxu0 %v1342
        %v8093 = vpop.f32.mrf.mxu0
        %v8094 = vadd.f32 %v8081, %v8093
        %v8095 = vpop.f32.mrf.mxu0
        %8096 = vdwg.mxu0
        %8097 = vmatpush.bf16.msra.mxu0 %v5400
        %8098 = vmatpush.bf16.msra.mxu0 %v5398
        %8099 = vmatpush.bf16.msra.mxu0 %v5396
        %8100 = vmatpush.bf16.msra.mxu0 %v5394
        %8101 = vmatpush.bf16.msra.mxu0 %v5392
        %8102 = vmatpush.bf16.msra.mxu0 %v5390
        %8103 = vmatpush.bf16.msra.mxu0 %v5388
        %8104 = vmatpush.bf16.msra.mxu0 %v5386
        %8105 = vmatmul.bf16.gmra.mxu0 %v1345
        %v8106 = vpop.f32.mrf.mxu0
        %v8107 = vadd.f32 %v8094, %v8106
        %v8108 = vpop.f32.mrf.mxu0
        %8109 = vdwg.mxu0
        %8110 = vmatpush.bf16.msra.mxu0 %v5416
        %8111 = vmatpush.bf16.msra.mxu0 %v5414
        %8112 = vmatpush.bf16.msra.mxu0 %v5412
        %8113 = vmatpush.bf16.msra.mxu0 %v5410
        %8114 = vmatpush.bf16.msra.mxu0 %v5408
        %8115 = vmatpush.bf16.msra.mxu0 %v5406
        %8116 = vmatpush.bf16.msra.mxu0 %v5404
        %8117 = vmatpush.bf16.msra.mxu0 %v5402
        %8118 = vmatmul.bf16.gmra.mxu0 %v1346
        %v8119 = vpop.f32.mrf.mxu0
        %v8120 = vadd.f32 %v8107, %v8119
        %v8121 = vpop.f32.mrf.mxu0
        %8122 = vdwg.mxu0
        %8123 = vmatpush.bf16.msra.mxu0 %v5432
        %8124 = vmatpush.bf16.msra.mxu0 %v5430
        %8125 = vmatpush.bf16.msra.mxu0 %v5428
        %8126 = vmatpush.bf16.msra.mxu0 %v5426
        %8127 = vmatpush.bf16.msra.mxu0 %v5424
        %8128 = vmatpush.bf16.msra.mxu0 %v5422
        %8129 = vmatpush.bf16.msra.mxu0 %v5420
        %8130 = vmatpush.bf16.msra.mxu0 %v5418
        %8131 = vmatmul.bf16.gmra.mxu0 %v1347
        %v8132 = vpop.f32.mrf.mxu0
        %v8133 = vadd.f32 %v8120, %v8132
        %v8134 = vpop.f32.mrf.mxu0
        %8135 = vdwg.mxu0
        %8136 = vmatpush.bf16.msra.mxu0 %v5448
        %8137 = vmatpush.bf16.msra.mxu0 %v5446
        %8138 = vmatpush.bf16.msra.mxu0 %v5444
        %8139 = vmatpush.bf16.msra.mxu0 %v5442
        %8140 = vmatpush.bf16.msra.mxu0 %v5440
        %8141 = vmatpush.bf16.msra.mxu0 %v5438
        %8142 = vmatpush.bf16.msra.mxu0 %v5436
        %8143 = vmatpush.bf16.msra.mxu0 %v5434
        %8144 = vmatmul.bf16.gmra.mxu0 %v1348
        %v8145 = vpop.f32.mrf.mxu0
        %v8146 = vadd.f32 %v8133, %v8145
        %v8147 = vpop.f32.mrf.mxu0
        %8148 = vdwg.mxu0
        %8149 = vmatpush.bf16.msra.mxu0 %v5464
        %8150 = vmatpush.bf16.msra.mxu0 %v5462
        %8151 = vmatpush.bf16.msra.mxu0 %v5460
        %8152 = vmatpush.bf16.msra.mxu0 %v5458
        %8153 = vmatpush.bf16.msra.mxu0 %v5456
        %8154 = vmatpush.bf16.msra.mxu0 %v5454
        %8155 = vmatpush.bf16.msra.mxu0 %v5452
        %8156 = vmatpush.bf16.msra.mxu0 %v5450
        %8157 = vmatmul.bf16.gmra.mxu0 %v1349
        %v8158 = vpop.f32.mrf.mxu0
        %v8159 = vadd.f32 %v8146, %v8158
        %v8160 = vpop.f32.mrf.mxu0
        %8161 = vdwg.mxu0
        %8162 = vmatpush.bf16.msra.mxu0 %v5480
        %8163 = vmatpush.bf16.msra.mxu0 %v5478
        %8164 = vmatpush.bf16.msra.mxu0 %v5476
        %8165 = vmatpush.bf16.msra.mxu0 %v5474
        %8166 = vmatpush.bf16.msra.mxu0 %v5472
        %8167 = vmatpush.bf16.msra.mxu0 %v5470
        %8168 = vmatpush.bf16.msra.mxu0 %v5468
        %8169 = vmatpush.bf16.msra.mxu0 %v5466
        %8170 = vmatmul.bf16.gmra.mxu0 %v1350
        %v8171 = vpop.f32.mrf.mxu0
        %v8172 = vadd.f32 %v8159, %v8171
        %v8173 = vpop.f32.mrf.mxu0
        %8174 = vdwg.mxu0
        %8175 = vmatpush.bf16.msra.mxu0 %v5496
        %8176 = vmatpush.bf16.msra.mxu0 %v5494
        %8177 = vmatpush.bf16.msra.mxu0 %v5492
        %8178 = vmatpush.bf16.msra.mxu0 %v5490
        %8179 = vmatpush.bf16.msra.mxu0 %v5488
        %8180 = vmatpush.bf16.msra.mxu0 %v5486
        %8181 = vmatpush.bf16.msra.mxu0 %v5484
        %8182 = vmatpush.bf16.msra.mxu0 %v5482
        %8183 = vmatmul.bf16.gmra.mxu0 %v1351
        %v8184 = vpop.f32.mrf.mxu0
        %v8185 = vadd.f32 %v8172, %v8184
        %v8186 = vpop.f32.mrf.mxu0
        %8187 = vdwg.mxu0
        %8188 = vmatpush.bf16.msra.mxu0 %v5512
        %8189 = vmatpush.bf16.msra.mxu0 %v5510
        %8190 = vmatpush.bf16.msra.mxu0 %v5508
        %8191 = vmatpush.bf16.msra.mxu0 %v5506
        %8192 = vmatpush.bf16.msra.mxu0 %v5504
        %8193 = vmatpush.bf16.msra.mxu0 %v5502
        %8194 = vmatpush.bf16.msra.mxu0 %v5500
        %8195 = vmatpush.bf16.msra.mxu0 %v5498
        %8196 = vmatmul.bf16.gmra.mxu0 %v1352
        %v8197 = vpop.f32.mrf.mxu0
        %v8198 = vadd.f32 %v8185, %v8197
        %v8199 = vpop.f32.mrf.mxu0
        %8200 = vdwg.mxu0
        %v8203 = vrot.slane %v8198, 6
        %vm8204 = vcmask 1041408
        %v8205 = vsel %vm8204, %v7366, %v8203
        %v8207 = vadd.f32 %v240, %v8205
        %8208 = vst [vmem:[#allocation2] sm:$0xf] %v8207
        %p8209 = scmp.eq.s32.totalorder %s17, 3
        // Predicated region
        $region45: #{fishcnn_forward.7} parent=39 // pred_check
          %p8210 = pneg %p8209
        $region46: #{fishcnn_forward.7} parent=39 // pred_check_branch
          %8212 = sbr.rel (%p8210) target = $region48
        $region47: #{fishcnn_forward.7} parent=39 // pred_region
          %v8213 = vld [vmem:[#allocation2] sm:$0xf]
          %v8214 = vld [vmem:[%s2] sm:$0x3]
          %v8216 = vperm.slane %v8214, 0
          %v8217 = vperm.slane %v8214, 1
          %v8218 = vrot.slane %v8217, 6
          %v8219 = vsel %vm8204, %v8216, %v8218
          %v8221 = vadd.f32 %v8213, %v8219
          %v8222 = vmax.f32 %v8221, 0.0
          %v8223 = vld [vmem:[%s3] sm:$0xff]
          %v8224 = vld [vmem:[%s3 + $0x8] sm:$0xff]
          %v8225 = vld [vmem:[%s3 + $0x10] sm:$0xff]
          %v8226 = vld [vmem:[%s3 + $0x18] sm:$0xff]
          %v8227 = vld [vmem:[%s3 + $0x20] sm:$0xff]
          %v8228 = vld [vmem:[%s3 + $0x28] sm:$0xff]
          %v8229 = vld [vmem:[%s3 + $0x30] sm:$0xff]
          %v8230 = vld [vmem:[%s3 + $0x38] sm:$0xff]
          %v8231 = vld [vmem:[%s3 + $0x40] sm:$0xff]
          %v8232 = vld [vmem:[%s3 + $0x48] sm:$0xff]
          %v8233 = vld [vmem:[%s3 + $0x50] sm:$0xff]
          %v8234 = vld [vmem:[%s3 + $0x58] sm:$0xff]
          %v8235 = vld [vmem:[%s3 + $0x60] sm:$0xff]
          %v8236 = vld [vmem:[%s3 + $0x68] sm:$0xff]
          %v8237 = vld [vmem:[%s3 + $0x70] sm:$0xff]
          %v8238 = vld [vmem:[%s3 + $0x78] sm:$0xff]
          %v8239 = vld [vmem:[%s3 + $0x80] sm:$0xff]
          %v8240 = vld [vmem:[%s3 + $0x88] sm:$0xff]
          %v8241 = vld [vmem:[%s3 + $0x90] sm:$0xff]
          %v8242 = vld [vmem:[%s3 + $0x98] sm:$0xff]
          %v8243 = vld [vmem:[%s3 + $0xa0] sm:$0xff]
          %v8244 = vld [vmem:[%s3 + $0xa8] sm:$0xff]
          %v8245 = vld [vmem:[%s3 + $0xb0] sm:$0xff]
          %v8246 = vld [vmem:[%s3 + $0xb8] sm:$0xff]
          %v8247 = vld [vmem:[%s3 + $0xc0] sm:$0xff]
          %v8248 = vld [vmem:[%s3 + $0xc8] sm:$0xff]
          %v8249 = vld [vmem:[%s3 + $0xd0] sm:$0xff]
          %v8250 = vld [vmem:[%s3 + $0xd8] sm:$0xff]
          %v8251 = vld [vmem:[%s3 + $0xe0] sm:$0xff]
          %v8252 = vld [vmem:[%s3 + $0xe8] sm:$0xff]
          %v8253 = vld [vmem:[%s3 + $0xf0] sm:$0xff]
          %v8254 = vld [vmem:[%s3 + $0xf8] sm:$0xff]
          %v8255 = vld [vmem:[%s4] sm:$0x1]
          %v8257 = vperm.slane %v8255, 0
          %8260 = vst [vmem:[#allocation1] ss:$4 sm:$0xff] %v8222
          %v8261 = vld.sshfl [vmem:[#allocation1] sm:$0xff pattern:$0x73625140]
          %v8262 = vld.sshfl [vmem:[#allocation1 + $0x8] sm:$0xff pattern:$0x73625140]
          %8265 = vmatpush.msra.mxu0 %v8238
          %8266 = vmatpush.msra.mxu0 %v8237
          %8267 = vmatpush.msra.mxu0 %v8236
          %8268 = vmatpush.msra.mxu0 %v8235
          %8269 = vmatpush.msra.mxu0 %v8234
          %8270 = vmatpush.msra.mxu0 %v8233
          %8271 = vmatpush.msra.mxu0 %v8232
          %8272 = vmatpush.msra.mxu0 %v8231
          %8273 = vmatpush.msra.mxu0 %v8230
          %8274 = vmatpush.msra.mxu0 %v8229
          %8275 = vmatpush.msra.mxu0 %v8228
          %8276 = vmatpush.msra.mxu0 %v8227
          %8277 = vmatpush.msra.mxu0 %v8226
          %8278 = vmatpush.msra.mxu0 %v8225
          %8279 = vmatpush.msra.mxu0 %v8224
          %8280 = vmatpush.msra.mxu0 %v8223
          %8281 = vmatmul.f32.gmra.mxu0 %v8261
          %v8282 = vpop.f32.mrf.mxu0
          %v8283 = vadd.f32 %v8257, %v8282
          %8284 = vdwg.mxu0
          %8285 = vmatpush.msra.mxu0 %v8254
          %8286 = vmatpush.msra.mxu0 %v8253
          %8287 = vmatpush.msra.mxu0 %v8252
          %8288 = vmatpush.msra.mxu0 %v8251
          %8289 = vmatpush.msra.mxu0 %v8250
          %8290 = vmatpush.msra.mxu0 %v8249
          %8291 = vmatpush.msra.mxu0 %v8248
          %8292 = vmatpush.msra.mxu0 %v8247
          %8293 = vmatpush.msra.mxu0 %v8246
          %8294 = vmatpush.msra.mxu0 %v8245
          %8295 = vmatpush.msra.mxu0 %v8244
          %8296 = vmatpush.msra.mxu0 %v8243
          %8297 = vmatpush.msra.mxu0 %v8242
          %8298 = vmatpush.msra.mxu0 %v8241
          %8299 = vmatpush.msra.mxu0 %v8240
          %8300 = vmatpush.msra.mxu0 %v8239
          %8301 = vmatmul.f32.gmra.mxu0 %v8262
          %v8302 = vpop.f32.mrf.mxu0
          %v8303 = vadd.f32 %v8283, %v8302
          %8304 = vdwg.mxu0
          %vm8305 = vcmask 74752
          %8306 = vst.msk [vmem:[#allocation3] sm:$0x3] %vm8305, %v8303
        $region48: #{fishcnn_forward.7} parent=39 // pred_fallthru
          _
        // Predicated region
        $region49: #{fishcnn_forward.7} parent=39 // pred_check
          %p8307 = pneg %p145
        $region50: #{fishcnn_forward.7} parent=39 // pred_check_branch
          %8309 = sbr.rel (%p8307) target = $region52
        $region51: #{fishcnn_forward.7} parent=39 // pred_region
          %8311 = vsyncadd [#allocation4], 0
          %s8313 = sshll.u32 [#allocation3], 4
          %s8314 = int_to_ptr.vmem [resolvable:$true] %s8313
          %s8315 = sshll.u32 %s5, 4
          %s8316 = int_to_ptr.hbm [resolvable:$true] %s8315
          %8318 = dma.vmem_to_hbm [thread:$0]  %s8314, 32, %s8316, [#allocation4]
        $region52: #{fishcnn_forward.7} parent=39 // pred_fallthru
          _
        // Predicated region
        $region53: #{fishcnn_forward.7} parent=39 // pred_check
          %p8319 = pneg %p145
        $region54: #{fishcnn_forward.7} parent=39 // pred_check_branch
          %8321 = sbr.rel (%p8319) target = $region56
        $region55: #{fishcnn_forward.7} parent=39 // pred_region
          %8323 = dma.done [#allocation4], 32
        $region56: #{fishcnn_forward.7} parent=39 // pred_fallthru
          _
      $region40: #{fishcnn_forward.7} parent=5 // pred_fallthru
        _
      %p8324 = scmp.le.s32.totalorder 2, %s12
      // Predicated region
      $region57: #{fishcnn_forward.7} parent=5 // pred_check
        %p8325 = pneg %p8324
      $region58: #{fishcnn_forward.7} parent=5 // pred_check_branch
        %8327 = sbr.rel (%p8325) target = $region60
      $region59: #{fishcnn_forward.7} parent=5 // pred_region
        %s8328 = ssub.s32 %s12, 2
      $region60: #{fishcnn_forward.7} parent=5 // pred_fallthru
        _
    $region6: #{fishcnn_forward.7} parent=1 // loop_footer
      %s16 = sadd.s32 1, %s12
    $region7: #{fishcnn_forward.7} parent=1 // loop_footer_branch
      %11 = sbr.rel target = $region3
    $region8: #{fishcnn_forward.7} parent=1 // loop_exit
      _
    %8329 = vsyncpa [#allocation4], 1
    %s8330 = scalar_lea.sflag [#allocation4], 1
    %8331 = vsyncpa %s8330, 1

</llo_original>
